<compile_context>
chip_gen: v7x
topology: tpu7x:2x2x1
jax: 0.10.0
libtpu: 0.0.40
codegen_flags: <defaults>
</compile_context>

<pallas_src>
import numpy as np
import jax
import jax.numpy as jnp
from jax import lax
from jax.experimental import pallas as pl
from jax.experimental.pallas import tpu as pltpu

# --- sizes (small, consistent with the module's forward) -------------------
V = 32    # vocab_size
E = 16    # embed_size
H = 32    # num_hiddens
L = 2     # num_layers (kernel is written for 2 layers)
B = 4     # batch
BP = 8    # batch padded to a full sublane
T = 6     # decoder num_steps
TK = 10   # encoder sequence length (num key/value positions)


# --- Pallas kernel ----------------------------------------------------------
def decoder_kernel(x_ref, enc_ref, keys_ref, mask_ref, h0_ref, h1_ref,
                   wq_whh1_ref, wv_ref,
                   wih0c_ref, wih0x_ref, whh0_ref, bi0_ref, bhn0_ref,
                   wih1_ref, bi1_ref, bhn1_ref,
                   wd_ref, bd_ref,
                   logits_ref, attn_ref, hout_ref):
    # ---- hoist all time-invariant loads out of the recurrence ----
    enc = enc_ref[...]              # (BP, TK, H) values
    keys = keys_ref[...]            # (BP, TK, H) pre-projected keys (enc @ W_k, done once)
    mask = mask_ref[...]            # (BP, TK) additive softmax bias (0 / -1e6)
    wv = wv_ref[...]                # (1, H)  scoring vector
    wq_whh1 = wq_whh1_ref[...]      # (H, 4H) fused [W_q | W_hh layer1] -> 128-lane result
    wih0c = wih0c_ref[...]          # (H, 3H)  GRU0 input weights (context part)
    wih0x = wih0x_ref[...]          # (E, 3H)  GRU0 input weights (embedding part)
    whh0 = whh0_ref[...]            # (H, 3H)
    bi0 = bi0_ref[...]              # (1, 3H)  b_ih0 with b_hh0 folded into r,z gates
    bhn0 = bhn0_ref[...]            # (1, H)   b_hh0 n-gate (stays inside r * (.))
    wih1 = wih1_ref[...]            # (H, 3H)
    bi1 = bi1_ref[...]              # (1, 3H)
    bhn1 = bhn1_ref[...]            # (1, H)
    wd = wd_ref[...]                # (H, V)
    bd = bd_ref[...]                # (1, V)

    def step(t, carry):
        h0, h1 = carry                                            # (BP, H) each

        # fused: query projection + layer-1 hidden gates (both contract prev h1)
        comb = jnp.dot(h1, wq_whh1, preferred_element_type=jnp.float32)   # (BP, 4H)=(8,128)
        q = comb[:, :H]                                           # (BP, H)
        gh1 = comb[:, H:]                                         # (BP, 3H)

        # ---- additive attention: w_v^T tanh(W_q q + W_k k) ----
        feat = jnp.tanh(q[:, None, :] + keys)                     # (BP, TK, H)
        scores = jnp.sum(feat * wv, axis=-1) + mask                # VPU mul + lane reduce
        scores = scores - jnp.max(scores, axis=-1, keepdims=True)
        e = jnp.exp(scores)
        attn = e * pl.reciprocal(jnp.sum(e, axis=-1, keepdims=True), approx=True)  # (BP, TK)

        # context = attn @ values
        context = jnp.sum(attn[:, :, None] * enc, axis=1)          # (BP, H)

        # ---- GRU layer 0 (input = [context | embedded token], concat avoided) ----
        x = x_ref[t]                                               # (BP, E)
        gi0 = (jnp.dot(context, wih0c, preferred_element_type=jnp.float32)
               + jnp.dot(x, wih0x, preferred_element_type=jnp.float32) + bi0)
        gh0 = jnp.dot(h0, whh0, preferred_element_type=jnp.float32)
        r0 = jax.nn.sigmoid(gi0[:, :H] + gh0[:, :H])
        z0 = jax.nn.sigmoid(gi0[:, H:2 * H] + gh0[:, H:2 * H])
        n0 = jnp.tanh(gi0[:, 2 * H:] + r0 * (gh0[:, 2 * H:] + bhn0))
        h0n = (1.0 - z0) * n0 + z0 * h0

        # ---- GRU layer 1 (hidden gates gh1 already computed in the fused matmul) ----
        gi1 = jnp.dot(h0n, wih1, preferred_element_type=jnp.float32) + bi1
        r1 = jax.nn.sigmoid(gi1[:, :H] + gh1[:, :H])
        z1 = jax.nn.sigmoid(gi1[:, H:2 * H] + gh1[:, H:2 * H])
        n1 = jnp.tanh(gi1[:, 2 * H:] + r1 * (gh1[:, 2 * H:] + bhn1))
        h1n = (1.0 - z1) * n1 + z1 * h1

        # ---- dense projection to vocab; per-step writes land in VMEM output block ----
        logits_ref[t] = jnp.dot(h1n, wd, preferred_element_type=jnp.float32) + bd
        attn_ref[t] = attn
        return (h0n, h1n)

    h0f, h1f = lax.fori_loop(0, T, step, (h0_ref[...], h1_ref[...]), unroll=True)
    hout_ref[0] = h0f
    hout_ref[1] = h1f


# --- wrapper ----------------------------------------------------------------
def decoder_forward(X_tokens, enc_outputs, enc_valid_lens, hidden_state, p):
    emb = p['emb'][X_tokens]                      # (B, T, E)  embedding lookup (glue)
    x_tm = jnp.transpose(emb, (1, 0, 2))          # (T, B, E)  time-major

    # ---- pad batch to a full sublane (BP=8); pad rows are discarded at the end ----
    padB = BP - B
    x_p = jnp.pad(x_tm, ((0, 0), (0, padB), (0, 0)))
    enc_p = jnp.pad(enc_outputs, ((0, padB), (0, 0), (0, 0)))
    h0_p = jnp.pad(hidden_state[0], ((0, padB), (0, 0)))
    h1_p = jnp.pad(hidden_state[1], ((0, padB), (0, 0)))

    # ---- hoisted time-invariant work (done once, outside the recurrence) ----
    keys_p = jnp.einsum('bkh,hj->bkj', enc_p, p['wk'])            # key projection, once
    vl = enc_valid_lens.astype(jnp.float32)
    mask = jnp.where(jnp.arange(TK, dtype=jnp.float32)[None, :] < vl[:, None], 0.0, -1e6)
    mask_p = jnp.pad(mask, ((0, padB), (0, 0)))                   # (BP, TK) additive bias

    # ---- fused / folded weights ----
    wq_whh1 = jnp.concatenate([p['wq'], p['whh1']], axis=1)       # (H, 4H) = (32, 128)
    wv_row = p['wv'].reshape(1, H)
    zH = jnp.zeros((1, H), jnp.float32)
    bi0 = p['bih0'] + jnp.concatenate([p['bhh0'][:, :2 * H], zH], axis=1)
    bhn0 = p['bhh0'][:, 2 * H:]
    bi1 = p['bih1'] + jnp.concatenate([p['bhh1'][:, :2 * H], zH], axis=1)
    bhn1 = p['bhh1'][:, 2 * H:]
    wih0c = p['wih0'][:H]                                          # (H, 3H)
    wih0x = p['wih0'][H:]                                          # (E, 3H)

    f3 = lambda i: (0, 0, 0)
    f2 = lambda i: (0, 0)
    in_specs = [
        pl.BlockSpec((T, BP, E), f3),      # embedded tokens, time-major
        pl.BlockSpec((BP, TK, H), f3),     # enc_outputs (values)
        pl.BlockSpec((BP, TK, H), f3),     # pre-projected keys
        pl.BlockSpec((BP, TK), f2),        # additive softmax mask
        pl.BlockSpec((BP, H), f2),         # h0 init
        pl.BlockSpec((BP, H), f2),         # h1 init
        pl.BlockSpec((H, 4 * H), f2),      # fused [W_q | W_hh1]
        pl.BlockSpec((1, H), f2),          # w_v (row)
        pl.BlockSpec((H, 3 * H), f2),      # GRU0 W_ih (context part)
        pl.BlockSpec((E, 3 * H), f2),      # GRU0 W_ih (embedding part)
        pl.BlockSpec((H, 3 * H), f2),      # GRU0 W_hh
        pl.BlockSpec((1, 3 * H), f2),      # GRU0 folded input bias
        pl.BlockSpec((1, H), f2),          # GRU0 b_hh n-gate
        pl.BlockSpec((H, 3 * H), f2),      # GRU1 W_ih
        pl.BlockSpec((1, 3 * H), f2),      # GRU1 folded input bias
        pl.BlockSpec((1, H), f2),          # GRU1 b_hh n-gate
        pl.BlockSpec((H, V), f2),          # dense W
        pl.BlockSpec((1, V), f2),          # dense b
    ]
    out_specs = [
        pl.BlockSpec((T, BP, V), f3),      # logits, written once in bulk
        pl.BlockSpec((T, BP, TK), f3),     # attention weights
        pl.BlockSpec((L, BP, H), f3),      # final hidden state
    ]
    out_shape = [
        jax.ShapeDtypeStruct((T, BP, V), jnp.float32),
        jax.ShapeDtypeStruct((T, BP, TK), jnp.float32),
        jax.ShapeDtypeStruct((L, BP, H), jnp.float32),
    ]

    logits_tm, attn_tm, h_final = pl.pallas_call(
        decoder_kernel,
        grid=(1,),
        in_specs=in_specs,
        out_specs=out_specs,
        out_shape=out_shape,
        compiler_params=pltpu.CompilerParams(dimension_semantics=("arbitrary",)),
    )(x_p, enc_p, keys_p, mask_p, h0_p, h1_p,
      wq_whh1, wv_row,
      wih0c, wih0x, p['whh0'], bi0, bhn0,
      p['wih1'], bi1, bhn1,
      p['wd'], p['bd'])

    outputs = jnp.transpose(logits_tm[:, :B], (1, 0, 2))           # (B, T, V)
    attn_w = jnp.transpose(attn_tm[:, :B], (1, 0, 2))              # (B, T, TK)
    h_fin = h_final[:, :B]                                         # (L, B, H)
    return outputs, (enc_outputs, h_fin, enc_valid_lens), attn_w


# --- pure-JAX reference (same math, original unfused weights) ---------------
def reference_forward(X_tokens, enc_outputs, enc_valid_lens, hidden_state, p):
    hi = lax.Precision.HIGHEST
    emb = p['emb'][X_tokens]
    x_tm = jnp.transpose(emb, (1, 0, 2))
    vl = enc_valid_lens.astype(jnp.float32).reshape(B, 1)
    h = hidden_state
    logits, attns = [], []

    def cell(xin, hh, wih, whh, bih, bhh):
        gi = jnp.dot(xin, wih, precision=hi) + bih
        gh = jnp.dot(hh, whh, precision=hi) + bhh
        r = jax.nn.sigmoid(gi[:, :H] + gh[:, :H])
        z = jax.nn.sigmoid(gi[:, H:2 * H] + gh[:, H:2 * H])
        n = jnp.tanh(gi[:, 2 * H:] + r * gh[:, 2 * H:])
        return (1.0 - z) * n + z * hh

    for t in range(T):
        q = jnp.dot(h[L - 1], p['wq'], precision=hi)
        k = jnp.einsum('bkh,hj->bkj', enc_outputs, p['wk'], precision=hi)
        feat = jnp.tanh(q[:, None, :] + k)
        scores = jnp.einsum('bkh,ho->bko', feat, p['wv'], precision=hi)[..., 0]
        pos = jnp.arange(TK, dtype=jnp.float32)[None, :]
        scores = jnp.where(pos < vl, scores, -1e6)
        scores = scores - jnp.max(scores, -1, keepdims=True)
        e = jnp.exp(scores)
        attn = e / jnp.sum(e, -1, keepdims=True)
        context = jnp.sum(attn[:, :, None] * enc_outputs, axis=1)
        inp = jnp.concatenate([context, x_tm[t]], axis=-1)
        h0n = cell(inp, h[0], p['wih0'], p['whh0'], p['bih0'], p['bhh0'])
        h1n = cell(h0n, h[1], p['wih1'], p['whh1'], p['bih1'], p['bhh1'])
        h = jnp.stack([h0n, h1n], axis=0)
        logits.append(jnp.dot(h1n, p['wd'], precision=hi) + p['bd'])
        attns.append(attn)
    return (jnp.transpose(jnp.stack(logits, 0), (1, 0, 2)), h,
            jnp.transpose(jnp.stack(attns, 0), (1, 0, 2)))


# --- deterministic parameter init -------------------------------------------
def init_params(key):
    ks = jax.random.split(key, 14)
    def n(k, shape, s=0.1):
        return (s * jax.random.normal(k, shape)).astype(jnp.float32)
    return dict(
        emb=n(ks[0], (V, E)),
        wq=n(ks[1], (H, H)), wk=n(ks[2], (H, H)), wv=n(ks[3], (H, 1)),
        wih0=n(ks[4], (H + E, 3 * H)), whh0=n(ks[5], (H, 3 * H)),
        bih0=n(ks[6], (1, 3 * H)), bhh0=n(ks[7], (1, 3 * H)),
        wih1=n(ks[8], (H, 3 * H)), whh1=n(ks[9], (H, 3 * H)),
        bih1=n(ks[10], (1, 3 * H)), bhh1=n(ks[11], (1, 3 * H)),
        wd=n(ks[12], (H, V)), bd=n(ks[13], (1, V)),
    )


if __name__ == "__main__":
    key = jax.random.PRNGKey(0)
    k_p, k_x, k_enc, k_h = jax.random.split(key, 4)

    params = init_params(k_p)
    X_tokens = jax.random.randint(k_x, (B, T), 0, V, dtype=jnp.int32)          # (B, T)
    enc_outputs = (0.1 * jax.random.normal(k_enc, (B, TK, H))).astype(jnp.float32)
    hidden_state = (0.1 * jax.random.normal(k_h, (L, B, H))).astype(jnp.float32)
    enc_valid_lens = jnp.array([10, 7, 4, 9], dtype=jnp.int32)

    outputs, (enc_o, h_fin, vlens), attn_w = decoder_forward(
        X_tokens, enc_outputs, enc_valid_lens, hidden_state, params)
    jax.block_until_ready((outputs, h_fin, attn_w))

    ref_out, ref_h, ref_attn = reference_forward(
        X_tokens, enc_outputs, enc_valid_lens, hidden_state, params)

    assert outputs.shape == (B, T, V)
    assert h_fin.shape == (L, B, H)
    assert attn_w.shape == (B, T, TK)
    np.testing.assert_allclose(np.asarray(outputs), np.asarray(ref_out), atol=1e-2, rtol=1e-2)
    np.testing.assert_allclose(np.asarray(h_fin), np.asarray(ref_h), atol=1e-2, rtol=1e-2)
    np.testing.assert_allclose(np.asarray(attn_w), np.asarray(ref_attn), atol=1e-2, rtol=1e-2)

    print("KERNEL_OK")
</pallas_src>

<mosaic_0001>
module attributes {stable_mosaic.version = 11 : i64} {
  func.func @decoder_kernel(%arg0: i32, %arg1: memref<6x8x16xf32, #tpu.memory_space<vmem>>, %arg2: memref<8x10x32xf32, #tpu.memory_space<vmem>>, %arg3: memref<8x10x32xf32, #tpu.memory_space<vmem>>, %arg4: memref<8x10xf32, #tpu.memory_space<vmem>>, %arg5: memref<8x32xf32, #tpu.memory_space<vmem>>, %arg6: memref<8x32xf32, #tpu.memory_space<vmem>>, %arg7: memref<32x128xf32, #tpu.memory_space<vmem>>, %arg8: memref<1x32xf32, #tpu.memory_space<vmem>>, %arg9: memref<32x96xf32, #tpu.memory_space<vmem>>, %arg10: memref<16x96xf32, #tpu.memory_space<vmem>>, %arg11: memref<32x96xf32, #tpu.memory_space<vmem>>, %arg12: memref<1x96xf32, #tpu.memory_space<vmem>>, %arg13: memref<1x32xf32, #tpu.memory_space<vmem>>, %arg14: memref<32x96xf32, #tpu.memory_space<vmem>>, %arg15: memref<1x96xf32, #tpu.memory_space<vmem>>, %arg16: memref<1x32xf32, #tpu.memory_space<vmem>>, %arg17: memref<32x32xf32, #tpu.memory_space<vmem>>, %arg18: memref<1x32xf32, #tpu.memory_space<vmem>>, %arg19: memref<6x8x32xf32, #tpu.memory_space<vmem>>, %arg20: memref<6x8x10xf32, #tpu.memory_space<vmem>>, %arg21: memref<2x8x32xf32, #tpu.memory_space<vmem>>) attributes {dimension_semantics = [#tpu.dimension_semantics<arbitrary>], iteration_bounds = array<i64: 1>, scalar_prefetch = 0 : i64, scratch_operands = 0 : i64, tpu.core_type = #tpu.core_type<tc>, window_params = [{pipeline_mode = #tpu.pipeline_mode<synchronous>, transform_indices = @transform_0, window_bounds = array<i64: 6, 8, 16>}, {pipeline_mode = #tpu.pipeline_mode<synchronous>, transform_indices = @transform_1, window_bounds = array<i64: 8, 10, 32>}, {pipeline_mode = #tpu.pipeline_mode<synchronous>, transform_indices = @transform_2, window_bounds = array<i64: 8, 10, 32>}, {pipeline_mode = #tpu.pipeline_mode<synchronous>, transform_indices = @transform_3, window_bounds = array<i64: 8, 10>}, {pipeline_mode = #tpu.pipeline_mode<synchronous>, transform_indices = @transform_4, window_bounds = array<i64: 8, 32>}, {pipeline_mode = #tpu.pipeline_mode<synchronous>, transform_indices = @transform_5, window_bounds = array<i64: 8, 32>}, {pipeline_mode = #tpu.pipeline_mode<synchronous>, transform_indices = @transform_6, window_bounds = array<i64: 32, 128>}, {pipeline_mode = #tpu.pipeline_mode<synchronous>, transform_indices = @transform_7, window_bounds = array<i64: 1, 32>}, {pipeline_mode = #tpu.pipeline_mode<synchronous>, transform_indices = @transform_8, window_bounds = array<i64: 32, 96>}, {pipeline_mode = #tpu.pipeline_mode<synchronous>, transform_indices = @transform_9, window_bounds = array<i64: 16, 96>}, {pipeline_mode = #tpu.pipeline_mode<synchronous>, transform_indices = @transform_10, window_bounds = array<i64: 32, 96>}, {pipeline_mode = #tpu.pipeline_mode<synchronous>, transform_indices = @transform_11, window_bounds = array<i64: 1, 96>}, {pipeline_mode = #tpu.pipeline_mode<synchronous>, transform_indices = @transform_12, window_bounds = array<i64: 1, 32>}, {pipeline_mode = #tpu.pipeline_mode<synchronous>, transform_indices = @transform_13, window_bounds = array<i64: 32, 96>}, {pipeline_mode = #tpu.pipeline_mode<synchronous>, transform_indices = @transform_14, window_bounds = array<i64: 1, 96>}, {pipeline_mode = #tpu.pipeline_mode<synchronous>, transform_indices = @transform_15, window_bounds = array<i64: 1, 32>}, {pipeline_mode = #tpu.pipeline_mode<synchronous>, transform_indices = @transform_16, window_bounds = array<i64: 32, 32>}, {pipeline_mode = #tpu.pipeline_mode<synchronous>, transform_indices = @transform_17, window_bounds = array<i64: 1, 32>}, {pipeline_mode = #tpu.pipeline_mode<synchronous>, transform_indices = @transform_18, window_bounds = array<i64: 6, 8, 32>}, {pipeline_mode = #tpu.pipeline_mode<synchronous>, transform_indices = @transform_19, window_bounds = array<i64: 6, 8, 10>}, {pipeline_mode = #tpu.pipeline_mode<synchronous>, transform_indices = @transform_20, window_bounds = array<i64: 2, 8, 32>}]} {
    %c0 = arith.constant 0 : index
    %c0_0 = arith.constant 0 : index
    %c0_1 = arith.constant 0 : index
    %0 = vector.load %arg2[%c0, %c0_0, %c0_1] : memref<8x10x32xf32, #tpu.memory_space<vmem>>, vector<8x10x32xf32>
    %c0_2 = arith.constant 0 : index
    %c0_3 = arith.constant 0 : index
    %c0_4 = arith.constant 0 : index
    %1 = vector.load %arg3[%c0_2, %c0_3, %c0_4] : memref<8x10x32xf32, #tpu.memory_space<vmem>>, vector<8x10x32xf32>
    %c0_5 = arith.constant 0 : index
    %c0_6 = arith.constant 0 : index
    %2 = vector.load %arg4[%c0_5, %c0_6] : memref<8x10xf32, #tpu.memory_space<vmem>>, vector<8x10xf32>
    %c0_7 = arith.constant 0 : index
    %c0_8 = arith.constant 0 : index
    %3 = vector.load %arg8[%c0_7, %c0_8] : memref<1x32xf32, #tpu.memory_space<vmem>>, vector<1x32xf32>
    %c0_9 = arith.constant 0 : index
    %c0_10 = arith.constant 0 : index
    %4 = vector.load %arg7[%c0_9, %c0_10] : memref<32x128xf32, #tpu.memory_space<vmem>>, vector<32x128xf32>
    %c0_11 = arith.constant 0 : index
    %c0_12 = arith.constant 0 : index
    %5 = vector.load %arg9[%c0_11, %c0_12] : memref<32x96xf32, #tpu.memory_space<vmem>>, vector<32x96xf32>
    %c0_13 = arith.constant 0 : index
    %c0_14 = arith.constant 0 : index
    %6 = vector.load %arg10[%c0_13, %c0_14] : memref<16x96xf32, #tpu.memory_space<vmem>>, vector<16x96xf32>
    %c0_15 = arith.constant 0 : index
    %c0_16 = arith.constant 0 : index
    %7 = vector.load %arg11[%c0_15, %c0_16] : memref<32x96xf32, #tpu.memory_space<vmem>>, vector<32x96xf32>
    %c0_17 = arith.constant 0 : index
    %c0_18 = arith.constant 0 : index
    %8 = vector.load %arg12[%c0_17, %c0_18] : memref<1x96xf32, #tpu.memory_space<vmem>>, vector<1x96xf32>
    %c0_19 = arith.constant 0 : index
    %c0_20 = arith.constant 0 : index
    %9 = vector.load %arg13[%c0_19, %c0_20] : memref<1x32xf32, #tpu.memory_space<vmem>>, vector<1x32xf32>
    %c0_21 = arith.constant 0 : index
    %c0_22 = arith.constant 0 : index
    %10 = vector.load %arg14[%c0_21, %c0_22] : memref<32x96xf32, #tpu.memory_space<vmem>>, vector<32x96xf32>
    %c0_23 = arith.constant 0 : index
    %c0_24 = arith.constant 0 : index
    %11 = vector.load %arg15[%c0_23, %c0_24] : memref<1x96xf32, #tpu.memory_space<vmem>>, vector<1x96xf32>
    %c0_25 = arith.constant 0 : index
    %c0_26 = arith.constant 0 : index
    %12 = vector.load %arg16[%c0_25, %c0_26] : memref<1x32xf32, #tpu.memory_space<vmem>>, vector<1x32xf32>
    %c0_27 = arith.constant 0 : index
    %c0_28 = arith.constant 0 : index
    %13 = vector.load %arg17[%c0_27, %c0_28] : memref<32x32xf32, #tpu.memory_space<vmem>>, vector<32x32xf32>
    %c0_29 = arith.constant 0 : index
    %c0_30 = arith.constant 0 : index
    %14 = vector.load %arg18[%c0_29, %c0_30] : memref<1x32xf32, #tpu.memory_space<vmem>>, vector<1x32xf32>
    %c0_31 = arith.constant 0 : index
    %c0_32 = arith.constant 0 : index
    %15 = vector.load %arg5[%c0_31, %c0_32] : memref<8x32xf32, #tpu.memory_space<vmem>>, vector<8x32xf32>
    %c0_33 = arith.constant 0 : index
    %c0_34 = arith.constant 0 : index
    %16 = vector.load %arg6[%c0_33, %c0_34] : memref<8x32xf32, #tpu.memory_space<vmem>>, vector<8x32xf32>
    %c0_i32 = arith.constant 0 : i32
    %cst = arith.constant dense<0.000000e+00> : vector<8x128xf32>
    %17 = tpu.matmul %16, %4, %cst {dimension_numbers = #tpu.dot_dimension_numbers<[1], [0], [0], [1], [0, 0, 1, 1], [], []>} : vector<8x32xf32>, vector<32x128xf32>, vector<8x128xf32> -> vector<8x128xf32>
    %18 = vector.extract_strided_slice %17 {offsets = [0, 0], sizes = [8, 32], strides = [1, 1]} : vector<8x128xf32> to vector<8x32xf32>
    %19 = vector.extract_strided_slice %17 {offsets = [0, 32], sizes = [8, 96], strides = [1, 1]} : vector<8x128xf32> to vector<8x96xf32>
    %20 = vector.shape_cast %18 : vector<8x32xf32> to vector<8x1x32xf32>
    %21 = vector.broadcast %20 : vector<8x1x32xf32> to vector<8x10x32xf32>
    %22 = arith.addf %21, %1 : vector<8x10x32xf32>
    %23 = math.tanh %22 : vector<8x10x32xf32>
    %24 = vector.shape_cast %3 : vector<1x32xf32> to vector<1x1x32xf32>
    %25 = vector.broadcast %24 : vector<1x1x32xf32> to vector<8x10x32xf32>
    %26 = arith.mulf %23, %25 : vector<8x10x32xf32>
    %cst_35 = arith.constant dense<0.000000e+00> : vector<8x10xf32>
    %27 = vector.multi_reduction <add>, %26, %cst_35 [2] : vector<8x10x32xf32> to vector<8x10xf32>
    %28 = arith.addf %27, %2 : vector<8x10xf32>
    %cst_36 = arith.constant dense<0xFF800000> : vector<8xf32>
    %29 = vector.multi_reduction <maximumf>, %28, %cst_36 [1] : vector<8x10xf32> to vector<8xf32>
    %30 = vector.shape_cast %29 : vector<8xf32> to vector<8x1xf32>
    %31 = vector.broadcast %30 : vector<8x1xf32> to vector<8x10xf32>
    %32 = arith.subf %28, %31 : vector<8x10xf32>
    %33 = math.exp %32 : vector<8x10xf32>
    %cst_37 = arith.constant dense<0.000000e+00> : vector<8xf32>
    %34 = vector.multi_reduction <add>, %33, %cst_37 [1] : vector<8x10xf32> to vector<8xf32>
    %35 = vector.shape_cast %34 : vector<8xf32> to vector<8x1xf32>
    %36 = tpu.reciprocal %35 {approx = true} : vector<8x1xf32> -> vector<8x1xf32>
    %37 = vector.broadcast %36 : vector<8x1xf32> to vector<8x10xf32>
    %38 = arith.mulf %33, %37 : vector<8x10xf32>
    %39 = vector.shape_cast %38 : vector<8x10xf32> to vector<8x10x1xf32>
    %40 = vector.broadcast %39 : vector<8x10x1xf32> to vector<8x10x32xf32>
    %41 = arith.mulf %40, %0 : vector<8x10x32xf32>
    %cst_38 = arith.constant dense<0.000000e+00> : vector<8x32xf32>
    %42 = vector.multi_reduction <add>, %41, %cst_38 [1] : vector<8x10x32xf32> to vector<8x32xf32>
    %43 = arith.index_cast %c0_i32 : i32 to index
    %c0_39 = arith.constant 0 : index
    %c0_40 = arith.constant 0 : index
    %44 = vector.load %arg1[%43, %c0_39, %c0_40] : memref<6x8x16xf32, #tpu.memory_space<vmem>>, vector<1x8x16xf32>
    %45 = vector.shape_cast %44 : vector<1x8x16xf32> to vector<8x16xf32>
    %cst_41 = arith.constant dense<0.000000e+00> : vector<8x96xf32>
    %46 = tpu.matmul %42, %5, %cst_41 {dimension_numbers = #tpu.dot_dimension_numbers<[1], [0], [0], [1], [0, 0, 1, 1], [], []>} : vector<8x32xf32>, vector<32x96xf32>, vector<8x96xf32> -> vector<8x96xf32>
    %cst_42 = arith.constant dense<0.000000e+00> : vector<8x96xf32>
    %47 = tpu.matmul %45, %6, %cst_42 {dimension_numbers = #tpu.dot_dimension_numbers<[1], [0], [0], [1], [0, 0, 1, 1], [], []>} : vector<8x16xf32>, vector<16x96xf32>, vector<8x96xf32> -> vector<8x96xf32>
    %48 = arith.addf %46, %47 : vector<8x96xf32>
    %49 = vector.broadcast %8 : vector<1x96xf32> to vector<8x96xf32>
    %50 = arith.addf %48, %49 : vector<8x96xf32>
    %cst_43 = arith.constant dense<0.000000e+00> : vector<8x96xf32>
    %51 = tpu.matmul %15, %7, %cst_43 {dimension_numbers = #tpu.dot_dimension_numbers<[1], [0], [0], [1], [0, 0, 1, 1], [], []>} : vector<8x32xf32>, vector<32x96xf32>, vector<8x96xf32> -> vector<8x96xf32>
    %52 = vector.extract_strided_slice %50 {offsets = [0, 0], sizes = [8, 32], strides = [1, 1]} : vector<8x96xf32> to vector<8x32xf32>
    %53 = vector.extract_strided_slice %51 {offsets = [0, 0], sizes = [8, 32], strides = [1, 1]} : vector<8x96xf32> to vector<8x32xf32>
    %54 = arith.addf %52, %53 : vector<8x32xf32>
    %55 = arith.negf %54 : vector<8x32xf32>
    %56 = math.exp %55 : vector<8x32xf32>
    %cst_44 = arith.constant 1.000000e+00 : f32
    %57 = vector.broadcast %cst_44 : f32 to vector<8x32xf32>
    %58 = arith.addf %57, %56 : vector<8x32xf32>
    %59 = arith.divf %57, %58 : vector<8x32xf32>
    %60 = vector.extract_strided_slice %50 {offsets = [0, 32], sizes = [8, 32], strides = [1, 1]} : vector<8x96xf32> to vector<8x32xf32>
    %61 = vector.extract_strided_slice %51 {offsets = [0, 32], sizes = [8, 32], strides = [1, 1]} : vector<8x96xf32> to vector<8x32xf32>
    %62 = arith.addf %60, %61 : vector<8x32xf32>
    %63 = arith.negf %62 : vector<8x32xf32>
    %64 = math.exp %63 : vector<8x32xf32>
    %cst_45 = arith.constant 1.000000e+00 : f32
    %65 = vector.broadcast %cst_45 : f32 to vector<8x32xf32>
    %66 = arith.addf %65, %64 : vector<8x32xf32>
    %67 = arith.divf %65, %66 : vector<8x32xf32>
    %68 = vector.extract_strided_slice %50 {offsets = [0, 64], sizes = [8, 32], strides = [1, 1]} : vector<8x96xf32> to vector<8x32xf32>
    %69 = vector.extract_strided_slice %51 {offsets = [0, 64], sizes = [8, 32], strides = [1, 1]} : vector<8x96xf32> to vector<8x32xf32>
    %70 = vector.broadcast %9 : vector<1x32xf32> to vector<8x32xf32>
    %71 = arith.addf %69, %70 : vector<8x32xf32>
    %72 = arith.mulf %59, %71 : vector<8x32xf32>
    %73 = arith.addf %68, %72 : vector<8x32xf32>
    %74 = math.tanh %73 : vector<8x32xf32>
    %cst_46 = arith.constant 1.000000e+00 : f32
    %75 = vector.broadcast %cst_46 : f32 to vector<8x32xf32>
    %76 = arith.subf %75, %67 : vector<8x32xf32>
    %77 = arith.mulf %76, %74 : vector<8x32xf32>
    %78 = arith.mulf %67, %15 : vector<8x32xf32>
    %79 = arith.addf %77, %78 : vector<8x32xf32>
    %cst_47 = arith.constant dense<0.000000e+00> : vector<8x96xf32>
    %80 = tpu.matmul %79, %10, %cst_47 {dimension_numbers = #tpu.dot_dimension_numbers<[1], [0], [0], [1], [0, 0, 1, 1], [], []>} : vector<8x32xf32>, vector<32x96xf32>, vector<8x96xf32> -> vector<8x96xf32>
    %81 = vector.broadcast %11 : vector<1x96xf32> to vector<8x96xf32>
    %82 = arith.addf %80, %81 : vector<8x96xf32>
    %83 = vector.extract_strided_slice %82 {offsets = [0, 0], sizes = [8, 32], strides = [1, 1]} : vector<8x96xf32> to vector<8x32xf32>
    %84 = vector.extract_strided_slice %19 {offsets = [0, 0], sizes = [8, 32], strides = [1, 1]} : vector<8x96xf32> to vector<8x32xf32>
    %85 = arith.addf %83, %84 : vector<8x32xf32>
    %86 = arith.negf %85 : vector<8x32xf32>
    %87 = math.exp %86 : vector<8x32xf32>
    %cst_48 = arith.constant 1.000000e+00 : f32
    %88 = vector.broadcast %cst_48 : f32 to vector<8x32xf32>
    %89 = arith.addf %88, %87 : vector<8x32xf32>
    %90 = arith.divf %88, %89 : vector<8x32xf32>
    %91 = vector.extract_strided_slice %82 {offsets = [0, 32], sizes = [8, 32], strides = [1, 1]} : vector<8x96xf32> to vector<8x32xf32>
    %92 = vector.extract_strided_slice %19 {offsets = [0, 32], sizes = [8, 32], strides = [1, 1]} : vector<8x96xf32> to vector<8x32xf32>
    %93 = arith.addf %91, %92 : vector<8x32xf32>
    %94 = arith.negf %93 : vector<8x32xf32>
    %95 = math.exp %94 : vector<8x32xf32>
    %cst_49 = arith.constant 1.000000e+00 : f32
    %96 = vector.broadcast %cst_49 : f32 to vector<8x32xf32>
    %97 = arith.addf %96, %95 : vector<8x32xf32>
    %98 = arith.divf %96, %97 : vector<8x32xf32>
    %99 = vector.extract_strided_slice %82 {offsets = [0, 64], sizes = [8, 32], strides = [1, 1]} : vector<8x96xf32> to vector<8x32xf32>
    %100 = vector.extract_strided_slice %19 {offsets = [0, 64], sizes = [8, 32], strides = [1, 1]} : vector<8x96xf32> to vector<8x32xf32>
    %101 = vector.broadcast %12 : vector<1x32xf32> to vector<8x32xf32>
    %102 = arith.addf %100, %101 : vector<8x32xf32>
    %103 = arith.mulf %90, %102 : vector<8x32xf32>
    %104 = arith.addf %99, %103 : vector<8x32xf32>
    %105 = math.tanh %104 : vector<8x32xf32>
    %cst_50 = arith.constant 1.000000e+00 : f32
    %106 = vector.broadcast %cst_50 : f32 to vector<8x32xf32>
    %107 = arith.subf %106, %98 : vector<8x32xf32>
    %108 = arith.mulf %107, %105 : vector<8x32xf32>
    %109 = arith.mulf %98, %16 : vector<8x32xf32>
    %110 = arith.addf %108, %109 : vector<8x32xf32>
    %cst_51 = arith.constant dense<0.000000e+00> : vector<8x32xf32>
    %111 = tpu.matmul %110, %13, %cst_51 {dimension_numbers = #tpu.dot_dimension_numbers<[1], [0], [0], [1], [0, 0, 1, 1], [], []>} : vector<8x32xf32>, vector<32x32xf32>, vector<8x32xf32> -> vector<8x32xf32>
    %112 = vector.broadcast %14 : vector<1x32xf32> to vector<8x32xf32>
    %113 = arith.addf %111, %112 : vector<8x32xf32>
    %114 = arith.index_cast %c0_i32 : i32 to index
    %c0_52 = arith.constant 0 : index
    %c0_53 = arith.constant 0 : index
    %115 = vector.load %arg19[%114, %c0_52, %c0_53] : memref<6x8x32xf32, #tpu.memory_space<vmem>>, vector<1x8x32xf32>
    %116 = vector.shape_cast %115 : vector<1x8x32xf32> to vector<8x32xf32>
    %117 = vector.shape_cast %113 : vector<8x32xf32> to vector<1x8x32xf32>
    tpu.vector_store %arg19[%114, %c0_52, %c0_53], %117 {strides = array<i32>} : memref<6x8x32xf32, #tpu.memory_space<vmem>>, vector<1x8x32xf32>,
    %118 = arith.index_cast %c0_i32 : i32 to index
    %c0_54 = arith.constant 0 : index
    %c0_55 = arith.constant 0 : index
    %119 = vector.load %arg20[%118, %c0_54, %c0_55] : memref<6x8x10xf32, #tpu.memory_space<vmem>>, vector<1x8x10xf32>
    %120 = vector.shape_cast %119 : vector<1x8x10xf32> to vector<8x10xf32>
    %121 = vector.shape_cast %38 : vector<8x10xf32> to vector<1x8x10xf32>
    tpu.vector_store %arg20[%118, %c0_54, %c0_55], %121 {strides = array<i32>} : memref<6x8x10xf32, #tpu.memory_space<vmem>>, vector<1x8x10xf32>,
    %c1_i32 = arith.constant 1 : i32
    %cst_56 = arith.constant dense<0.000000e+00> : vector<8x128xf32>
    %122 = tpu.matmul %110, %4, %cst_56 {dimension_numbers = #tpu.dot_dimension_numbers<[1], [0], [0], [1], [0, 0, 1, 1], [], []>} : vector<8x32xf32>, vector<32x128xf32>, vector<8x128xf32> -> vector<8x128xf32>
    %123 = vector.extract_strided_slice %122 {offsets = [0, 0], sizes = [8, 32], strides = [1, 1]} : vector<8x128xf32> to vector<8x32xf32>
    %124 = vector.extract_strided_slice %122 {offsets = [0, 32], sizes = [8, 96], strides = [1, 1]} : vector<8x128xf32> to vector<8x96xf32>
    %125 = vector.shape_cast %123 : vector<8x32xf32> to vector<8x1x32xf32>
    %126 = vector.broadcast %125 : vector<8x1x32xf32> to vector<8x10x32xf32>
    %127 = arith.addf %126, %1 : vector<8x10x32xf32>
    %128 = math.tanh %127 : vector<8x10x32xf32>
    %129 = vector.shape_cast %3 : vector<1x32xf32> to vector<1x1x32xf32>
    %130 = vector.broadcast %129 : vector<1x1x32xf32> to vector<8x10x32xf32>
    %131 = arith.mulf %128, %130 : vector<8x10x32xf32>
    %cst_57 = arith.constant dense<0.000000e+00> : vector<8x10xf32>
    %132 = vector.multi_reduction <add>, %131, %cst_57 [2] : vector<8x10x32xf32> to vector<8x10xf32>
    %133 = arith.addf %132, %2 : vector<8x10xf32>
    %cst_58 = arith.constant dense<0xFF800000> : vector<8xf32>
    %134 = vector.multi_reduction <maximumf>, %133, %cst_58 [1] : vector<8x10xf32> to vector<8xf32>
    %135 = vector.shape_cast %134 : vector<8xf32> to vector<8x1xf32>
    %136 = vector.broadcast %135 : vector<8x1xf32> to vector<8x10xf32>
    %137 = arith.subf %133, %136 : vector<8x10xf32>
    %138 = math.exp %137 : vector<8x10xf32>
    %cst_59 = arith.constant dense<0.000000e+00> : vector<8xf32>
    %139 = vector.multi_reduction <add>, %138, %cst_59 [1] : vector<8x10xf32> to vector<8xf32>
    %140 = vector.shape_cast %139 : vector<8xf32> to vector<8x1xf32>
    %141 = tpu.reciprocal %140 {approx = true} : vector<8x1xf32> -> vector<8x1xf32>
    %142 = vector.broadcast %141 : vector<8x1xf32> to vector<8x10xf32>
    %143 = arith.mulf %138, %142 : vector<8x10xf32>
    %144 = vector.shape_cast %143 : vector<8x10xf32> to vector<8x10x1xf32>
    %145 = vector.broadcast %144 : vector<8x10x1xf32> to vector<8x10x32xf32>
    %146 = arith.mulf %145, %0 : vector<8x10x32xf32>
    %cst_60 = arith.constant dense<0.000000e+00> : vector<8x32xf32>
    %147 = vector.multi_reduction <add>, %146, %cst_60 [1] : vector<8x10x32xf32> to vector<8x32xf32>
    %148 = arith.index_cast %c1_i32 : i32 to index
    %c0_61 = arith.constant 0 : index
    %c0_62 = arith.constant 0 : index
    %149 = vector.load %arg1[%148, %c0_61, %c0_62] : memref<6x8x16xf32, #tpu.memory_space<vmem>>, vector<1x8x16xf32>
    %150 = vector.shape_cast %149 : vector<1x8x16xf32> to vector<8x16xf32>
    %cst_63 = arith.constant dense<0.000000e+00> : vector<8x96xf32>
    %151 = tpu.matmul %147, %5, %cst_63 {dimension_numbers = #tpu.dot_dimension_numbers<[1], [0], [0], [1], [0, 0, 1, 1], [], []>} : vector<8x32xf32>, vector<32x96xf32>, vector<8x96xf32> -> vector<8x96xf32>
    %cst_64 = arith.constant dense<0.000000e+00> : vector<8x96xf32>
    %152 = tpu.matmul %150, %6, %cst_64 {dimension_numbers = #tpu.dot_dimension_numbers<[1], [0], [0], [1], [0, 0, 1, 1], [], []>} : vector<8x16xf32>, vector<16x96xf32>, vector<8x96xf32> -> vector<8x96xf32>
    %153 = arith.addf %151, %152 : vector<8x96xf32>
    %154 = vector.broadcast %8 : vector<1x96xf32> to vector<8x96xf32>
    %155 = arith.addf %153, %154 : vector<8x96xf32>
    %cst_65 = arith.constant dense<0.000000e+00> : vector<8x96xf32>
    %156 = tpu.matmul %79, %7, %cst_65 {dimension_numbers = #tpu.dot_dimension_numbers<[1], [0], [0], [1], [0, 0, 1, 1], [], []>} : vector<8x32xf32>, vector<32x96xf32>, vector<8x96xf32> -> vector<8x96xf32>
    %157 = vector.extract_strided_slice %155 {offsets = [0, 0], sizes = [8, 32], strides = [1, 1]} : vector<8x96xf32> to vector<8x32xf32>
    %158 = vector.extract_strided_slice %156 {offsets = [0, 0], sizes = [8, 32], strides = [1, 1]} : vector<8x96xf32> to vector<8x32xf32>
    %159 = arith.addf %157, %158 : vector<8x32xf32>
    %160 = arith.negf %159 : vector<8x32xf32>
    %161 = math.exp %160 : vector<8x32xf32>
    %cst_66 = arith.constant 1.000000e+00 : f32
    %162 = vector.broadcast %cst_66 : f32 to vector<8x32xf32>
    %163 = arith.addf %162, %161 : vector<8x32xf32>
    %164 = arith.divf %162, %163 : vector<8x32xf32>
    %165 = vector.extract_strided_slice %155 {offsets = [0, 32], sizes = [8, 32], strides = [1, 1]} : vector<8x96xf32> to vector<8x32xf32>
    %166 = vector.extract_strided_slice %156 {offsets = [0, 32], sizes = [8, 32], strides = [1, 1]} : vector<8x96xf32> to vector<8x32xf32>
    %167 = arith.addf %165, %166 : vector<8x32xf32>
    %168 = arith.negf %167 : vector<8x32xf32>
    %169 = math.exp %168 : vector<8x32xf32>
    %cst_67 = arith.constant 1.000000e+00 : f32
    %170 = vector.broadcast %cst_67 : f32 to vector<8x32xf32>
    %171 = arith.addf %170, %169 : vector<8x32xf32>
    %172 = arith.divf %170, %171 : vector<8x32xf32>
    %173 = vector.extract_strided_slice %155 {offsets = [0, 64], sizes = [8, 32], strides = [1, 1]} : vector<8x96xf32> to vector<8x32xf32>
    %174 = vector.extract_strided_slice %156 {offsets = [0, 64], sizes = [8, 32], strides = [1, 1]} : vector<8x96xf32> to vector<8x32xf32>
    %175 = vector.broadcast %9 : vector<1x32xf32> to vector<8x32xf32>
    %176 = arith.addf %174, %175 : vector<8x32xf32>
    %177 = arith.mulf %164, %176 : vector<8x32xf32>
    %178 = arith.addf %173, %177 : vector<8x32xf32>
    %179 = math.tanh %178 : vector<8x32xf32>
    %cst_68 = arith.constant 1.000000e+00 : f32
    %180 = vector.broadcast %cst_68 : f32 to vector<8x32xf32>
    %181 = arith.subf %180, %172 : vector<8x32xf32>
    %182 = arith.mulf %181, %179 : vector<8x32xf32>
    %183 = arith.mulf %172, %79 : vector<8x32xf32>
    %184 = arith.addf %182, %183 : vector<8x32xf32>
    %cst_69 = arith.constant dense<0.000000e+00> : vector<8x96xf32>
    %185 = tpu.matmul %184, %10, %cst_69 {dimension_numbers = #tpu.dot_dimension_numbers<[1], [0], [0], [1], [0, 0, 1, 1], [], []>} : vector<8x32xf32>, vector<32x96xf32>, vector<8x96xf32> -> vector<8x96xf32>
    %186 = vector.broadcast %11 : vector<1x96xf32> to vector<8x96xf32>
    %187 = arith.addf %185, %186 : vector<8x96xf32>
    %188 = vector.extract_strided_slice %187 {offsets = [0, 0], sizes = [8, 32], strides = [1, 1]} : vector<8x96xf32> to vector<8x32xf32>
    %189 = vector.extract_strided_slice %124 {offsets = [0, 0], sizes = [8, 32], strides = [1, 1]} : vector<8x96xf32> to vector<8x32xf32>
    %190 = arith.addf %188, %189 : vector<8x32xf32>
    %191 = arith.negf %190 : vector<8x32xf32>
    %192 = math.exp %191 : vector<8x32xf32>
    %cst_70 = arith.constant 1.000000e+00 : f32
    %193 = vector.broadcast %cst_70 : f32 to vector<8x32xf32>
    %194 = arith.addf %193, %192 : vector<8x32xf32>
    %195 = arith.divf %193, %194 : vector<8x32xf32>
    %196 = vector.extract_strided_slice %187 {offsets = [0, 32], sizes = [8, 32], strides = [1, 1]} : vector<8x96xf32> to vector<8x32xf32>
    %197 = vector.extract_strided_slice %124 {offsets = [0, 32], sizes = [8, 32], strides = [1, 1]} : vector<8x96xf32> to vector<8x32xf32>
    %198 = arith.addf %196, %197 : vector<8x32xf32>
    %199 = arith.negf %198 : vector<8x32xf32>
    %200 = math.exp %199 : vector<8x32xf32>
    %cst_71 = arith.constant 1.000000e+00 : f32
    %201 = vector.broadcast %cst_71 : f32 to vector<8x32xf32>
    %202 = arith.addf %201, %200 : vector<8x32xf32>
    %203 = arith.divf %201, %202 : vector<8x32xf32>
    %204 = vector.extract_strided_slice %187 {offsets = [0, 64], sizes = [8, 32], strides = [1, 1]} : vector<8x96xf32> to vector<8x32xf32>
    %205 = vector.extract_strided_slice %124 {offsets = [0, 64], sizes = [8, 32], strides = [1, 1]} : vector<8x96xf32> to vector<8x32xf32>
    %206 = vector.broadcast %12 : vector<1x32xf32> to vector<8x32xf32>
    %207 = arith.addf %205, %206 : vector<8x32xf32>
    %208 = arith.mulf %195, %207 : vector<8x32xf32>
    %209 = arith.addf %204, %208 : vector<8x32xf32>
    %210 = math.tanh %209 : vector<8x32xf32>
    %cst_72 = arith.constant 1.000000e+00 : f32
    %211 = vector.broadcast %cst_72 : f32 to vector<8x32xf32>
    %212 = arith.subf %211, %203 : vector<8x32xf32>
    %213 = arith.mulf %212, %210 : vector<8x32xf32>
    %214 = arith.mulf %203, %110 : vector<8x32xf32>
    %215 = arith.addf %213, %214 : vector<8x32xf32>
    %cst_73 = arith.constant dense<0.000000e+00> : vector<8x32xf32>
    %216 = tpu.matmul %215, %13, %cst_73 {dimension_numbers = #tpu.dot_dimension_numbers<[1], [0], [0], [1], [0, 0, 1, 1], [], []>} : vector<8x32xf32>, vector<32x32xf32>, vector<8x32xf32> -> vector<8x32xf32>
    %217 = vector.broadcast %14 : vector<1x32xf32> to vector<8x32xf32>
    %218 = arith.addf %216, %217 : vector<8x32xf32>
    %219 = arith.index_cast %c1_i32 : i32 to index
    %c0_74 = arith.constant 0 : index
    %c0_75 = arith.constant 0 : index
    %220 = vector.load %arg19[%219, %c0_74, %c0_75] : memref<6x8x32xf32, #tpu.memory_space<vmem>>, vector<1x8x32xf32>
    %221 = vector.shape_cast %220 : vector<1x8x32xf32> to vector<8x32xf32>
    %222 = vector.shape_cast %218 : vector<8x32xf32> to vector<1x8x32xf32>
    tpu.vector_store %arg19[%219, %c0_74, %c0_75], %222 {strides = array<i32>} : memref<6x8x32xf32, #tpu.memory_space<vmem>>, vector<1x8x32xf32>,
    %223 = arith.index_cast %c1_i32 : i32 to index
    %c0_76 = arith.constant 0 : index
    %c0_77 = arith.constant 0 : index
    %224 = vector.load %arg20[%223, %c0_76, %c0_77] : memref<6x8x10xf32, #tpu.memory_space<vmem>>, vector<1x8x10xf32>
    %225 = vector.shape_cast %224 : vector<1x8x10xf32> to vector<8x10xf32>
    %226 = vector.shape_cast %143 : vector<8x10xf32> to vector<1x8x10xf32>
    tpu.vector_store %arg20[%223, %c0_76, %c0_77], %226 {strides = array<i32>} : memref<6x8x10xf32, #tpu.memory_space<vmem>>, vector<1x8x10xf32>,
    %c2_i32 = arith.constant 2 : i32
    %cst_78 = arith.constant dense<0.000000e+00> : vector<8x128xf32>
    %227 = tpu.matmul %215, %4, %cst_78 {dimension_numbers = #tpu.dot_dimension_numbers<[1], [0], [0], [1], [0, 0, 1, 1], [], []>} : vector<8x32xf32>, vector<32x128xf32>, vector<8x128xf32> -> vector<8x128xf32>
    %228 = vector.extract_strided_slice %227 {offsets = [0, 0], sizes = [8, 32], strides = [1, 1]} : vector<8x128xf32> to vector<8x32xf32>
    %229 = vector.extract_strided_slice %227 {offsets = [0, 32], sizes = [8, 96], strides = [1, 1]} : vector<8x128xf32> to vector<8x96xf32>
    %230 = vector.shape_cast %228 : vector<8x32xf32> to vector<8x1x32xf32>
    %231 = vector.broadcast %230 : vector<8x1x32xf32> to vector<8x10x32xf32>
    %232 = arith.addf %231, %1 : vector<8x10x32xf32>
    %233 = math.tanh %232 : vector<8x10x32xf32>
    %234 = vector.shape_cast %3 : vector<1x32xf32> to vector<1x1x32xf32>
    %235 = vector.broadcast %234 : vector<1x1x32xf32> to vector<8x10x32xf32>
    %236 = arith.mulf %233, %235 : vector<8x10x32xf32>
    %cst_79 = arith.constant dense<0.000000e+00> : vector<8x10xf32>
    %237 = vector.multi_reduction <add>, %236, %cst_79 [2] : vector<8x10x32xf32> to vector<8x10xf32>
    %238 = arith.addf %237, %2 : vector<8x10xf32>
    %cst_80 = arith.constant dense<0xFF800000> : vector<8xf32>
    %239 = vector.multi_reduction <maximumf>, %238, %cst_80 [1] : vector<8x10xf32> to vector<8xf32>
    %240 = vector.shape_cast %239 : vector<8xf32> to vector<8x1xf32>
    %241 = vector.broadcast %240 : vector<8x1xf32> to vector<8x10xf32>
    %242 = arith.subf %238, %241 : vector<8x10xf32>
    %243 = math.exp %242 : vector<8x10xf32>
    %cst_81 = arith.constant dense<0.000000e+00> : vector<8xf32>
    %244 = vector.multi_reduction <add>, %243, %cst_81 [1] : vector<8x10xf32> to vector<8xf32>
    %245 = vector.shape_cast %244 : vector<8xf32> to vector<8x1xf32>
    %246 = tpu.reciprocal %245 {approx = true} : vector<8x1xf32> -> vector<8x1xf32>
    %247 = vector.broadcast %246 : vector<8x1xf32> to vector<8x10xf32>
    %248 = arith.mulf %243, %247 : vector<8x10xf32>
    %249 = vector.shape_cast %248 : vector<8x10xf32> to vector<8x10x1xf32>
    %250 = vector.broadcast %249 : vector<8x10x1xf32> to vector<8x10x32xf32>
    %251 = arith.mulf %250, %0 : vector<8x10x32xf32>
    %cst_82 = arith.constant dense<0.000000e+00> : vector<8x32xf32>
    %252 = vector.multi_reduction <add>, %251, %cst_82 [1] : vector<8x10x32xf32> to vector<8x32xf32>
    %253 = arith.index_cast %c2_i32 : i32 to index
    %c0_83 = arith.constant 0 : index
    %c0_84 = arith.constant 0 : index
    %254 = vector.load %arg1[%253, %c0_83, %c0_84] : memref<6x8x16xf32, #tpu.memory_space<vmem>>, vector<1x8x16xf32>
    %255 = vector.shape_cast %254 : vector<1x8x16xf32> to vector<8x16xf32>
    %cst_85 = arith.constant dense<0.000000e+00> : vector<8x96xf32>
    %256 = tpu.matmul %252, %5, %cst_85 {dimension_numbers = #tpu.dot_dimension_numbers<[1], [0], [0], [1], [0, 0, 1, 1], [], []>} : vector<8x32xf32>, vector<32x96xf32>, vector<8x96xf32> -> vector<8x96xf32>
    %cst_86 = arith.constant dense<0.000000e+00> : vector<8x96xf32>
    %257 = tpu.matmul %255, %6, %cst_86 {dimension_numbers = #tpu.dot_dimension_numbers<[1], [0], [0], [1], [0, 0, 1, 1], [], []>} : vector<8x16xf32>, vector<16x96xf32>, vector<8x96xf32> -> vector<8x96xf32>
    %258 = arith.addf %256, %257 : vector<8x96xf32>
    %259 = vector.broadcast %8 : vector<1x96xf32> to vector<8x96xf32>
    %260 = arith.addf %258, %259 : vector<8x96xf32>
    %cst_87 = arith.constant dense<0.000000e+00> : vector<8x96xf32>
    %261 = tpu.matmul %184, %7, %cst_87 {dimension_numbers = #tpu.dot_dimension_numbers<[1], [0], [0], [1], [0, 0, 1, 1], [], []>} : vector<8x32xf32>, vector<32x96xf32>, vector<8x96xf32> -> vector<8x96xf32>
    %262 = vector.extract_strided_slice %260 {offsets = [0, 0], sizes = [8, 32], strides = [1, 1]} : vector<8x96xf32> to vector<8x32xf32>
    %263 = vector.extract_strided_slice %261 {offsets = [0, 0], sizes = [8, 32], strides = [1, 1]} : vector<8x96xf32> to vector<8x32xf32>
    %264 = arith.addf %262, %263 : vector<8x32xf32>
    %265 = arith.negf %264 : vector<8x32xf32>
    %266 = math.exp %265 : vector<8x32xf32>
    %cst_88 = arith.constant 1.000000e+00 : f32
    %267 = vector.broadcast %cst_88 : f32 to vector<8x32xf32>
    %268 = arith.addf %267, %266 : vector<8x32xf32>
    %269 = arith.divf %267, %268 : vector<8x32xf32>
    %270 = vector.extract_strided_slice %260 {offsets = [0, 32], sizes = [8, 32], strides = [1, 1]} : vector<8x96xf32> to vector<8x32xf32>
    %271 = vector.extract_strided_slice %261 {offsets = [0, 32], sizes = [8, 32], strides = [1, 1]} : vector<8x96xf32> to vector<8x32xf32>
    %272 = arith.addf %270, %271 : vector<8x32xf32>
    %273 = arith.negf %272 : vector<8x32xf32>
    %274 = math.exp %273 : vector<8x32xf32>
    %cst_89 = arith.constant 1.000000e+00 : f32
    %275 = vector.broadcast %cst_89 : f32 to vector<8x32xf32>
    %276 = arith.addf %275, %274 : vector<8x32xf32>
    %277 = arith.divf %275, %276 : vector<8x32xf32>
    %278 = vector.extract_strided_slice %260 {offsets = [0, 64], sizes = [8, 32], strides = [1, 1]} : vector<8x96xf32> to vector<8x32xf32>
    %279 = vector.extract_strided_slice %261 {offsets = [0, 64], sizes = [8, 32], strides = [1, 1]} : vector<8x96xf32> to vector<8x32xf32>
    %280 = vector.broadcast %9 : vector<1x32xf32> to vector<8x32xf32>
    %281 = arith.addf %279, %280 : vector<8x32xf32>
    %282 = arith.mulf %269, %281 : vector<8x32xf32>
    %283 = arith.addf %278, %282 : vector<8x32xf32>
    %284 = math.tanh %283 : vector<8x32xf32>
    %cst_90 = arith.constant 1.000000e+00 : f32
    %285 = vector.broadcast %cst_90 : f32 to vector<8x32xf32>
    %286 = arith.subf %285, %277 : vector<8x32xf32>
    %287 = arith.mulf %286, %284 : vector<8x32xf32>
    %288 = arith.mulf %277, %184 : vector<8x32xf32>
    %289 = arith.addf %287, %288 : vector<8x32xf32>
    %cst_91 = arith.constant dense<0.000000e+00> : vector<8x96xf32>
    %290 = tpu.matmul %289, %10, %cst_91 {dimension_numbers = #tpu.dot_dimension_numbers<[1], [0], [0], [1], [0, 0, 1, 1], [], []>} : vector<8x32xf32>, vector<32x96xf32>, vector<8x96xf32> -> vector<8x96xf32>
    %291 = vector.broadcast %11 : vector<1x96xf32> to vector<8x96xf32>
    %292 = arith.addf %290, %291 : vector<8x96xf32>
    %293 = vector.extract_strided_slice %292 {offsets = [0, 0], sizes = [8, 32], strides = [1, 1]} : vector<8x96xf32> to vector<8x32xf32>
    %294 = vector.extract_strided_slice %229 {offsets = [0, 0], sizes = [8, 32], strides = [1, 1]} : vector<8x96xf32> to vector<8x32xf32>
    %295 = arith.addf %293, %294 : vector<8x32xf32>
    %296 = arith.negf %295 : vector<8x32xf32>
    %297 = math.exp %296 : vector<8x32xf32>
    %cst_92 = arith.constant 1.000000e+00 : f32
    %298 = vector.broadcast %cst_92 : f32 to vector<8x32xf32>
    %299 = arith.addf %298, %297 : vector<8x32xf32>
    %300 = arith.divf %298, %299 : vector<8x32xf32>
    %301 = vector.extract_strided_slice %292 {offsets = [0, 32], sizes = [8, 32], strides = [1, 1]} : vector<8x96xf32> to vector<8x32xf32>
    %302 = vector.extract_strided_slice %229 {offsets = [0, 32], sizes = [8, 32], strides = [1, 1]} : vector<8x96xf32> to vector<8x32xf32>
    %303 = arith.addf %301, %302 : vector<8x32xf32>
    %304 = arith.negf %303 : vector<8x32xf32>
    %305 = math.exp %304 : vector<8x32xf32>
    %cst_93 = arith.constant 1.000000e+00 : f32
    %306 = vector.broadcast %cst_93 : f32 to vector<8x32xf32>
    %307 = arith.addf %306, %305 : vector<8x32xf32>
    %308 = arith.divf %306, %307 : vector<8x32xf32>
    %309 = vector.extract_strided_slice %292 {offsets = [0, 64], sizes = [8, 32], strides = [1, 1]} : vector<8x96xf32> to vector<8x32xf32>
    %310 = vector.extract_strided_slice %229 {offsets = [0, 64], sizes = [8, 32], strides = [1, 1]} : vector<8x96xf32> to vector<8x32xf32>
    %311 = vector.broadcast %12 : vector<1x32xf32> to vector<8x32xf32>
    %312 = arith.addf %310, %311 : vector<8x32xf32>
    %313 = arith.mulf %300, %312 : vector<8x32xf32>
    %314 = arith.addf %309, %313 : vector<8x32xf32>
    %315 = math.tanh %314 : vector<8x32xf32>
    %cst_94 = arith.constant 1.000000e+00 : f32
    %316 = vector.broadcast %cst_94 : f32 to vector<8x32xf32>
    %317 = arith.subf %316, %308 : vector<8x32xf32>
    %318 = arith.mulf %317, %315 : vector<8x32xf32>
    %319 = arith.mulf %308, %215 : vector<8x32xf32>
    %320 = arith.addf %318, %319 : vector<8x32xf32>
    %cst_95 = arith.constant dense<0.000000e+00> : vector<8x32xf32>
    %321 = tpu.matmul %320, %13, %cst_95 {dimension_numbers = #tpu.dot_dimension_numbers<[1], [0], [0], [1], [0, 0, 1, 1], [], []>} : vector<8x32xf32>, vector<32x32xf32>, vector<8x32xf32> -> vector<8x32xf32>
    %322 = vector.broadcast %14 : vector<1x32xf32> to vector<8x32xf32>
    %323 = arith.addf %321, %322 : vector<8x32xf32>
    %324 = arith.index_cast %c2_i32 : i32 to index
    %c0_96 = arith.constant 0 : index
    %c0_97 = arith.constant 0 : index
    %325 = vector.load %arg19[%324, %c0_96, %c0_97] : memref<6x8x32xf32, #tpu.memory_space<vmem>>, vector<1x8x32xf32>
    %326 = vector.shape_cast %325 : vector<1x8x32xf32> to vector<8x32xf32>
    %327 = vector.shape_cast %323 : vector<8x32xf32> to vector<1x8x32xf32>
    tpu.vector_store %arg19[%324, %c0_96, %c0_97], %327 {strides = array<i32>} : memref<6x8x32xf32, #tpu.memory_space<vmem>>, vector<1x8x32xf32>,
    %328 = arith.index_cast %c2_i32 : i32 to index
    %c0_98 = arith.constant 0 : index
    %c0_99 = arith.constant 0 : index
    %329 = vector.load %arg20[%328, %c0_98, %c0_99] : memref<6x8x10xf32, #tpu.memory_space<vmem>>, vector<1x8x10xf32>
    %330 = vector.shape_cast %329 : vector<1x8x10xf32> to vector<8x10xf32>
    %331 = vector.shape_cast %248 : vector<8x10xf32> to vector<1x8x10xf32>
    tpu.vector_store %arg20[%328, %c0_98, %c0_99], %331 {strides = array<i32>} : memref<6x8x10xf32, #tpu.memory_space<vmem>>, vector<1x8x10xf32>,
    %c3_i32 = arith.constant 3 : i32
    %cst_100 = arith.constant dense<0.000000e+00> : vector<8x128xf32>
    %332 = tpu.matmul %320, %4, %cst_100 {dimension_numbers = #tpu.dot_dimension_numbers<[1], [0], [0], [1], [0, 0, 1, 1], [], []>} : vector<8x32xf32>, vector<32x128xf32>, vector<8x128xf32> -> vector<8x128xf32>
    %333 = vector.extract_strided_slice %332 {offsets = [0, 0], sizes = [8, 32], strides = [1, 1]} : vector<8x128xf32> to vector<8x32xf32>
    %334 = vector.extract_strided_slice %332 {offsets = [0, 32], sizes = [8, 96], strides = [1, 1]} : vector<8x128xf32> to vector<8x96xf32>
    %335 = vector.shape_cast %333 : vector<8x32xf32> to vector<8x1x32xf32>
    %336 = vector.broadcast %335 : vector<8x1x32xf32> to vector<8x10x32xf32>
    %337 = arith.addf %336, %1 : vector<8x10x32xf32>
    %338 = math.tanh %337 : vector<8x10x32xf32>
    %339 = vector.shape_cast %3 : vector<1x32xf32> to vector<1x1x32xf32>
    %340 = vector.broadcast %339 : vector<1x1x32xf32> to vector<8x10x32xf32>
    %341 = arith.mulf %338, %340 : vector<8x10x32xf32>
    %cst_101 = arith.constant dense<0.000000e+00> : vector<8x10xf32>
    %342 = vector.multi_reduction <add>, %341, %cst_101 [2] : vector<8x10x32xf32> to vector<8x10xf32>
    %343 = arith.addf %342, %2 : vector<8x10xf32>
    %cst_102 = arith.constant dense<0xFF800000> : vector<8xf32>
    %344 = vector.multi_reduction <maximumf>, %343, %cst_102 [1] : vector<8x10xf32> to vector<8xf32>
    %345 = vector.shape_cast %344 : vector<8xf32> to vector<8x1xf32>
    %346 = vector.broadcast %345 : vector<8x1xf32> to vector<8x10xf32>
    %347 = arith.subf %343, %346 : vector<8x10xf32>
    %348 = math.exp %347 : vector<8x10xf32>
    %cst_103 = arith.constant dense<0.000000e+00> : vector<8xf32>
    %349 = vector.multi_reduction <add>, %348, %cst_103 [1] : vector<8x10xf32> to vector<8xf32>
    %350 = vector.shape_cast %349 : vector<8xf32> to vector<8x1xf32>
    %351 = tpu.reciprocal %350 {approx = true} : vector<8x1xf32> -> vector<8x1xf32>
    %352 = vector.broadcast %351 : vector<8x1xf32> to vector<8x10xf32>
    %353 = arith.mulf %348, %352 : vector<8x10xf32>
    %354 = vector.shape_cast %353 : vector<8x10xf32> to vector<8x10x1xf32>
    %355 = vector.broadcast %354 : vector<8x10x1xf32> to vector<8x10x32xf32>
    %356 = arith.mulf %355, %0 : vector<8x10x32xf32>
    %cst_104 = arith.constant dense<0.000000e+00> : vector<8x32xf32>
    %357 = vector.multi_reduction <add>, %356, %cst_104 [1] : vector<8x10x32xf32> to vector<8x32xf32>
    %358 = arith.index_cast %c3_i32 : i32 to index
    %c0_105 = arith.constant 0 : index
    %c0_106 = arith.constant 0 : index
    %359 = vector.load %arg1[%358, %c0_105, %c0_106] : memref<6x8x16xf32, #tpu.memory_space<vmem>>, vector<1x8x16xf32>
    %360 = vector.shape_cast %359 : vector<1x8x16xf32> to vector<8x16xf32>
    %cst_107 = arith.constant dense<0.000000e+00> : vector<8x96xf32>
    %361 = tpu.matmul %357, %5, %cst_107 {dimension_numbers = #tpu.dot_dimension_numbers<[1], [0], [0], [1], [0, 0, 1, 1], [], []>} : vector<8x32xf32>, vector<32x96xf32>, vector<8x96xf32> -> vector<8x96xf32>
    %cst_108 = arith.constant dense<0.000000e+00> : vector<8x96xf32>
    %362 = tpu.matmul %360, %6, %cst_108 {dimension_numbers = #tpu.dot_dimension_numbers<[1], [0], [0], [1], [0, 0, 1, 1], [], []>} : vector<8x16xf32>, vector<16x96xf32>, vector<8x96xf32> -> vector<8x96xf32>
    %363 = arith.addf %361, %362 : vector<8x96xf32>
    %364 = vector.broadcast %8 : vector<1x96xf32> to vector<8x96xf32>
    %365 = arith.addf %363, %364 : vector<8x96xf32>
    %cst_109 = arith.constant dense<0.000000e+00> : vector<8x96xf32>
    %366 = tpu.matmul %289, %7, %cst_109 {dimension_numbers = #tpu.dot_dimension_numbers<[1], [0], [0], [1], [0, 0, 1, 1], [], []>} : vector<8x32xf32>, vector<32x96xf32>, vector<8x96xf32> -> vector<8x96xf32>
    %367 = vector.extract_strided_slice %365 {offsets = [0, 0], sizes = [8, 32], strides = [1, 1]} : vector<8x96xf32> to vector<8x32xf32>
    %368 = vector.extract_strided_slice %366 {offsets = [0, 0], sizes = [8, 32], strides = [1, 1]} : vector<8x96xf32> to vector<8x32xf32>
    %369 = arith.addf %367, %368 : vector<8x32xf32>
    %370 = arith.negf %369 : vector<8x32xf32>
    %371 = math.exp %370 : vector<8x32xf32>
    %cst_110 = arith.constant 1.000000e+00 : f32
    %372 = vector.broadcast %cst_110 : f32 to vector<8x32xf32>
    %373 = arith.addf %372, %371 : vector<8x32xf32>
    %374 = arith.divf %372, %373 : vector<8x32xf32>
    %375 = vector.extract_strided_slice %365 {offsets = [0, 32], sizes = [8, 32], strides = [1, 1]} : vector<8x96xf32> to vector<8x32xf32>
    %376 = vector.extract_strided_slice %366 {offsets = [0, 32], sizes = [8, 32], strides = [1, 1]} : vector<8x96xf32> to vector<8x32xf32>
    %377 = arith.addf %375, %376 : vector<8x32xf32>
    %378 = arith.negf %377 : vector<8x32xf32>
    %379 = math.exp %378 : vector<8x32xf32>
    %cst_111 = arith.constant 1.000000e+00 : f32
    %380 = vector.broadcast %cst_111 : f32 to vector<8x32xf32>
    %381 = arith.addf %380, %379 : vector<8x32xf32>
    %382 = arith.divf %380, %381 : vector<8x32xf32>
    %383 = vector.extract_strided_slice %365 {offsets = [0, 64], sizes = [8, 32], strides = [1, 1]} : vector<8x96xf32> to vector<8x32xf32>
    %384 = vector.extract_strided_slice %366 {offsets = [0, 64], sizes = [8, 32], strides = [1, 1]} : vector<8x96xf32> to vector<8x32xf32>
    %385 = vector.broadcast %9 : vector<1x32xf32> to vector<8x32xf32>
    %386 = arith.addf %384, %385 : vector<8x32xf32>
    %387 = arith.mulf %374, %386 : vector<8x32xf32>
    %388 = arith.addf %383, %387 : vector<8x32xf32>
    %389 = math.tanh %388 : vector<8x32xf32>
    %cst_112 = arith.constant 1.000000e+00 : f32
    %390 = vector.broadcast %cst_112 : f32 to vector<8x32xf32>
    %391 = arith.subf %390, %382 : vector<8x32xf32>
    %392 = arith.mulf %391, %389 : vector<8x32xf32>
    %393 = arith.mulf %382, %289 : vector<8x32xf32>
    %394 = arith.addf %392, %393 : vector<8x32xf32>
    %cst_113 = arith.constant dense<0.000000e+00> : vector<8x96xf32>
    %395 = tpu.matmul %394, %10, %cst_113 {dimension_numbers = #tpu.dot_dimension_numbers<[1], [0], [0], [1], [0, 0, 1, 1], [], []>} : vector<8x32xf32>, vector<32x96xf32>, vector<8x96xf32> -> vector<8x96xf32>
    %396 = vector.broadcast %11 : vector<1x96xf32> to vector<8x96xf32>
    %397 = arith.addf %395, %396 : vector<8x96xf32>
    %398 = vector.extract_strided_slice %397 {offsets = [0, 0], sizes = [8, 32], strides = [1, 1]} : vector<8x96xf32> to vector<8x32xf32>
    %399 = vector.extract_strided_slice %334 {offsets = [0, 0], sizes = [8, 32], strides = [1, 1]} : vector<8x96xf32> to vector<8x32xf32>
    %400 = arith.addf %398, %399 : vector<8x32xf32>
    %401 = arith.negf %400 : vector<8x32xf32>
    %402 = math.exp %401 : vector<8x32xf32>
    %cst_114 = arith.constant 1.000000e+00 : f32
    %403 = vector.broadcast %cst_114 : f32 to vector<8x32xf32>
    %404 = arith.addf %403, %402 : vector<8x32xf32>
    %405 = arith.divf %403, %404 : vector<8x32xf32>
    %406 = vector.extract_strided_slice %397 {offsets = [0, 32], sizes = [8, 32], strides = [1, 1]} : vector<8x96xf32> to vector<8x32xf32>
    %407 = vector.extract_strided_slice %334 {offsets = [0, 32], sizes = [8, 32], strides = [1, 1]} : vector<8x96xf32> to vector<8x32xf32>
    %408 = arith.addf %406, %407 : vector<8x32xf32>
    %409 = arith.negf %408 : vector<8x32xf32>
    %410 = math.exp %409 : vector<8x32xf32>
    %cst_115 = arith.constant 1.000000e+00 : f32
    %411 = vector.broadcast %cst_115 : f32 to vector<8x32xf32>
    %412 = arith.addf %411, %410 : vector<8x32xf32>
    %413 = arith.divf %411, %412 : vector<8x32xf32>
    %414 = vector.extract_strided_slice %397 {offsets = [0, 64], sizes = [8, 32], strides = [1, 1]} : vector<8x96xf32> to vector<8x32xf32>
    %415 = vector.extract_strided_slice %334 {offsets = [0, 64], sizes = [8, 32], strides = [1, 1]} : vector<8x96xf32> to vector<8x32xf32>
    %416 = vector.broadcast %12 : vector<1x32xf32> to vector<8x32xf32>
    %417 = arith.addf %415, %416 : vector<8x32xf32>
    %418 = arith.mulf %405, %417 : vector<8x32xf32>
    %419 = arith.addf %414, %418 : vector<8x32xf32>
    %420 = math.tanh %419 : vector<8x32xf32>
    %cst_116 = arith.constant 1.000000e+00 : f32
    %421 = vector.broadcast %cst_116 : f32 to vector<8x32xf32>
    %422 = arith.subf %421, %413 : vector<8x32xf32>
    %423 = arith.mulf %422, %420 : vector<8x32xf32>
    %424 = arith.mulf %413, %320 : vector<8x32xf32>
    %425 = arith.addf %423, %424 : vector<8x32xf32>
    %cst_117 = arith.constant dense<0.000000e+00> : vector<8x32xf32>
    %426 = tpu.matmul %425, %13, %cst_117 {dimension_numbers = #tpu.dot_dimension_numbers<[1], [0], [0], [1], [0, 0, 1, 1], [], []>} : vector<8x32xf32>, vector<32x32xf32>, vector<8x32xf32> -> vector<8x32xf32>
    %427 = vector.broadcast %14 : vector<1x32xf32> to vector<8x32xf32>
    %428 = arith.addf %426, %427 : vector<8x32xf32>
    %429 = arith.index_cast %c3_i32 : i32 to index
    %c0_118 = arith.constant 0 : index
    %c0_119 = arith.constant 0 : index
    %430 = vector.load %arg19[%429, %c0_118, %c0_119] : memref<6x8x32xf32, #tpu.memory_space<vmem>>, vector<1x8x32xf32>
    %431 = vector.shape_cast %430 : vector<1x8x32xf32> to vector<8x32xf32>
    %432 = vector.shape_cast %428 : vector<8x32xf32> to vector<1x8x32xf32>
    tpu.vector_store %arg19[%429, %c0_118, %c0_119], %432 {strides = array<i32>} : memref<6x8x32xf32, #tpu.memory_space<vmem>>, vector<1x8x32xf32>,
    %433 = arith.index_cast %c3_i32 : i32 to index
    %c0_120 = arith.constant 0 : index
    %c0_121 = arith.constant 0 : index
    %434 = vector.load %arg20[%433, %c0_120, %c0_121] : memref<6x8x10xf32, #tpu.memory_space<vmem>>, vector<1x8x10xf32>
    %435 = vector.shape_cast %434 : vector<1x8x10xf32> to vector<8x10xf32>
    %436 = vector.shape_cast %353 : vector<8x10xf32> to vector<1x8x10xf32>
    tpu.vector_store %arg20[%433, %c0_120, %c0_121], %436 {strides = array<i32>} : memref<6x8x10xf32, #tpu.memory_space<vmem>>, vector<1x8x10xf32>,
    %c4_i32 = arith.constant 4 : i32
    %cst_122 = arith.constant dense<0.000000e+00> : vector<8x128xf32>
    %437 = tpu.matmul %425, %4, %cst_122 {dimension_numbers = #tpu.dot_dimension_numbers<[1], [0], [0], [1], [0, 0, 1, 1], [], []>} : vector<8x32xf32>, vector<32x128xf32>, vector<8x128xf32> -> vector<8x128xf32>
    %438 = vector.extract_strided_slice %437 {offsets = [0, 0], sizes = [8, 32], strides = [1, 1]} : vector<8x128xf32> to vector<8x32xf32>
    %439 = vector.extract_strided_slice %437 {offsets = [0, 32], sizes = [8, 96], strides = [1, 1]} : vector<8x128xf32> to vector<8x96xf32>
    %440 = vector.shape_cast %438 : vector<8x32xf32> to vector<8x1x32xf32>
    %441 = vector.broadcast %440 : vector<8x1x32xf32> to vector<8x10x32xf32>
    %442 = arith.addf %441, %1 : vector<8x10x32xf32>
    %443 = math.tanh %442 : vector<8x10x32xf32>
    %444 = vector.shape_cast %3 : vector<1x32xf32> to vector<1x1x32xf32>
    %445 = vector.broadcast %444 : vector<1x1x32xf32> to vector<8x10x32xf32>
    %446 = arith.mulf %443, %445 : vector<8x10x32xf32>
    %cst_123 = arith.constant dense<0.000000e+00> : vector<8x10xf32>
    %447 = vector.multi_reduction <add>, %446, %cst_123 [2] : vector<8x10x32xf32> to vector<8x10xf32>
    %448 = arith.addf %447, %2 : vector<8x10xf32>
    %cst_124 = arith.constant dense<0xFF800000> : vector<8xf32>
    %449 = vector.multi_reduction <maximumf>, %448, %cst_124 [1] : vector<8x10xf32> to vector<8xf32>
    %450 = vector.shape_cast %449 : vector<8xf32> to vector<8x1xf32>
    %451 = vector.broadcast %450 : vector<8x1xf32> to vector<8x10xf32>
    %452 = arith.subf %448, %451 : vector<8x10xf32>
    %453 = math.exp %452 : vector<8x10xf32>
    %cst_125 = arith.constant dense<0.000000e+00> : vector<8xf32>
    %454 = vector.multi_reduction <add>, %453, %cst_125 [1] : vector<8x10xf32> to vector<8xf32>
    %455 = vector.shape_cast %454 : vector<8xf32> to vector<8x1xf32>
    %456 = tpu.reciprocal %455 {approx = true} : vector<8x1xf32> -> vector<8x1xf32>
    %457 = vector.broadcast %456 : vector<8x1xf32> to vector<8x10xf32>
    %458 = arith.mulf %453, %457 : vector<8x10xf32>
    %459 = vector.shape_cast %458 : vector<8x10xf32> to vector<8x10x1xf32>
    %460 = vector.broadcast %459 : vector<8x10x1xf32> to vector<8x10x32xf32>
    %461 = arith.mulf %460, %0 : vector<8x10x32xf32>
    %cst_126 = arith.constant dense<0.000000e+00> : vector<8x32xf32>
    %462 = vector.multi_reduction <add>, %461, %cst_126 [1] : vector<8x10x32xf32> to vector<8x32xf32>
    %463 = arith.index_cast %c4_i32 : i32 to index
    %c0_127 = arith.constant 0 : index
    %c0_128 = arith.constant 0 : index
    %464 = vector.load %arg1[%463, %c0_127, %c0_128] : memref<6x8x16xf32, #tpu.memory_space<vmem>>, vector<1x8x16xf32>
    %465 = vector.shape_cast %464 : vector<1x8x16xf32> to vector<8x16xf32>
    %cst_129 = arith.constant dense<0.000000e+00> : vector<8x96xf32>
    %466 = tpu.matmul %462, %5, %cst_129 {dimension_numbers = #tpu.dot_dimension_numbers<[1], [0], [0], [1], [0, 0, 1, 1], [], []>} : vector<8x32xf32>, vector<32x96xf32>, vector<8x96xf32> -> vector<8x96xf32>
    %cst_130 = arith.constant dense<0.000000e+00> : vector<8x96xf32>
    %467 = tpu.matmul %465, %6, %cst_130 {dimension_numbers = #tpu.dot_dimension_numbers<[1], [0], [0], [1], [0, 0, 1, 1], [], []>} : vector<8x16xf32>, vector<16x96xf32>, vector<8x96xf32> -> vector<8x96xf32>
    %468 = arith.addf %466, %467 : vector<8x96xf32>
    %469 = vector.broadcast %8 : vector<1x96xf32> to vector<8x96xf32>
    %470 = arith.addf %468, %469 : vector<8x96xf32>
    %cst_131 = arith.constant dense<0.000000e+00> : vector<8x96xf32>
    %471 = tpu.matmul %394, %7, %cst_131 {dimension_numbers = #tpu.dot_dimension_numbers<[1], [0], [0], [1], [0, 0, 1, 1], [], []>} : vector<8x32xf32>, vector<32x96xf32>, vector<8x96xf32> -> vector<8x96xf32>
    %472 = vector.extract_strided_slice %470 {offsets = [0, 0], sizes = [8, 32], strides = [1, 1]} : vector<8x96xf32> to vector<8x32xf32>
    %473 = vector.extract_strided_slice %471 {offsets = [0, 0], sizes = [8, 32], strides = [1, 1]} : vector<8x96xf32> to vector<8x32xf32>
    %474 = arith.addf %472, %473 : vector<8x32xf32>
    %475 = arith.negf %474 : vector<8x32xf32>
    %476 = math.exp %475 : vector<8x32xf32>
    %cst_132 = arith.constant 1.000000e+00 : f32
    %477 = vector.broadcast %cst_132 : f32 to vector<8x32xf32>
    %478 = arith.addf %477, %476 : vector<8x32xf32>
    %479 = arith.divf %477, %478 : vector<8x32xf32>
    %480 = vector.extract_strided_slice %470 {offsets = [0, 32], sizes = [8, 32], strides = [1, 1]} : vector<8x96xf32> to vector<8x32xf32>
    %481 = vector.extract_strided_slice %471 {offsets = [0, 32], sizes = [8, 32], strides = [1, 1]} : vector<8x96xf32> to vector<8x32xf32>
    %482 = arith.addf %480, %481 : vector<8x32xf32>
    %483 = arith.negf %482 : vector<8x32xf32>
    %484 = math.exp %483 : vector<8x32xf32>
    %cst_133 = arith.constant 1.000000e+00 : f32
    %485 = vector.broadcast %cst_133 : f32 to vector<8x32xf32>
    %486 = arith.addf %485, %484 : vector<8x32xf32>
    %487 = arith.divf %485, %486 : vector<8x32xf32>
    %488 = vector.extract_strided_slice %470 {offsets = [0, 64], sizes = [8, 32], strides = [1, 1]} : vector<8x96xf32> to vector<8x32xf32>
    %489 = vector.extract_strided_slice %471 {offsets = [0, 64], sizes = [8, 32], strides = [1, 1]} : vector<8x96xf32> to vector<8x32xf32>
    %490 = vector.broadcast %9 : vector<1x32xf32> to vector<8x32xf32>
    %491 = arith.addf %489, %490 : vector<8x32xf32>
    %492 = arith.mulf %479, %491 : vector<8x32xf32>
    %493 = arith.addf %488, %492 : vector<8x32xf32>
    %494 = math.tanh %493 : vector<8x32xf32>
    %cst_134 = arith.constant 1.000000e+00 : f32
    %495 = vector.broadcast %cst_134 : f32 to vector<8x32xf32>
    %496 = arith.subf %495, %487 : vector<8x32xf32>
    %497 = arith.mulf %496, %494 : vector<8x32xf32>
    %498 = arith.mulf %487, %394 : vector<8x32xf32>
    %499 = arith.addf %497, %498 : vector<8x32xf32>
    %cst_135 = arith.constant dense<0.000000e+00> : vector<8x96xf32>
    %500 = tpu.matmul %499, %10, %cst_135 {dimension_numbers = #tpu.dot_dimension_numbers<[1], [0], [0], [1], [0, 0, 1, 1], [], []>} : vector<8x32xf32>, vector<32x96xf32>, vector<8x96xf32> -> vector<8x96xf32>
    %501 = vector.broadcast %11 : vector<1x96xf32> to vector<8x96xf32>
    %502 = arith.addf %500, %501 : vector<8x96xf32>
    %503 = vector.extract_strided_slice %502 {offsets = [0, 0], sizes = [8, 32], strides = [1, 1]} : vector<8x96xf32> to vector<8x32xf32>
    %504 = vector.extract_strided_slice %439 {offsets = [0, 0], sizes = [8, 32], strides = [1, 1]} : vector<8x96xf32> to vector<8x32xf32>
    %505 = arith.addf %503, %504 : vector<8x32xf32>
    %506 = arith.negf %505 : vector<8x32xf32>
    %507 = math.exp %506 : vector<8x32xf32>
    %cst_136 = arith.constant 1.000000e+00 : f32
    %508 = vector.broadcast %cst_136 : f32 to vector<8x32xf32>
    %509 = arith.addf %508, %507 : vector<8x32xf32>
    %510 = arith.divf %508, %509 : vector<8x32xf32>
    %511 = vector.extract_strided_slice %502 {offsets = [0, 32], sizes = [8, 32], strides = [1, 1]} : vector<8x96xf32> to vector<8x32xf32>
    %512 = vector.extract_strided_slice %439 {offsets = [0, 32], sizes = [8, 32], strides = [1, 1]} : vector<8x96xf32> to vector<8x32xf32>
    %513 = arith.addf %511, %512 : vector<8x32xf32>
    %514 = arith.negf %513 : vector<8x32xf32>
    %515 = math.exp %514 : vector<8x32xf32>
    %cst_137 = arith.constant 1.000000e+00 : f32
    %516 = vector.broadcast %cst_137 : f32 to vector<8x32xf32>
    %517 = arith.addf %516, %515 : vector<8x32xf32>
    %518 = arith.divf %516, %517 : vector<8x32xf32>
    %519 = vector.extract_strided_slice %502 {offsets = [0, 64], sizes = [8, 32], strides = [1, 1]} : vector<8x96xf32> to vector<8x32xf32>
    %520 = vector.extract_strided_slice %439 {offsets = [0, 64], sizes = [8, 32], strides = [1, 1]} : vector<8x96xf32> to vector<8x32xf32>
    %521 = vector.broadcast %12 : vector<1x32xf32> to vector<8x32xf32>
    %522 = arith.addf %520, %521 : vector<8x32xf32>
    %523 = arith.mulf %510, %522 : vector<8x32xf32>
    %524 = arith.addf %519, %523 : vector<8x32xf32>
    %525 = math.tanh %524 : vector<8x32xf32>
    %cst_138 = arith.constant 1.000000e+00 : f32
    %526 = vector.broadcast %cst_138 : f32 to vector<8x32xf32>
    %527 = arith.subf %526, %518 : vector<8x32xf32>
    %528 = arith.mulf %527, %525 : vector<8x32xf32>
    %529 = arith.mulf %518, %425 : vector<8x32xf32>
    %530 = arith.addf %528, %529 : vector<8x32xf32>
    %cst_139 = arith.constant dense<0.000000e+00> : vector<8x32xf32>
    %531 = tpu.matmul %530, %13, %cst_139 {dimension_numbers = #tpu.dot_dimension_numbers<[1], [0], [0], [1], [0, 0, 1, 1], [], []>} : vector<8x32xf32>, vector<32x32xf32>, vector<8x32xf32> -> vector<8x32xf32>
    %532 = vector.broadcast %14 : vector<1x32xf32> to vector<8x32xf32>
    %533 = arith.addf %531, %532 : vector<8x32xf32>
    %534 = arith.index_cast %c4_i32 : i32 to index
    %c0_140 = arith.constant 0 : index
    %c0_141 = arith.constant 0 : index
    %535 = vector.load %arg19[%534, %c0_140, %c0_141] : memref<6x8x32xf32, #tpu.memory_space<vmem>>, vector<1x8x32xf32>
    %536 = vector.shape_cast %535 : vector<1x8x32xf32> to vector<8x32xf32>
    %537 = vector.shape_cast %533 : vector<8x32xf32> to vector<1x8x32xf32>
    tpu.vector_store %arg19[%534, %c0_140, %c0_141], %537 {strides = array<i32>} : memref<6x8x32xf32, #tpu.memory_space<vmem>>, vector<1x8x32xf32>,
    %538 = arith.index_cast %c4_i32 : i32 to index
    %c0_142 = arith.constant 0 : index
    %c0_143 = arith.constant 0 : index
    %539 = vector.load %arg20[%538, %c0_142, %c0_143] : memref<6x8x10xf32, #tpu.memory_space<vmem>>, vector<1x8x10xf32>
    %540 = vector.shape_cast %539 : vector<1x8x10xf32> to vector<8x10xf32>
    %541 = vector.shape_cast %458 : vector<8x10xf32> to vector<1x8x10xf32>
    tpu.vector_store %arg20[%538, %c0_142, %c0_143], %541 {strides = array<i32>} : memref<6x8x10xf32, #tpu.memory_space<vmem>>, vector<1x8x10xf32>,
    %c5_i32 = arith.constant 5 : i32
    %cst_144 = arith.constant dense<0.000000e+00> : vector<8x128xf32>
    %542 = tpu.matmul %530, %4, %cst_144 {dimension_numbers = #tpu.dot_dimension_numbers<[1], [0], [0], [1], [0, 0, 1, 1], [], []>} : vector<8x32xf32>, vector<32x128xf32>, vector<8x128xf32> -> vector<8x128xf32>
    %543 = vector.extract_strided_slice %542 {offsets = [0, 0], sizes = [8, 32], strides = [1, 1]} : vector<8x128xf32> to vector<8x32xf32>
    %544 = vector.extract_strided_slice %542 {offsets = [0, 32], sizes = [8, 96], strides = [1, 1]} : vector<8x128xf32> to vector<8x96xf32>
    %545 = vector.shape_cast %543 : vector<8x32xf32> to vector<8x1x32xf32>
    %546 = vector.broadcast %545 : vector<8x1x32xf32> to vector<8x10x32xf32>
    %547 = arith.addf %546, %1 : vector<8x10x32xf32>
    %548 = math.tanh %547 : vector<8x10x32xf32>
    %549 = vector.shape_cast %3 : vector<1x32xf32> to vector<1x1x32xf32>
    %550 = vector.broadcast %549 : vector<1x1x32xf32> to vector<8x10x32xf32>
    %551 = arith.mulf %548, %550 : vector<8x10x32xf32>
    %cst_145 = arith.constant dense<0.000000e+00> : vector<8x10xf32>
    %552 = vector.multi_reduction <add>, %551, %cst_145 [2] : vector<8x10x32xf32> to vector<8x10xf32>
    %553 = arith.addf %552, %2 : vector<8x10xf32>
    %cst_146 = arith.constant dense<0xFF800000> : vector<8xf32>
    %554 = vector.multi_reduction <maximumf>, %553, %cst_146 [1] : vector<8x10xf32> to vector<8xf32>
    %555 = vector.shape_cast %554 : vector<8xf32> to vector<8x1xf32>
    %556 = vector.broadcast %555 : vector<8x1xf32> to vector<8x10xf32>
    %557 = arith.subf %553, %556 : vector<8x10xf32>
    %558 = math.exp %557 : vector<8x10xf32>
    %cst_147 = arith.constant dense<0.000000e+00> : vector<8xf32>
    %559 = vector.multi_reduction <add>, %558, %cst_147 [1] : vector<8x10xf32> to vector<8xf32>
    %560 = vector.shape_cast %559 : vector<8xf32> to vector<8x1xf32>
    %561 = tpu.reciprocal %560 {approx = true} : vector<8x1xf32> -> vector<8x1xf32>
    %562 = vector.broadcast %561 : vector<8x1xf32> to vector<8x10xf32>
    %563 = arith.mulf %558, %562 : vector<8x10xf32>
    %564 = vector.shape_cast %563 : vector<8x10xf32> to vector<8x10x1xf32>
    %565 = vector.broadcast %564 : vector<8x10x1xf32> to vector<8x10x32xf32>
    %566 = arith.mulf %565, %0 : vector<8x10x32xf32>
    %cst_148 = arith.constant dense<0.000000e+00> : vector<8x32xf32>
    %567 = vector.multi_reduction <add>, %566, %cst_148 [1] : vector<8x10x32xf32> to vector<8x32xf32>
    %568 = arith.index_cast %c5_i32 : i32 to index
    %c0_149 = arith.constant 0 : index
    %c0_150 = arith.constant 0 : index
    %569 = vector.load %arg1[%568, %c0_149, %c0_150] : memref<6x8x16xf32, #tpu.memory_space<vmem>>, vector<1x8x16xf32>
    %570 = vector.shape_cast %569 : vector<1x8x16xf32> to vector<8x16xf32>
    %cst_151 = arith.constant dense<0.000000e+00> : vector<8x96xf32>
    %571 = tpu.matmul %567, %5, %cst_151 {dimension_numbers = #tpu.dot_dimension_numbers<[1], [0], [0], [1], [0, 0, 1, 1], [], []>} : vector<8x32xf32>, vector<32x96xf32>, vector<8x96xf32> -> vector<8x96xf32>
    %cst_152 = arith.constant dense<0.000000e+00> : vector<8x96xf32>
    %572 = tpu.matmul %570, %6, %cst_152 {dimension_numbers = #tpu.dot_dimension_numbers<[1], [0], [0], [1], [0, 0, 1, 1], [], []>} : vector<8x16xf32>, vector<16x96xf32>, vector<8x96xf32> -> vector<8x96xf32>
    %573 = arith.addf %571, %572 : vector<8x96xf32>
    %574 = vector.broadcast %8 : vector<1x96xf32> to vector<8x96xf32>
    %575 = arith.addf %573, %574 : vector<8x96xf32>
    %cst_153 = arith.constant dense<0.000000e+00> : vector<8x96xf32>
    %576 = tpu.matmul %499, %7, %cst_153 {dimension_numbers = #tpu.dot_dimension_numbers<[1], [0], [0], [1], [0, 0, 1, 1], [], []>} : vector<8x32xf32>, vector<32x96xf32>, vector<8x96xf32> -> vector<8x96xf32>
    %577 = vector.extract_strided_slice %575 {offsets = [0, 0], sizes = [8, 32], strides = [1, 1]} : vector<8x96xf32> to vector<8x32xf32>
    %578 = vector.extract_strided_slice %576 {offsets = [0, 0], sizes = [8, 32], strides = [1, 1]} : vector<8x96xf32> to vector<8x32xf32>
    %579 = arith.addf %577, %578 : vector<8x32xf32>
    %580 = arith.negf %579 : vector<8x32xf32>
    %581 = math.exp %580 : vector<8x32xf32>
    %cst_154 = arith.constant 1.000000e+00 : f32
    %582 = vector.broadcast %cst_154 : f32 to vector<8x32xf32>
    %583 = arith.addf %582, %581 : vector<8x32xf32>
    %584 = arith.divf %582, %583 : vector<8x32xf32>
    %585 = vector.extract_strided_slice %575 {offsets = [0, 32], sizes = [8, 32], strides = [1, 1]} : vector<8x96xf32> to vector<8x32xf32>
    %586 = vector.extract_strided_slice %576 {offsets = [0, 32], sizes = [8, 32], strides = [1, 1]} : vector<8x96xf32> to vector<8x32xf32>
    %587 = arith.addf %585, %586 : vector<8x32xf32>
    %588 = arith.negf %587 : vector<8x32xf32>
    %589 = math.exp %588 : vector<8x32xf32>
    %cst_155 = arith.constant 1.000000e+00 : f32
    %590 = vector.broadcast %cst_155 : f32 to vector<8x32xf32>
    %591 = arith.addf %590, %589 : vector<8x32xf32>
    %592 = arith.divf %590, %591 : vector<8x32xf32>
    %593 = vector.extract_strided_slice %575 {offsets = [0, 64], sizes = [8, 32], strides = [1, 1]} : vector<8x96xf32> to vector<8x32xf32>
    %594 = vector.extract_strided_slice %576 {offsets = [0, 64], sizes = [8, 32], strides = [1, 1]} : vector<8x96xf32> to vector<8x32xf32>
    %595 = vector.broadcast %9 : vector<1x32xf32> to vector<8x32xf32>
    %596 = arith.addf %594, %595 : vector<8x32xf32>
    %597 = arith.mulf %584, %596 : vector<8x32xf32>
    %598 = arith.addf %593, %597 : vector<8x32xf32>
    %599 = math.tanh %598 : vector<8x32xf32>
    %cst_156 = arith.constant 1.000000e+00 : f32
    %600 = vector.broadcast %cst_156 : f32 to vector<8x32xf32>
    %601 = arith.subf %600, %592 : vector<8x32xf32>
    %602 = arith.mulf %601, %599 : vector<8x32xf32>
    %603 = arith.mulf %592, %499 : vector<8x32xf32>
    %604 = arith.addf %602, %603 : vector<8x32xf32>
    %cst_157 = arith.constant dense<0.000000e+00> : vector<8x96xf32>
    %605 = tpu.matmul %604, %10, %cst_157 {dimension_numbers = #tpu.dot_dimension_numbers<[1], [0], [0], [1], [0, 0, 1, 1], [], []>} : vector<8x32xf32>, vector<32x96xf32>, vector<8x96xf32> -> vector<8x96xf32>
    %606 = vector.broadcast %11 : vector<1x96xf32> to vector<8x96xf32>
    %607 = arith.addf %605, %606 : vector<8x96xf32>
    %608 = vector.extract_strided_slice %607 {offsets = [0, 0], sizes = [8, 32], strides = [1, 1]} : vector<8x96xf32> to vector<8x32xf32>
    %609 = vector.extract_strided_slice %544 {offsets = [0, 0], sizes = [8, 32], strides = [1, 1]} : vector<8x96xf32> to vector<8x32xf32>
    %610 = arith.addf %608, %609 : vector<8x32xf32>
    %611 = arith.negf %610 : vector<8x32xf32>
    %612 = math.exp %611 : vector<8x32xf32>
    %cst_158 = arith.constant 1.000000e+00 : f32
    %613 = vector.broadcast %cst_158 : f32 to vector<8x32xf32>
    %614 = arith.addf %613, %612 : vector<8x32xf32>
    %615 = arith.divf %613, %614 : vector<8x32xf32>
    %616 = vector.extract_strided_slice %607 {offsets = [0, 32], sizes = [8, 32], strides = [1, 1]} : vector<8x96xf32> to vector<8x32xf32>
    %617 = vector.extract_strided_slice %544 {offsets = [0, 32], sizes = [8, 32], strides = [1, 1]} : vector<8x96xf32> to vector<8x32xf32>
    %618 = arith.addf %616, %617 : vector<8x32xf32>
    %619 = arith.negf %618 : vector<8x32xf32>
    %620 = math.exp %619 : vector<8x32xf32>
    %cst_159 = arith.constant 1.000000e+00 : f32
    %621 = vector.broadcast %cst_159 : f32 to vector<8x32xf32>
    %622 = arith.addf %621, %620 : vector<8x32xf32>
    %623 = arith.divf %621, %622 : vector<8x32xf32>
    %624 = vector.extract_strided_slice %607 {offsets = [0, 64], sizes = [8, 32], strides = [1, 1]} : vector<8x96xf32> to vector<8x32xf32>
    %625 = vector.extract_strided_slice %544 {offsets = [0, 64], sizes = [8, 32], strides = [1, 1]} : vector<8x96xf32> to vector<8x32xf32>
    %626 = vector.broadcast %12 : vector<1x32xf32> to vector<8x32xf32>
    %627 = arith.addf %625, %626 : vector<8x32xf32>
    %628 = arith.mulf %615, %627 : vector<8x32xf32>
    %629 = arith.addf %624, %628 : vector<8x32xf32>
    %630 = math.tanh %629 : vector<8x32xf32>
    %cst_160 = arith.constant 1.000000e+00 : f32
    %631 = vector.broadcast %cst_160 : f32 to vector<8x32xf32>
    %632 = arith.subf %631, %623 : vector<8x32xf32>
    %633 = arith.mulf %632, %630 : vector<8x32xf32>
    %634 = arith.mulf %623, %530 : vector<8x32xf32>
    %635 = arith.addf %633, %634 : vector<8x32xf32>
    %cst_161 = arith.constant dense<0.000000e+00> : vector<8x32xf32>
    %636 = tpu.matmul %635, %13, %cst_161 {dimension_numbers = #tpu.dot_dimension_numbers<[1], [0], [0], [1], [0, 0, 1, 1], [], []>} : vector<8x32xf32>, vector<32x32xf32>, vector<8x32xf32> -> vector<8x32xf32>
    %637 = vector.broadcast %14 : vector<1x32xf32> to vector<8x32xf32>
    %638 = arith.addf %636, %637 : vector<8x32xf32>
    %639 = arith.index_cast %c5_i32 : i32 to index
    %c0_162 = arith.constant 0 : index
    %c0_163 = arith.constant 0 : index
    %640 = vector.load %arg19[%639, %c0_162, %c0_163] : memref<6x8x32xf32, #tpu.memory_space<vmem>>, vector<1x8x32xf32>
    %641 = vector.shape_cast %640 : vector<1x8x32xf32> to vector<8x32xf32>
    %642 = vector.shape_cast %638 : vector<8x32xf32> to vector<1x8x32xf32>
    tpu.vector_store %arg19[%639, %c0_162, %c0_163], %642 {strides = array<i32>} : memref<6x8x32xf32, #tpu.memory_space<vmem>>, vector<1x8x32xf32>,
    %643 = arith.index_cast %c5_i32 : i32 to index
    %c0_164 = arith.constant 0 : index
    %c0_165 = arith.constant 0 : index
    %644 = vector.load %arg20[%643, %c0_164, %c0_165] : memref<6x8x10xf32, #tpu.memory_space<vmem>>, vector<1x8x10xf32>
    %645 = vector.shape_cast %644 : vector<1x8x10xf32> to vector<8x10xf32>
    %646 = vector.shape_cast %563 : vector<8x10xf32> to vector<1x8x10xf32>
    tpu.vector_store %arg20[%643, %c0_164, %c0_165], %646 {strides = array<i32>} : memref<6x8x10xf32, #tpu.memory_space<vmem>>, vector<1x8x10xf32>,
    %c6_i32 = arith.constant 6 : i32
    %c0_166 = arith.constant 0 : index
    %c0_167 = arith.constant 0 : index
    %c0_168 = arith.constant 0 : index
    %647 = vector.load %arg21[%c0_166, %c0_167, %c0_168] : memref<2x8x32xf32, #tpu.memory_space<vmem>>, vector<1x8x32xf32>
    %648 = vector.shape_cast %647 : vector<1x8x32xf32> to vector<8x32xf32>
    %649 = vector.shape_cast %604 : vector<8x32xf32> to vector<1x8x32xf32>
    tpu.vector_store %arg21[%c0_166, %c0_167, %c0_168], %649 {strides = array<i32>} : memref<2x8x32xf32, #tpu.memory_space<vmem>>, vector<1x8x32xf32>,
    %c1 = arith.constant 1 : index
    %c0_169 = arith.constant 0 : index
    %c0_170 = arith.constant 0 : index
    %650 = vector.load %arg21[%c1, %c0_169, %c0_170] : memref<2x8x32xf32, #tpu.memory_space<vmem>>, vector<1x8x32xf32>
    %651 = vector.shape_cast %650 : vector<1x8x32xf32> to vector<8x32xf32>
    %652 = vector.shape_cast %635 : vector<8x32xf32> to vector<1x8x32xf32>
    tpu.vector_store %arg21[%c1, %c0_169, %c0_170], %652 {strides = array<i32>} : memref<2x8x32xf32, #tpu.memory_space<vmem>>, vector<1x8x32xf32>,
    return
  }
  func.func @transform_0(%arg0: i32) -> (i32, i32, i32) {
    %c0_i32 = arith.constant 0 : i32
    %c0_i32_0 = arith.constant 0 : i32
    %c0_i32_1 = arith.constant 0 : i32
    %c0_i32_2 = arith.constant 0 : i32
    return %c0_i32, %c0_i32_0, %c0_i32_1 : i32, i32, i32
  }
  func.func @transform_1(%arg0: i32) -> (i32, i32, i32) {
    %c0_i32 = arith.constant 0 : i32
    %c0_i32_0 = arith.constant 0 : i32
    %c0_i32_1 = arith.constant 0 : i32
    %c0_i32_2 = arith.constant 0 : i32
    return %c0_i32, %c0_i32_0, %c0_i32_1 : i32, i32, i32
  }
  func.func @transform_2(%arg0: i32) -> (i32, i32, i32) {
    %c0_i32 = arith.constant 0 : i32
    %c0_i32_0 = arith.constant 0 : i32
    %c0_i32_1 = arith.constant 0 : i32
    %c0_i32_2 = arith.constant 0 : i32
    return %c0_i32, %c0_i32_0, %c0_i32_1 : i32, i32, i32
  }
  func.func @transform_3(%arg0: i32) -> (i32, i32) {
    %c0_i32 = arith.constant 0 : i32
    %c0_i32_0 = arith.constant 0 : i32
    %c0_i32_1 = arith.constant 0 : i32
    return %c0_i32, %c0_i32_0 : i32, i32
  }
  func.func @transform_4(%arg0: i32) -> (i32, i32) {
    %c0_i32 = arith.constant 0 : i32
    %c0_i32_0 = arith.constant 0 : i32
    %c0_i32_1 = arith.constant 0 : i32
    return %c0_i32, %c0_i32_0 : i32, i32
  }
  func.func @transform_5(%arg0: i32) -> (i32, i32) {
    %c0_i32 = arith.constant 0 : i32
    %c0_i32_0 = arith.constant 0 : i32
    %c0_i32_1 = arith.constant 0 : i32
    return %c0_i32, %c0_i32_0 : i32, i32
  }
  func.func @transform_6(%arg0: i32) -> (i32, i32) {
    %c0_i32 = arith.constant 0 : i32
    %c0_i32_0 = arith.constant 0 : i32
    %c0_i32_1 = arith.constant 0 : i32
    return %c0_i32, %c0_i32_0 : i32, i32
  }
  func.func @transform_7(%arg0: i32) -> (i32, i32) {
    %c0_i32 = arith.constant 0 : i32
    %c0_i32_0 = arith.constant 0 : i32
    %c0_i32_1 = arith.constant 0 : i32
    return %c0_i32, %c0_i32_0 : i32, i32
  }
  func.func @transform_8(%arg0: i32) -> (i32, i32) {
    %c0_i32 = arith.constant 0 : i32
    %c0_i32_0 = arith.constant 0 : i32
    %c0_i32_1 = arith.constant 0 : i32
    return %c0_i32, %c0_i32_0 : i32, i32
  }
  func.func @transform_9(%arg0: i32) -> (i32, i32) {
    %c0_i32 = arith.constant 0 : i32
    %c0_i32_0 = arith.constant 0 : i32
    %c0_i32_1 = arith.constant 0 : i32
    return %c0_i32, %c0_i32_0 : i32, i32
  }
  func.func @transform_10(%arg0: i32) -> (i32, i32) {
    %c0_i32 = arith.constant 0 : i32
    %c0_i32_0 = arith.constant 0 : i32
    %c0_i32_1 = arith.constant 0 : i32
    return %c0_i32, %c0_i32_0 : i32, i32
  }
  func.func @transform_11(%arg0: i32) -> (i32, i32) {
    %c0_i32 = arith.constant 0 : i32
    %c0_i32_0 = arith.constant 0 : i32
    %c0_i32_1 = arith.constant 0 : i32
    return %c0_i32, %c0_i32_0 : i32, i32
  }
  func.func @transform_12(%arg0: i32) -> (i32, i32) {
    %c0_i32 = arith.constant 0 : i32
    %c0_i32_0 = arith.constant 0 : i32
    %c0_i32_1 = arith.constant 0 : i32
    return %c0_i32, %c0_i32_0 : i32, i32
  }
  func.func @transform_13(%arg0: i32) -> (i32, i32) {
    %c0_i32 = arith.constant 0 : i32
    %c0_i32_0 = arith.constant 0 : i32
    %c0_i32_1 = arith.constant 0 : i32
    return %c0_i32, %c0_i32_0 : i32, i32
  }
  func.func @transform_14(%arg0: i32) -> (i32, i32) {
    %c0_i32 = arith.constant 0 : i32
    %c0_i32_0 = arith.constant 0 : i32
    %c0_i32_1 = arith.constant 0 : i32
    return %c0_i32, %c0_i32_0 : i32, i32
  }
  func.func @transform_15(%arg0: i32) -> (i32, i32) {
    %c0_i32 = arith.constant 0 : i32
    %c0_i32_0 = arith.constant 0 : i32
    %c0_i32_1 = arith.constant 0 : i32
    return %c0_i32, %c0_i32_0 : i32, i32
  }
  func.func @transform_16(%arg0: i32) -> (i32, i32) {
    %c0_i32 = arith.constant 0 : i32
    %c0_i32_0 = arith.constant 0 : i32
    %c0_i32_1 = arith.constant 0 : i32
    return %c0_i32, %c0_i32_0 : i32, i32
  }
  func.func @transform_17(%arg0: i32) -> (i32, i32) {
    %c0_i32 = arith.constant 0 : i32
    %c0_i32_0 = arith.constant 0 : i32
    %c0_i32_1 = arith.constant 0 : i32
    return %c0_i32, %c0_i32_0 : i32, i32
  }
  func.func @transform_18(%arg0: i32) -> (i32, i32, i32) {
    %c0_i32 = arith.constant 0 : i32
    %c0_i32_0 = arith.constant 0 : i32
    %c0_i32_1 = arith.constant 0 : i32
    %c0_i32_2 = arith.constant 0 : i32
    return %c0_i32, %c0_i32_0, %c0_i32_1 : i32, i32, i32
  }
  func.func @transform_19(%arg0: i32) -> (i32, i32, i32) {
    %c0_i32 = arith.constant 0 : i32
    %c0_i32_0 = arith.constant 0 : i32
    %c0_i32_1 = arith.constant 0 : i32
    %c0_i32_2 = arith.constant 0 : i32
    return %c0_i32, %c0_i32_0, %c0_i32_1 : i32, i32, i32
  }
  func.func @transform_20(%arg0: i32) -> (i32, i32, i32) {
    %c0_i32 = arith.constant 0 : i32
    %c0_i32_0 = arith.constant 0 : i32
    %c0_i32_1 = arith.constant 0 : i32
    %c0_i32_2 = arith.constant 0 : i32
    return %c0_i32, %c0_i32_0, %c0_i32_1 : i32, i32, i32
  }
}

</mosaic_0001>

<llo_original>
// kernel: tpu_custom_call.1
$region0: #{tpu_custom_call.1}
  #allocation0 [shape = 'u32[]', space=smem, size = 0x4, offset = 0x4, fixed_abs, tag = 'smem constant byte address 0x4 - core index']
  #allocation1 [shape = 'u32[144,128]{1,0:T(1,128)}', space=vmem, size = 0x12000, scoped, tag = 'internal scratch']
  %s0 = inlined_call_operand.vmem [shape: f32[6,8,16], index: 0, kind: input, shape index: {}]
  %s1 = inlined_call_operand.vmem [shape: f32[8,10,32], index: 1, kind: input, shape index: {}]
  %s2 = inlined_call_operand.vmem [shape: f32[8,10,32], index: 2, kind: input, shape index: {}]
  %s3 = inlined_call_operand.vmem [shape: f32[8,10], index: 3, kind: input, shape index: {}]
  %s4 = inlined_call_operand.vmem [shape: f32[8,32], index: 4, kind: input, shape index: {}]
  %s5 = inlined_call_operand.vmem [shape: f32[8,32], index: 5, kind: input, shape index: {}]
  %s6 = inlined_call_operand.vmem [shape: f32[32,128], index: 6, kind: input, shape index: {}]
  %s7 = inlined_call_operand.vmem [shape: f32[1,32], index: 7, kind: input, shape index: {}]
  %s8 = inlined_call_operand.vmem [shape: f32[32,96], index: 8, kind: input, shape index: {}]
  %s9 = inlined_call_operand.vmem [shape: f32[16,96], index: 9, kind: input, shape index: {}]
  %s10 = inlined_call_operand.vmem [shape: f32[32,96], index: 10, kind: input, shape index: {}]
  %s11 = inlined_call_operand.vmem [shape: f32[1,96], index: 11, kind: input, shape index: {}]
  %s12 = inlined_call_operand.vmem [shape: f32[1,32], index: 12, kind: input, shape index: {}]
  %s13 = inlined_call_operand.vmem [shape: f32[32,96], index: 13, kind: input, shape index: {}]
  %s14 = inlined_call_operand.vmem [shape: f32[1,96], index: 14, kind: input, shape index: {}]
  %s15 = inlined_call_operand.vmem [shape: f32[1,32], index: 15, kind: input, shape index: {}]
  %s16 = inlined_call_operand.vmem [shape: f32[32,32], index: 16, kind: input, shape index: {}]
  %s17 = inlined_call_operand.vmem [shape: f32[1,32], index: 17, kind: input, shape index: {}]
  %s18 = inlined_call_operand.hbm [shape: f32[6,8,32], index: 18, kind: output, shape index: {0}]
  %s19 = inlined_call_operand.hbm [shape: f32[6,8,10], index: 19, kind: output, shape index: {1}]
  %s20 = inlined_call_operand.hbm [shape: f32[2,8,32], index: 20, kind: output, shape index: {2}]
  %21 = xla_tuple %s18, %s19, %s20
  %s22 = sld [smem:[#allocation0]]
  $region98: #{tpu_custom_call.1} parent=0
    _
  %s24 = ssub.s32 1, %s22
  %s25 = scalar_select 0, %s24, %s22
  $region1: #{tpu_custom_call.1} parent=0
    #allocation2 [shape = 'u8[24576]{0}', space=vmem, size = 0x6000, scoped, tag = 'output window, operand 0, single buffered']
    #allocation3 [shape = 's32[1]{0}', space=sflag, size = 0x4, scoped, tag = 'scoped memory for tpu_custom_call.1']
    #allocation4 [shape = 'u8[24576]{0}', space=vmem, size = 0x6000, scoped, tag = 'output window, operand 1, single buffered']
    #allocation5 [shape = 's32[1]{0}', space=sflag, size = 0x4, scoped, tag = 'scoped memory for tpu_custom_call.1']
    #allocation6 [shape = 'u8[8192]{0}', space=vmem, size = 0x2000, scoped, tag = 'output window, operand 2, single buffered']
    %26 = vsyncpa [#allocation3], 0
    %27 = vsyncpa [#allocation5], 0
    // Predicated region
    $region2: #{tpu_custom_call.1} parent=1 // pred_check
      _
    $region3: #{tpu_custom_call.1} parent=1 // pred_check_branch
      %29 = sbr.rel (0) target = $region5
    $region4: #{tpu_custom_call.1} parent=1 // pred_region
      _
    $region5: #{tpu_custom_call.1} parent=1 // pred_fallthru
      _
    // Predicated region
    $region6: #{tpu_custom_call.1} parent=1 // pred_check
      _
    $region7: #{tpu_custom_call.1} parent=1 // pred_check_branch
      %31 = sbr.rel (0) target = $region9
    $region8: #{tpu_custom_call.1} parent=1 // pred_region
      _
    $region9: #{tpu_custom_call.1} parent=1 // pred_fallthru
      _
    // Predicated region
    $region10: #{tpu_custom_call.1} parent=1 // pred_check
      _
    $region11: #{tpu_custom_call.1} parent=1 // pred_check_branch
      %33 = sbr.rel (0) target = $region13
    $region12: #{tpu_custom_call.1} parent=1 // pred_region
      _
    $region13: #{tpu_custom_call.1} parent=1 // pred_fallthru
      _
    // Predicated region
    $region14: #{tpu_custom_call.1} parent=1 // pred_check
      _
    $region15: #{tpu_custom_call.1} parent=1 // pred_check_branch
      %35 = sbr.rel (0) target = $region17
    $region16: #{tpu_custom_call.1} parent=1 // pred_region
      _
    $region17: #{tpu_custom_call.1} parent=1 // pred_fallthru
      _
    // Predicated region
    $region18: #{tpu_custom_call.1} parent=1 // pred_check
      _
    $region19: #{tpu_custom_call.1} parent=1 // pred_check_branch
      %37 = sbr.rel (0) target = $region21
    $region20: #{tpu_custom_call.1} parent=1 // pred_region
      _
    $region21: #{tpu_custom_call.1} parent=1 // pred_fallthru
      _
    // Predicated region
    $region22: #{tpu_custom_call.1} parent=1 // pred_check
      _
    $region23: #{tpu_custom_call.1} parent=1 // pred_check_branch
      %39 = sbr.rel (0) target = $region25
    $region24: #{tpu_custom_call.1} parent=1 // pred_region
      _
    $region25: #{tpu_custom_call.1} parent=1 // pred_fallthru
      _
    // Predicated region
    $region26: #{tpu_custom_call.1} parent=1 // pred_check
      _
    $region27: #{tpu_custom_call.1} parent=1 // pred_check_branch
      %41 = sbr.rel (0) target = $region29
    $region28: #{tpu_custom_call.1} parent=1 // pred_region
      _
    $region29: #{tpu_custom_call.1} parent=1 // pred_fallthru
      _
    // Predicated region
    $region30: #{tpu_custom_call.1} parent=1 // pred_check
      _
    $region31: #{tpu_custom_call.1} parent=1 // pred_check_branch
      %43 = sbr.rel (0) target = $region33
    $region32: #{tpu_custom_call.1} parent=1 // pred_region
      _
    $region33: #{tpu_custom_call.1} parent=1 // pred_fallthru
      _
    // Predicated region
    $region34: #{tpu_custom_call.1} parent=1 // pred_check
      _
    $region35: #{tpu_custom_call.1} parent=1 // pred_check_branch
      %45 = sbr.rel (0) target = $region37
    $region36: #{tpu_custom_call.1} parent=1 // pred_region
      _
    $region37: #{tpu_custom_call.1} parent=1 // pred_fallthru
      _
    // Predicated region
    $region38: #{tpu_custom_call.1} parent=1 // pred_check
      _
    $region39: #{tpu_custom_call.1} parent=1 // pred_check_branch
      %47 = sbr.rel (0) target = $region41
    $region40: #{tpu_custom_call.1} parent=1 // pred_region
      _
    $region41: #{tpu_custom_call.1} parent=1 // pred_fallthru
      _
    // Predicated region
    $region42: #{tpu_custom_call.1} parent=1 // pred_check
      _
    $region43: #{tpu_custom_call.1} parent=1 // pred_check_branch
      %49 = sbr.rel (0) target = $region45
    $region44: #{tpu_custom_call.1} parent=1 // pred_region
      _
    $region45: #{tpu_custom_call.1} parent=1 // pred_fallthru
      _
    // Predicated region
    $region46: #{tpu_custom_call.1} parent=1 // pred_check
      _
    $region47: #{tpu_custom_call.1} parent=1 // pred_check_branch
      %51 = sbr.rel (0) target = $region49
    $region48: #{tpu_custom_call.1} parent=1 // pred_region
      _
    $region49: #{tpu_custom_call.1} parent=1 // pred_fallthru
      _
    // Predicated region
    $region50: #{tpu_custom_call.1} parent=1 // pred_check
      _
    $region51: #{tpu_custom_call.1} parent=1 // pred_check_branch
      %53 = sbr.rel (0) target = $region53
    $region52: #{tpu_custom_call.1} parent=1 // pred_region
      _
    $region53: #{tpu_custom_call.1} parent=1 // pred_fallthru
      _
    // Predicated region
    $region54: #{tpu_custom_call.1} parent=1 // pred_check
      _
    $region55: #{tpu_custom_call.1} parent=1 // pred_check_branch
      %55 = sbr.rel (0) target = $region57
    $region56: #{tpu_custom_call.1} parent=1 // pred_region
      _
    $region57: #{tpu_custom_call.1} parent=1 // pred_fallthru
      _
    // Predicated region
    $region58: #{tpu_custom_call.1} parent=1 // pred_check
      _
    $region59: #{tpu_custom_call.1} parent=1 // pred_check_branch
      %57 = sbr.rel (0) target = $region61
    $region60: #{tpu_custom_call.1} parent=1 // pred_region
      _
    $region61: #{tpu_custom_call.1} parent=1 // pred_fallthru
      _
    // Predicated region
    $region62: #{tpu_custom_call.1} parent=1 // pred_check
      _
    $region63: #{tpu_custom_call.1} parent=1 // pred_check_branch
      %59 = sbr.rel (0) target = $region65
    $region64: #{tpu_custom_call.1} parent=1 // pred_region
      _
    $region65: #{tpu_custom_call.1} parent=1 // pred_fallthru
      _
    // Predicated region
    $region66: #{tpu_custom_call.1} parent=1 // pred_check
      _
    $region67: #{tpu_custom_call.1} parent=1 // pred_check_branch
      %61 = sbr.rel (0) target = $region69
    $region68: #{tpu_custom_call.1} parent=1 // pred_region
      _
    $region69: #{tpu_custom_call.1} parent=1 // pred_fallthru
      _
    // Predicated region
    $region70: #{tpu_custom_call.1} parent=1 // pred_check
      _
    $region71: #{tpu_custom_call.1} parent=1 // pred_check_branch
      %63 = sbr.rel (0) target = $region73
    $region72: #{tpu_custom_call.1} parent=1 // pred_region
      _
    $region73: #{tpu_custom_call.1} parent=1 // pred_fallthru
      _
    %v64 = vld [vmem:[%s1] sm:$0xff]
    %v65 = vld [vmem:[%s1 + $0x8] sm:$0x3]
    %v66 = vld [vmem:[%s1 + $0x10] sm:$0xff]
    %v67 = vld [vmem:[%s1 + $0x18] sm:$0x3]
    %v68 = vld [vmem:[%s1 + $0x20] sm:$0xff]
    %v69 = vld [vmem:[%s1 + $0x28] sm:$0x3]
    %v70 = vld [vmem:[%s1 + $0x30] sm:$0xff]
    %v71 = vld [vmem:[%s1 + $0x38] sm:$0x3]
    %v72 = vld [vmem:[%s1 + $0x40] sm:$0xff]
    %v73 = vld [vmem:[%s1 + $0x48] sm:$0x3]
    %v74 = vld [vmem:[%s1 + $0x50] sm:$0xff]
    %v75 = vld [vmem:[%s1 + $0x58] sm:$0x3]
    %v76 = vld [vmem:[%s1 + $0x60] sm:$0xff]
    %v77 = vld [vmem:[%s1 + $0x68] sm:$0x3]
    %v78 = vld [vmem:[%s1 + $0x70] sm:$0xff]
    %v79 = vld [vmem:[%s1 + $0x78] sm:$0x3]
    %v80 = vld [vmem:[%s2] sm:$0xff]
    %v81 = vld [vmem:[%s2 + $0x8] sm:$0x3]
    %v82 = vld [vmem:[%s2 + $0x10] sm:$0xff]
    %v83 = vld [vmem:[%s2 + $0x18] sm:$0x3]
    %v84 = vld [vmem:[%s2 + $0x20] sm:$0xff]
    %v85 = vld [vmem:[%s2 + $0x28] sm:$0x3]
    %v86 = vld [vmem:[%s2 + $0x30] sm:$0xff]
    %v87 = vld [vmem:[%s2 + $0x38] sm:$0x3]
    %v88 = vld [vmem:[%s2 + $0x40] sm:$0xff]
    %v89 = vld [vmem:[%s2 + $0x48] sm:$0x3]
    %v90 = vld [vmem:[%s2 + $0x50] sm:$0xff]
    %v91 = vld [vmem:[%s2 + $0x58] sm:$0x3]
    %v92 = vld [vmem:[%s2 + $0x60] sm:$0xff]
    %v93 = vld [vmem:[%s2 + $0x68] sm:$0x3]
    %v94 = vld [vmem:[%s2 + $0x70] sm:$0xff]
    %v95 = vld [vmem:[%s2 + $0x78] sm:$0x3]
    %v96 = vld [vmem:[%s3] sm:$0xff]
    %v97 = vld [vmem:[%s7] sm:$0x1]
    %v98 = vld [vmem:[%s6] sm:$0xff]
    %v99 = vld [vmem:[%s6 + $0x8] sm:$0xff]
    %v100 = vld [vmem:[%s6 + $0x10] sm:$0xff]
    %v101 = vld [vmem:[%s6 + $0x18] sm:$0xff]
    %v102 = vld [vmem:[%s8] sm:$0xff]
    %v103 = vld [vmem:[%s8 + $0x8] sm:$0xff]
    %v104 = vld [vmem:[%s8 + $0x10] sm:$0xff]
    %v105 = vld [vmem:[%s8 + $0x18] sm:$0xff]
    %v106 = vld [vmem:[%s9] sm:$0xff]
    %v107 = vld [vmem:[%s9 + $0x8] sm:$0xff]
    %v108 = vld [vmem:[%s10] sm:$0xff]
    %v109 = vld [vmem:[%s10 + $0x8] sm:$0xff]
    %v110 = vld [vmem:[%s10 + $0x10] sm:$0xff]
    %v111 = vld [vmem:[%s10 + $0x18] sm:$0xff]
    %v112 = vld [vmem:[%s11] sm:$0x1]
    %v113 = vld [vmem:[%s12] sm:$0x1]
    %v114 = vld [vmem:[%s13] sm:$0xff]
    %v115 = vld [vmem:[%s13 + $0x8] sm:$0xff]
    %v116 = vld [vmem:[%s13 + $0x10] sm:$0xff]
    %v117 = vld [vmem:[%s13 + $0x18] sm:$0xff]
    %v118 = vld [vmem:[%s14] sm:$0x1]
    %v119 = vld [vmem:[%s15] sm:$0x1]
    %v120 = vld [vmem:[%s16] sm:$0xff]
    %v121 = vld [vmem:[%s16 + $0x8] sm:$0xff]
    %v122 = vld [vmem:[%s16 + $0x10] sm:$0xff]
    %v123 = vld [vmem:[%s16 + $0x18] sm:$0xff]
    %v124 = vld [vmem:[%s17] sm:$0x1]
    %v125 = vld [vmem:[%s4] sm:$0xff]
    %v126 = vld [vmem:[%s5] sm:$0xff]
    %vm127 = vcmask 261120
    %v129 = vsel %vm127, %v126, 0
    %131 = vmatprep.subr.mxu0 0.0
    %132 = vmatpush1.msra.mxu0 %v98
    %133 = vmatprep.subr.mxu0 0.0
    %134 = vmatpush1.msra.mxu0 %v99
    %135 = vmatprep.subr.mxu0 0.0
    %136 = vmatpush1.msra.mxu0 %v100
    %137 = vmatprep.subr.mxu0 0.0
    %138 = vmatpush1.msra.mxu0 %v101
    %139 = vmatprep.subr.mxu0 0.0
    %140 = vmatpush1.msra.mxu0 0.0
    %141 = vmatprep.subr.mxu0 0.0
    %142 = vmatpush1.msra.mxu0 0.0
    %143 = vmatprep.subr.mxu0 0.0
    %144 = vmatpush1.msra.mxu0 0.0
    %145 = vmatprep.subr.mxu0 0.0
    %146 = vmatpush1.msra.mxu0 0.0
    %147 = vmatprep.subr.mxu0 0.0
    %148 = vmatpush1.msra.mxu0 0.0
    %149 = vmatprep.subr.mxu0 0.0
    %150 = vmatpush1.msra.mxu0 0.0
    %151 = vmatprep.subr.mxu0 0.0
    %152 = vmatpush1.msra.mxu0 0.0
    %153 = vmatprep.subr.mxu0 0.0
    %154 = vmatpush1.msra.mxu0 0.0
    %155 = vmatprep.subr.mxu0 0.0
    %156 = vmatpush1.msra.mxu0 0.0
    %157 = vmatprep.subr.mxu0 0.0
    %158 = vmatpush1.msra.mxu0 0.0
    %159 = vmatprep.subr.mxu0 0.0
    %160 = vmatpush1.msra.mxu0 0.0
    %161 = vmatprep.subr.mxu0 0.0
    %162 = vmatpush1.msra.mxu0 0.0
    %163 = vmatprep.subr.mxu0 0.0
    %164 = vmatpush1.msra.mxu0 0.0
    %165 = vmatprep.subr.mxu0 0.0
    %166 = vmatpush1.msra.mxu0 0.0
    %167 = vmatprep.subr.mxu0 0.0
    %168 = vmatpush1.msra.mxu0 0.0
    %169 = vmatprep.subr.mxu0 0.0
    %170 = vmatpush1.msra.mxu0 0.0
    %171 = vmatprep.subr.mxu0 0.0
    %172 = vmatpush1.msra.mxu0 0.0
    %173 = vmatprep.subr.mxu0 0.0
    %174 = vmatpush1.msra.mxu0 0.0
    %175 = vmatprep.subr.mxu0 0.0
    %176 = vmatpush1.msra.mxu0 0.0
    %177 = vmatprep.subr.mxu0 0.0
    %178 = vmatpush1.msra.mxu0 0.0
    %179 = vmatprep.subr.mxu0 0.0
    %180 = vmatpush1.msra.mxu0 0.0
    %181 = vmatprep.subr.mxu0 0.0
    %182 = vmatpush1.msra.mxu0 0.0
    %183 = vmatprep.subr.mxu0 0.0
    %184 = vmatpush1.msra.mxu0 0.0
    %185 = vmatprep.subr.mxu0 0.0
    %186 = vmatpush1.msra.mxu0 0.0
    %187 = vmatprep.subr.mxu0 0.0
    %188 = vmatpush1.msra.mxu0 0.0
    %189 = vmatprep.subr.mxu0 0.0
    %190 = vmatpush1.msra.mxu0 0.0
    %191 = vmatprep.subr.mxu0 0.0
    %192 = vmatpush1.msra.mxu0 0.0
    %193 = vmatprep.subr.mxu0 0.0
    %194 = vmatpush1.msra.mxu0 0.0
    %195 = vmatprep.mubr.f32.mxu0 0.0
    %196 = vmatmul.mubr.f32.gmra.mrb[0].mxu0 %v129
    %v197 = vpop.f32.mrb[0].mxu0
    %v198 = vadd.f32 0.0, %v197
    %v199 = vpop.f32.mrb[0].mxu0
    %200 = vdwg.mxu0
    %v202 = vcombine.high %v198, %v198
    %v204 = vunpack.c.l.s4 1966171168
    %v205 = vunpack.c.0.s8 %v204
    %v206 = vlaneseq
    %v207 = vshrl.u32 %v206, 7
    %v208 = vsub.s32 %v205, %v207
    %v209 = vrot.slane %v198, %v208
    %v211 = vunpack.c.l.s4 1966171168
    %v212 = vunpack.c.0.s8 %v211
    %v213 = vlaneseq
    %v214 = vshrl.u32 %v213, 7
    %v215 = vsub.s32 %v212, %v214
    %v216 = vrot.slane %v202, %v215
    %v217 = vcombine.high %v209, %v209
    %v218 = vcombine.high %v216, %v216
    %v220 = vunpack.c.l.s4 1966171168
    %v221 = vunpack.c.0.s8 %v220
    %v222 = vlaneseq
    %v223 = vshrl.u32 %v222, 7
    %v224 = vsub.s32 %v221, %v223
    %v225 = vrot.slane %v209, %v224
    %v227 = vunpack.c.l.s4 1966171168
    %v228 = vunpack.c.0.s8 %v227
    %v229 = vlaneseq
    %v230 = vshrl.u32 %v229, 7
    %v231 = vsub.s32 %v228, %v230
    %v232 = vrot.slane %v216, %v231
    %v234 = vunpack.c.l.s4 1966171168
    %v235 = vunpack.c.0.s8 %v234
    %v236 = vlaneseq
    %v237 = vshrl.u32 %v236, 7
    %v238 = vsub.s32 %v235, %v237
    %v239 = vrot.slane %v217, %v238
    %v241 = vunpack.c.l.s4 1966171168
    %v242 = vunpack.c.0.s8 %v241
    %v243 = vlaneseq
    %v244 = vshrl.u32 %v243, 7
    %v245 = vsub.s32 %v242, %v244
    %v246 = vrot.slane %v218, %v245
    %v247 = vcombine.high %v225, %v225
    %v248 = vcombine.high %v232, %v232
    %v249 = vcombine.high %v239, %v239
    %v250 = vcombine.high %v246, %v246
    %v251 = vlaneseq
    %v252 = vshrl.u32 %v251, 7
    %v253 = vsub.s32 0, %v252
    %v254 = vrot.slane %v225, %v253
    %v255 = vlaneseq
    %v256 = vshrl.u32 %v255, 7
    %v257 = vsub.s32 0, %v256
    %v258 = vrot.slane %v239, %v257
    %v259 = vlaneseq
    %v260 = vshrl.u32 %v259, 7
    %v261 = vsub.s32 0, %v260
    %v262 = vrot.slane %v247, %v261
    %v263 = vlaneseq
    %v264 = vshrl.u32 %v263, 7
    %v265 = vsub.s32 0, %v264
    %v266 = vrot.slane %v249, %v265
    %v267 = vlaneseq
    %v268 = vshrl.u32 %v267, 7
    %v269 = vsub.s32 0, %v268
    %v270 = vrot.slane %v232, %v269
    %v271 = vlaneseq
    %v272 = vshrl.u32 %v271, 7
    %v273 = vsub.s32 0, %v272
    %v274 = vrot.slane %v246, %v273
    %v275 = vlaneseq
    %v276 = vshrl.u32 %v275, 7
    %v277 = vsub.s32 0, %v276
    %v278 = vrot.slane %v248, %v277
    %v279 = vlaneseq
    %v280 = vshrl.u32 %v279, 7
    %v281 = vsub.s32 0, %v280
    %v282 = vrot.slane %v250, %v281
    %v291 = vadd.f32 %v254, %v80
    %v292 = vadd.f32 %v254, %v81
    %v293 = vadd.f32 %v258, %v82
    %v294 = vadd.f32 %v258, %v83
    %v295 = vadd.f32 %v262, %v84
    %v296 = vadd.f32 %v262, %v85
    %v297 = vadd.f32 %v266, %v86
    %v298 = vadd.f32 %v266, %v87
    %v299 = vadd.f32 %v270, %v88
    %v300 = vadd.f32 %v270, %v89
    %v301 = vadd.f32 %v274, %v90
    %v302 = vadd.f32 %v274, %v91
    %v303 = vadd.f32 %v278, %v92
    %v304 = vadd.f32 %v278, %v93
    %v305 = vadd.f32 %v282, %v94
    %v306 = vadd.f32 %v282, %v95
    %v307 = vtanh.pop %v291
    %v308 = vtanh.pop %v292
    %v309 = vtanh.pop %v293
    %v310 = vtanh.pop %v294
    %v311 = vtanh.pop %v295
    %v312 = vtanh.pop %v296
    %v313 = vtanh.pop %v297
    %v314 = vtanh.pop %v298
    %v315 = vtanh.pop %v299
    %v316 = vtanh.pop %v300
    %v317 = vtanh.pop %v301
    %v318 = vtanh.pop %v302
    %v319 = vtanh.pop %v303
    %v320 = vtanh.pop %v304
    %v321 = vtanh.pop %v305
    %v322 = vtanh.pop %v306
    %v324 = vlaneseq
    %v325 = vshrl.u32 %v324, 7
    %v326 = vsub.s32 0, %v325
    %v327 = vrot.slane %v97, %v326
    %v329 = vmul.f32 %v307, %v327
    %v330 = vmul.f32 %v308, %v327
    %v331 = vmul.f32 %v309, %v327
    %v332 = vmul.f32 %v310, %v327
    %v333 = vmul.f32 %v311, %v327
    %v334 = vmul.f32 %v312, %v327
    %v335 = vmul.f32 %v313, %v327
    %v336 = vmul.f32 %v314, %v327
    %v337 = vmul.f32 %v315, %v327
    %v338 = vmul.f32 %v316, %v327
    %v339 = vmul.f32 %v317, %v327
    %v340 = vmul.f32 %v318, %v327
    %v341 = vmul.f32 %v319, %v327
    %v342 = vmul.f32 %v320, %v327
    %v343 = vmul.f32 %v321, %v327
    %v344 = vmul.f32 %v322, %v327
    %v345 = vsel %vm127, %v329, 0.0
    %346 = vadd.xlane.f32.xlu0 %v345
    %v347 = vpop.xlane.xlu0 %346
    %vm348 = vcmask 254976
    %v349 = vsel %vm348, %v330, 0.0
    %350 = vadd.xlane.f32.xlu0 %v349
    %v351 = vpop.xlane.xlu0 %350
    %v352 = vsel %vm127, %v331, 0.0
    %353 = vadd.xlane.f32.xlu0 %v352
    %v354 = vpop.xlane.xlu0 %353
    %v355 = vsel %vm348, %v332, 0.0
    %356 = vadd.xlane.f32.xlu0 %v355
    %v357 = vpop.xlane.xlu0 %356
    %v358 = vsel %vm127, %v333, 0.0
    %359 = vadd.xlane.f32.xlu0 %v358
    %v360 = vpop.xlane.xlu0 %359
    %v361 = vsel %vm348, %v334, 0.0
    %362 = vadd.xlane.f32.xlu0 %v361
    %v363 = vpop.xlane.xlu0 %362
    %v364 = vsel %vm127, %v335, 0.0
    %365 = vadd.xlane.f32.xlu0 %v364
    %v366 = vpop.xlane.xlu0 %365
    %v367 = vsel %vm348, %v336, 0.0
    %368 = vadd.xlane.f32.xlu0 %v367
    %v369 = vpop.xlane.xlu0 %368
    %v370 = vsel %vm127, %v337, 0.0
    %371 = vadd.xlane.f32.xlu0 %v370
    %v372 = vpop.xlane.xlu0 %371
    %v373 = vsel %vm348, %v338, 0.0
    %374 = vadd.xlane.f32.xlu0 %v373
    %v375 = vpop.xlane.xlu0 %374
    %v376 = vsel %vm127, %v339, 0.0
    %377 = vadd.xlane.f32.xlu0 %v376
    %v378 = vpop.xlane.xlu0 %377
    %v379 = vsel %vm348, %v340, 0.0
    %380 = vadd.xlane.f32.xlu0 %v379
    %v381 = vpop.xlane.xlu0 %380
    %v382 = vsel %vm127, %v341, 0.0
    %383 = vadd.xlane.f32.xlu0 %v382
    %v384 = vpop.xlane.xlu0 %383
    %v385 = vsel %vm348, %v342, 0.0
    %386 = vadd.xlane.f32.xlu0 %v385
    %v387 = vpop.xlane.xlu0 %386
    %v388 = vsel %vm127, %v343, 0.0
    %389 = vadd.xlane.f32.xlu0 %v388
    %v390 = vpop.xlane.xlu0 %389
    %v391 = vsel %vm348, %v344, 0.0
    %392 = vadd.xlane.f32.xlu0 %v391
    %v393 = vpop.xlane.xlu0 %392
    %v395 = vlaneseq
    %v396 = vshrl.u32 %v395, 7
    %v397 = vsub.s32 0, %v396
    %v398 = vrot.slane %v96, %v397
    %400 = vbcast.lane.b32.xlu0 %v398, 256
    %v401 = vpop.permute.xlu0 %400
    %s403 = sor.u32 256, 8
    %404 = vbcast.lane.b32.xlu0 %v398, %s403
    %v405 = vpop.permute.xlu0 %404
    %v406 = vlaneseq
    %v407 = vshrl.u32 %v406, 7
    %v408 = vsub.s32 1, %v407
    %v409 = vrot.slane %v96, %v408
    %411 = vbcast.lane.b32.xlu0 %v409, 256
    %v412 = vpop.permute.xlu0 %411
    %s414 = sor.u32 256, 8
    %415 = vbcast.lane.b32.xlu0 %v409, %s414
    %v416 = vpop.permute.xlu0 %415
    %v417 = vlaneseq
    %v418 = vshrl.u32 %v417, 7
    %v419 = vsub.s32 2, %v418
    %v420 = vrot.slane %v96, %v419
    %422 = vbcast.lane.b32.xlu0 %v420, 256
    %v423 = vpop.permute.xlu0 %422
    %s425 = sor.u32 256, 8
    %426 = vbcast.lane.b32.xlu0 %v420, %s425
    %v427 = vpop.permute.xlu0 %426
    %v428 = vlaneseq
    %v429 = vshrl.u32 %v428, 7
    %v430 = vsub.s32 3, %v429
    %v431 = vrot.slane %v96, %v430
    %433 = vbcast.lane.b32.xlu0 %v431, 256
    %v434 = vpop.permute.xlu0 %433
    %s436 = sor.u32 256, 8
    %437 = vbcast.lane.b32.xlu0 %v431, %s436
    %v438 = vpop.permute.xlu0 %437
    %v439 = vlaneseq
    %v440 = vshrl.u32 %v439, 7
    %v441 = vsub.s32 4, %v440
    %v442 = vrot.slane %v96, %v441
    %444 = vbcast.lane.b32.xlu0 %v442, 256
    %v445 = vpop.permute.xlu0 %444
    %s447 = sor.u32 256, 8
    %448 = vbcast.lane.b32.xlu0 %v442, %s447
    %v449 = vpop.permute.xlu0 %448
    %v450 = vlaneseq
    %v451 = vshrl.u32 %v450, 7
    %v452 = vsub.s32 5, %v451
    %v453 = vrot.slane %v96, %v452
    %455 = vbcast.lane.b32.xlu0 %v453, 256
    %v456 = vpop.permute.xlu0 %455
    %s458 = sor.u32 256, 8
    %459 = vbcast.lane.b32.xlu0 %v453, %s458
    %v460 = vpop.permute.xlu0 %459
    %v461 = vlaneseq
    %v462 = vshrl.u32 %v461, 7
    %v463 = vsub.s32 6, %v462
    %v464 = vrot.slane %v96, %v463
    %466 = vbcast.lane.b32.xlu0 %v464, 256
    %v467 = vpop.permute.xlu0 %466
    %s469 = sor.u32 256, 8
    %470 = vbcast.lane.b32.xlu0 %v464, %s469
    %v471 = vpop.permute.xlu0 %470
    %v472 = vlaneseq
    %v473 = vshrl.u32 %v472, 7
    %v474 = vsub.s32 7, %v473
    %v475 = vrot.slane %v96, %v474
    %477 = vbcast.lane.b32.xlu0 %v475, 256
    %v478 = vpop.permute.xlu0 %477
    %s480 = sor.u32 256, 8
    %481 = vbcast.lane.b32.xlu0 %v475, %s480
    %v482 = vpop.permute.xlu0 %481
    %v499 = vadd.f32 %v347, %v401
    %v500 = vadd.f32 %v351, %v405
    %v501 = vadd.f32 %v354, %v412
    %v502 = vadd.f32 %v357, %v416
    %v503 = vadd.f32 %v360, %v423
    %v504 = vadd.f32 %v363, %v427
    %v505 = vadd.f32 %v366, %v434
    %v506 = vadd.f32 %v369, %v438
    %v507 = vadd.f32 %v372, %v445
    %v508 = vadd.f32 %v375, %v449
    %v509 = vadd.f32 %v378, %v456
    %v510 = vadd.f32 %v381, %v460
    %v511 = vadd.f32 %v384, %v467
    %v512 = vadd.f32 %v387, %v471
    %v513 = vadd.f32 %v390, %v478
    %v514 = vadd.f32 %v393, %v482
    %531 = vset.pattern.permute.xlu0 0
    %532 = vperm.xlu0 %531, %v499
    %v533 = vpop.permute.xlu0 %532
    %534 = vset.pattern.permute.xlu0 0
    %535 = vperm.xlu0 %534, %v500
    %v536 = vpop.permute.xlu0 %535
    %537 = vset.pattern.permute.xlu0 0
    %538 = vperm.xlu0 %537, %v501
    %v539 = vpop.permute.xlu0 %538
    %540 = vset.pattern.permute.xlu0 0
    %541 = vperm.xlu0 %540, %v502
    %v542 = vpop.permute.xlu0 %541
    %543 = vset.pattern.permute.xlu0 0
    %544 = vperm.xlu0 %543, %v503
    %v545 = vpop.permute.xlu0 %544
    %546 = vset.pattern.permute.xlu0 0
    %547 = vperm.xlu0 %546, %v504
    %v548 = vpop.permute.xlu0 %547
    %549 = vset.pattern.permute.xlu0 0
    %550 = vperm.xlu0 %549, %v505
    %v551 = vpop.permute.xlu0 %550
    %552 = vset.pattern.permute.xlu0 0
    %553 = vperm.xlu0 %552, %v506
    %v554 = vpop.permute.xlu0 %553
    %555 = vset.pattern.permute.xlu0 0
    %556 = vperm.xlu0 %555, %v507
    %v557 = vpop.permute.xlu0 %556
    %558 = vset.pattern.permute.xlu0 0
    %559 = vperm.xlu0 %558, %v508
    %v560 = vpop.permute.xlu0 %559
    %561 = vset.pattern.permute.xlu0 0
    %562 = vperm.xlu0 %561, %v509
    %v563 = vpop.permute.xlu0 %562
    %564 = vset.pattern.permute.xlu0 0
    %565 = vperm.xlu0 %564, %v510
    %v566 = vpop.permute.xlu0 %565
    %567 = vset.pattern.permute.xlu0 0
    %568 = vperm.xlu0 %567, %v511
    %v569 = vpop.permute.xlu0 %568
    %570 = vset.pattern.permute.xlu0 0
    %571 = vperm.xlu0 %570, %v512
    %v572 = vpop.permute.xlu0 %571
    %573 = vset.pattern.permute.xlu0 0
    %574 = vperm.xlu0 %573, %v513
    %v575 = vpop.permute.xlu0 %574
    %576 = vset.pattern.permute.xlu0 0
    %577 = vperm.xlu0 %576, %v514
    %v578 = vpop.permute.xlu0 %577
    %v579 = vlaneseq
    %v580 = vand.u32 %v579, 127
    %v581 = vlaneseq
    %v582 = vshrl.u32 %v581, 7
    %v583 = vsub.s32 %v580, %v582
    %v584 = vrot.slane %v533, %v583
    %v585 = vadd.s32 %v580, 4294967288
    %v586 = vlaneseq
    %v587 = vshrl.u32 %v586, 7
    %v588 = vsub.s32 %v585, %v587
    %v589 = vrot.slane %v536, %v588
    %vm590 = vcmask 130112
    %v591 = vsel %vm590, %v589, %v584
    %v592 = vlaneseq
    %v593 = vshrl.u32 %v592, 7
    %v594 = vsub.s32 %v580, %v593
    %v595 = vrot.slane %v539, %v594
    %v596 = vlaneseq
    %v597 = vshrl.u32 %v596, 7
    %v598 = vsub.s32 %v585, %v597
    %v599 = vrot.slane %v542, %v598
    %v600 = vsel %vm590, %v599, %v595
    %v601 = vlaneseq
    %v602 = vshrl.u32 %v601, 7
    %v603 = vsub.s32 %v580, %v602
    %v604 = vrot.slane %v545, %v603
    %v605 = vlaneseq
    %v606 = vshrl.u32 %v605, 7
    %v607 = vsub.s32 %v585, %v606
    %v608 = vrot.slane %v548, %v607
    %v609 = vsel %vm590, %v608, %v604
    %v610 = vlaneseq
    %v611 = vshrl.u32 %v610, 7
    %v612 = vsub.s32 %v580, %v611
    %v613 = vrot.slane %v551, %v612
    %v614 = vlaneseq
    %v615 = vshrl.u32 %v614, 7
    %v616 = vsub.s32 %v585, %v615
    %v617 = vrot.slane %v554, %v616
    %v618 = vsel %vm590, %v617, %v613
    %v619 = vlaneseq
    %v620 = vshrl.u32 %v619, 7
    %v621 = vsub.s32 %v580, %v620
    %v622 = vrot.slane %v557, %v621
    %v623 = vlaneseq
    %v624 = vshrl.u32 %v623, 7
    %v625 = vsub.s32 %v585, %v624
    %v626 = vrot.slane %v560, %v625
    %v627 = vsel %vm590, %v626, %v622
    %v628 = vlaneseq
    %v629 = vshrl.u32 %v628, 7
    %v630 = vsub.s32 %v580, %v629
    %v631 = vrot.slane %v563, %v630
    %v632 = vlaneseq
    %v633 = vshrl.u32 %v632, 7
    %v634 = vsub.s32 %v585, %v633
    %v635 = vrot.slane %v566, %v634
    %v636 = vsel %vm590, %v635, %v631
    %v637 = vlaneseq
    %v638 = vshrl.u32 %v637, 7
    %v639 = vsub.s32 %v580, %v638
    %v640 = vrot.slane %v569, %v639
    %v641 = vlaneseq
    %v642 = vshrl.u32 %v641, 7
    %v643 = vsub.s32 %v585, %v642
    %v644 = vrot.slane %v572, %v643
    %v645 = vsel %vm590, %v644, %v640
    %v646 = vlaneseq
    %v647 = vshrl.u32 %v646, 7
    %v648 = vsub.s32 %v580, %v647
    %v649 = vrot.slane %v575, %v648
    %v650 = vlaneseq
    %v651 = vshrl.u32 %v650, 7
    %v652 = vsub.s32 %v585, %v651
    %v653 = vrot.slane %v578, %v652
    %v654 = vsel %vm590, %v653, %v649
    %vm655 = vcmask 1041409
    %v656 = vsel %vm655, %v600, %v591
    %vm657 = vcmask 1042434
    %v658 = vsel %vm657, %v609, %v656
    %vm659 = vcmask 1043459
    %v660 = vsel %vm659, %v618, %v658
    %vm661 = vcmask 1044484
    %v662 = vsel %vm661, %v627, %v660
    %vm663 = vcmask 1045509
    %v664 = vsel %vm663, %v636, %v662
    %vm665 = vcmask 1046534
    %v666 = vsel %vm665, %v645, %v664
    %vm667 = vcmask 1047559
    %v668 = vsel %vm667, %v654, %v666
    %vm670 = vcmask 80896
    %v671 = vsel %vm670, %v668, -inf
    %672 = vmax.xlane.f32.xlu0 %v671
    %v673 = vpop.xlane.xlu0 %672
    %v675 = vlaneseq
    %v676 = vshrl.u32 %v675, 7
    %v677 = vsub.s32 0, %v676
    %v678 = vrot.slane %v673, %v677
    %v679 = vlaneseq
    %v680 = vshrl.u32 %v679, 7
    %v681 = vsub.s32 1, %v680
    %v682 = vrot.slane %v673, %v681
    %v683 = vlaneseq
    %v684 = vshrl.u32 %v683, 7
    %v685 = vsub.s32 2, %v684
    %v686 = vrot.slane %v673, %v685
    %v687 = vlaneseq
    %v688 = vshrl.u32 %v687, 7
    %v689 = vsub.s32 3, %v688
    %v690 = vrot.slane %v673, %v689
    %v691 = vlaneseq
    %v692 = vshrl.u32 %v691, 7
    %v693 = vsub.s32 4, %v692
    %v694 = vrot.slane %v673, %v693
    %v695 = vlaneseq
    %v696 = vshrl.u32 %v695, 7
    %v697 = vsub.s32 5, %v696
    %v698 = vrot.slane %v673, %v697
    %v699 = vlaneseq
    %v700 = vshrl.u32 %v699, 7
    %v701 = vsub.s32 6, %v700
    %v702 = vrot.slane %v673, %v701
    %v703 = vlaneseq
    %v704 = vshrl.u32 %v703, 7
    %v705 = vsub.s32 7, %v704
    %v706 = vrot.slane %v673, %v705
    %v715 = vsub.f32 %v499, %v678
    %v716 = vsub.f32 %v500, %v678
    %v717 = vsub.f32 %v501, %v682
    %v718 = vsub.f32 %v502, %v682
    %v719 = vsub.f32 %v503, %v686
    %v720 = vsub.f32 %v504, %v686
    %v721 = vsub.f32 %v505, %v690
    %v722 = vsub.f32 %v506, %v690
    %v723 = vsub.f32 %v507, %v694
    %v724 = vsub.f32 %v508, %v694
    %v725 = vsub.f32 %v509, %v698
    %v726 = vsub.f32 %v510, %v698
    %v727 = vsub.f32 %v511, %v702
    %v728 = vsub.f32 %v512, %v702
    %v729 = vsub.f32 %v513, %v706
    %v730 = vsub.f32 %v514, %v706
    %v731 = vmul.f32 %v715, 1.442695
    %v732 = vpow.pop %v731
    %v733 = vmul.f32 %v716, 1.442695
    %v734 = vpow.pop %v733
    %v735 = vmul.f32 %v717, 1.442695
    %v736 = vpow.pop %v735
    %v737 = vmul.f32 %v718, 1.442695
    %v738 = vpow.pop %v737
    %v739 = vmul.f32 %v719, 1.442695
    %v740 = vpow.pop %v739
    %v741 = vmul.f32 %v720, 1.442695
    %v742 = vpow.pop %v741
    %v743 = vmul.f32 %v721, 1.442695
    %v744 = vpow.pop %v743
    %v745 = vmul.f32 %v722, 1.442695
    %v746 = vpow.pop %v745
    %v747 = vmul.f32 %v723, 1.442695
    %v748 = vpow.pop %v747
    %v749 = vmul.f32 %v724, 1.442695
    %v750 = vpow.pop %v749
    %v751 = vmul.f32 %v725, 1.442695
    %v752 = vpow.pop %v751
    %v753 = vmul.f32 %v726, 1.442695
    %v754 = vpow.pop %v753
    %v755 = vmul.f32 %v727, 1.442695
    %v756 = vpow.pop %v755
    %v757 = vmul.f32 %v728, 1.442695
    %v758 = vpow.pop %v757
    %v759 = vmul.f32 %v729, 1.442695
    %v760 = vpow.pop %v759
    %v761 = vmul.f32 %v730, 1.442695
    %v762 = vpow.pop %v761
    %779 = vset.pattern.permute.xlu0 0
    %780 = vperm.xlu0 %779, %v732
    %v781 = vpop.permute.xlu0 %780
    %782 = vset.pattern.permute.xlu0 0
    %783 = vperm.xlu0 %782, %v734
    %v784 = vpop.permute.xlu0 %783
    %785 = vset.pattern.permute.xlu0 0
    %786 = vperm.xlu0 %785, %v736
    %v787 = vpop.permute.xlu0 %786
    %788 = vset.pattern.permute.xlu0 0
    %789 = vperm.xlu0 %788, %v738
    %v790 = vpop.permute.xlu0 %789
    %791 = vset.pattern.permute.xlu0 0
    %792 = vperm.xlu0 %791, %v740
    %v793 = vpop.permute.xlu0 %792
    %794 = vset.pattern.permute.xlu0 0
    %795 = vperm.xlu0 %794, %v742
    %v796 = vpop.permute.xlu0 %795
    %797 = vset.pattern.permute.xlu0 0
    %798 = vperm.xlu0 %797, %v744
    %v799 = vpop.permute.xlu0 %798
    %800 = vset.pattern.permute.xlu0 0
    %801 = vperm.xlu0 %800, %v746
    %v802 = vpop.permute.xlu0 %801
    %803 = vset.pattern.permute.xlu0 0
    %804 = vperm.xlu0 %803, %v748
    %v805 = vpop.permute.xlu0 %804
    %806 = vset.pattern.permute.xlu0 0
    %807 = vperm.xlu0 %806, %v750
    %v808 = vpop.permute.xlu0 %807
    %809 = vset.pattern.permute.xlu0 0
    %810 = vperm.xlu0 %809, %v752
    %v811 = vpop.permute.xlu0 %810
    %812 = vset.pattern.permute.xlu0 0
    %813 = vperm.xlu0 %812, %v754
    %v814 = vpop.permute.xlu0 %813
    %815 = vset.pattern.permute.xlu0 0
    %816 = vperm.xlu0 %815, %v756
    %v817 = vpop.permute.xlu0 %816
    %818 = vset.pattern.permute.xlu0 0
    %819 = vperm.xlu0 %818, %v758
    %v820 = vpop.permute.xlu0 %819
    %821 = vset.pattern.permute.xlu0 0
    %822 = vperm.xlu0 %821, %v760
    %v823 = vpop.permute.xlu0 %822
    %824 = vset.pattern.permute.xlu0 0
    %825 = vperm.xlu0 %824, %v762
    %v826 = vpop.permute.xlu0 %825
    %v827 = vlaneseq
    %v828 = vshrl.u32 %v827, 7
    %v829 = vsub.s32 %v580, %v828
    %v830 = vrot.slane %v781, %v829
    %v831 = vlaneseq
    %v832 = vshrl.u32 %v831, 7
    %v833 = vsub.s32 %v585, %v832
    %v834 = vrot.slane %v784, %v833
    %v835 = vsel %vm590, %v834, %v830
    %v836 = vlaneseq
    %v837 = vshrl.u32 %v836, 7
    %v838 = vsub.s32 %v580, %v837
    %v839 = vrot.slane %v787, %v838
    %v840 = vlaneseq
    %v841 = vshrl.u32 %v840, 7
    %v842 = vsub.s32 %v585, %v841
    %v843 = vrot.slane %v790, %v842
    %v844 = vsel %vm590, %v843, %v839
    %v845 = vlaneseq
    %v846 = vshrl.u32 %v845, 7
    %v847 = vsub.s32 %v580, %v846
    %v848 = vrot.slane %v793, %v847
    %v849 = vlaneseq
    %v850 = vshrl.u32 %v849, 7
    %v851 = vsub.s32 %v585, %v850
    %v852 = vrot.slane %v796, %v851
    %v853 = vsel %vm590, %v852, %v848
    %v854 = vlaneseq
    %v855 = vshrl.u32 %v854, 7
    %v856 = vsub.s32 %v580, %v855
    %v857 = vrot.slane %v799, %v856
    %v858 = vlaneseq
    %v859 = vshrl.u32 %v858, 7
    %v860 = vsub.s32 %v585, %v859
    %v861 = vrot.slane %v802, %v860
    %v862 = vsel %vm590, %v861, %v857
    %v863 = vlaneseq
    %v864 = vshrl.u32 %v863, 7
    %v865 = vsub.s32 %v580, %v864
    %v866 = vrot.slane %v805, %v865
    %v867 = vlaneseq
    %v868 = vshrl.u32 %v867, 7
    %v869 = vsub.s32 %v585, %v868
    %v870 = vrot.slane %v808, %v869
    %v871 = vsel %vm590, %v870, %v866
    %v872 = vlaneseq
    %v873 = vshrl.u32 %v872, 7
    %v874 = vsub.s32 %v580, %v873
    %v875 = vrot.slane %v811, %v874
    %v876 = vlaneseq
    %v877 = vshrl.u32 %v876, 7
    %v878 = vsub.s32 %v585, %v877
    %v879 = vrot.slane %v814, %v878
    %v880 = vsel %vm590, %v879, %v875
    %v881 = vlaneseq
    %v882 = vshrl.u32 %v881, 7
    %v883 = vsub.s32 %v580, %v882
    %v884 = vrot.slane %v817, %v883
    %v885 = vlaneseq
    %v886 = vshrl.u32 %v885, 7
    %v887 = vsub.s32 %v585, %v886
    %v888 = vrot.slane %v820, %v887
    %v889 = vsel %vm590, %v888, %v884
    %v890 = vlaneseq
    %v891 = vshrl.u32 %v890, 7
    %v892 = vsub.s32 %v580, %v891
    %v893 = vrot.slane %v823, %v892
    %v894 = vlaneseq
    %v895 = vshrl.u32 %v894, 7
    %v896 = vsub.s32 %v585, %v895
    %v897 = vrot.slane %v826, %v896
    %v898 = vsel %vm590, %v897, %v893
    %v899 = vsel %vm655, %v844, %v835
    %v900 = vsel %vm657, %v853, %v899
    %v901 = vsel %vm659, %v862, %v900
    %v902 = vsel %vm661, %v871, %v901
    %v903 = vsel %vm663, %v880, %v902
    %v904 = vsel %vm665, %v889, %v903
    %v905 = vsel %vm667, %v898, %v904
    %v907 = vsel %vm670, %v905, 0.0
    %908 = vadd.xlane.f32.xlu0 %v907
    %v909 = vpop.xlane.xlu0 %908
    %v910 = vrcp.pop %v909
    %v912 = vlaneseq
    %v913 = vshrl.u32 %v912, 7
    %v914 = vsub.s32 0, %v913
    %v915 = vrot.slane %v910, %v914
    %v916 = vlaneseq
    %v917 = vshrl.u32 %v916, 7
    %v918 = vsub.s32 1, %v917
    %v919 = vrot.slane %v910, %v918
    %v920 = vlaneseq
    %v921 = vshrl.u32 %v920, 7
    %v922 = vsub.s32 2, %v921
    %v923 = vrot.slane %v910, %v922
    %v924 = vlaneseq
    %v925 = vshrl.u32 %v924, 7
    %v926 = vsub.s32 3, %v925
    %v927 = vrot.slane %v910, %v926
    %v928 = vlaneseq
    %v929 = vshrl.u32 %v928, 7
    %v930 = vsub.s32 4, %v929
    %v931 = vrot.slane %v910, %v930
    %v932 = vlaneseq
    %v933 = vshrl.u32 %v932, 7
    %v934 = vsub.s32 5, %v933
    %v935 = vrot.slane %v910, %v934
    %v936 = vlaneseq
    %v937 = vshrl.u32 %v936, 7
    %v938 = vsub.s32 6, %v937
    %v939 = vrot.slane %v910, %v938
    %v940 = vlaneseq
    %v941 = vshrl.u32 %v940, 7
    %v942 = vsub.s32 7, %v941
    %v943 = vrot.slane %v910, %v942
    %v952 = vmul.f32 %v732, %v915
    %v953 = vmul.f32 %v734, %v915
    %v954 = vmul.f32 %v736, %v919
    %v955 = vmul.f32 %v738, %v919
    %v956 = vmul.f32 %v740, %v923
    %v957 = vmul.f32 %v742, %v923
    %v958 = vmul.f32 %v744, %v927
    %v959 = vmul.f32 %v746, %v927
    %v960 = vmul.f32 %v748, %v931
    %v961 = vmul.f32 %v750, %v931
    %v962 = vmul.f32 %v752, %v935
    %v963 = vmul.f32 %v754, %v935
    %v964 = vmul.f32 %v756, %v939
    %v965 = vmul.f32 %v758, %v939
    %v966 = vmul.f32 %v760, %v943
    %v967 = vmul.f32 %v762, %v943
    %969 = vset.pattern.permute.xlu0 0
    %970 = vperm.xlu0 %969, %v952
    %v971 = vpop.permute.xlu0 %970
    %974 = vset.pattern.permute.xlu0 0
    %975 = vperm.xlu0 %974, %v953
    %v976 = vpop.permute.xlu0 %975
    %979 = vset.pattern.permute.xlu0 0
    %980 = vperm.xlu0 %979, %v954
    %v981 = vpop.permute.xlu0 %980
    %984 = vset.pattern.permute.xlu0 0
    %985 = vperm.xlu0 %984, %v955
    %v986 = vpop.permute.xlu0 %985
    %989 = vset.pattern.permute.xlu0 0
    %990 = vperm.xlu0 %989, %v956
    %v991 = vpop.permute.xlu0 %990
    %994 = vset.pattern.permute.xlu0 0
    %995 = vperm.xlu0 %994, %v957
    %v996 = vpop.permute.xlu0 %995
    %999 = vset.pattern.permute.xlu0 0
    %1000 = vperm.xlu0 %999, %v958
    %v1001 = vpop.permute.xlu0 %1000
    %1004 = vset.pattern.permute.xlu0 0
    %1005 = vperm.xlu0 %1004, %v959
    %v1006 = vpop.permute.xlu0 %1005
    %1009 = vset.pattern.permute.xlu0 0
    %1010 = vperm.xlu0 %1009, %v960
    %v1011 = vpop.permute.xlu0 %1010
    %1014 = vset.pattern.permute.xlu0 0
    %1015 = vperm.xlu0 %1014, %v961
    %v1016 = vpop.permute.xlu0 %1015
    %1019 = vset.pattern.permute.xlu0 0
    %1020 = vperm.xlu0 %1019, %v962
    %v1021 = vpop.permute.xlu0 %1020
    %1024 = vset.pattern.permute.xlu0 0
    %1025 = vperm.xlu0 %1024, %v963
    %v1026 = vpop.permute.xlu0 %1025
    %1029 = vset.pattern.permute.xlu0 0
    %1030 = vperm.xlu0 %1029, %v964
    %v1031 = vpop.permute.xlu0 %1030
    %1034 = vset.pattern.permute.xlu0 0
    %1035 = vperm.xlu0 %1034, %v965
    %v1036 = vpop.permute.xlu0 %1035
    %1039 = vset.pattern.permute.xlu0 0
    %1040 = vperm.xlu0 %1039, %v966
    %v1041 = vpop.permute.xlu0 %1040
    %1044 = vset.pattern.permute.xlu0 0
    %1045 = vperm.xlu0 %1044, %v967
    %v1046 = vpop.permute.xlu0 %1045
    %v1048 = vmul.f32 %v971, %v64
    %v1049 = vmul.f32 %v976, %v65
    %v1050 = vmul.f32 %v981, %v66
    %v1051 = vmul.f32 %v986, %v67
    %v1052 = vmul.f32 %v991, %v68
    %v1053 = vmul.f32 %v996, %v69
    %v1054 = vmul.f32 %v1001, %v70
    %v1055 = vmul.f32 %v1006, %v71
    %v1056 = vmul.f32 %v1011, %v72
    %v1057 = vmul.f32 %v1016, %v73
    %v1058 = vmul.f32 %v1021, %v74
    %v1059 = vmul.f32 %v1026, %v75
    %v1060 = vmul.f32 %v1031, %v76
    %v1061 = vmul.f32 %v1036, %v77
    %v1062 = vmul.f32 %v1041, %v78
    %v1063 = vmul.f32 %v1046, %v79
    %v1064 = vsel %vm127, %v1048, 0.0
    %v1065 = vsel %vm348, %v1049, 0.0
    %v1066 = vadd.f32 %v1064, %v1065
    %v1067 = vrot.slane %v1066, 4
    %v1068 = vadd.f32 %v1066, %v1067
    %v1069 = vrot.slane %v1068, 2
    %v1070 = vadd.f32 %v1068, %v1069
    %v1071 = vrot.slane %v1070, 1
    %v1072 = vadd.f32 %v1070, %v1071
    %v1073 = vsel %vm127, %v1050, 0.0
    %v1074 = vsel %vm348, %v1051, 0.0
    %v1075 = vadd.f32 %v1073, %v1074
    %v1076 = vrot.slane %v1075, 4
    %v1077 = vadd.f32 %v1075, %v1076
    %v1078 = vrot.slane %v1077, 2
    %v1079 = vadd.f32 %v1077, %v1078
    %v1080 = vrot.slane %v1079, 1
    %v1081 = vadd.f32 %v1079, %v1080
    %v1082 = vsel %vm127, %v1052, 0.0
    %v1083 = vsel %vm348, %v1053, 0.0
    %v1084 = vadd.f32 %v1082, %v1083
    %v1085 = vrot.slane %v1084, 4
    %v1086 = vadd.f32 %v1084, %v1085
    %v1087 = vrot.slane %v1086, 2
    %v1088 = vadd.f32 %v1086, %v1087
    %v1089 = vrot.slane %v1088, 1
    %v1090 = vadd.f32 %v1088, %v1089
    %v1091 = vsel %vm127, %v1054, 0.0
    %v1092 = vsel %vm348, %v1055, 0.0
    %v1093 = vadd.f32 %v1091, %v1092
    %v1094 = vrot.slane %v1093, 4
    %v1095 = vadd.f32 %v1093, %v1094
    %v1096 = vrot.slane %v1095, 2
    %v1097 = vadd.f32 %v1095, %v1096
    %v1098 = vrot.slane %v1097, 1
    %v1099 = vadd.f32 %v1097, %v1098
    %v1100 = vsel %vm127, %v1056, 0.0
    %v1101 = vsel %vm348, %v1057, 0.0
    %v1102 = vadd.f32 %v1100, %v1101
    %v1103 = vrot.slane %v1102, 4
    %v1104 = vadd.f32 %v1102, %v1103
    %v1105 = vrot.slane %v1104, 2
    %v1106 = vadd.f32 %v1104, %v1105
    %v1107 = vrot.slane %v1106, 1
    %v1108 = vadd.f32 %v1106, %v1107
    %v1109 = vsel %vm127, %v1058, 0.0
    %v1110 = vsel %vm348, %v1059, 0.0
    %v1111 = vadd.f32 %v1109, %v1110
    %v1112 = vrot.slane %v1111, 4
    %v1113 = vadd.f32 %v1111, %v1112
    %v1114 = vrot.slane %v1113, 2
    %v1115 = vadd.f32 %v1113, %v1114
    %v1116 = vrot.slane %v1115, 1
    %v1117 = vadd.f32 %v1115, %v1116
    %v1118 = vsel %vm127, %v1060, 0.0
    %v1119 = vsel %vm348, %v1061, 0.0
    %v1120 = vadd.f32 %v1118, %v1119
    %v1121 = vrot.slane %v1120, 4
    %v1122 = vadd.f32 %v1120, %v1121
    %v1123 = vrot.slane %v1122, 2
    %v1124 = vadd.f32 %v1122, %v1123
    %v1125 = vrot.slane %v1124, 1
    %v1126 = vadd.f32 %v1124, %v1125
    %v1127 = vsel %vm127, %v1062, 0.0
    %v1128 = vsel %vm348, %v1063, 0.0
    %v1129 = vadd.f32 %v1127, %v1128
    %v1130 = vrot.slane %v1129, 4
    %v1131 = vadd.f32 %v1129, %v1130
    %v1132 = vrot.slane %v1131, 2
    %v1133 = vadd.f32 %v1131, %v1132
    %v1134 = vrot.slane %v1133, 1
    %v1135 = vadd.f32 %v1133, %v1134
    %v1136 = vld [vmem:[%s0] sm:$0xff]
    %vm1137 = vcmask 130048
    %v1139 = vsel %vm1137, %v1136, 0
    %1141 = vmatprep.subr.mxu0 0.0
    %1142 = vmatpush1.msra.mxu0 %v106
    %1143 = vmatprep.subr.mxu0 0.0
    %1144 = vmatpush1.msra.mxu0 %v107
    %1145 = vmatprep.subr.mxu0 0.0
    %1146 = vmatpush1.msra.mxu0 0.0
    %1147 = vmatprep.subr.mxu0 0.0
    %1148 = vmatpush1.msra.mxu0 0.0
    %1149 = vmatprep.subr.mxu0 0.0
    %1150 = vmatpush1.msra.mxu0 0.0
    %1151 = vmatprep.subr.mxu0 0.0
    %1152 = vmatpush1.msra.mxu0 0.0
    %1153 = vmatprep.subr.mxu0 0.0
    %1154 = vmatpush1.msra.mxu0 0.0
    %1155 = vmatprep.subr.mxu0 0.0
    %1156 = vmatpush1.msra.mxu0 0.0
    %1157 = vmatprep.subr.mxu0 0.0
    %1158 = vmatpush1.msra.mxu0 0.0
    %1159 = vmatprep.subr.mxu0 0.0
    %1160 = vmatpush1.msra.mxu0 0.0
    %1161 = vmatprep.subr.mxu0 0.0
    %1162 = vmatpush1.msra.mxu0 0.0
    %1163 = vmatprep.subr.mxu0 0.0
    %1164 = vmatpush1.msra.mxu0 0.0
    %1165 = vmatprep.subr.mxu0 0.0
    %1166 = vmatpush1.msra.mxu0 0.0
    %1167 = vmatprep.subr.mxu0 0.0
    %1168 = vmatpush1.msra.mxu0 0.0
    %1169 = vmatprep.subr.mxu0 0.0
    %1170 = vmatpush1.msra.mxu0 0.0
    %1171 = vmatprep.subr.mxu0 0.0
    %1172 = vmatpush1.msra.mxu0 0.0
    %1173 = vmatprep.subr.mxu0 0.0
    %1174 = vmatpush1.msra.mxu0 0.0
    %1175 = vmatprep.subr.mxu0 0.0
    %1176 = vmatpush1.msra.mxu0 0.0
    %1177 = vmatprep.subr.mxu0 0.0
    %1178 = vmatpush1.msra.mxu0 0.0
    %1179 = vmatprep.subr.mxu0 0.0
    %1180 = vmatpush1.msra.mxu0 0.0
    %1181 = vmatprep.subr.mxu0 0.0
    %1182 = vmatpush1.msra.mxu0 0.0
    %1183 = vmatprep.subr.mxu0 0.0
    %1184 = vmatpush1.msra.mxu0 0.0
    %1185 = vmatprep.subr.mxu0 0.0
    %1186 = vmatpush1.msra.mxu0 0.0
    %1187 = vmatprep.subr.mxu0 0.0
    %1188 = vmatpush1.msra.mxu0 0.0
    %1189 = vmatprep.subr.mxu0 0.0
    %1190 = vmatpush1.msra.mxu0 0.0
    %1191 = vmatprep.subr.mxu0 0.0
    %1192 = vmatpush1.msra.mxu0 0.0
    %1193 = vmatprep.subr.mxu0 0.0
    %1194 = vmatpush1.msra.mxu0 0.0
    %1195 = vmatprep.subr.mxu0 0.0
    %1196 = vmatpush1.msra.mxu0 0.0
    %1197 = vmatprep.subr.mxu0 0.0
    %1198 = vmatpush1.msra.mxu0 0.0
    %1199 = vmatprep.subr.mxu0 0.0
    %1200 = vmatpush1.msra.mxu0 0.0
    %1201 = vmatprep.subr.mxu0 0.0
    %1202 = vmatpush1.msra.mxu0 0.0
    %1203 = vmatprep.subr.mxu0 0.0
    %1204 = vmatpush1.msra.mxu0 0.0
    %1205 = vmatprep.mubr.f32.mxu0 0.0
    %1206 = vmatmul.mubr.f32.gmra.mrb[0].mxu0 %v1139
    %v1207 = vpop.f32.mrb[0].mxu0
    %v1208 = vadd.f32 0.0, %v1207
    %v1209 = vpop.f32.mrb[0].mxu0
    %1210 = vdwg.mxu0
    %v1219 = vsel %vm655, %v1081, %v1072
    %v1220 = vsel %vm657, %v1090, %v1219
    %v1221 = vsel %vm659, %v1099, %v1220
    %v1222 = vsel %vm661, %v1108, %v1221
    %v1223 = vsel %vm663, %v1117, %v1222
    %v1224 = vsel %vm665, %v1126, %v1223
    %v1225 = vsel %vm667, %v1135, %v1224
    %v1226 = vsel %vm127, %v1225, 0
    %1228 = vmatprep.subr.mxu0 0.0
    %1229 = vmatpush1.msra.mxu0 %v102
    %1230 = vmatprep.subr.mxu0 0.0
    %1231 = vmatpush1.msra.mxu0 %v103
    %1232 = vmatprep.subr.mxu0 0.0
    %1233 = vmatpush1.msra.mxu0 %v104
    %1234 = vmatprep.subr.mxu0 0.0
    %1235 = vmatpush1.msra.mxu0 %v105
    %1236 = vmatprep.subr.mxu0 0.0
    %1237 = vmatpush1.msra.mxu0 0.0
    %1238 = vmatprep.subr.mxu0 0.0
    %1239 = vmatpush1.msra.mxu0 0.0
    %1240 = vmatprep.subr.mxu0 0.0
    %1241 = vmatpush1.msra.mxu0 0.0
    %1242 = vmatprep.subr.mxu0 0.0
    %1243 = vmatpush1.msra.mxu0 0.0
    %1244 = vmatprep.subr.mxu0 0.0
    %1245 = vmatpush1.msra.mxu0 0.0
    %1246 = vmatprep.subr.mxu0 0.0
    %1247 = vmatpush1.msra.mxu0 0.0
    %1248 = vmatprep.subr.mxu0 0.0
    %1249 = vmatpush1.msra.mxu0 0.0
    %1250 = vmatprep.subr.mxu0 0.0
    %1251 = vmatpush1.msra.mxu0 0.0
    %1252 = vmatprep.subr.mxu0 0.0
    %1253 = vmatpush1.msra.mxu0 0.0
    %1254 = vmatprep.subr.mxu0 0.0
    %1255 = vmatpush1.msra.mxu0 0.0
    %1256 = vmatprep.subr.mxu0 0.0
    %1257 = vmatpush1.msra.mxu0 0.0
    %1258 = vmatprep.subr.mxu0 0.0
    %1259 = vmatpush1.msra.mxu0 0.0
    %1260 = vmatprep.subr.mxu0 0.0
    %1261 = vmatpush1.msra.mxu0 0.0
    %1262 = vmatprep.subr.mxu0 0.0
    %1263 = vmatpush1.msra.mxu0 0.0
    %1264 = vmatprep.subr.mxu0 0.0
    %1265 = vmatpush1.msra.mxu0 0.0
    %1266 = vmatprep.subr.mxu0 0.0
    %1267 = vmatpush1.msra.mxu0 0.0
    %1268 = vmatprep.subr.mxu0 0.0
    %1269 = vmatpush1.msra.mxu0 0.0
    %1270 = vmatprep.subr.mxu0 0.0
    %1271 = vmatpush1.msra.mxu0 0.0
    %1272 = vmatprep.subr.mxu0 0.0
    %1273 = vmatpush1.msra.mxu0 0.0
    %1274 = vmatprep.subr.mxu0 0.0
    %1275 = vmatpush1.msra.mxu0 0.0
    %1276 = vmatprep.subr.mxu0 0.0
    %1277 = vmatpush1.msra.mxu0 0.0
    %1278 = vmatprep.subr.mxu0 0.0
    %1279 = vmatpush1.msra.mxu0 0.0
    %1280 = vmatprep.subr.mxu0 0.0
    %1281 = vmatpush1.msra.mxu0 0.0
    %1282 = vmatprep.subr.mxu0 0.0
    %1283 = vmatpush1.msra.mxu0 0.0
    %1284 = vmatprep.subr.mxu0 0.0
    %1285 = vmatpush1.msra.mxu0 0.0
    %1286 = vmatprep.subr.mxu0 0.0
    %1287 = vmatpush1.msra.mxu0 0.0
    %1288 = vmatprep.subr.mxu0 0.0
    %1289 = vmatpush1.msra.mxu0 0.0
    %1290 = vmatprep.subr.mxu0 0.0
    %1291 = vmatpush1.msra.mxu0 0.0
    %1292 = vmatprep.mubr.f32.mxu0 0.0
    %1293 = vmatmul.mubr.f32.gmra.mrb[0].mxu0 %v1226
    %v1294 = vpop.f32.mrb[0].mxu0
    %v1295 = vadd.f32 %v1208, %v1294
    %v1296 = vpop.f32.mrb[0].mxu0
    %1297 = vdwg.mxu0
    %v1299 = vlaneseq
    %v1300 = vshrl.u32 %v1299, 7
    %v1301 = vsub.s32 0, %v1300
    %v1302 = vrot.slane %v112, %v1301
    %v1304 = vadd.f32 %v1295, %v1302
    %v1306 = vsel %vm127, %v125, 0
    %1308 = vmatprep.subr.mxu0 0.0
    %1309 = vmatpush1.msra.mxu0 %v108
    %1310 = vmatprep.subr.mxu0 0.0
    %1311 = vmatpush1.msra.mxu0 %v109
    %1312 = vmatprep.subr.mxu0 0.0
    %1313 = vmatpush1.msra.mxu0 %v110
    %1314 = vmatprep.subr.mxu0 0.0
    %1315 = vmatpush1.msra.mxu0 %v111
    %1316 = vmatprep.subr.mxu0 0.0
    %1317 = vmatpush1.msra.mxu0 0.0
    %1318 = vmatprep.subr.mxu0 0.0
    %1319 = vmatpush1.msra.mxu0 0.0
    %1320 = vmatprep.subr.mxu0 0.0
    %1321 = vmatpush1.msra.mxu0 0.0
    %1322 = vmatprep.subr.mxu0 0.0
    %1323 = vmatpush1.msra.mxu0 0.0
    %1324 = vmatprep.subr.mxu0 0.0
    %1325 = vmatpush1.msra.mxu0 0.0
    %1326 = vmatprep.subr.mxu0 0.0
    %1327 = vmatpush1.msra.mxu0 0.0
    %1328 = vmatprep.subr.mxu0 0.0
    %1329 = vmatpush1.msra.mxu0 0.0
    %1330 = vmatprep.subr.mxu0 0.0
    %1331 = vmatpush1.msra.mxu0 0.0
    %1332 = vmatprep.subr.mxu0 0.0
    %1333 = vmatpush1.msra.mxu0 0.0
    %1334 = vmatprep.subr.mxu0 0.0
    %1335 = vmatpush1.msra.mxu0 0.0
    %1336 = vmatprep.subr.mxu0 0.0
    %1337 = vmatpush1.msra.mxu0 0.0
    %1338 = vmatprep.subr.mxu0 0.0
    %1339 = vmatpush1.msra.mxu0 0.0
    %1340 = vmatprep.subr.mxu0 0.0
    %1341 = vmatpush1.msra.mxu0 0.0
    %1342 = vmatprep.subr.mxu0 0.0
    %1343 = vmatpush1.msra.mxu0 0.0
    %1344 = vmatprep.subr.mxu0 0.0
    %1345 = vmatpush1.msra.mxu0 0.0
    %1346 = vmatprep.subr.mxu0 0.0
    %1347 = vmatpush1.msra.mxu0 0.0
    %1348 = vmatprep.subr.mxu0 0.0
    %1349 = vmatpush1.msra.mxu0 0.0
    %1350 = vmatprep.subr.mxu0 0.0
    %1351 = vmatpush1.msra.mxu0 0.0
    %1352 = vmatprep.subr.mxu0 0.0
    %1353 = vmatpush1.msra.mxu0 0.0
    %1354 = vmatprep.subr.mxu0 0.0
    %1355 = vmatpush1.msra.mxu0 0.0
    %1356 = vmatprep.subr.mxu0 0.0
    %1357 = vmatpush1.msra.mxu0 0.0
    %1358 = vmatprep.subr.mxu0 0.0
    %1359 = vmatpush1.msra.mxu0 0.0
    %1360 = vmatprep.subr.mxu0 0.0
    %1361 = vmatpush1.msra.mxu0 0.0
    %1362 = vmatprep.subr.mxu0 0.0
    %1363 = vmatpush1.msra.mxu0 0.0
    %1364 = vmatprep.subr.mxu0 0.0
    %1365 = vmatpush1.msra.mxu0 0.0
    %1366 = vmatprep.subr.mxu0 0.0
    %1367 = vmatpush1.msra.mxu0 0.0
    %1368 = vmatprep.subr.mxu0 0.0
    %1369 = vmatpush1.msra.mxu0 0.0
    %1370 = vmatprep.subr.mxu0 0.0
    %1371 = vmatpush1.msra.mxu0 0.0
    %1372 = vmatprep.mubr.f32.mxu0 0.0
    %1373 = vmatmul.mubr.f32.gmra.mrb[0].mxu0 %v1306
    %v1374 = vpop.f32.mrb[0].mxu0
    %v1375 = vadd.f32 0.0, %v1374
    %v1376 = vpop.f32.mrb[0].mxu0
    %1377 = vdwg.mxu0
    %v1378 = vadd.f32 %v1304, %v1375
    %v1379 = vxor.u32 %v1378, 2147483648
    %v1380 = vmul.f32 %v1379, 1.442695
    %v1381 = vpow.pop %v1380
    %v1382 = vadd.f32 %v1381, 1.0
    %v1383 = vrcp.pop %v1382
    %v1384 = vmul.f32 1.0, %v1383
    %v1386 = vlaneseq
    %v1387 = vshrl.u32 %v1386, 7
    %v1388 = vsub.s32 0, %v1387
    %v1389 = vrot.slane %v113, %v1388
    %1390 = vrot.lane.b32.xlu0 %v1389, 64
    %v1391 = vpop.permute.xlu0 %1390
    %v1393 = vadd.f32 %v1375, %v1391
    %1395 = vrot.lane.b32.xlu0 %v1393, 64
    %v1396 = vpop.permute.xlu0 %1395
    %v1398 = vmul.f32 %v1384, %v1396
    %1400 = vrot.lane.b32.xlu0 %v1398, 64
    %v1401 = vpop.permute.xlu0 %1400
    %v1403 = vadd.f32 %v1304, %v1401
    %v1404 = vtanh.pop %v1403
    %v1405 = vsub.f32 1.0, %v1384
    %1407 = vrot.lane.b32.xlu0 %v1404, 96
    %v1408 = vpop.permute.xlu0 %1407
    %v1410 = vmul.f32 %v1405, %v1408
    %1411 = vrot.lane.b32.xlu0 %v125, 32
    %v1412 = vpop.permute.xlu0 %1411
    %v1414 = vmul.f32 %v1384, %v1412
    %v1415 = vadd.f32 %v1410, %v1414
    %v1417 = vlaneseq
    %v1418 = vshrl.u32 %v1417, 7
    %v1419 = vsub.s32 0, %v1418
    %v1420 = vrot.slane %v118, %v1419
    %1423 = vrot.lane.b32.xlu0 %v1415, 96
    %v1424 = vpop.permute.xlu0 %1423
    %v1425 = vsel %vm127, %v1424, 0
    %1427 = vmatprep.subr.mxu0 0.0
    %1428 = vmatpush1.msra.mxu0 %v114
    %1429 = vmatprep.subr.mxu0 0.0
    %1430 = vmatpush1.msra.mxu0 %v115
    %1431 = vmatprep.subr.mxu0 0.0
    %1432 = vmatpush1.msra.mxu0 %v116
    %1433 = vmatprep.subr.mxu0 0.0
    %1434 = vmatpush1.msra.mxu0 %v117
    %1435 = vmatprep.subr.mxu0 0.0
    %1436 = vmatpush1.msra.mxu0 0.0
    %1437 = vmatprep.subr.mxu0 0.0
    %1438 = vmatpush1.msra.mxu0 0.0
    %1439 = vmatprep.subr.mxu0 0.0
    %1440 = vmatpush1.msra.mxu0 0.0
    %1441 = vmatprep.subr.mxu0 0.0
    %1442 = vmatpush1.msra.mxu0 0.0
    %1443 = vmatprep.subr.mxu0 0.0
    %1444 = vmatpush1.msra.mxu0 0.0
    %1445 = vmatprep.subr.mxu0 0.0
    %1446 = vmatpush1.msra.mxu0 0.0
    %1447 = vmatprep.subr.mxu0 0.0
    %1448 = vmatpush1.msra.mxu0 0.0
    %1449 = vmatprep.subr.mxu0 0.0
    %1450 = vmatpush1.msra.mxu0 0.0
    %1451 = vmatprep.subr.mxu0 0.0
    %1452 = vmatpush1.msra.mxu0 0.0
    %1453 = vmatprep.subr.mxu0 0.0
    %1454 = vmatpush1.msra.mxu0 0.0
    %1455 = vmatprep.subr.mxu0 0.0
    %1456 = vmatpush1.msra.mxu0 0.0
    %1457 = vmatprep.subr.mxu0 0.0
    %1458 = vmatpush1.msra.mxu0 0.0
    %1459 = vmatprep.subr.mxu0 0.0
    %1460 = vmatpush1.msra.mxu0 0.0
    %1461 = vmatprep.subr.mxu0 0.0
    %1462 = vmatpush1.msra.mxu0 0.0
    %1463 = vmatprep.subr.mxu0 0.0
    %1464 = vmatpush1.msra.mxu0 0.0
    %1465 = vmatprep.subr.mxu0 0.0
    %1466 = vmatpush1.msra.mxu0 0.0
    %1467 = vmatprep.subr.mxu0 0.0
    %1468 = vmatpush1.msra.mxu0 0.0
    %1469 = vmatprep.subr.mxu0 0.0
    %1470 = vmatpush1.msra.mxu0 0.0
    %1471 = vmatprep.subr.mxu0 0.0
    %1472 = vmatpush1.msra.mxu0 0.0
    %1473 = vmatprep.subr.mxu0 0.0
    %1474 = vmatpush1.msra.mxu0 0.0
    %1475 = vmatprep.subr.mxu0 0.0
    %1476 = vmatpush1.msra.mxu0 0.0
    %1477 = vmatprep.subr.mxu0 0.0
    %1478 = vmatpush1.msra.mxu0 0.0
    %1479 = vmatprep.subr.mxu0 0.0
    %1480 = vmatpush1.msra.mxu0 0.0
    %1481 = vmatprep.subr.mxu0 0.0
    %1482 = vmatpush1.msra.mxu0 0.0
    %1483 = vmatprep.subr.mxu0 0.0
    %1484 = vmatpush1.msra.mxu0 0.0
    %1485 = vmatprep.subr.mxu0 0.0
    %1486 = vmatpush1.msra.mxu0 0.0
    %1487 = vmatprep.subr.mxu0 0.0
    %1488 = vmatpush1.msra.mxu0 0.0
    %1489 = vmatprep.subr.mxu0 0.0
    %1490 = vmatpush1.msra.mxu0 0.0
    %1491 = vmatprep.mubr.f32.mxu0 0.0
    %1492 = vmatmul.mubr.f32.gmra.mrb[0].mxu0 %v1425
    %v1493 = vpop.f32.mrb[0].mxu0
    %v1494 = vadd.f32 %v1420, %v1493
    %v1495 = vpop.f32.mrb[0].mxu0
    %1496 = vdwg.mxu0
    %1497 = vrot.lane.b32.xlu0 %v198, 96
    %v1498 = vpop.permute.xlu0 %1497
    %v1500 = vadd.f32 %v1494, %v1498
    %v1501 = vxor.u32 %v1500, 2147483648
    %v1502 = vmul.f32 %v1501, 1.442695
    %v1503 = vpow.pop %v1502
    %v1504 = vadd.f32 %v1503, 1.0
    %v1505 = vrcp.pop %v1504
    %v1506 = vmul.f32 1.0, %v1505
    %v1508 = vlaneseq
    %v1509 = vshrl.u32 %v1508, 7
    %v1510 = vsub.s32 0, %v1509
    %v1511 = vrot.slane %v119, %v1510
    %1512 = vrot.lane.b32.xlu0 %v1511, 96
    %v1513 = vpop.permute.xlu0 %1512
    %v1515 = vadd.f32 %v198, %v1513
    %1517 = vrot.lane.b32.xlu0 %v1515, 32
    %v1518 = vpop.permute.xlu0 %1517
    %v1520 = vmul.f32 %v1506, %v1518
    %1522 = vrot.lane.b32.xlu0 %v1520, 64
    %v1523 = vpop.permute.xlu0 %1522
    %v1525 = vadd.f32 %v1494, %v1523
    %v1526 = vtanh.pop %v1525
    %v1527 = vsub.f32 1.0, %v1506
    %1529 = vrot.lane.b32.xlu0 %v1526, 96
    %v1530 = vpop.permute.xlu0 %1529
    %v1532 = vmul.f32 %v1527, %v1530
    %1533 = vrot.lane.b32.xlu0 %v126, 32
    %v1534 = vpop.permute.xlu0 %1533
    %v1536 = vmul.f32 %v1506, %v1534
    %v1537 = vadd.f32 %v1532, %v1536
    %v1539 = vlaneseq
    %v1540 = vshrl.u32 %v1539, 7
    %v1541 = vsub.s32 0, %v1540
    %v1542 = vrot.slane %v124, %v1541
    %1545 = vrot.lane.b32.xlu0 %v1537, 96
    %v1546 = vpop.permute.xlu0 %1545
    %v1547 = vsel %vm127, %v1546, 0
    %1549 = vmatprep.subr.mxu0 0.0
    %1550 = vmatpush1.msra.mxu0 %v120
    %1551 = vmatprep.subr.mxu0 0.0
    %1552 = vmatpush1.msra.mxu0 %v121
    %1553 = vmatprep.subr.mxu0 0.0
    %1554 = vmatpush1.msra.mxu0 %v122
    %1555 = vmatprep.subr.mxu0 0.0
    %1556 = vmatpush1.msra.mxu0 %v123
    %1557 = vmatprep.subr.mxu0 0.0
    %1558 = vmatpush1.msra.mxu0 0.0
    %1559 = vmatprep.subr.mxu0 0.0
    %1560 = vmatpush1.msra.mxu0 0.0
    %1561 = vmatprep.subr.mxu0 0.0
    %1562 = vmatpush1.msra.mxu0 0.0
    %1563 = vmatprep.subr.mxu0 0.0
    %1564 = vmatpush1.msra.mxu0 0.0
    %1565 = vmatprep.subr.mxu0 0.0
    %1566 = vmatpush1.msra.mxu0 0.0
    %1567 = vmatprep.subr.mxu0 0.0
    %1568 = vmatpush1.msra.mxu0 0.0
    %1569 = vmatprep.subr.mxu0 0.0
    %1570 = vmatpush1.msra.mxu0 0.0
    %1571 = vmatprep.subr.mxu0 0.0
    %1572 = vmatpush1.msra.mxu0 0.0
    %1573 = vmatprep.subr.mxu0 0.0
    %1574 = vmatpush1.msra.mxu0 0.0
    %1575 = vmatprep.subr.mxu0 0.0
    %1576 = vmatpush1.msra.mxu0 0.0
    %1577 = vmatprep.subr.mxu0 0.0
    %1578 = vmatpush1.msra.mxu0 0.0
    %1579 = vmatprep.subr.mxu0 0.0
    %1580 = vmatpush1.msra.mxu0 0.0
    %1581 = vmatprep.subr.mxu0 0.0
    %1582 = vmatpush1.msra.mxu0 0.0
    %1583 = vmatprep.subr.mxu0 0.0
    %1584 = vmatpush1.msra.mxu0 0.0
    %1585 = vmatprep.subr.mxu0 0.0
    %1586 = vmatpush1.msra.mxu0 0.0
    %1587 = vmatprep.subr.mxu0 0.0
    %1588 = vmatpush1.msra.mxu0 0.0
    %1589 = vmatprep.subr.mxu0 0.0
    %1590 = vmatpush1.msra.mxu0 0.0
    %1591 = vmatprep.subr.mxu0 0.0
    %1592 = vmatpush1.msra.mxu0 0.0
    %1593 = vmatprep.subr.mxu0 0.0
    %1594 = vmatpush1.msra.mxu0 0.0
    %1595 = vmatprep.subr.mxu0 0.0
    %1596 = vmatpush1.msra.mxu0 0.0
    %1597 = vmatprep.subr.mxu0 0.0
    %1598 = vmatpush1.msra.mxu0 0.0
    %1599 = vmatprep.subr.mxu0 0.0
    %1600 = vmatpush1.msra.mxu0 0.0
    %1601 = vmatprep.subr.mxu0 0.0
    %1602 = vmatpush1.msra.mxu0 0.0
    %1603 = vmatprep.subr.mxu0 0.0
    %1604 = vmatpush1.msra.mxu0 0.0
    %1605 = vmatprep.subr.mxu0 0.0
    %1606 = vmatpush1.msra.mxu0 0.0
    %1607 = vmatprep.subr.mxu0 0.0
    %1608 = vmatpush1.msra.mxu0 0.0
    %1609 = vmatprep.subr.mxu0 0.0
    %1610 = vmatpush1.msra.mxu0 0.0
    %1611 = vmatprep.subr.mxu0 0.0
    %1612 = vmatpush1.msra.mxu0 0.0
    %1613 = vmatprep.mubr.f32.mxu0 0.0
    %1614 = vmatmul.mubr.f32.gmra.mrb[0].mxu0 %v1547
    %v1615 = vpop.f32.mrb[0].mxu0
    %v1616 = vadd.f32 %v1542, %v1615
    %v1617 = vpop.f32.mrb[0].mxu0
    %1618 = vdwg.mxu0
    %1619 = vst.msk [vmem:[#allocation2] sm:$0xff] %vm127, %v1616
    %v1620 = vlaneseq
    %v1621 = vshrl.u32 %v1620, 7
    %v1622 = vsub.s32 %v580, %v1621
    %v1623 = vrot.slane %v971, %v1622
    %v1624 = vlaneseq
    %v1625 = vshrl.u32 %v1624, 7
    %v1626 = vsub.s32 %v585, %v1625
    %v1627 = vrot.slane %v976, %v1626
    %v1628 = vsel %vm590, %v1627, %v1623
    %v1629 = vlaneseq
    %v1630 = vshrl.u32 %v1629, 7
    %v1631 = vsub.s32 %v580, %v1630
    %v1632 = vrot.slane %v981, %v1631
    %v1633 = vlaneseq
    %v1634 = vshrl.u32 %v1633, 7
    %v1635 = vsub.s32 %v585, %v1634
    %v1636 = vrot.slane %v986, %v1635
    %v1637 = vsel %vm590, %v1636, %v1632
    %v1638 = vlaneseq
    %v1639 = vshrl.u32 %v1638, 7
    %v1640 = vsub.s32 %v580, %v1639
    %v1641 = vrot.slane %v991, %v1640
    %v1642 = vlaneseq
    %v1643 = vshrl.u32 %v1642, 7
    %v1644 = vsub.s32 %v585, %v1643
    %v1645 = vrot.slane %v996, %v1644
    %v1646 = vsel %vm590, %v1645, %v1641
    %v1647 = vlaneseq
    %v1648 = vshrl.u32 %v1647, 7
    %v1649 = vsub.s32 %v580, %v1648
    %v1650 = vrot.slane %v1001, %v1649
    %v1651 = vlaneseq
    %v1652 = vshrl.u32 %v1651, 7
    %v1653 = vsub.s32 %v585, %v1652
    %v1654 = vrot.slane %v1006, %v1653
    %v1655 = vsel %vm590, %v1654, %v1650
    %v1656 = vlaneseq
    %v1657 = vshrl.u32 %v1656, 7
    %v1658 = vsub.s32 %v580, %v1657
    %v1659 = vrot.slane %v1011, %v1658
    %v1660 = vlaneseq
    %v1661 = vshrl.u32 %v1660, 7
    %v1662 = vsub.s32 %v585, %v1661
    %v1663 = vrot.slane %v1016, %v1662
    %v1664 = vsel %vm590, %v1663, %v1659
    %v1665 = vlaneseq
    %v1666 = vshrl.u32 %v1665, 7
    %v1667 = vsub.s32 %v580, %v1666
    %v1668 = vrot.slane %v1021, %v1667
    %v1669 = vlaneseq
    %v1670 = vshrl.u32 %v1669, 7
    %v1671 = vsub.s32 %v585, %v1670
    %v1672 = vrot.slane %v1026, %v1671
    %v1673 = vsel %vm590, %v1672, %v1668
    %v1674 = vlaneseq
    %v1675 = vshrl.u32 %v1674, 7
    %v1676 = vsub.s32 %v580, %v1675
    %v1677 = vrot.slane %v1031, %v1676
    %v1678 = vlaneseq
    %v1679 = vshrl.u32 %v1678, 7
    %v1680 = vsub.s32 %v585, %v1679
    %v1681 = vrot.slane %v1036, %v1680
    %v1682 = vsel %vm590, %v1681, %v1677
    %v1683 = vlaneseq
    %v1684 = vshrl.u32 %v1683, 7
    %v1685 = vsub.s32 %v580, %v1684
    %v1686 = vrot.slane %v1041, %v1685
    %v1687 = vlaneseq
    %v1688 = vshrl.u32 %v1687, 7
    %v1689 = vsub.s32 %v585, %v1688
    %v1690 = vrot.slane %v1046, %v1689
    %v1691 = vsel %vm590, %v1690, %v1686
    %v1692 = vsel %vm655, %v1637, %v1628
    %v1693 = vsel %vm657, %v1646, %v1692
    %v1694 = vsel %vm659, %v1655, %v1693
    %v1695 = vsel %vm661, %v1664, %v1694
    %v1696 = vsel %vm663, %v1673, %v1695
    %v1697 = vsel %vm665, %v1682, %v1696
    %v1698 = vsel %vm667, %v1691, %v1697
    %1700 = vst.msk [vmem:[#allocation4] sm:$0xff] %vm670, %v1698
    %1701 = vmatprep.subr.mxu0 0.0
    %1702 = vmatpush1.msra.mxu0 %v98
    %1703 = vmatprep.subr.mxu0 0.0
    %1704 = vmatpush1.msra.mxu0 %v99
    %1705 = vmatprep.subr.mxu0 0.0
    %1706 = vmatpush1.msra.mxu0 %v100
    %1707 = vmatprep.subr.mxu0 0.0
    %1708 = vmatpush1.msra.mxu0 %v101
    %1709 = vmatprep.subr.mxu0 0.0
    %1710 = vmatpush1.msra.mxu0 0.0
    %1711 = vmatprep.subr.mxu0 0.0
    %1712 = vmatpush1.msra.mxu0 0.0
    %1713 = vmatprep.subr.mxu0 0.0
    %1714 = vmatpush1.msra.mxu0 0.0
    %1715 = vmatprep.subr.mxu0 0.0
    %1716 = vmatpush1.msra.mxu0 0.0
    %1717 = vmatprep.subr.mxu0 0.0
    %1718 = vmatpush1.msra.mxu0 0.0
    %1719 = vmatprep.subr.mxu0 0.0
    %1720 = vmatpush1.msra.mxu0 0.0
    %1721 = vmatprep.subr.mxu0 0.0
    %1722 = vmatpush1.msra.mxu0 0.0
    %1723 = vmatprep.subr.mxu0 0.0
    %1724 = vmatpush1.msra.mxu0 0.0
    %1725 = vmatprep.subr.mxu0 0.0
    %1726 = vmatpush1.msra.mxu0 0.0
    %1727 = vmatprep.subr.mxu0 0.0
    %1728 = vmatpush1.msra.mxu0 0.0
    %1729 = vmatprep.subr.mxu0 0.0
    %1730 = vmatpush1.msra.mxu0 0.0
    %1731 = vmatprep.subr.mxu0 0.0
    %1732 = vmatpush1.msra.mxu0 0.0
    %1733 = vmatprep.subr.mxu0 0.0
    %1734 = vmatpush1.msra.mxu0 0.0
    %1735 = vmatprep.subr.mxu0 0.0
    %1736 = vmatpush1.msra.mxu0 0.0
    %1737 = vmatprep.subr.mxu0 0.0
    %1738 = vmatpush1.msra.mxu0 0.0
    %1739 = vmatprep.subr.mxu0 0.0
    %1740 = vmatpush1.msra.mxu0 0.0
    %1741 = vmatprep.subr.mxu0 0.0
    %1742 = vmatpush1.msra.mxu0 0.0
    %1743 = vmatprep.subr.mxu0 0.0
    %1744 = vmatpush1.msra.mxu0 0.0
    %1745 = vmatprep.subr.mxu0 0.0
    %1746 = vmatpush1.msra.mxu0 0.0
    %1747 = vmatprep.subr.mxu0 0.0
    %1748 = vmatpush1.msra.mxu0 0.0
    %1749 = vmatprep.subr.mxu0 0.0
    %1750 = vmatpush1.msra.mxu0 0.0
    %1751 = vmatprep.subr.mxu0 0.0
    %1752 = vmatpush1.msra.mxu0 0.0
    %1753 = vmatprep.subr.mxu0 0.0
    %1754 = vmatpush1.msra.mxu0 0.0
    %1755 = vmatprep.subr.mxu0 0.0
    %1756 = vmatpush1.msra.mxu0 0.0
    %1757 = vmatprep.subr.mxu0 0.0
    %1758 = vmatpush1.msra.mxu0 0.0
    %1759 = vmatprep.subr.mxu0 0.0
    %1760 = vmatpush1.msra.mxu0 0.0
    %1761 = vmatprep.subr.mxu0 0.0
    %1762 = vmatpush1.msra.mxu0 0.0
    %1763 = vmatprep.subr.mxu0 0.0
    %1764 = vmatpush1.msra.mxu0 0.0
    %1765 = vmatprep.mubr.f32.mxu0 0.0
    %1766 = vmatmul.mubr.f32.gmra.mrb[0].mxu0 %v1547
    %v1767 = vpop.f32.mrb[0].mxu0
    %v1768 = vadd.f32 0.0, %v1767
    %v1769 = vpop.f32.mrb[0].mxu0
    %1770 = vdwg.mxu0
    %v1772 = vcombine.high %v1768, %v1768
    %v1774 = vunpack.c.l.s4 1966171168
    %v1775 = vunpack.c.0.s8 %v1774
    %v1776 = vlaneseq
    %v1777 = vshrl.u32 %v1776, 7
    %v1778 = vsub.s32 %v1775, %v1777
    %v1779 = vrot.slane %v1768, %v1778
    %v1781 = vunpack.c.l.s4 1966171168
    %v1782 = vunpack.c.0.s8 %v1781
    %v1783 = vlaneseq
    %v1784 = vshrl.u32 %v1783, 7
    %v1785 = vsub.s32 %v1782, %v1784
    %v1786 = vrot.slane %v1772, %v1785
    %v1787 = vcombine.high %v1779, %v1779
    %v1788 = vcombine.high %v1786, %v1786
    %v1790 = vunpack.c.l.s4 1966171168
    %v1791 = vunpack.c.0.s8 %v1790
    %v1792 = vlaneseq
    %v1793 = vshrl.u32 %v1792, 7
    %v1794 = vsub.s32 %v1791, %v1793
    %v1795 = vrot.slane %v1779, %v1794
    %v1797 = vunpack.c.l.s4 1966171168
    %v1798 = vunpack.c.0.s8 %v1797
    %v1799 = vlaneseq
    %v1800 = vshrl.u32 %v1799, 7
    %v1801 = vsub.s32 %v1798, %v1800
    %v1802 = vrot.slane %v1786, %v1801
    %v1804 = vunpack.c.l.s4 1966171168
    %v1805 = vunpack.c.0.s8 %v1804
    %v1806 = vlaneseq
    %v1807 = vshrl.u32 %v1806, 7
    %v1808 = vsub.s32 %v1805, %v1807
    %v1809 = vrot.slane %v1787, %v1808
    %v1811 = vunpack.c.l.s4 1966171168
    %v1812 = vunpack.c.0.s8 %v1811
    %v1813 = vlaneseq
    %v1814 = vshrl.u32 %v1813, 7
    %v1815 = vsub.s32 %v1812, %v1814
    %v1816 = vrot.slane %v1788, %v1815
    %v1817 = vcombine.high %v1795, %v1795
    %v1818 = vcombine.high %v1802, %v1802
    %v1819 = vcombine.high %v1809, %v1809
    %v1820 = vcombine.high %v1816, %v1816
    %v1821 = vlaneseq
    %v1822 = vshrl.u32 %v1821, 7
    %v1823 = vsub.s32 0, %v1822
    %v1824 = vrot.slane %v1795, %v1823
    %v1825 = vlaneseq
    %v1826 = vshrl.u32 %v1825, 7
    %v1827 = vsub.s32 0, %v1826
    %v1828 = vrot.slane %v1809, %v1827
    %v1829 = vlaneseq
    %v1830 = vshrl.u32 %v1829, 7
    %v1831 = vsub.s32 0, %v1830
    %v1832 = vrot.slane %v1817, %v1831
    %v1833 = vlaneseq
    %v1834 = vshrl.u32 %v1833, 7
    %v1835 = vsub.s32 0, %v1834
    %v1836 = vrot.slane %v1819, %v1835
    %v1837 = vlaneseq
    %v1838 = vshrl.u32 %v1837, 7
    %v1839 = vsub.s32 0, %v1838
    %v1840 = vrot.slane %v1802, %v1839
    %v1841 = vlaneseq
    %v1842 = vshrl.u32 %v1841, 7
    %v1843 = vsub.s32 0, %v1842
    %v1844 = vrot.slane %v1816, %v1843
    %v1845 = vlaneseq
    %v1846 = vshrl.u32 %v1845, 7
    %v1847 = vsub.s32 0, %v1846
    %v1848 = vrot.slane %v1818, %v1847
    %v1849 = vlaneseq
    %v1850 = vshrl.u32 %v1849, 7
    %v1851 = vsub.s32 0, %v1850
    %v1852 = vrot.slane %v1820, %v1851
    %v1861 = vadd.f32 %v1824, %v80
    %v1862 = vadd.f32 %v1824, %v81
    %v1863 = vadd.f32 %v1828, %v82
    %v1864 = vadd.f32 %v1828, %v83
    %v1865 = vadd.f32 %v1832, %v84
    %v1866 = vadd.f32 %v1832, %v85
    %v1867 = vadd.f32 %v1836, %v86
    %v1868 = vadd.f32 %v1836, %v87
    %v1869 = vadd.f32 %v1840, %v88
    %v1870 = vadd.f32 %v1840, %v89
    %v1871 = vadd.f32 %v1844, %v90
    %v1872 = vadd.f32 %v1844, %v91
    %v1873 = vadd.f32 %v1848, %v92
    %v1874 = vadd.f32 %v1848, %v93
    %v1875 = vadd.f32 %v1852, %v94
    %v1876 = vadd.f32 %v1852, %v95
    %v1877 = vtanh.pop %v1861
    %v1878 = vtanh.pop %v1862
    %v1879 = vtanh.pop %v1863
    %v1880 = vtanh.pop %v1864
    %v1881 = vtanh.pop %v1865
    %v1882 = vtanh.pop %v1866
    %v1883 = vtanh.pop %v1867
    %v1884 = vtanh.pop %v1868
    %v1885 = vtanh.pop %v1869
    %v1886 = vtanh.pop %v1870
    %v1887 = vtanh.pop %v1871
    %v1888 = vtanh.pop %v1872
    %v1889 = vtanh.pop %v1873
    %v1890 = vtanh.pop %v1874
    %v1891 = vtanh.pop %v1875
    %v1892 = vtanh.pop %v1876
    %v1893 = vmul.f32 %v1877, %v327
    %v1894 = vmul.f32 %v1878, %v327
    %v1895 = vmul.f32 %v1879, %v327
    %v1896 = vmul.f32 %v1880, %v327
    %v1897 = vmul.f32 %v1881, %v327
    %v1898 = vmul.f32 %v1882, %v327
    %v1899 = vmul.f32 %v1883, %v327
    %v1900 = vmul.f32 %v1884, %v327
    %v1901 = vmul.f32 %v1885, %v327
    %v1902 = vmul.f32 %v1886, %v327
    %v1903 = vmul.f32 %v1887, %v327
    %v1904 = vmul.f32 %v1888, %v327
    %v1905 = vmul.f32 %v1889, %v327
    %v1906 = vmul.f32 %v1890, %v327
    %v1907 = vmul.f32 %v1891, %v327
    %v1908 = vmul.f32 %v1892, %v327
    %v1909 = vsel %vm127, %v1893, 0.0
    %1910 = vadd.xlane.f32.xlu0 %v1909
    %v1911 = vpop.xlane.xlu0 %1910
    %v1912 = vsel %vm348, %v1894, 0.0
    %1913 = vadd.xlane.f32.xlu0 %v1912
    %v1914 = vpop.xlane.xlu0 %1913
    %v1915 = vsel %vm127, %v1895, 0.0
    %1916 = vadd.xlane.f32.xlu0 %v1915
    %v1917 = vpop.xlane.xlu0 %1916
    %v1918 = vsel %vm348, %v1896, 0.0
    %1919 = vadd.xlane.f32.xlu0 %v1918
    %v1920 = vpop.xlane.xlu0 %1919
    %v1921 = vsel %vm127, %v1897, 0.0
    %1922 = vadd.xlane.f32.xlu0 %v1921
    %v1923 = vpop.xlane.xlu0 %1922
    %v1924 = vsel %vm348, %v1898, 0.0
    %1925 = vadd.xlane.f32.xlu0 %v1924
    %v1926 = vpop.xlane.xlu0 %1925
    %v1927 = vsel %vm127, %v1899, 0.0
    %1928 = vadd.xlane.f32.xlu0 %v1927
    %v1929 = vpop.xlane.xlu0 %1928
    %v1930 = vsel %vm348, %v1900, 0.0
    %1931 = vadd.xlane.f32.xlu0 %v1930
    %v1932 = vpop.xlane.xlu0 %1931
    %v1933 = vsel %vm127, %v1901, 0.0
    %1934 = vadd.xlane.f32.xlu0 %v1933
    %v1935 = vpop.xlane.xlu0 %1934
    %v1936 = vsel %vm348, %v1902, 0.0
    %1937 = vadd.xlane.f32.xlu0 %v1936
    %v1938 = vpop.xlane.xlu0 %1937
    %v1939 = vsel %vm127, %v1903, 0.0
    %1940 = vadd.xlane.f32.xlu0 %v1939
    %v1941 = vpop.xlane.xlu0 %1940
    %v1942 = vsel %vm348, %v1904, 0.0
    %1943 = vadd.xlane.f32.xlu0 %v1942
    %v1944 = vpop.xlane.xlu0 %1943
    %v1945 = vsel %vm127, %v1905, 0.0
    %1946 = vadd.xlane.f32.xlu0 %v1945
    %v1947 = vpop.xlane.xlu0 %1946
    %v1948 = vsel %vm348, %v1906, 0.0
    %1949 = vadd.xlane.f32.xlu0 %v1948
    %v1950 = vpop.xlane.xlu0 %1949
    %v1951 = vsel %vm127, %v1907, 0.0
    %1952 = vadd.xlane.f32.xlu0 %v1951
    %v1953 = vpop.xlane.xlu0 %1952
    %v1954 = vsel %vm348, %v1908, 0.0
    %1955 = vadd.xlane.f32.xlu0 %v1954
    %v1956 = vpop.xlane.xlu0 %1955
    %v1957 = vadd.f32 %v1911, %v401
    %v1958 = vadd.f32 %v1914, %v405
    %v1959 = vadd.f32 %v1917, %v412
    %v1960 = vadd.f32 %v1920, %v416
    %v1961 = vadd.f32 %v1923, %v423
    %v1962 = vadd.f32 %v1926, %v427
    %v1963 = vadd.f32 %v1929, %v434
    %v1964 = vadd.f32 %v1932, %v438
    %v1965 = vadd.f32 %v1935, %v445
    %v1966 = vadd.f32 %v1938, %v449
    %v1967 = vadd.f32 %v1941, %v456
    %v1968 = vadd.f32 %v1944, %v460
    %v1969 = vadd.f32 %v1947, %v467
    %v1970 = vadd.f32 %v1950, %v471
    %v1971 = vadd.f32 %v1953, %v478
    %v1972 = vadd.f32 %v1956, %v482
    %1989 = vset.pattern.permute.xlu0 0
    %1990 = vperm.xlu0 %1989, %v1957
    %v1991 = vpop.permute.xlu0 %1990
    %1992 = vset.pattern.permute.xlu0 0
    %1993 = vperm.xlu0 %1992, %v1958
    %v1994 = vpop.permute.xlu0 %1993
    %1995 = vset.pattern.permute.xlu0 0
    %1996 = vperm.xlu0 %1995, %v1959
    %v1997 = vpop.permute.xlu0 %1996
    %1998 = vset.pattern.permute.xlu0 0
    %1999 = vperm.xlu0 %1998, %v1960
    %v2000 = vpop.permute.xlu0 %1999
    %2001 = vset.pattern.permute.xlu0 0
    %2002 = vperm.xlu0 %2001, %v1961
    %v2003 = vpop.permute.xlu0 %2002
    %2004 = vset.pattern.permute.xlu0 0
    %2005 = vperm.xlu0 %2004, %v1962
    %v2006 = vpop.permute.xlu0 %2005
    %2007 = vset.pattern.permute.xlu0 0
    %2008 = vperm.xlu0 %2007, %v1963
    %v2009 = vpop.permute.xlu0 %2008
    %2010 = vset.pattern.permute.xlu0 0
    %2011 = vperm.xlu0 %2010, %v1964
    %v2012 = vpop.permute.xlu0 %2011
    %2013 = vset.pattern.permute.xlu0 0
    %2014 = vperm.xlu0 %2013, %v1965
    %v2015 = vpop.permute.xlu0 %2014
    %2016 = vset.pattern.permute.xlu0 0
    %2017 = vperm.xlu0 %2016, %v1966
    %v2018 = vpop.permute.xlu0 %2017
    %2019 = vset.pattern.permute.xlu0 0
    %2020 = vperm.xlu0 %2019, %v1967
    %v2021 = vpop.permute.xlu0 %2020
    %2022 = vset.pattern.permute.xlu0 0
    %2023 = vperm.xlu0 %2022, %v1968
    %v2024 = vpop.permute.xlu0 %2023
    %2025 = vset.pattern.permute.xlu0 0
    %2026 = vperm.xlu0 %2025, %v1969
    %v2027 = vpop.permute.xlu0 %2026
    %2028 = vset.pattern.permute.xlu0 0
    %2029 = vperm.xlu0 %2028, %v1970
    %v2030 = vpop.permute.xlu0 %2029
    %2031 = vset.pattern.permute.xlu0 0
    %2032 = vperm.xlu0 %2031, %v1971
    %v2033 = vpop.permute.xlu0 %2032
    %2034 = vset.pattern.permute.xlu0 0
    %2035 = vperm.xlu0 %2034, %v1972
    %v2036 = vpop.permute.xlu0 %2035
    %v2037 = vlaneseq
    %v2038 = vshrl.u32 %v2037, 7
    %v2039 = vsub.s32 %v580, %v2038
    %v2040 = vrot.slane %v1991, %v2039
    %v2041 = vlaneseq
    %v2042 = vshrl.u32 %v2041, 7
    %v2043 = vsub.s32 %v585, %v2042
    %v2044 = vrot.slane %v1994, %v2043
    %v2045 = vsel %vm590, %v2044, %v2040
    %v2046 = vlaneseq
    %v2047 = vshrl.u32 %v2046, 7
    %v2048 = vsub.s32 %v580, %v2047
    %v2049 = vrot.slane %v1997, %v2048
    %v2050 = vlaneseq
    %v2051 = vshrl.u32 %v2050, 7
    %v2052 = vsub.s32 %v585, %v2051
    %v2053 = vrot.slane %v2000, %v2052
    %v2054 = vsel %vm590, %v2053, %v2049
    %v2055 = vlaneseq
    %v2056 = vshrl.u32 %v2055, 7
    %v2057 = vsub.s32 %v580, %v2056
    %v2058 = vrot.slane %v2003, %v2057
    %v2059 = vlaneseq
    %v2060 = vshrl.u32 %v2059, 7
    %v2061 = vsub.s32 %v585, %v2060
    %v2062 = vrot.slane %v2006, %v2061
    %v2063 = vsel %vm590, %v2062, %v2058
    %v2064 = vlaneseq
    %v2065 = vshrl.u32 %v2064, 7
    %v2066 = vsub.s32 %v580, %v2065
    %v2067 = vrot.slane %v2009, %v2066
    %v2068 = vlaneseq
    %v2069 = vshrl.u32 %v2068, 7
    %v2070 = vsub.s32 %v585, %v2069
    %v2071 = vrot.slane %v2012, %v2070
    %v2072 = vsel %vm590, %v2071, %v2067
    %v2073 = vlaneseq
    %v2074 = vshrl.u32 %v2073, 7
    %v2075 = vsub.s32 %v580, %v2074
    %v2076 = vrot.slane %v2015, %v2075
    %v2077 = vlaneseq
    %v2078 = vshrl.u32 %v2077, 7
    %v2079 = vsub.s32 %v585, %v2078
    %v2080 = vrot.slane %v2018, %v2079
    %v2081 = vsel %vm590, %v2080, %v2076
    %v2082 = vlaneseq
    %v2083 = vshrl.u32 %v2082, 7
    %v2084 = vsub.s32 %v580, %v2083
    %v2085 = vrot.slane %v2021, %v2084
    %v2086 = vlaneseq
    %v2087 = vshrl.u32 %v2086, 7
    %v2088 = vsub.s32 %v585, %v2087
    %v2089 = vrot.slane %v2024, %v2088
    %v2090 = vsel %vm590, %v2089, %v2085
    %v2091 = vlaneseq
    %v2092 = vshrl.u32 %v2091, 7
    %v2093 = vsub.s32 %v580, %v2092
    %v2094 = vrot.slane %v2027, %v2093
    %v2095 = vlaneseq
    %v2096 = vshrl.u32 %v2095, 7
    %v2097 = vsub.s32 %v585, %v2096
    %v2098 = vrot.slane %v2030, %v2097
    %v2099 = vsel %vm590, %v2098, %v2094
    %v2100 = vlaneseq
    %v2101 = vshrl.u32 %v2100, 7
    %v2102 = vsub.s32 %v580, %v2101
    %v2103 = vrot.slane %v2033, %v2102
    %v2104 = vlaneseq
    %v2105 = vshrl.u32 %v2104, 7
    %v2106 = vsub.s32 %v585, %v2105
    %v2107 = vrot.slane %v2036, %v2106
    %v2108 = vsel %vm590, %v2107, %v2103
    %v2109 = vsel %vm655, %v2054, %v2045
    %v2110 = vsel %vm657, %v2063, %v2109
    %v2111 = vsel %vm659, %v2072, %v2110
    %v2112 = vsel %vm661, %v2081, %v2111
    %v2113 = vsel %vm663, %v2090, %v2112
    %v2114 = vsel %vm665, %v2099, %v2113
    %v2115 = vsel %vm667, %v2108, %v2114
    %v2117 = vsel %vm670, %v2115, -inf
    %2118 = vmax.xlane.f32.xlu0 %v2117
    %v2119 = vpop.xlane.xlu0 %2118
    %v2121 = vlaneseq
    %v2122 = vshrl.u32 %v2121, 7
    %v2123 = vsub.s32 0, %v2122
    %v2124 = vrot.slane %v2119, %v2123
    %v2125 = vlaneseq
    %v2126 = vshrl.u32 %v2125, 7
    %v2127 = vsub.s32 1, %v2126
    %v2128 = vrot.slane %v2119, %v2127
    %v2129 = vlaneseq
    %v2130 = vshrl.u32 %v2129, 7
    %v2131 = vsub.s32 2, %v2130
    %v2132 = vrot.slane %v2119, %v2131
    %v2133 = vlaneseq
    %v2134 = vshrl.u32 %v2133, 7
    %v2135 = vsub.s32 3, %v2134
    %v2136 = vrot.slane %v2119, %v2135
    %v2137 = vlaneseq
    %v2138 = vshrl.u32 %v2137, 7
    %v2139 = vsub.s32 4, %v2138
    %v2140 = vrot.slane %v2119, %v2139
    %v2141 = vlaneseq
    %v2142 = vshrl.u32 %v2141, 7
    %v2143 = vsub.s32 5, %v2142
    %v2144 = vrot.slane %v2119, %v2143
    %v2145 = vlaneseq
    %v2146 = vshrl.u32 %v2145, 7
    %v2147 = vsub.s32 6, %v2146
    %v2148 = vrot.slane %v2119, %v2147
    %v2149 = vlaneseq
    %v2150 = vshrl.u32 %v2149, 7
    %v2151 = vsub.s32 7, %v2150
    %v2152 = vrot.slane %v2119, %v2151
    %v2161 = vsub.f32 %v1957, %v2124
    %v2162 = vsub.f32 %v1958, %v2124
    %v2163 = vsub.f32 %v1959, %v2128
    %v2164 = vsub.f32 %v1960, %v2128
    %v2165 = vsub.f32 %v1961, %v2132
    %v2166 = vsub.f32 %v1962, %v2132
    %v2167 = vsub.f32 %v1963, %v2136
    %v2168 = vsub.f32 %v1964, %v2136
    %v2169 = vsub.f32 %v1965, %v2140
    %v2170 = vsub.f32 %v1966, %v2140
    %v2171 = vsub.f32 %v1967, %v2144
    %v2172 = vsub.f32 %v1968, %v2144
    %v2173 = vsub.f32 %v1969, %v2148
    %v2174 = vsub.f32 %v1970, %v2148
    %v2175 = vsub.f32 %v1971, %v2152
    %v2176 = vsub.f32 %v1972, %v2152
    %v2177 = vmul.f32 %v2161, 1.442695
    %v2178 = vpow.pop %v2177
    %v2179 = vmul.f32 %v2162, 1.442695
    %v2180 = vpow.pop %v2179
    %v2181 = vmul.f32 %v2163, 1.442695
    %v2182 = vpow.pop %v2181
    %v2183 = vmul.f32 %v2164, 1.442695
    %v2184 = vpow.pop %v2183
    %v2185 = vmul.f32 %v2165, 1.442695
    %v2186 = vpow.pop %v2185
    %v2187 = vmul.f32 %v2166, 1.442695
    %v2188 = vpow.pop %v2187
    %v2189 = vmul.f32 %v2167, 1.442695
    %v2190 = vpow.pop %v2189
    %v2191 = vmul.f32 %v2168, 1.442695
    %v2192 = vpow.pop %v2191
    %v2193 = vmul.f32 %v2169, 1.442695
    %v2194 = vpow.pop %v2193
    %v2195 = vmul.f32 %v2170, 1.442695
    %v2196 = vpow.pop %v2195
    %v2197 = vmul.f32 %v2171, 1.442695
    %v2198 = vpow.pop %v2197
    %v2199 = vmul.f32 %v2172, 1.442695
    %v2200 = vpow.pop %v2199
    %v2201 = vmul.f32 %v2173, 1.442695
    %v2202 = vpow.pop %v2201
    %v2203 = vmul.f32 %v2174, 1.442695
    %v2204 = vpow.pop %v2203
    %v2205 = vmul.f32 %v2175, 1.442695
    %v2206 = vpow.pop %v2205
    %v2207 = vmul.f32 %v2176, 1.442695
    %v2208 = vpow.pop %v2207
    %2225 = vset.pattern.permute.xlu0 0
    %2226 = vperm.xlu0 %2225, %v2178
    %v2227 = vpop.permute.xlu0 %2226
    %2228 = vset.pattern.permute.xlu0 0
    %2229 = vperm.xlu0 %2228, %v2180
    %v2230 = vpop.permute.xlu0 %2229
    %2231 = vset.pattern.permute.xlu0 0
    %2232 = vperm.xlu0 %2231, %v2182
    %v2233 = vpop.permute.xlu0 %2232
    %2234 = vset.pattern.permute.xlu0 0
    %2235 = vperm.xlu0 %2234, %v2184
    %v2236 = vpop.permute.xlu0 %2235
    %2237 = vset.pattern.permute.xlu0 0
    %2238 = vperm.xlu0 %2237, %v2186
    %v2239 = vpop.permute.xlu0 %2238
    %2240 = vset.pattern.permute.xlu0 0
    %2241 = vperm.xlu0 %2240, %v2188
    %v2242 = vpop.permute.xlu0 %2241
    %2243 = vset.pattern.permute.xlu0 0
    %2244 = vperm.xlu0 %2243, %v2190
    %v2245 = vpop.permute.xlu0 %2244
    %2246 = vset.pattern.permute.xlu0 0
    %2247 = vperm.xlu0 %2246, %v2192
    %v2248 = vpop.permute.xlu0 %2247
    %2249 = vset.pattern.permute.xlu0 0
    %2250 = vperm.xlu0 %2249, %v2194
    %v2251 = vpop.permute.xlu0 %2250
    %2252 = vset.pattern.permute.xlu0 0
    %2253 = vperm.xlu0 %2252, %v2196
    %v2254 = vpop.permute.xlu0 %2253
    %2255 = vset.pattern.permute.xlu0 0
    %2256 = vperm.xlu0 %2255, %v2198
    %v2257 = vpop.permute.xlu0 %2256
    %2258 = vset.pattern.permute.xlu0 0
    %2259 = vperm.xlu0 %2258, %v2200
    %v2260 = vpop.permute.xlu0 %2259
    %2261 = vset.pattern.permute.xlu0 0
    %2262 = vperm.xlu0 %2261, %v2202
    %v2263 = vpop.permute.xlu0 %2262
    %2264 = vset.pattern.permute.xlu0 0
    %2265 = vperm.xlu0 %2264, %v2204
    %v2266 = vpop.permute.xlu0 %2265
    %2267 = vset.pattern.permute.xlu0 0
    %2268 = vperm.xlu0 %2267, %v2206
    %v2269 = vpop.permute.xlu0 %2268
    %2270 = vset.pattern.permute.xlu0 0
    %2271 = vperm.xlu0 %2270, %v2208
    %v2272 = vpop.permute.xlu0 %2271
    %v2273 = vlaneseq
    %v2274 = vshrl.u32 %v2273, 7
    %v2275 = vsub.s32 %v580, %v2274
    %v2276 = vrot.slane %v2227, %v2275
    %v2277 = vlaneseq
    %v2278 = vshrl.u32 %v2277, 7
    %v2279 = vsub.s32 %v585, %v2278
    %v2280 = vrot.slane %v2230, %v2279
    %v2281 = vsel %vm590, %v2280, %v2276
    %v2282 = vlaneseq
    %v2283 = vshrl.u32 %v2282, 7
    %v2284 = vsub.s32 %v580, %v2283
    %v2285 = vrot.slane %v2233, %v2284
    %v2286 = vlaneseq
    %v2287 = vshrl.u32 %v2286, 7
    %v2288 = vsub.s32 %v585, %v2287
    %v2289 = vrot.slane %v2236, %v2288
    %v2290 = vsel %vm590, %v2289, %v2285
    %v2291 = vlaneseq
    %v2292 = vshrl.u32 %v2291, 7
    %v2293 = vsub.s32 %v580, %v2292
    %v2294 = vrot.slane %v2239, %v2293
    %v2295 = vlaneseq
    %v2296 = vshrl.u32 %v2295, 7
    %v2297 = vsub.s32 %v585, %v2296
    %v2298 = vrot.slane %v2242, %v2297
    %v2299 = vsel %vm590, %v2298, %v2294
    %v2300 = vlaneseq
    %v2301 = vshrl.u32 %v2300, 7
    %v2302 = vsub.s32 %v580, %v2301
    %v2303 = vrot.slane %v2245, %v2302
    %v2304 = vlaneseq
    %v2305 = vshrl.u32 %v2304, 7
    %v2306 = vsub.s32 %v585, %v2305
    %v2307 = vrot.slane %v2248, %v2306
    %v2308 = vsel %vm590, %v2307, %v2303
    %v2309 = vlaneseq
    %v2310 = vshrl.u32 %v2309, 7
    %v2311 = vsub.s32 %v580, %v2310
    %v2312 = vrot.slane %v2251, %v2311
    %v2313 = vlaneseq
    %v2314 = vshrl.u32 %v2313, 7
    %v2315 = vsub.s32 %v585, %v2314
    %v2316 = vrot.slane %v2254, %v2315
    %v2317 = vsel %vm590, %v2316, %v2312
    %v2318 = vlaneseq
    %v2319 = vshrl.u32 %v2318, 7
    %v2320 = vsub.s32 %v580, %v2319
    %v2321 = vrot.slane %v2257, %v2320
    %v2322 = vlaneseq
    %v2323 = vshrl.u32 %v2322, 7
    %v2324 = vsub.s32 %v585, %v2323
    %v2325 = vrot.slane %v2260, %v2324
    %v2326 = vsel %vm590, %v2325, %v2321
    %v2327 = vlaneseq
    %v2328 = vshrl.u32 %v2327, 7
    %v2329 = vsub.s32 %v580, %v2328
    %v2330 = vrot.slane %v2263, %v2329
    %v2331 = vlaneseq
    %v2332 = vshrl.u32 %v2331, 7
    %v2333 = vsub.s32 %v585, %v2332
    %v2334 = vrot.slane %v2266, %v2333
    %v2335 = vsel %vm590, %v2334, %v2330
    %v2336 = vlaneseq
    %v2337 = vshrl.u32 %v2336, 7
    %v2338 = vsub.s32 %v580, %v2337
    %v2339 = vrot.slane %v2269, %v2338
    %v2340 = vlaneseq
    %v2341 = vshrl.u32 %v2340, 7
    %v2342 = vsub.s32 %v585, %v2341
    %v2343 = vrot.slane %v2272, %v2342
    %v2344 = vsel %vm590, %v2343, %v2339
    %v2345 = vsel %vm655, %v2290, %v2281
    %v2346 = vsel %vm657, %v2299, %v2345
    %v2347 = vsel %vm659, %v2308, %v2346
    %v2348 = vsel %vm661, %v2317, %v2347
    %v2349 = vsel %vm663, %v2326, %v2348
    %v2350 = vsel %vm665, %v2335, %v2349
    %v2351 = vsel %vm667, %v2344, %v2350
    %v2353 = vsel %vm670, %v2351, 0.0
    %2354 = vadd.xlane.f32.xlu0 %v2353
    %v2355 = vpop.xlane.xlu0 %2354
    %v2356 = vrcp.pop %v2355
    %v2358 = vlaneseq
    %v2359 = vshrl.u32 %v2358, 7
    %v2360 = vsub.s32 0, %v2359
    %v2361 = vrot.slane %v2356, %v2360
    %v2362 = vlaneseq
    %v2363 = vshrl.u32 %v2362, 7
    %v2364 = vsub.s32 1, %v2363
    %v2365 = vrot.slane %v2356, %v2364
    %v2366 = vlaneseq
    %v2367 = vshrl.u32 %v2366, 7
    %v2368 = vsub.s32 2, %v2367
    %v2369 = vrot.slane %v2356, %v2368
    %v2370 = vlaneseq
    %v2371 = vshrl.u32 %v2370, 7
    %v2372 = vsub.s32 3, %v2371
    %v2373 = vrot.slane %v2356, %v2372
    %v2374 = vlaneseq
    %v2375 = vshrl.u32 %v2374, 7
    %v2376 = vsub.s32 4, %v2375
    %v2377 = vrot.slane %v2356, %v2376
    %v2378 = vlaneseq
    %v2379 = vshrl.u32 %v2378, 7
    %v2380 = vsub.s32 5, %v2379
    %v2381 = vrot.slane %v2356, %v2380
    %v2382 = vlaneseq
    %v2383 = vshrl.u32 %v2382, 7
    %v2384 = vsub.s32 6, %v2383
    %v2385 = vrot.slane %v2356, %v2384
    %v2386 = vlaneseq
    %v2387 = vshrl.u32 %v2386, 7
    %v2388 = vsub.s32 7, %v2387
    %v2389 = vrot.slane %v2356, %v2388
    %v2398 = vmul.f32 %v2178, %v2361
    %v2399 = vmul.f32 %v2180, %v2361
    %v2400 = vmul.f32 %v2182, %v2365
    %v2401 = vmul.f32 %v2184, %v2365
    %v2402 = vmul.f32 %v2186, %v2369
    %v2403 = vmul.f32 %v2188, %v2369
    %v2404 = vmul.f32 %v2190, %v2373
    %v2405 = vmul.f32 %v2192, %v2373
    %v2406 = vmul.f32 %v2194, %v2377
    %v2407 = vmul.f32 %v2196, %v2377
    %v2408 = vmul.f32 %v2198, %v2381
    %v2409 = vmul.f32 %v2200, %v2381
    %v2410 = vmul.f32 %v2202, %v2385
    %v2411 = vmul.f32 %v2204, %v2385
    %v2412 = vmul.f32 %v2206, %v2389
    %v2413 = vmul.f32 %v2208, %v2389
    %2415 = vset.pattern.permute.xlu0 0
    %2416 = vperm.xlu0 %2415, %v2398
    %v2417 = vpop.permute.xlu0 %2416
    %2420 = vset.pattern.permute.xlu0 0
    %2421 = vperm.xlu0 %2420, %v2399
    %v2422 = vpop.permute.xlu0 %2421
    %2425 = vset.pattern.permute.xlu0 0
    %2426 = vperm.xlu0 %2425, %v2400
    %v2427 = vpop.permute.xlu0 %2426
    %2430 = vset.pattern.permute.xlu0 0
    %2431 = vperm.xlu0 %2430, %v2401
    %v2432 = vpop.permute.xlu0 %2431
    %2435 = vset.pattern.permute.xlu0 0
    %2436 = vperm.xlu0 %2435, %v2402
    %v2437 = vpop.permute.xlu0 %2436
    %2440 = vset.pattern.permute.xlu0 0
    %2441 = vperm.xlu0 %2440, %v2403
    %v2442 = vpop.permute.xlu0 %2441
    %2445 = vset.pattern.permute.xlu0 0
    %2446 = vperm.xlu0 %2445, %v2404
    %v2447 = vpop.permute.xlu0 %2446
    %2450 = vset.pattern.permute.xlu0 0
    %2451 = vperm.xlu0 %2450, %v2405
    %v2452 = vpop.permute.xlu0 %2451
    %2455 = vset.pattern.permute.xlu0 0
    %2456 = vperm.xlu0 %2455, %v2406
    %v2457 = vpop.permute.xlu0 %2456
    %2460 = vset.pattern.permute.xlu0 0
    %2461 = vperm.xlu0 %2460, %v2407
    %v2462 = vpop.permute.xlu0 %2461
    %2465 = vset.pattern.permute.xlu0 0
    %2466 = vperm.xlu0 %2465, %v2408
    %v2467 = vpop.permute.xlu0 %2466
    %2470 = vset.pattern.permute.xlu0 0
    %2471 = vperm.xlu0 %2470, %v2409
    %v2472 = vpop.permute.xlu0 %2471
    %2475 = vset.pattern.permute.xlu0 0
    %2476 = vperm.xlu0 %2475, %v2410
    %v2477 = vpop.permute.xlu0 %2476
    %2480 = vset.pattern.permute.xlu0 0
    %2481 = vperm.xlu0 %2480, %v2411
    %v2482 = vpop.permute.xlu0 %2481
    %2485 = vset.pattern.permute.xlu0 0
    %2486 = vperm.xlu0 %2485, %v2412
    %v2487 = vpop.permute.xlu0 %2486
    %2490 = vset.pattern.permute.xlu0 0
    %2491 = vperm.xlu0 %2490, %v2413
    %v2492 = vpop.permute.xlu0 %2491
    %v2494 = vmul.f32 %v2417, %v64
    %v2495 = vmul.f32 %v2422, %v65
    %v2496 = vmul.f32 %v2427, %v66
    %v2497 = vmul.f32 %v2432, %v67
    %v2498 = vmul.f32 %v2437, %v68
    %v2499 = vmul.f32 %v2442, %v69
    %v2500 = vmul.f32 %v2447, %v70
    %v2501 = vmul.f32 %v2452, %v71
    %v2502 = vmul.f32 %v2457, %v72
    %v2503 = vmul.f32 %v2462, %v73
    %v2504 = vmul.f32 %v2467, %v74
    %v2505 = vmul.f32 %v2472, %v75
    %v2506 = vmul.f32 %v2477, %v76
    %v2507 = vmul.f32 %v2482, %v77
    %v2508 = vmul.f32 %v2487, %v78
    %v2509 = vmul.f32 %v2492, %v79
    %v2510 = vsel %vm127, %v2494, 0.0
    %v2511 = vsel %vm348, %v2495, 0.0
    %v2512 = vadd.f32 %v2510, %v2511
    %v2513 = vrot.slane %v2512, 4
    %v2514 = vadd.f32 %v2512, %v2513
    %v2515 = vrot.slane %v2514, 2
    %v2516 = vadd.f32 %v2514, %v2515
    %v2517 = vrot.slane %v2516, 1
    %v2518 = vadd.f32 %v2516, %v2517
    %v2519 = vsel %vm127, %v2496, 0.0
    %v2520 = vsel %vm348, %v2497, 0.0
    %v2521 = vadd.f32 %v2519, %v2520
    %v2522 = vrot.slane %v2521, 4
    %v2523 = vadd.f32 %v2521, %v2522
    %v2524 = vrot.slane %v2523, 2
    %v2525 = vadd.f32 %v2523, %v2524
    %v2526 = vrot.slane %v2525, 1
    %v2527 = vadd.f32 %v2525, %v2526
    %v2528 = vsel %vm127, %v2498, 0.0
    %v2529 = vsel %vm348, %v2499, 0.0
    %v2530 = vadd.f32 %v2528, %v2529
    %v2531 = vrot.slane %v2530, 4
    %v2532 = vadd.f32 %v2530, %v2531
    %v2533 = vrot.slane %v2532, 2
    %v2534 = vadd.f32 %v2532, %v2533
    %v2535 = vrot.slane %v2534, 1
    %v2536 = vadd.f32 %v2534, %v2535
    %v2537 = vsel %vm127, %v2500, 0.0
    %v2538 = vsel %vm348, %v2501, 0.0
    %v2539 = vadd.f32 %v2537, %v2538
    %v2540 = vrot.slane %v2539, 4
    %v2541 = vadd.f32 %v2539, %v2540
    %v2542 = vrot.slane %v2541, 2
    %v2543 = vadd.f32 %v2541, %v2542
    %v2544 = vrot.slane %v2543, 1
    %v2545 = vadd.f32 %v2543, %v2544
    %v2546 = vsel %vm127, %v2502, 0.0
    %v2547 = vsel %vm348, %v2503, 0.0
    %v2548 = vadd.f32 %v2546, %v2547
    %v2549 = vrot.slane %v2548, 4
    %v2550 = vadd.f32 %v2548, %v2549
    %v2551 = vrot.slane %v2550, 2
    %v2552 = vadd.f32 %v2550, %v2551
    %v2553 = vrot.slane %v2552, 1
    %v2554 = vadd.f32 %v2552, %v2553
    %v2555 = vsel %vm127, %v2504, 0.0
    %v2556 = vsel %vm348, %v2505, 0.0
    %v2557 = vadd.f32 %v2555, %v2556
    %v2558 = vrot.slane %v2557, 4
    %v2559 = vadd.f32 %v2557, %v2558
    %v2560 = vrot.slane %v2559, 2
    %v2561 = vadd.f32 %v2559, %v2560
    %v2562 = vrot.slane %v2561, 1
    %v2563 = vadd.f32 %v2561, %v2562
    %v2564 = vsel %vm127, %v2506, 0.0
    %v2565 = vsel %vm348, %v2507, 0.0
    %v2566 = vadd.f32 %v2564, %v2565
    %v2567 = vrot.slane %v2566, 4
    %v2568 = vadd.f32 %v2566, %v2567
    %v2569 = vrot.slane %v2568, 2
    %v2570 = vadd.f32 %v2568, %v2569
    %v2571 = vrot.slane %v2570, 1
    %v2572 = vadd.f32 %v2570, %v2571
    %v2573 = vsel %vm127, %v2508, 0.0
    %v2574 = vsel %vm348, %v2509, 0.0
    %v2575 = vadd.f32 %v2573, %v2574
    %v2576 = vrot.slane %v2575, 4
    %v2577 = vadd.f32 %v2575, %v2576
    %v2578 = vrot.slane %v2577, 2
    %v2579 = vadd.f32 %v2577, %v2578
    %v2580 = vrot.slane %v2579, 1
    %v2581 = vadd.f32 %v2579, %v2580
    %s2582 = scalar_lea.vmem %s0, 8
    %v2583 = vld [vmem:[%s2582] sm:$0xff]
    %v2585 = vsel %vm1137, %v2583, 0
    %2587 = vmatprep.subr.mxu0 0.0
    %2588 = vmatpush1.msra.mxu0 %v106
    %2589 = vmatprep.subr.mxu0 0.0
    %2590 = vmatpush1.msra.mxu0 %v107
    %2591 = vmatprep.subr.mxu0 0.0
    %2592 = vmatpush1.msra.mxu0 0.0
    %2593 = vmatprep.subr.mxu0 0.0
    %2594 = vmatpush1.msra.mxu0 0.0
    %2595 = vmatprep.subr.mxu0 0.0
    %2596 = vmatpush1.msra.mxu0 0.0
    %2597 = vmatprep.subr.mxu0 0.0
    %2598 = vmatpush1.msra.mxu0 0.0
    %2599 = vmatprep.subr.mxu0 0.0
    %2600 = vmatpush1.msra.mxu0 0.0
    %2601 = vmatprep.subr.mxu0 0.0
    %2602 = vmatpush1.msra.mxu0 0.0
    %2603 = vmatprep.subr.mxu0 0.0
    %2604 = vmatpush1.msra.mxu0 0.0
    %2605 = vmatprep.subr.mxu0 0.0
    %2606 = vmatpush1.msra.mxu0 0.0
    %2607 = vmatprep.subr.mxu0 0.0
    %2608 = vmatpush1.msra.mxu0 0.0
    %2609 = vmatprep.subr.mxu0 0.0
    %2610 = vmatpush1.msra.mxu0 0.0
    %2611 = vmatprep.subr.mxu0 0.0
    %2612 = vmatpush1.msra.mxu0 0.0
    %2613 = vmatprep.subr.mxu0 0.0
    %2614 = vmatpush1.msra.mxu0 0.0
    %2615 = vmatprep.subr.mxu0 0.0
    %2616 = vmatpush1.msra.mxu0 0.0
    %2617 = vmatprep.subr.mxu0 0.0
    %2618 = vmatpush1.msra.mxu0 0.0
    %2619 = vmatprep.subr.mxu0 0.0
    %2620 = vmatpush1.msra.mxu0 0.0
    %2621 = vmatprep.subr.mxu0 0.0
    %2622 = vmatpush1.msra.mxu0 0.0
    %2623 = vmatprep.subr.mxu0 0.0
    %2624 = vmatpush1.msra.mxu0 0.0
    %2625 = vmatprep.subr.mxu0 0.0
    %2626 = vmatpush1.msra.mxu0 0.0
    %2627 = vmatprep.subr.mxu0 0.0
    %2628 = vmatpush1.msra.mxu0 0.0
    %2629 = vmatprep.subr.mxu0 0.0
    %2630 = vmatpush1.msra.mxu0 0.0
    %2631 = vmatprep.subr.mxu0 0.0
    %2632 = vmatpush1.msra.mxu0 0.0
    %2633 = vmatprep.subr.mxu0 0.0
    %2634 = vmatpush1.msra.mxu0 0.0
    %2635 = vmatprep.subr.mxu0 0.0
    %2636 = vmatpush1.msra.mxu0 0.0
    %2637 = vmatprep.subr.mxu0 0.0
    %2638 = vmatpush1.msra.mxu0 0.0
    %2639 = vmatprep.subr.mxu0 0.0
    %2640 = vmatpush1.msra.mxu0 0.0
    %2641 = vmatprep.subr.mxu0 0.0
    %2642 = vmatpush1.msra.mxu0 0.0
    %2643 = vmatprep.subr.mxu0 0.0
    %2644 = vmatpush1.msra.mxu0 0.0
    %2645 = vmatprep.subr.mxu0 0.0
    %2646 = vmatpush1.msra.mxu0 0.0
    %2647 = vmatprep.subr.mxu0 0.0
    %2648 = vmatpush1.msra.mxu0 0.0
    %2649 = vmatprep.subr.mxu0 0.0
    %2650 = vmatpush1.msra.mxu0 0.0
    %2651 = vmatprep.mubr.f32.mxu0 0.0
    %2652 = vmatmul.mubr.f32.gmra.mrb[0].mxu0 %v2585
    %v2653 = vpop.f32.mrb[0].mxu0
    %v2654 = vadd.f32 0.0, %v2653
    %v2655 = vpop.f32.mrb[0].mxu0
    %2656 = vdwg.mxu0
    %v2665 = vsel %vm655, %v2527, %v2518
    %v2666 = vsel %vm657, %v2536, %v2665
    %v2667 = vsel %vm659, %v2545, %v2666
    %v2668 = vsel %vm661, %v2554, %v2667
    %v2669 = vsel %vm663, %v2563, %v2668
    %v2670 = vsel %vm665, %v2572, %v2669
    %v2671 = vsel %vm667, %v2581, %v2670
    %v2672 = vsel %vm127, %v2671, 0
    %2674 = vmatprep.subr.mxu0 0.0
    %2675 = vmatpush1.msra.mxu0 %v102
    %2676 = vmatprep.subr.mxu0 0.0
    %2677 = vmatpush1.msra.mxu0 %v103
    %2678 = vmatprep.subr.mxu0 0.0
    %2679 = vmatpush1.msra.mxu0 %v104
    %2680 = vmatprep.subr.mxu0 0.0
    %2681 = vmatpush1.msra.mxu0 %v105
    %2682 = vmatprep.subr.mxu0 0.0
    %2683 = vmatpush1.msra.mxu0 0.0
    %2684 = vmatprep.subr.mxu0 0.0
    %2685 = vmatpush1.msra.mxu0 0.0
    %2686 = vmatprep.subr.mxu0 0.0
    %2687 = vmatpush1.msra.mxu0 0.0
    %2688 = vmatprep.subr.mxu0 0.0
    %2689 = vmatpush1.msra.mxu0 0.0
    %2690 = vmatprep.subr.mxu0 0.0
    %2691 = vmatpush1.msra.mxu0 0.0
    %2692 = vmatprep.subr.mxu0 0.0
    %2693 = vmatpush1.msra.mxu0 0.0
    %2694 = vmatprep.subr.mxu0 0.0
    %2695 = vmatpush1.msra.mxu0 0.0
    %2696 = vmatprep.subr.mxu0 0.0
    %2697 = vmatpush1.msra.mxu0 0.0
    %2698 = vmatprep.subr.mxu0 0.0
    %2699 = vmatpush1.msra.mxu0 0.0
    %2700 = vmatprep.subr.mxu0 0.0
    %2701 = vmatpush1.msra.mxu0 0.0
    %2702 = vmatprep.subr.mxu0 0.0
    %2703 = vmatpush1.msra.mxu0 0.0
    %2704 = vmatprep.subr.mxu0 0.0
    %2705 = vmatpush1.msra.mxu0 0.0
    %2706 = vmatprep.subr.mxu0 0.0
    %2707 = vmatpush1.msra.mxu0 0.0
    %2708 = vmatprep.subr.mxu0 0.0
    %2709 = vmatpush1.msra.mxu0 0.0
    %2710 = vmatprep.subr.mxu0 0.0
    %2711 = vmatpush1.msra.mxu0 0.0
    %2712 = vmatprep.subr.mxu0 0.0
    %2713 = vmatpush1.msra.mxu0 0.0
    %2714 = vmatprep.subr.mxu0 0.0
    %2715 = vmatpush1.msra.mxu0 0.0
    %2716 = vmatprep.subr.mxu0 0.0
    %2717 = vmatpush1.msra.mxu0 0.0
    %2718 = vmatprep.subr.mxu0 0.0
    %2719 = vmatpush1.msra.mxu0 0.0
    %2720 = vmatprep.subr.mxu0 0.0
    %2721 = vmatpush1.msra.mxu0 0.0
    %2722 = vmatprep.subr.mxu0 0.0
    %2723 = vmatpush1.msra.mxu0 0.0
    %2724 = vmatprep.subr.mxu0 0.0
    %2725 = vmatpush1.msra.mxu0 0.0
    %2726 = vmatprep.subr.mxu0 0.0
    %2727 = vmatpush1.msra.mxu0 0.0
    %2728 = vmatprep.subr.mxu0 0.0
    %2729 = vmatpush1.msra.mxu0 0.0
    %2730 = vmatprep.subr.mxu0 0.0
    %2731 = vmatpush1.msra.mxu0 0.0
    %2732 = vmatprep.subr.mxu0 0.0
    %2733 = vmatpush1.msra.mxu0 0.0
    %2734 = vmatprep.subr.mxu0 0.0
    %2735 = vmatpush1.msra.mxu0 0.0
    %2736 = vmatprep.subr.mxu0 0.0
    %2737 = vmatpush1.msra.mxu0 0.0
    %2738 = vmatprep.mubr.f32.mxu0 0.0
    %2739 = vmatmul.mubr.f32.gmra.mrb[0].mxu0 %v2672
    %v2740 = vpop.f32.mrb[0].mxu0
    %v2741 = vadd.f32 %v2654, %v2740
    %v2742 = vpop.f32.mrb[0].mxu0
    %2743 = vdwg.mxu0
    %v2744 = vadd.f32 %v2741, %v1302
    %2745 = vmatprep.subr.mxu0 0.0
    %2746 = vmatpush1.msra.mxu0 %v108
    %2747 = vmatprep.subr.mxu0 0.0
    %2748 = vmatpush1.msra.mxu0 %v109
    %2749 = vmatprep.subr.mxu0 0.0
    %2750 = vmatpush1.msra.mxu0 %v110
    %2751 = vmatprep.subr.mxu0 0.0
    %2752 = vmatpush1.msra.mxu0 %v111
    %2753 = vmatprep.subr.mxu0 0.0
    %2754 = vmatpush1.msra.mxu0 0.0
    %2755 = vmatprep.subr.mxu0 0.0
    %2756 = vmatpush1.msra.mxu0 0.0
    %2757 = vmatprep.subr.mxu0 0.0
    %2758 = vmatpush1.msra.mxu0 0.0
    %2759 = vmatprep.subr.mxu0 0.0
    %2760 = vmatpush1.msra.mxu0 0.0
    %2761 = vmatprep.subr.mxu0 0.0
    %2762 = vmatpush1.msra.mxu0 0.0
    %2763 = vmatprep.subr.mxu0 0.0
    %2764 = vmatpush1.msra.mxu0 0.0
    %2765 = vmatprep.subr.mxu0 0.0
    %2766 = vmatpush1.msra.mxu0 0.0
    %2767 = vmatprep.subr.mxu0 0.0
    %2768 = vmatpush1.msra.mxu0 0.0
    %2769 = vmatprep.subr.mxu0 0.0
    %2770 = vmatpush1.msra.mxu0 0.0
    %2771 = vmatprep.subr.mxu0 0.0
    %2772 = vmatpush1.msra.mxu0 0.0
    %2773 = vmatprep.subr.mxu0 0.0
    %2774 = vmatpush1.msra.mxu0 0.0
    %2775 = vmatprep.subr.mxu0 0.0
    %2776 = vmatpush1.msra.mxu0 0.0
    %2777 = vmatprep.subr.mxu0 0.0
    %2778 = vmatpush1.msra.mxu0 0.0
    %2779 = vmatprep.subr.mxu0 0.0
    %2780 = vmatpush1.msra.mxu0 0.0
    %2781 = vmatprep.subr.mxu0 0.0
    %2782 = vmatpush1.msra.mxu0 0.0
    %2783 = vmatprep.subr.mxu0 0.0
    %2784 = vmatpush1.msra.mxu0 0.0
    %2785 = vmatprep.subr.mxu0 0.0
    %2786 = vmatpush1.msra.mxu0 0.0
    %2787 = vmatprep.subr.mxu0 0.0
    %2788 = vmatpush1.msra.mxu0 0.0
    %2789 = vmatprep.subr.mxu0 0.0
    %2790 = vmatpush1.msra.mxu0 0.0
    %2791 = vmatprep.subr.mxu0 0.0
    %2792 = vmatpush1.msra.mxu0 0.0
    %2793 = vmatprep.subr.mxu0 0.0
    %2794 = vmatpush1.msra.mxu0 0.0
    %2795 = vmatprep.subr.mxu0 0.0
    %2796 = vmatpush1.msra.mxu0 0.0
    %2797 = vmatprep.subr.mxu0 0.0
    %2798 = vmatpush1.msra.mxu0 0.0
    %2799 = vmatprep.subr.mxu0 0.0
    %2800 = vmatpush1.msra.mxu0 0.0
    %2801 = vmatprep.subr.mxu0 0.0
    %2802 = vmatpush1.msra.mxu0 0.0
    %2803 = vmatprep.subr.mxu0 0.0
    %2804 = vmatpush1.msra.mxu0 0.0
    %2805 = vmatprep.subr.mxu0 0.0
    %2806 = vmatpush1.msra.mxu0 0.0
    %2807 = vmatprep.subr.mxu0 0.0
    %2808 = vmatpush1.msra.mxu0 0.0
    %2809 = vmatprep.mubr.f32.mxu0 0.0
    %2810 = vmatmul.mubr.f32.gmra.mrb[0].mxu0 %v1425
    %v2811 = vpop.f32.mrb[0].mxu0
    %v2812 = vadd.f32 0.0, %v2811
    %v2813 = vpop.f32.mrb[0].mxu0
    %2814 = vdwg.mxu0
    %v2815 = vadd.f32 %v2744, %v2812
    %v2816 = vxor.u32 %v2815, 2147483648
    %v2817 = vmul.f32 %v2816, 1.442695
    %v2818 = vpow.pop %v2817
    %v2819 = vadd.f32 %v2818, 1.0
    %v2820 = vrcp.pop %v2819
    %v2821 = vmul.f32 1.0, %v2820
    %v2822 = vadd.f32 %v2812, %v1391
    %2824 = vrot.lane.b32.xlu0 %v2822, 64
    %v2825 = vpop.permute.xlu0 %2824
    %v2827 = vmul.f32 %v2821, %v2825
    %2829 = vrot.lane.b32.xlu0 %v2827, 64
    %v2830 = vpop.permute.xlu0 %2829
    %v2832 = vadd.f32 %v2744, %v2830
    %v2833 = vtanh.pop %v2832
    %v2834 = vsub.f32 1.0, %v2821
    %2836 = vrot.lane.b32.xlu0 %v2833, 96
    %v2837 = vpop.permute.xlu0 %2836
    %v2839 = vmul.f32 %v2834, %v2837
    %v2840 = vmul.f32 %v2821, %v1415
    %v2841 = vadd.f32 %v2839, %v2840
    %2843 = vrot.lane.b32.xlu0 %v2841, 96
    %v2844 = vpop.permute.xlu0 %2843
    %v2845 = vsel %vm127, %v2844, 0
    %2847 = vmatprep.subr.mxu0 0.0
    %2848 = vmatpush1.msra.mxu0 %v114
    %2849 = vmatprep.subr.mxu0 0.0
    %2850 = vmatpush1.msra.mxu0 %v115
    %2851 = vmatprep.subr.mxu0 0.0
    %2852 = vmatpush1.msra.mxu0 %v116
    %2853 = vmatprep.subr.mxu0 0.0
    %2854 = vmatpush1.msra.mxu0 %v117
    %2855 = vmatprep.subr.mxu0 0.0
    %2856 = vmatpush1.msra.mxu0 0.0
    %2857 = vmatprep.subr.mxu0 0.0
    %2858 = vmatpush1.msra.mxu0 0.0
    %2859 = vmatprep.subr.mxu0 0.0
    %2860 = vmatpush1.msra.mxu0 0.0
    %2861 = vmatprep.subr.mxu0 0.0
    %2862 = vmatpush1.msra.mxu0 0.0
    %2863 = vmatprep.subr.mxu0 0.0
    %2864 = vmatpush1.msra.mxu0 0.0
    %2865 = vmatprep.subr.mxu0 0.0
    %2866 = vmatpush1.msra.mxu0 0.0
    %2867 = vmatprep.subr.mxu0 0.0
    %2868 = vmatpush1.msra.mxu0 0.0
    %2869 = vmatprep.subr.mxu0 0.0
    %2870 = vmatpush1.msra.mxu0 0.0
    %2871 = vmatprep.subr.mxu0 0.0
    %2872 = vmatpush1.msra.mxu0 0.0
    %2873 = vmatprep.subr.mxu0 0.0
    %2874 = vmatpush1.msra.mxu0 0.0
    %2875 = vmatprep.subr.mxu0 0.0
    %2876 = vmatpush1.msra.mxu0 0.0
    %2877 = vmatprep.subr.mxu0 0.0
    %2878 = vmatpush1.msra.mxu0 0.0
    %2879 = vmatprep.subr.mxu0 0.0
    %2880 = vmatpush1.msra.mxu0 0.0
    %2881 = vmatprep.subr.mxu0 0.0
    %2882 = vmatpush1.msra.mxu0 0.0
    %2883 = vmatprep.subr.mxu0 0.0
    %2884 = vmatpush1.msra.mxu0 0.0
    %2885 = vmatprep.subr.mxu0 0.0
    %2886 = vmatpush1.msra.mxu0 0.0
    %2887 = vmatprep.subr.mxu0 0.0
    %2888 = vmatpush1.msra.mxu0 0.0
    %2889 = vmatprep.subr.mxu0 0.0
    %2890 = vmatpush1.msra.mxu0 0.0
    %2891 = vmatprep.subr.mxu0 0.0
    %2892 = vmatpush1.msra.mxu0 0.0
    %2893 = vmatprep.subr.mxu0 0.0
    %2894 = vmatpush1.msra.mxu0 0.0
    %2895 = vmatprep.subr.mxu0 0.0
    %2896 = vmatpush1.msra.mxu0 0.0
    %2897 = vmatprep.subr.mxu0 0.0
    %2898 = vmatpush1.msra.mxu0 0.0
    %2899 = vmatprep.subr.mxu0 0.0
    %2900 = vmatpush1.msra.mxu0 0.0
    %2901 = vmatprep.subr.mxu0 0.0
    %2902 = vmatpush1.msra.mxu0 0.0
    %2903 = vmatprep.subr.mxu0 0.0
    %2904 = vmatpush1.msra.mxu0 0.0
    %2905 = vmatprep.subr.mxu0 0.0
    %2906 = vmatpush1.msra.mxu0 0.0
    %2907 = vmatprep.subr.mxu0 0.0
    %2908 = vmatpush1.msra.mxu0 0.0
    %2909 = vmatprep.subr.mxu0 0.0
    %2910 = vmatpush1.msra.mxu0 0.0
    %2911 = vmatprep.mubr.f32.mxu0 0.0
    %2912 = vmatmul.mubr.f32.gmra.mrb[0].mxu0 %v2845
    %v2913 = vpop.f32.mrb[0].mxu0
    %v2914 = vadd.f32 %v1420, %v2913
    %v2915 = vpop.f32.mrb[0].mxu0
    %2916 = vdwg.mxu0
    %2917 = vrot.lane.b32.xlu0 %v1768, 96
    %v2918 = vpop.permute.xlu0 %2917
    %v2920 = vadd.f32 %v2914, %v2918
    %v2921 = vxor.u32 %v2920, 2147483648
    %v2922 = vmul.f32 %v2921, 1.442695
    %v2923 = vpow.pop %v2922
    %v2924 = vadd.f32 %v2923, 1.0
    %v2925 = vrcp.pop %v2924
    %v2926 = vmul.f32 1.0, %v2925
    %v2927 = vadd.f32 %v1768, %v1513
    %2929 = vrot.lane.b32.xlu0 %v2927, 32
    %v2930 = vpop.permute.xlu0 %2929
    %v2932 = vmul.f32 %v2926, %v2930
    %2934 = vrot.lane.b32.xlu0 %v2932, 64
    %v2935 = vpop.permute.xlu0 %2934
    %v2937 = vadd.f32 %v2914, %v2935
    %v2938 = vtanh.pop %v2937
    %v2939 = vsub.f32 1.0, %v2926
    %2941 = vrot.lane.b32.xlu0 %v2938, 96
    %v2942 = vpop.permute.xlu0 %2941
    %v2944 = vmul.f32 %v2939, %v2942
    %v2945 = vmul.f32 %v2926, %v1537
    %v2946 = vadd.f32 %v2944, %v2945
    %2948 = vrot.lane.b32.xlu0 %v2946, 96
    %v2949 = vpop.permute.xlu0 %2948
    %v2950 = vsel %vm127, %v2949, 0
    %2952 = vmatprep.subr.mxu0 0.0
    %2953 = vmatpush1.msra.mxu0 %v120
    %2954 = vmatprep.subr.mxu0 0.0
    %2955 = vmatpush1.msra.mxu0 %v121
    %2956 = vmatprep.subr.mxu0 0.0
    %2957 = vmatpush1.msra.mxu0 %v122
    %2958 = vmatprep.subr.mxu0 0.0
    %2959 = vmatpush1.msra.mxu0 %v123
    %2960 = vmatprep.subr.mxu0 0.0
    %2961 = vmatpush1.msra.mxu0 0.0
    %2962 = vmatprep.subr.mxu0 0.0
    %2963 = vmatpush1.msra.mxu0 0.0
    %2964 = vmatprep.subr.mxu0 0.0
    %2965 = vmatpush1.msra.mxu0 0.0
    %2966 = vmatprep.subr.mxu0 0.0
    %2967 = vmatpush1.msra.mxu0 0.0
    %2968 = vmatprep.subr.mxu0 0.0
    %2969 = vmatpush1.msra.mxu0 0.0
    %2970 = vmatprep.subr.mxu0 0.0
    %2971 = vmatpush1.msra.mxu0 0.0
    %2972 = vmatprep.subr.mxu0 0.0
    %2973 = vmatpush1.msra.mxu0 0.0
    %2974 = vmatprep.subr.mxu0 0.0
    %2975 = vmatpush1.msra.mxu0 0.0
    %2976 = vmatprep.subr.mxu0 0.0
    %2977 = vmatpush1.msra.mxu0 0.0
    %2978 = vmatprep.subr.mxu0 0.0
    %2979 = vmatpush1.msra.mxu0 0.0
    %2980 = vmatprep.subr.mxu0 0.0
    %2981 = vmatpush1.msra.mxu0 0.0
    %2982 = vmatprep.subr.mxu0 0.0
    %2983 = vmatpush1.msra.mxu0 0.0
    %2984 = vmatprep.subr.mxu0 0.0
    %2985 = vmatpush1.msra.mxu0 0.0
    %2986 = vmatprep.subr.mxu0 0.0
    %2987 = vmatpush1.msra.mxu0 0.0
    %2988 = vmatprep.subr.mxu0 0.0
    %2989 = vmatpush1.msra.mxu0 0.0
    %2990 = vmatprep.subr.mxu0 0.0
    %2991 = vmatpush1.msra.mxu0 0.0
    %2992 = vmatprep.subr.mxu0 0.0
    %2993 = vmatpush1.msra.mxu0 0.0
    %2994 = vmatprep.subr.mxu0 0.0
    %2995 = vmatpush1.msra.mxu0 0.0
    %2996 = vmatprep.subr.mxu0 0.0
    %2997 = vmatpush1.msra.mxu0 0.0
    %2998 = vmatprep.subr.mxu0 0.0
    %2999 = vmatpush1.msra.mxu0 0.0
    %3000 = vmatprep.subr.mxu0 0.0
    %3001 = vmatpush1.msra.mxu0 0.0
    %3002 = vmatprep.subr.mxu0 0.0
    %3003 = vmatpush1.msra.mxu0 0.0
    %3004 = vmatprep.subr.mxu0 0.0
    %3005 = vmatpush1.msra.mxu0 0.0
    %3006 = vmatprep.subr.mxu0 0.0
    %3007 = vmatpush1.msra.mxu0 0.0
    %3008 = vmatprep.subr.mxu0 0.0
    %3009 = vmatpush1.msra.mxu0 0.0
    %3010 = vmatprep.subr.mxu0 0.0
    %3011 = vmatpush1.msra.mxu0 0.0
    %3012 = vmatprep.subr.mxu0 0.0
    %3013 = vmatpush1.msra.mxu0 0.0
    %3014 = vmatprep.subr.mxu0 0.0
    %3015 = vmatpush1.msra.mxu0 0.0
    %3016 = vmatprep.mubr.f32.mxu0 0.0
    %3017 = vmatmul.mubr.f32.gmra.mrb[0].mxu0 %v2950
    %v3018 = vpop.f32.mrb[0].mxu0
    %v3019 = vadd.f32 %v1542, %v3018
    %v3020 = vpop.f32.mrb[0].mxu0
    %3021 = vdwg.mxu0
    %s3022 = scalar_lea.vmem [#allocation2], 8
    %3023 = vst.msk [vmem:[%s3022] sm:$0xff] %vm127, %v3019
    %v3024 = vlaneseq
    %v3025 = vshrl.u32 %v3024, 7
    %v3026 = vsub.s32 %v580, %v3025
    %v3027 = vrot.slane %v2417, %v3026
    %v3028 = vlaneseq
    %v3029 = vshrl.u32 %v3028, 7
    %v3030 = vsub.s32 %v585, %v3029
    %v3031 = vrot.slane %v2422, %v3030
    %v3032 = vsel %vm590, %v3031, %v3027
    %v3033 = vlaneseq
    %v3034 = vshrl.u32 %v3033, 7
    %v3035 = vsub.s32 %v580, %v3034
    %v3036 = vrot.slane %v2427, %v3035
    %v3037 = vlaneseq
    %v3038 = vshrl.u32 %v3037, 7
    %v3039 = vsub.s32 %v585, %v3038
    %v3040 = vrot.slane %v2432, %v3039
    %v3041 = vsel %vm590, %v3040, %v3036
    %v3042 = vlaneseq
    %v3043 = vshrl.u32 %v3042, 7
    %v3044 = vsub.s32 %v580, %v3043
    %v3045 = vrot.slane %v2437, %v3044
    %v3046 = vlaneseq
    %v3047 = vshrl.u32 %v3046, 7
    %v3048 = vsub.s32 %v585, %v3047
    %v3049 = vrot.slane %v2442, %v3048
    %v3050 = vsel %vm590, %v3049, %v3045
    %v3051 = vlaneseq
    %v3052 = vshrl.u32 %v3051, 7
    %v3053 = vsub.s32 %v580, %v3052
    %v3054 = vrot.slane %v2447, %v3053
    %v3055 = vlaneseq
    %v3056 = vshrl.u32 %v3055, 7
    %v3057 = vsub.s32 %v585, %v3056
    %v3058 = vrot.slane %v2452, %v3057
    %v3059 = vsel %vm590, %v3058, %v3054
    %v3060 = vlaneseq
    %v3061 = vshrl.u32 %v3060, 7
    %v3062 = vsub.s32 %v580, %v3061
    %v3063 = vrot.slane %v2457, %v3062
    %v3064 = vlaneseq
    %v3065 = vshrl.u32 %v3064, 7
    %v3066 = vsub.s32 %v585, %v3065
    %v3067 = vrot.slane %v2462, %v3066
    %v3068 = vsel %vm590, %v3067, %v3063
    %v3069 = vlaneseq
    %v3070 = vshrl.u32 %v3069, 7
    %v3071 = vsub.s32 %v580, %v3070
    %v3072 = vrot.slane %v2467, %v3071
    %v3073 = vlaneseq
    %v3074 = vshrl.u32 %v3073, 7
    %v3075 = vsub.s32 %v585, %v3074
    %v3076 = vrot.slane %v2472, %v3075
    %v3077 = vsel %vm590, %v3076, %v3072
    %v3078 = vlaneseq
    %v3079 = vshrl.u32 %v3078, 7
    %v3080 = vsub.s32 %v580, %v3079
    %v3081 = vrot.slane %v2477, %v3080
    %v3082 = vlaneseq
    %v3083 = vshrl.u32 %v3082, 7
    %v3084 = vsub.s32 %v585, %v3083
    %v3085 = vrot.slane %v2482, %v3084
    %v3086 = vsel %vm590, %v3085, %v3081
    %v3087 = vlaneseq
    %v3088 = vshrl.u32 %v3087, 7
    %v3089 = vsub.s32 %v580, %v3088
    %v3090 = vrot.slane %v2487, %v3089
    %v3091 = vlaneseq
    %v3092 = vshrl.u32 %v3091, 7
    %v3093 = vsub.s32 %v585, %v3092
    %v3094 = vrot.slane %v2492, %v3093
    %v3095 = vsel %vm590, %v3094, %v3090
    %v3096 = vsel %vm655, %v3041, %v3032
    %v3097 = vsel %vm657, %v3050, %v3096
    %v3098 = vsel %vm659, %v3059, %v3097
    %v3099 = vsel %vm661, %v3068, %v3098
    %v3100 = vsel %vm663, %v3077, %v3099
    %v3101 = vsel %vm665, %v3086, %v3100
    %v3102 = vsel %vm667, %v3095, %v3101
    %s3104 = scalar_lea.vmem [#allocation4], 8
    %3105 = vst.msk [vmem:[%s3104] sm:$0xff] %vm670, %v3102
    %3106 = vmatprep.subr.mxu0 0.0
    %3107 = vmatpush1.msra.mxu0 %v98
    %3108 = vmatprep.subr.mxu0 0.0
    %3109 = vmatpush1.msra.mxu0 %v99
    %3110 = vmatprep.subr.mxu0 0.0
    %3111 = vmatpush1.msra.mxu0 %v100
    %3112 = vmatprep.subr.mxu0 0.0
    %3113 = vmatpush1.msra.mxu0 %v101
    %3114 = vmatprep.subr.mxu0 0.0
    %3115 = vmatpush1.msra.mxu0 0.0
    %3116 = vmatprep.subr.mxu0 0.0
    %3117 = vmatpush1.msra.mxu0 0.0
    %3118 = vmatprep.subr.mxu0 0.0
    %3119 = vmatpush1.msra.mxu0 0.0
    %3120 = vmatprep.subr.mxu0 0.0
    %3121 = vmatpush1.msra.mxu0 0.0
    %3122 = vmatprep.subr.mxu0 0.0
    %3123 = vmatpush1.msra.mxu0 0.0
    %3124 = vmatprep.subr.mxu0 0.0
    %3125 = vmatpush1.msra.mxu0 0.0
    %3126 = vmatprep.subr.mxu0 0.0
    %3127 = vmatpush1.msra.mxu0 0.0
    %3128 = vmatprep.subr.mxu0 0.0
    %3129 = vmatpush1.msra.mxu0 0.0
    %3130 = vmatprep.subr.mxu0 0.0
    %3131 = vmatpush1.msra.mxu0 0.0
    %3132 = vmatprep.subr.mxu0 0.0
    %3133 = vmatpush1.msra.mxu0 0.0
    %3134 = vmatprep.subr.mxu0 0.0
    %3135 = vmatpush1.msra.mxu0 0.0
    %3136 = vmatprep.subr.mxu0 0.0
    %3137 = vmatpush1.msra.mxu0 0.0
    %3138 = vmatprep.subr.mxu0 0.0
    %3139 = vmatpush1.msra.mxu0 0.0
    %3140 = vmatprep.subr.mxu0 0.0
    %3141 = vmatpush1.msra.mxu0 0.0
    %3142 = vmatprep.subr.mxu0 0.0
    %3143 = vmatpush1.msra.mxu0 0.0
    %3144 = vmatprep.subr.mxu0 0.0
    %3145 = vmatpush1.msra.mxu0 0.0
    %3146 = vmatprep.subr.mxu0 0.0
    %3147 = vmatpush1.msra.mxu0 0.0
    %3148 = vmatprep.subr.mxu0 0.0
    %3149 = vmatpush1.msra.mxu0 0.0
    %3150 = vmatprep.subr.mxu0 0.0
    %3151 = vmatpush1.msra.mxu0 0.0
    %3152 = vmatprep.subr.mxu0 0.0
    %3153 = vmatpush1.msra.mxu0 0.0
    %3154 = vmatprep.subr.mxu0 0.0
    %3155 = vmatpush1.msra.mxu0 0.0
    %3156 = vmatprep.subr.mxu0 0.0
    %3157 = vmatpush1.msra.mxu0 0.0
    %3158 = vmatprep.subr.mxu0 0.0
    %3159 = vmatpush1.msra.mxu0 0.0
    %3160 = vmatprep.subr.mxu0 0.0
    %3161 = vmatpush1.msra.mxu0 0.0
    %3162 = vmatprep.subr.mxu0 0.0
    %3163 = vmatpush1.msra.mxu0 0.0
    %3164 = vmatprep.subr.mxu0 0.0
    %3165 = vmatpush1.msra.mxu0 0.0
    %3166 = vmatprep.subr.mxu0 0.0
    %3167 = vmatpush1.msra.mxu0 0.0
    %3168 = vmatprep.subr.mxu0 0.0
    %3169 = vmatpush1.msra.mxu0 0.0
    %3170 = vmatprep.mubr.f32.mxu0 0.0
    %3171 = vmatmul.mubr.f32.gmra.mrb[0].mxu0 %v2950
    %v3172 = vpop.f32.mrb[0].mxu0
    %v3173 = vadd.f32 0.0, %v3172
    %v3174 = vpop.f32.mrb[0].mxu0
    %3175 = vdwg.mxu0
    %v3177 = vcombine.high %v3173, %v3173
    %v3179 = vunpack.c.l.s4 1966171168
    %v3180 = vunpack.c.0.s8 %v3179
    %v3181 = vlaneseq
    %v3182 = vshrl.u32 %v3181, 7
    %v3183 = vsub.s32 %v3180, %v3182
    %v3184 = vrot.slane %v3173, %v3183
    %v3186 = vunpack.c.l.s4 1966171168
    %v3187 = vunpack.c.0.s8 %v3186
    %v3188 = vlaneseq
    %v3189 = vshrl.u32 %v3188, 7
    %v3190 = vsub.s32 %v3187, %v3189
    %v3191 = vrot.slane %v3177, %v3190
    %v3192 = vcombine.high %v3184, %v3184
    %v3193 = vcombine.high %v3191, %v3191
    %v3195 = vunpack.c.l.s4 1966171168
    %v3196 = vunpack.c.0.s8 %v3195
    %v3197 = vlaneseq
    %v3198 = vshrl.u32 %v3197, 7
    %v3199 = vsub.s32 %v3196, %v3198
    %v3200 = vrot.slane %v3184, %v3199
    %v3202 = vunpack.c.l.s4 1966171168
    %v3203 = vunpack.c.0.s8 %v3202
    %v3204 = vlaneseq
    %v3205 = vshrl.u32 %v3204, 7
    %v3206 = vsub.s32 %v3203, %v3205
    %v3207 = vrot.slane %v3191, %v3206
    %v3209 = vunpack.c.l.s4 1966171168
    %v3210 = vunpack.c.0.s8 %v3209
    %v3211 = vlaneseq
    %v3212 = vshrl.u32 %v3211, 7
    %v3213 = vsub.s32 %v3210, %v3212
    %v3214 = vrot.slane %v3192, %v3213
    %v3216 = vunpack.c.l.s4 1966171168
    %v3217 = vunpack.c.0.s8 %v3216
    %v3218 = vlaneseq
    %v3219 = vshrl.u32 %v3218, 7
    %v3220 = vsub.s32 %v3217, %v3219
    %v3221 = vrot.slane %v3193, %v3220
    %v3222 = vcombine.high %v3200, %v3200
    %v3223 = vcombine.high %v3207, %v3207
    %v3224 = vcombine.high %v3214, %v3214
    %v3225 = vcombine.high %v3221, %v3221
    %v3226 = vlaneseq
    %v3227 = vshrl.u32 %v3226, 7
    %v3228 = vsub.s32 0, %v3227
    %v3229 = vrot.slane %v3200, %v3228
    %v3230 = vlaneseq
    %v3231 = vshrl.u32 %v3230, 7
    %v3232 = vsub.s32 0, %v3231
    %v3233 = vrot.slane %v3214, %v3232
    %v3234 = vlaneseq
    %v3235 = vshrl.u32 %v3234, 7
    %v3236 = vsub.s32 0, %v3235
    %v3237 = vrot.slane %v3222, %v3236
    %v3238 = vlaneseq
    %v3239 = vshrl.u32 %v3238, 7
    %v3240 = vsub.s32 0, %v3239
    %v3241 = vrot.slane %v3224, %v3240
    %v3242 = vlaneseq
    %v3243 = vshrl.u32 %v3242, 7
    %v3244 = vsub.s32 0, %v3243
    %v3245 = vrot.slane %v3207, %v3244
    %v3246 = vlaneseq
    %v3247 = vshrl.u32 %v3246, 7
    %v3248 = vsub.s32 0, %v3247
    %v3249 = vrot.slane %v3221, %v3248
    %v3250 = vlaneseq
    %v3251 = vshrl.u32 %v3250, 7
    %v3252 = vsub.s32 0, %v3251
    %v3253 = vrot.slane %v3223, %v3252
    %v3254 = vlaneseq
    %v3255 = vshrl.u32 %v3254, 7
    %v3256 = vsub.s32 0, %v3255
    %v3257 = vrot.slane %v3225, %v3256
    %v3266 = vadd.f32 %v3229, %v80
    %v3267 = vadd.f32 %v3229, %v81
    %v3268 = vadd.f32 %v3233, %v82
    %v3269 = vadd.f32 %v3233, %v83
    %v3270 = vadd.f32 %v3237, %v84
    %v3271 = vadd.f32 %v3237, %v85
    %v3272 = vadd.f32 %v3241, %v86
    %v3273 = vadd.f32 %v3241, %v87
    %v3274 = vadd.f32 %v3245, %v88
    %v3275 = vadd.f32 %v3245, %v89
    %v3276 = vadd.f32 %v3249, %v90
    %v3277 = vadd.f32 %v3249, %v91
    %v3278 = vadd.f32 %v3253, %v92
    %v3279 = vadd.f32 %v3253, %v93
    %v3280 = vadd.f32 %v3257, %v94
    %v3281 = vadd.f32 %v3257, %v95
    %v3282 = vtanh.pop %v3266
    %v3283 = vtanh.pop %v3267
    %v3284 = vtanh.pop %v3268
    %v3285 = vtanh.pop %v3269
    %v3286 = vtanh.pop %v3270
    %v3287 = vtanh.pop %v3271
    %v3288 = vtanh.pop %v3272
    %v3289 = vtanh.pop %v3273
    %v3290 = vtanh.pop %v3274
    %v3291 = vtanh.pop %v3275
    %v3292 = vtanh.pop %v3276
    %v3293 = vtanh.pop %v3277
    %v3294 = vtanh.pop %v3278
    %v3295 = vtanh.pop %v3279
    %v3296 = vtanh.pop %v3280
    %v3297 = vtanh.pop %v3281
    %v3298 = vmul.f32 %v3282, %v327
    %v3299 = vmul.f32 %v3283, %v327
    %v3300 = vmul.f32 %v3284, %v327
    %v3301 = vmul.f32 %v3285, %v327
    %v3302 = vmul.f32 %v3286, %v327
    %v3303 = vmul.f32 %v3287, %v327
    %v3304 = vmul.f32 %v3288, %v327
    %v3305 = vmul.f32 %v3289, %v327
    %v3306 = vmul.f32 %v3290, %v327
    %v3307 = vmul.f32 %v3291, %v327
    %v3308 = vmul.f32 %v3292, %v327
    %v3309 = vmul.f32 %v3293, %v327
    %v3310 = vmul.f32 %v3294, %v327
    %v3311 = vmul.f32 %v3295, %v327
    %v3312 = vmul.f32 %v3296, %v327
    %v3313 = vmul.f32 %v3297, %v327
    %v3314 = vsel %vm127, %v3298, 0.0
    %3315 = vadd.xlane.f32.xlu0 %v3314
    %v3316 = vpop.xlane.xlu0 %3315
    %v3317 = vsel %vm348, %v3299, 0.0
    %3318 = vadd.xlane.f32.xlu0 %v3317
    %v3319 = vpop.xlane.xlu0 %3318
    %v3320 = vsel %vm127, %v3300, 0.0
    %3321 = vadd.xlane.f32.xlu0 %v3320
    %v3322 = vpop.xlane.xlu0 %3321
    %v3323 = vsel %vm348, %v3301, 0.0
    %3324 = vadd.xlane.f32.xlu0 %v3323
    %v3325 = vpop.xlane.xlu0 %3324
    %v3326 = vsel %vm127, %v3302, 0.0
    %3327 = vadd.xlane.f32.xlu0 %v3326
    %v3328 = vpop.xlane.xlu0 %3327
    %v3329 = vsel %vm348, %v3303, 0.0
    %3330 = vadd.xlane.f32.xlu0 %v3329
    %v3331 = vpop.xlane.xlu0 %3330
    %v3332 = vsel %vm127, %v3304, 0.0
    %3333 = vadd.xlane.f32.xlu0 %v3332
    %v3334 = vpop.xlane.xlu0 %3333
    %v3335 = vsel %vm348, %v3305, 0.0
    %3336 = vadd.xlane.f32.xlu0 %v3335
    %v3337 = vpop.xlane.xlu0 %3336
    %v3338 = vsel %vm127, %v3306, 0.0
    %3339 = vadd.xlane.f32.xlu0 %v3338
    %v3340 = vpop.xlane.xlu0 %3339
    %v3341 = vsel %vm348, %v3307, 0.0
    %3342 = vadd.xlane.f32.xlu0 %v3341
    %v3343 = vpop.xlane.xlu0 %3342
    %v3344 = vsel %vm127, %v3308, 0.0
    %3345 = vadd.xlane.f32.xlu0 %v3344
    %v3346 = vpop.xlane.xlu0 %3345
    %v3347 = vsel %vm348, %v3309, 0.0
    %3348 = vadd.xlane.f32.xlu0 %v3347
    %v3349 = vpop.xlane.xlu0 %3348
    %v3350 = vsel %vm127, %v3310, 0.0
    %3351 = vadd.xlane.f32.xlu0 %v3350
    %v3352 = vpop.xlane.xlu0 %3351
    %v3353 = vsel %vm348, %v3311, 0.0
    %3354 = vadd.xlane.f32.xlu0 %v3353
    %v3355 = vpop.xlane.xlu0 %3354
    %v3356 = vsel %vm127, %v3312, 0.0
    %3357 = vadd.xlane.f32.xlu0 %v3356
    %v3358 = vpop.xlane.xlu0 %3357
    %v3359 = vsel %vm348, %v3313, 0.0
    %3360 = vadd.xlane.f32.xlu0 %v3359
    %v3361 = vpop.xlane.xlu0 %3360
    %v3362 = vadd.f32 %v3316, %v401
    %v3363 = vadd.f32 %v3319, %v405
    %v3364 = vadd.f32 %v3322, %v412
    %v3365 = vadd.f32 %v3325, %v416
    %v3366 = vadd.f32 %v3328, %v423
    %v3367 = vadd.f32 %v3331, %v427
    %v3368 = vadd.f32 %v3334, %v434
    %v3369 = vadd.f32 %v3337, %v438
    %v3370 = vadd.f32 %v3340, %v445
    %v3371 = vadd.f32 %v3343, %v449
    %v3372 = vadd.f32 %v3346, %v456
    %v3373 = vadd.f32 %v3349, %v460
    %v3374 = vadd.f32 %v3352, %v467
    %v3375 = vadd.f32 %v3355, %v471
    %v3376 = vadd.f32 %v3358, %v478
    %v3377 = vadd.f32 %v3361, %v482
    %3394 = vset.pattern.permute.xlu0 0
    %3395 = vperm.xlu0 %3394, %v3362
    %v3396 = vpop.permute.xlu0 %3395
    %3397 = vset.pattern.permute.xlu0 0
    %3398 = vperm.xlu0 %3397, %v3363
    %v3399 = vpop.permute.xlu0 %3398
    %3400 = vset.pattern.permute.xlu0 0
    %3401 = vperm.xlu0 %3400, %v3364
    %v3402 = vpop.permute.xlu0 %3401
    %3403 = vset.pattern.permute.xlu0 0
    %3404 = vperm.xlu0 %3403, %v3365
    %v3405 = vpop.permute.xlu0 %3404
    %3406 = vset.pattern.permute.xlu0 0
    %3407 = vperm.xlu0 %3406, %v3366
    %v3408 = vpop.permute.xlu0 %3407
    %3409 = vset.pattern.permute.xlu0 0
    %3410 = vperm.xlu0 %3409, %v3367
    %v3411 = vpop.permute.xlu0 %3410
    %3412 = vset.pattern.permute.xlu0 0
    %3413 = vperm.xlu0 %3412, %v3368
    %v3414 = vpop.permute.xlu0 %3413
    %3415 = vset.pattern.permute.xlu0 0
    %3416 = vperm.xlu0 %3415, %v3369
    %v3417 = vpop.permute.xlu0 %3416
    %3418 = vset.pattern.permute.xlu0 0
    %3419 = vperm.xlu0 %3418, %v3370
    %v3420 = vpop.permute.xlu0 %3419
    %3421 = vset.pattern.permute.xlu0 0
    %3422 = vperm.xlu0 %3421, %v3371
    %v3423 = vpop.permute.xlu0 %3422
    %3424 = vset.pattern.permute.xlu0 0
    %3425 = vperm.xlu0 %3424, %v3372
    %v3426 = vpop.permute.xlu0 %3425
    %3427 = vset.pattern.permute.xlu0 0
    %3428 = vperm.xlu0 %3427, %v3373
    %v3429 = vpop.permute.xlu0 %3428
    %3430 = vset.pattern.permute.xlu0 0
    %3431 = vperm.xlu0 %3430, %v3374
    %v3432 = vpop.permute.xlu0 %3431
    %3433 = vset.pattern.permute.xlu0 0
    %3434 = vperm.xlu0 %3433, %v3375
    %v3435 = vpop.permute.xlu0 %3434
    %3436 = vset.pattern.permute.xlu0 0
    %3437 = vperm.xlu0 %3436, %v3376
    %v3438 = vpop.permute.xlu0 %3437
    %3439 = vset.pattern.permute.xlu0 0
    %3440 = vperm.xlu0 %3439, %v3377
    %v3441 = vpop.permute.xlu0 %3440
    %v3442 = vlaneseq
    %v3443 = vshrl.u32 %v3442, 7
    %v3444 = vsub.s32 %v580, %v3443
    %v3445 = vrot.slane %v3396, %v3444
    %v3446 = vlaneseq
    %v3447 = vshrl.u32 %v3446, 7
    %v3448 = vsub.s32 %v585, %v3447
    %v3449 = vrot.slane %v3399, %v3448
    %v3450 = vsel %vm590, %v3449, %v3445
    %v3451 = vlaneseq
    %v3452 = vshrl.u32 %v3451, 7
    %v3453 = vsub.s32 %v580, %v3452
    %v3454 = vrot.slane %v3402, %v3453
    %v3455 = vlaneseq
    %v3456 = vshrl.u32 %v3455, 7
    %v3457 = vsub.s32 %v585, %v3456
    %v3458 = vrot.slane %v3405, %v3457
    %v3459 = vsel %vm590, %v3458, %v3454
    %v3460 = vlaneseq
    %v3461 = vshrl.u32 %v3460, 7
    %v3462 = vsub.s32 %v580, %v3461
    %v3463 = vrot.slane %v3408, %v3462
    %v3464 = vlaneseq
    %v3465 = vshrl.u32 %v3464, 7
    %v3466 = vsub.s32 %v585, %v3465
    %v3467 = vrot.slane %v3411, %v3466
    %v3468 = vsel %vm590, %v3467, %v3463
    %v3469 = vlaneseq
    %v3470 = vshrl.u32 %v3469, 7
    %v3471 = vsub.s32 %v580, %v3470
    %v3472 = vrot.slane %v3414, %v3471
    %v3473 = vlaneseq
    %v3474 = vshrl.u32 %v3473, 7
    %v3475 = vsub.s32 %v585, %v3474
    %v3476 = vrot.slane %v3417, %v3475
    %v3477 = vsel %vm590, %v3476, %v3472
    %v3478 = vlaneseq
    %v3479 = vshrl.u32 %v3478, 7
    %v3480 = vsub.s32 %v580, %v3479
    %v3481 = vrot.slane %v3420, %v3480
    %v3482 = vlaneseq
    %v3483 = vshrl.u32 %v3482, 7
    %v3484 = vsub.s32 %v585, %v3483
    %v3485 = vrot.slane %v3423, %v3484
    %v3486 = vsel %vm590, %v3485, %v3481
    %v3487 = vlaneseq
    %v3488 = vshrl.u32 %v3487, 7
    %v3489 = vsub.s32 %v580, %v3488
    %v3490 = vrot.slane %v3426, %v3489
    %v3491 = vlaneseq
    %v3492 = vshrl.u32 %v3491, 7
    %v3493 = vsub.s32 %v585, %v3492
    %v3494 = vrot.slane %v3429, %v3493
    %v3495 = vsel %vm590, %v3494, %v3490
    %v3496 = vlaneseq
    %v3497 = vshrl.u32 %v3496, 7
    %v3498 = vsub.s32 %v580, %v3497
    %v3499 = vrot.slane %v3432, %v3498
    %v3500 = vlaneseq
    %v3501 = vshrl.u32 %v3500, 7
    %v3502 = vsub.s32 %v585, %v3501
    %v3503 = vrot.slane %v3435, %v3502
    %v3504 = vsel %vm590, %v3503, %v3499
    %v3505 = vlaneseq
    %v3506 = vshrl.u32 %v3505, 7
    %v3507 = vsub.s32 %v580, %v3506
    %v3508 = vrot.slane %v3438, %v3507
    %v3509 = vlaneseq
    %v3510 = vshrl.u32 %v3509, 7
    %v3511 = vsub.s32 %v585, %v3510
    %v3512 = vrot.slane %v3441, %v3511
    %v3513 = vsel %vm590, %v3512, %v3508
    %v3514 = vsel %vm655, %v3459, %v3450
    %v3515 = vsel %vm657, %v3468, %v3514
    %v3516 = vsel %vm659, %v3477, %v3515
    %v3517 = vsel %vm661, %v3486, %v3516
    %v3518 = vsel %vm663, %v3495, %v3517
    %v3519 = vsel %vm665, %v3504, %v3518
    %v3520 = vsel %vm667, %v3513, %v3519
    %v3522 = vsel %vm670, %v3520, -inf
    %3523 = vmax.xlane.f32.xlu0 %v3522
    %v3524 = vpop.xlane.xlu0 %3523
    %v3526 = vlaneseq
    %v3527 = vshrl.u32 %v3526, 7
    %v3528 = vsub.s32 0, %v3527
    %v3529 = vrot.slane %v3524, %v3528
    %v3530 = vlaneseq
    %v3531 = vshrl.u32 %v3530, 7
    %v3532 = vsub.s32 1, %v3531
    %v3533 = vrot.slane %v3524, %v3532
    %v3534 = vlaneseq
    %v3535 = vshrl.u32 %v3534, 7
    %v3536 = vsub.s32 2, %v3535
    %v3537 = vrot.slane %v3524, %v3536
    %v3538 = vlaneseq
    %v3539 = vshrl.u32 %v3538, 7
    %v3540 = vsub.s32 3, %v3539
    %v3541 = vrot.slane %v3524, %v3540
    %v3542 = vlaneseq
    %v3543 = vshrl.u32 %v3542, 7
    %v3544 = vsub.s32 4, %v3543
    %v3545 = vrot.slane %v3524, %v3544
    %v3546 = vlaneseq
    %v3547 = vshrl.u32 %v3546, 7
    %v3548 = vsub.s32 5, %v3547
    %v3549 = vrot.slane %v3524, %v3548
    %v3550 = vlaneseq
    %v3551 = vshrl.u32 %v3550, 7
    %v3552 = vsub.s32 6, %v3551
    %v3553 = vrot.slane %v3524, %v3552
    %v3554 = vlaneseq
    %v3555 = vshrl.u32 %v3554, 7
    %v3556 = vsub.s32 7, %v3555
    %v3557 = vrot.slane %v3524, %v3556
    %v3566 = vsub.f32 %v3362, %v3529
    %v3567 = vsub.f32 %v3363, %v3529
    %v3568 = vsub.f32 %v3364, %v3533
    %v3569 = vsub.f32 %v3365, %v3533
    %v3570 = vsub.f32 %v3366, %v3537
    %v3571 = vsub.f32 %v3367, %v3537
    %v3572 = vsub.f32 %v3368, %v3541
    %v3573 = vsub.f32 %v3369, %v3541
    %v3574 = vsub.f32 %v3370, %v3545
    %v3575 = vsub.f32 %v3371, %v3545
    %v3576 = vsub.f32 %v3372, %v3549
    %v3577 = vsub.f32 %v3373, %v3549
    %v3578 = vsub.f32 %v3374, %v3553
    %v3579 = vsub.f32 %v3375, %v3553
    %v3580 = vsub.f32 %v3376, %v3557
    %v3581 = vsub.f32 %v3377, %v3557
    %v3582 = vmul.f32 %v3566, 1.442695
    %v3583 = vpow.pop %v3582
    %v3584 = vmul.f32 %v3567, 1.442695
    %v3585 = vpow.pop %v3584
    %v3586 = vmul.f32 %v3568, 1.442695
    %v3587 = vpow.pop %v3586
    %v3588 = vmul.f32 %v3569, 1.442695
    %v3589 = vpow.pop %v3588
    %v3590 = vmul.f32 %v3570, 1.442695
    %v3591 = vpow.pop %v3590
    %v3592 = vmul.f32 %v3571, 1.442695
    %v3593 = vpow.pop %v3592
    %v3594 = vmul.f32 %v3572, 1.442695
    %v3595 = vpow.pop %v3594
    %v3596 = vmul.f32 %v3573, 1.442695
    %v3597 = vpow.pop %v3596
    %v3598 = vmul.f32 %v3574, 1.442695
    %v3599 = vpow.pop %v3598
    %v3600 = vmul.f32 %v3575, 1.442695
    %v3601 = vpow.pop %v3600
    %v3602 = vmul.f32 %v3576, 1.442695
    %v3603 = vpow.pop %v3602
    %v3604 = vmul.f32 %v3577, 1.442695
    %v3605 = vpow.pop %v3604
    %v3606 = vmul.f32 %v3578, 1.442695
    %v3607 = vpow.pop %v3606
    %v3608 = vmul.f32 %v3579, 1.442695
    %v3609 = vpow.pop %v3608
    %v3610 = vmul.f32 %v3580, 1.442695
    %v3611 = vpow.pop %v3610
    %v3612 = vmul.f32 %v3581, 1.442695
    %v3613 = vpow.pop %v3612
    %3630 = vset.pattern.permute.xlu0 0
    %3631 = vperm.xlu0 %3630, %v3583
    %v3632 = vpop.permute.xlu0 %3631
    %3633 = vset.pattern.permute.xlu0 0
    %3634 = vperm.xlu0 %3633, %v3585
    %v3635 = vpop.permute.xlu0 %3634
    %3636 = vset.pattern.permute.xlu0 0
    %3637 = vperm.xlu0 %3636, %v3587
    %v3638 = vpop.permute.xlu0 %3637
    %3639 = vset.pattern.permute.xlu0 0
    %3640 = vperm.xlu0 %3639, %v3589
    %v3641 = vpop.permute.xlu0 %3640
    %3642 = vset.pattern.permute.xlu0 0
    %3643 = vperm.xlu0 %3642, %v3591
    %v3644 = vpop.permute.xlu0 %3643
    %3645 = vset.pattern.permute.xlu0 0
    %3646 = vperm.xlu0 %3645, %v3593
    %v3647 = vpop.permute.xlu0 %3646
    %3648 = vset.pattern.permute.xlu0 0
    %3649 = vperm.xlu0 %3648, %v3595
    %v3650 = vpop.permute.xlu0 %3649
    %3651 = vset.pattern.permute.xlu0 0
    %3652 = vperm.xlu0 %3651, %v3597
    %v3653 = vpop.permute.xlu0 %3652
    %3654 = vset.pattern.permute.xlu0 0
    %3655 = vperm.xlu0 %3654, %v3599
    %v3656 = vpop.permute.xlu0 %3655
    %3657 = vset.pattern.permute.xlu0 0
    %3658 = vperm.xlu0 %3657, %v3601
    %v3659 = vpop.permute.xlu0 %3658
    %3660 = vset.pattern.permute.xlu0 0
    %3661 = vperm.xlu0 %3660, %v3603
    %v3662 = vpop.permute.xlu0 %3661
    %3663 = vset.pattern.permute.xlu0 0
    %3664 = vperm.xlu0 %3663, %v3605
    %v3665 = vpop.permute.xlu0 %3664
    %3666 = vset.pattern.permute.xlu0 0
    %3667 = vperm.xlu0 %3666, %v3607
    %v3668 = vpop.permute.xlu0 %3667
    %3669 = vset.pattern.permute.xlu0 0
    %3670 = vperm.xlu0 %3669, %v3609
    %v3671 = vpop.permute.xlu0 %3670
    %3672 = vset.pattern.permute.xlu0 0
    %3673 = vperm.xlu0 %3672, %v3611
    %v3674 = vpop.permute.xlu0 %3673
    %3675 = vset.pattern.permute.xlu0 0
    %3676 = vperm.xlu0 %3675, %v3613
    %v3677 = vpop.permute.xlu0 %3676
    %v3678 = vlaneseq
    %v3679 = vshrl.u32 %v3678, 7
    %v3680 = vsub.s32 %v580, %v3679
    %v3681 = vrot.slane %v3632, %v3680
    %v3682 = vlaneseq
    %v3683 = vshrl.u32 %v3682, 7
    %v3684 = vsub.s32 %v585, %v3683
    %v3685 = vrot.slane %v3635, %v3684
    %v3686 = vsel %vm590, %v3685, %v3681
    %v3687 = vlaneseq
    %v3688 = vshrl.u32 %v3687, 7
    %v3689 = vsub.s32 %v580, %v3688
    %v3690 = vrot.slane %v3638, %v3689
    %v3691 = vlaneseq
    %v3692 = vshrl.u32 %v3691, 7
    %v3693 = vsub.s32 %v585, %v3692
    %v3694 = vrot.slane %v3641, %v3693
    %v3695 = vsel %vm590, %v3694, %v3690
    %v3696 = vlaneseq
    %v3697 = vshrl.u32 %v3696, 7
    %v3698 = vsub.s32 %v580, %v3697
    %v3699 = vrot.slane %v3644, %v3698
    %v3700 = vlaneseq
    %v3701 = vshrl.u32 %v3700, 7
    %v3702 = vsub.s32 %v585, %v3701
    %v3703 = vrot.slane %v3647, %v3702
    %v3704 = vsel %vm590, %v3703, %v3699
    %v3705 = vlaneseq
    %v3706 = vshrl.u32 %v3705, 7
    %v3707 = vsub.s32 %v580, %v3706
    %v3708 = vrot.slane %v3650, %v3707
    %v3709 = vlaneseq
    %v3710 = vshrl.u32 %v3709, 7
    %v3711 = vsub.s32 %v585, %v3710
    %v3712 = vrot.slane %v3653, %v3711
    %v3713 = vsel %vm590, %v3712, %v3708
    %v3714 = vlaneseq
    %v3715 = vshrl.u32 %v3714, 7
    %v3716 = vsub.s32 %v580, %v3715
    %v3717 = vrot.slane %v3656, %v3716
    %v3718 = vlaneseq
    %v3719 = vshrl.u32 %v3718, 7
    %v3720 = vsub.s32 %v585, %v3719
    %v3721 = vrot.slane %v3659, %v3720
    %v3722 = vsel %vm590, %v3721, %v3717
    %v3723 = vlaneseq
    %v3724 = vshrl.u32 %v3723, 7
    %v3725 = vsub.s32 %v580, %v3724
    %v3726 = vrot.slane %v3662, %v3725
    %v3727 = vlaneseq
    %v3728 = vshrl.u32 %v3727, 7
    %v3729 = vsub.s32 %v585, %v3728
    %v3730 = vrot.slane %v3665, %v3729
    %v3731 = vsel %vm590, %v3730, %v3726
    %v3732 = vlaneseq
    %v3733 = vshrl.u32 %v3732, 7
    %v3734 = vsub.s32 %v580, %v3733
    %v3735 = vrot.slane %v3668, %v3734
    %v3736 = vlaneseq
    %v3737 = vshrl.u32 %v3736, 7
    %v3738 = vsub.s32 %v585, %v3737
    %v3739 = vrot.slane %v3671, %v3738
    %v3740 = vsel %vm590, %v3739, %v3735
    %v3741 = vlaneseq
    %v3742 = vshrl.u32 %v3741, 7
    %v3743 = vsub.s32 %v580, %v3742
    %v3744 = vrot.slane %v3674, %v3743
    %v3745 = vlaneseq
    %v3746 = vshrl.u32 %v3745, 7
    %v3747 = vsub.s32 %v585, %v3746
    %v3748 = vrot.slane %v3677, %v3747
    %v3749 = vsel %vm590, %v3748, %v3744
    %v3750 = vsel %vm655, %v3695, %v3686
    %v3751 = vsel %vm657, %v3704, %v3750
    %v3752 = vsel %vm659, %v3713, %v3751
    %v3753 = vsel %vm661, %v3722, %v3752
    %v3754 = vsel %vm663, %v3731, %v3753
    %v3755 = vsel %vm665, %v3740, %v3754
    %v3756 = vsel %vm667, %v3749, %v3755
    %v3758 = vsel %vm670, %v3756, 0.0
    %3759 = vadd.xlane.f32.xlu0 %v3758
    %v3760 = vpop.xlane.xlu0 %3759
    %v3761 = vrcp.pop %v3760
    %v3763 = vlaneseq
    %v3764 = vshrl.u32 %v3763, 7
    %v3765 = vsub.s32 0, %v3764
    %v3766 = vrot.slane %v3761, %v3765
    %v3767 = vlaneseq
    %v3768 = vshrl.u32 %v3767, 7
    %v3769 = vsub.s32 1, %v3768
    %v3770 = vrot.slane %v3761, %v3769
    %v3771 = vlaneseq
    %v3772 = vshrl.u32 %v3771, 7
    %v3773 = vsub.s32 2, %v3772
    %v3774 = vrot.slane %v3761, %v3773
    %v3775 = vlaneseq
    %v3776 = vshrl.u32 %v3775, 7
    %v3777 = vsub.s32 3, %v3776
    %v3778 = vrot.slane %v3761, %v3777
    %v3779 = vlaneseq
    %v3780 = vshrl.u32 %v3779, 7
    %v3781 = vsub.s32 4, %v3780
    %v3782 = vrot.slane %v3761, %v3781
    %v3783 = vlaneseq
    %v3784 = vshrl.u32 %v3783, 7
    %v3785 = vsub.s32 5, %v3784
    %v3786 = vrot.slane %v3761, %v3785
    %v3787 = vlaneseq
    %v3788 = vshrl.u32 %v3787, 7
    %v3789 = vsub.s32 6, %v3788
    %v3790 = vrot.slane %v3761, %v3789
    %v3791 = vlaneseq
    %v3792 = vshrl.u32 %v3791, 7
    %v3793 = vsub.s32 7, %v3792
    %v3794 = vrot.slane %v3761, %v3793
    %v3803 = vmul.f32 %v3583, %v3766
    %v3804 = vmul.f32 %v3585, %v3766
    %v3805 = vmul.f32 %v3587, %v3770
    %v3806 = vmul.f32 %v3589, %v3770
    %v3807 = vmul.f32 %v3591, %v3774
    %v3808 = vmul.f32 %v3593, %v3774
    %v3809 = vmul.f32 %v3595, %v3778
    %v3810 = vmul.f32 %v3597, %v3778
    %v3811 = vmul.f32 %v3599, %v3782
    %v3812 = vmul.f32 %v3601, %v3782
    %v3813 = vmul.f32 %v3603, %v3786
    %v3814 = vmul.f32 %v3605, %v3786
    %v3815 = vmul.f32 %v3607, %v3790
    %v3816 = vmul.f32 %v3609, %v3790
    %v3817 = vmul.f32 %v3611, %v3794
    %v3818 = vmul.f32 %v3613, %v3794
    %3820 = vset.pattern.permute.xlu0 0
    %3821 = vperm.xlu0 %3820, %v3803
    %v3822 = vpop.permute.xlu0 %3821
    %3825 = vset.pattern.permute.xlu0 0
    %3826 = vperm.xlu0 %3825, %v3804
    %v3827 = vpop.permute.xlu0 %3826
    %3830 = vset.pattern.permute.xlu0 0
    %3831 = vperm.xlu0 %3830, %v3805
    %v3832 = vpop.permute.xlu0 %3831
    %3835 = vset.pattern.permute.xlu0 0
    %3836 = vperm.xlu0 %3835, %v3806
    %v3837 = vpop.permute.xlu0 %3836
    %3840 = vset.pattern.permute.xlu0 0
    %3841 = vperm.xlu0 %3840, %v3807
    %v3842 = vpop.permute.xlu0 %3841
    %3845 = vset.pattern.permute.xlu0 0
    %3846 = vperm.xlu0 %3845, %v3808
    %v3847 = vpop.permute.xlu0 %3846
    %3850 = vset.pattern.permute.xlu0 0
    %3851 = vperm.xlu0 %3850, %v3809
    %v3852 = vpop.permute.xlu0 %3851
    %3855 = vset.pattern.permute.xlu0 0
    %3856 = vperm.xlu0 %3855, %v3810
    %v3857 = vpop.permute.xlu0 %3856
    %3860 = vset.pattern.permute.xlu0 0
    %3861 = vperm.xlu0 %3860, %v3811
    %v3862 = vpop.permute.xlu0 %3861
    %3865 = vset.pattern.permute.xlu0 0
    %3866 = vperm.xlu0 %3865, %v3812
    %v3867 = vpop.permute.xlu0 %3866
    %3870 = vset.pattern.permute.xlu0 0
    %3871 = vperm.xlu0 %3870, %v3813
    %v3872 = vpop.permute.xlu0 %3871
    %3875 = vset.pattern.permute.xlu0 0
    %3876 = vperm.xlu0 %3875, %v3814
    %v3877 = vpop.permute.xlu0 %3876
    %3880 = vset.pattern.permute.xlu0 0
    %3881 = vperm.xlu0 %3880, %v3815
    %v3882 = vpop.permute.xlu0 %3881
    %3885 = vset.pattern.permute.xlu0 0
    %3886 = vperm.xlu0 %3885, %v3816
    %v3887 = vpop.permute.xlu0 %3886
    %3890 = vset.pattern.permute.xlu0 0
    %3891 = vperm.xlu0 %3890, %v3817
    %v3892 = vpop.permute.xlu0 %3891
    %3895 = vset.pattern.permute.xlu0 0
    %3896 = vperm.xlu0 %3895, %v3818
    %v3897 = vpop.permute.xlu0 %3896
    %v3899 = vmul.f32 %v3822, %v64
    %v3900 = vmul.f32 %v3827, %v65
    %v3901 = vmul.f32 %v3832, %v66
    %v3902 = vmul.f32 %v3837, %v67
    %v3903 = vmul.f32 %v3842, %v68
    %v3904 = vmul.f32 %v3847, %v69
    %v3905 = vmul.f32 %v3852, %v70
    %v3906 = vmul.f32 %v3857, %v71
    %v3907 = vmul.f32 %v3862, %v72
    %v3908 = vmul.f32 %v3867, %v73
    %v3909 = vmul.f32 %v3872, %v74
    %v3910 = vmul.f32 %v3877, %v75
    %v3911 = vmul.f32 %v3882, %v76
    %v3912 = vmul.f32 %v3887, %v77
    %v3913 = vmul.f32 %v3892, %v78
    %v3914 = vmul.f32 %v3897, %v79
    %v3915 = vsel %vm127, %v3899, 0.0
    %v3916 = vsel %vm348, %v3900, 0.0
    %v3917 = vadd.f32 %v3915, %v3916
    %v3918 = vrot.slane %v3917, 4
    %v3919 = vadd.f32 %v3917, %v3918
    %v3920 = vrot.slane %v3919, 2
    %v3921 = vadd.f32 %v3919, %v3920
    %v3922 = vrot.slane %v3921, 1
    %v3923 = vadd.f32 %v3921, %v3922
    %v3924 = vsel %vm127, %v3901, 0.0
    %v3925 = vsel %vm348, %v3902, 0.0
    %v3926 = vadd.f32 %v3924, %v3925
    %v3927 = vrot.slane %v3926, 4
    %v3928 = vadd.f32 %v3926, %v3927
    %v3929 = vrot.slane %v3928, 2
    %v3930 = vadd.f32 %v3928, %v3929
    %v3931 = vrot.slane %v3930, 1
    %v3932 = vadd.f32 %v3930, %v3931
    %v3933 = vsel %vm127, %v3903, 0.0
    %v3934 = vsel %vm348, %v3904, 0.0
    %v3935 = vadd.f32 %v3933, %v3934
    %v3936 = vrot.slane %v3935, 4
    %v3937 = vadd.f32 %v3935, %v3936
    %v3938 = vrot.slane %v3937, 2
    %v3939 = vadd.f32 %v3937, %v3938
    %v3940 = vrot.slane %v3939, 1
    %v3941 = vadd.f32 %v3939, %v3940
    %v3942 = vsel %vm127, %v3905, 0.0
    %v3943 = vsel %vm348, %v3906, 0.0
    %v3944 = vadd.f32 %v3942, %v3943
    %v3945 = vrot.slane %v3944, 4
    %v3946 = vadd.f32 %v3944, %v3945
    %v3947 = vrot.slane %v3946, 2
    %v3948 = vadd.f32 %v3946, %v3947
    %v3949 = vrot.slane %v3948, 1
    %v3950 = vadd.f32 %v3948, %v3949
    %v3951 = vsel %vm127, %v3907, 0.0
    %v3952 = vsel %vm348, %v3908, 0.0
    %v3953 = vadd.f32 %v3951, %v3952
    %v3954 = vrot.slane %v3953, 4
    %v3955 = vadd.f32 %v3953, %v3954
    %v3956 = vrot.slane %v3955, 2
    %v3957 = vadd.f32 %v3955, %v3956
    %v3958 = vrot.slane %v3957, 1
    %v3959 = vadd.f32 %v3957, %v3958
    %v3960 = vsel %vm127, %v3909, 0.0
    %v3961 = vsel %vm348, %v3910, 0.0
    %v3962 = vadd.f32 %v3960, %v3961
    %v3963 = vrot.slane %v3962, 4
    %v3964 = vadd.f32 %v3962, %v3963
    %v3965 = vrot.slane %v3964, 2
    %v3966 = vadd.f32 %v3964, %v3965
    %v3967 = vrot.slane %v3966, 1
    %v3968 = vadd.f32 %v3966, %v3967
    %v3969 = vsel %vm127, %v3911, 0.0
    %v3970 = vsel %vm348, %v3912, 0.0
    %v3971 = vadd.f32 %v3969, %v3970
    %v3972 = vrot.slane %v3971, 4
    %v3973 = vadd.f32 %v3971, %v3972
    %v3974 = vrot.slane %v3973, 2
    %v3975 = vadd.f32 %v3973, %v3974
    %v3976 = vrot.slane %v3975, 1
    %v3977 = vadd.f32 %v3975, %v3976
    %v3978 = vsel %vm127, %v3913, 0.0
    %v3979 = vsel %vm348, %v3914, 0.0
    %v3980 = vadd.f32 %v3978, %v3979
    %v3981 = vrot.slane %v3980, 4
    %v3982 = vadd.f32 %v3980, %v3981
    %v3983 = vrot.slane %v3982, 2
    %v3984 = vadd.f32 %v3982, %v3983
    %v3985 = vrot.slane %v3984, 1
    %v3986 = vadd.f32 %v3984, %v3985
    %s3987 = scalar_lea.vmem %s0, 16
    %v3988 = vld [vmem:[%s3987] sm:$0xff]
    %v3990 = vsel %vm1137, %v3988, 0
    %3992 = vmatprep.subr.mxu0 0.0
    %3993 = vmatpush1.msra.mxu0 %v106
    %3994 = vmatprep.subr.mxu0 0.0
    %3995 = vmatpush1.msra.mxu0 %v107
    %3996 = vmatprep.subr.mxu0 0.0
    %3997 = vmatpush1.msra.mxu0 0.0
    %3998 = vmatprep.subr.mxu0 0.0
    %3999 = vmatpush1.msra.mxu0 0.0
    %4000 = vmatprep.subr.mxu0 0.0
    %4001 = vmatpush1.msra.mxu0 0.0
    %4002 = vmatprep.subr.mxu0 0.0
    %4003 = vmatpush1.msra.mxu0 0.0
    %4004 = vmatprep.subr.mxu0 0.0
    %4005 = vmatpush1.msra.mxu0 0.0
    %4006 = vmatprep.subr.mxu0 0.0
    %4007 = vmatpush1.msra.mxu0 0.0
    %4008 = vmatprep.subr.mxu0 0.0
    %4009 = vmatpush1.msra.mxu0 0.0
    %4010 = vmatprep.subr.mxu0 0.0
    %4011 = vmatpush1.msra.mxu0 0.0
    %4012 = vmatprep.subr.mxu0 0.0
    %4013 = vmatpush1.msra.mxu0 0.0
    %4014 = vmatprep.subr.mxu0 0.0
    %4015 = vmatpush1.msra.mxu0 0.0
    %4016 = vmatprep.subr.mxu0 0.0
    %4017 = vmatpush1.msra.mxu0 0.0
    %4018 = vmatprep.subr.mxu0 0.0
    %4019 = vmatpush1.msra.mxu0 0.0
    %4020 = vmatprep.subr.mxu0 0.0
    %4021 = vmatpush1.msra.mxu0 0.0
    %4022 = vmatprep.subr.mxu0 0.0
    %4023 = vmatpush1.msra.mxu0 0.0
    %4024 = vmatprep.subr.mxu0 0.0
    %4025 = vmatpush1.msra.mxu0 0.0
    %4026 = vmatprep.subr.mxu0 0.0
    %4027 = vmatpush1.msra.mxu0 0.0
    %4028 = vmatprep.subr.mxu0 0.0
    %4029 = vmatpush1.msra.mxu0 0.0
    %4030 = vmatprep.subr.mxu0 0.0
    %4031 = vmatpush1.msra.mxu0 0.0
    %4032 = vmatprep.subr.mxu0 0.0
    %4033 = vmatpush1.msra.mxu0 0.0
    %4034 = vmatprep.subr.mxu0 0.0
    %4035 = vmatpush1.msra.mxu0 0.0
    %4036 = vmatprep.subr.mxu0 0.0
    %4037 = vmatpush1.msra.mxu0 0.0
    %4038 = vmatprep.subr.mxu0 0.0
    %4039 = vmatpush1.msra.mxu0 0.0
    %4040 = vmatprep.subr.mxu0 0.0
    %4041 = vmatpush1.msra.mxu0 0.0
    %4042 = vmatprep.subr.mxu0 0.0
    %4043 = vmatpush1.msra.mxu0 0.0
    %4044 = vmatprep.subr.mxu0 0.0
    %4045 = vmatpush1.msra.mxu0 0.0
    %4046 = vmatprep.subr.mxu0 0.0
    %4047 = vmatpush1.msra.mxu0 0.0
    %4048 = vmatprep.subr.mxu0 0.0
    %4049 = vmatpush1.msra.mxu0 0.0
    %4050 = vmatprep.subr.mxu0 0.0
    %4051 = vmatpush1.msra.mxu0 0.0
    %4052 = vmatprep.subr.mxu0 0.0
    %4053 = vmatpush1.msra.mxu0 0.0
    %4054 = vmatprep.subr.mxu0 0.0
    %4055 = vmatpush1.msra.mxu0 0.0
    %4056 = vmatprep.mubr.f32.mxu0 0.0
    %4057 = vmatmul.mubr.f32.gmra.mrb[0].mxu0 %v3990
    %v4058 = vpop.f32.mrb[0].mxu0
    %v4059 = vadd.f32 0.0, %v4058
    %v4060 = vpop.f32.mrb[0].mxu0
    %4061 = vdwg.mxu0
    %v4070 = vsel %vm655, %v3932, %v3923
    %v4071 = vsel %vm657, %v3941, %v4070
    %v4072 = vsel %vm659, %v3950, %v4071
    %v4073 = vsel %vm661, %v3959, %v4072
    %v4074 = vsel %vm663, %v3968, %v4073
    %v4075 = vsel %vm665, %v3977, %v4074
    %v4076 = vsel %vm667, %v3986, %v4075
    %v4077 = vsel %vm127, %v4076, 0
    %4079 = vmatprep.subr.mxu0 0.0
    %4080 = vmatpush1.msra.mxu0 %v102
    %4081 = vmatprep.subr.mxu0 0.0
    %4082 = vmatpush1.msra.mxu0 %v103
    %4083 = vmatprep.subr.mxu0 0.0
    %4084 = vmatpush1.msra.mxu0 %v104
    %4085 = vmatprep.subr.mxu0 0.0
    %4086 = vmatpush1.msra.mxu0 %v105
    %4087 = vmatprep.subr.mxu0 0.0
    %4088 = vmatpush1.msra.mxu0 0.0
    %4089 = vmatprep.subr.mxu0 0.0
    %4090 = vmatpush1.msra.mxu0 0.0
    %4091 = vmatprep.subr.mxu0 0.0
    %4092 = vmatpush1.msra.mxu0 0.0
    %4093 = vmatprep.subr.mxu0 0.0
    %4094 = vmatpush1.msra.mxu0 0.0
    %4095 = vmatprep.subr.mxu0 0.0
    %4096 = vmatpush1.msra.mxu0 0.0
    %4097 = vmatprep.subr.mxu0 0.0
    %4098 = vmatpush1.msra.mxu0 0.0
    %4099 = vmatprep.subr.mxu0 0.0
    %4100 = vmatpush1.msra.mxu0 0.0
    %4101 = vmatprep.subr.mxu0 0.0
    %4102 = vmatpush1.msra.mxu0 0.0
    %4103 = vmatprep.subr.mxu0 0.0
    %4104 = vmatpush1.msra.mxu0 0.0
    %4105 = vmatprep.subr.mxu0 0.0
    %4106 = vmatpush1.msra.mxu0 0.0
    %4107 = vmatprep.subr.mxu0 0.0
    %4108 = vmatpush1.msra.mxu0 0.0
    %4109 = vmatprep.subr.mxu0 0.0
    %4110 = vmatpush1.msra.mxu0 0.0
    %4111 = vmatprep.subr.mxu0 0.0
    %4112 = vmatpush1.msra.mxu0 0.0
    %4113 = vmatprep.subr.mxu0 0.0
    %4114 = vmatpush1.msra.mxu0 0.0
    %4115 = vmatprep.subr.mxu0 0.0
    %4116 = vmatpush1.msra.mxu0 0.0
    %4117 = vmatprep.subr.mxu0 0.0
    %4118 = vmatpush1.msra.mxu0 0.0
    %4119 = vmatprep.subr.mxu0 0.0
    %4120 = vmatpush1.msra.mxu0 0.0
    %4121 = vmatprep.subr.mxu0 0.0
    %4122 = vmatpush1.msra.mxu0 0.0
    %4123 = vmatprep.subr.mxu0 0.0
    %4124 = vmatpush1.msra.mxu0 0.0
    %4125 = vmatprep.subr.mxu0 0.0
    %4126 = vmatpush1.msra.mxu0 0.0
    %4127 = vmatprep.subr.mxu0 0.0
    %4128 = vmatpush1.msra.mxu0 0.0
    %4129 = vmatprep.subr.mxu0 0.0
    %4130 = vmatpush1.msra.mxu0 0.0
    %4131 = vmatprep.subr.mxu0 0.0
    %4132 = vmatpush1.msra.mxu0 0.0
    %4133 = vmatprep.subr.mxu0 0.0
    %4134 = vmatpush1.msra.mxu0 0.0
    %4135 = vmatprep.subr.mxu0 0.0
    %4136 = vmatpush1.msra.mxu0 0.0
    %4137 = vmatprep.subr.mxu0 0.0
    %4138 = vmatpush1.msra.mxu0 0.0
    %4139 = vmatprep.subr.mxu0 0.0
    %4140 = vmatpush1.msra.mxu0 0.0
    %4141 = vmatprep.subr.mxu0 0.0
    %4142 = vmatpush1.msra.mxu0 0.0
    %4143 = vmatprep.mubr.f32.mxu0 0.0
    %4144 = vmatmul.mubr.f32.gmra.mrb[0].mxu0 %v4077
    %v4145 = vpop.f32.mrb[0].mxu0
    %v4146 = vadd.f32 %v4059, %v4145
    %v4147 = vpop.f32.mrb[0].mxu0
    %4148 = vdwg.mxu0
    %v4149 = vadd.f32 %v4146, %v1302
    %4150 = vmatprep.subr.mxu0 0.0
    %4151 = vmatpush1.msra.mxu0 %v108
    %4152 = vmatprep.subr.mxu0 0.0
    %4153 = vmatpush1.msra.mxu0 %v109
    %4154 = vmatprep.subr.mxu0 0.0
    %4155 = vmatpush1.msra.mxu0 %v110
    %4156 = vmatprep.subr.mxu0 0.0
    %4157 = vmatpush1.msra.mxu0 %v111
    %4158 = vmatprep.subr.mxu0 0.0
    %4159 = vmatpush1.msra.mxu0 0.0
    %4160 = vmatprep.subr.mxu0 0.0
    %4161 = vmatpush1.msra.mxu0 0.0
    %4162 = vmatprep.subr.mxu0 0.0
    %4163 = vmatpush1.msra.mxu0 0.0
    %4164 = vmatprep.subr.mxu0 0.0
    %4165 = vmatpush1.msra.mxu0 0.0
    %4166 = vmatprep.subr.mxu0 0.0
    %4167 = vmatpush1.msra.mxu0 0.0
    %4168 = vmatprep.subr.mxu0 0.0
    %4169 = vmatpush1.msra.mxu0 0.0
    %4170 = vmatprep.subr.mxu0 0.0
    %4171 = vmatpush1.msra.mxu0 0.0
    %4172 = vmatprep.subr.mxu0 0.0
    %4173 = vmatpush1.msra.mxu0 0.0
    %4174 = vmatprep.subr.mxu0 0.0
    %4175 = vmatpush1.msra.mxu0 0.0
    %4176 = vmatprep.subr.mxu0 0.0
    %4177 = vmatpush1.msra.mxu0 0.0
    %4178 = vmatprep.subr.mxu0 0.0
    %4179 = vmatpush1.msra.mxu0 0.0
    %4180 = vmatprep.subr.mxu0 0.0
    %4181 = vmatpush1.msra.mxu0 0.0
    %4182 = vmatprep.subr.mxu0 0.0
    %4183 = vmatpush1.msra.mxu0 0.0
    %4184 = vmatprep.subr.mxu0 0.0
    %4185 = vmatpush1.msra.mxu0 0.0
    %4186 = vmatprep.subr.mxu0 0.0
    %4187 = vmatpush1.msra.mxu0 0.0
    %4188 = vmatprep.subr.mxu0 0.0
    %4189 = vmatpush1.msra.mxu0 0.0
    %4190 = vmatprep.subr.mxu0 0.0
    %4191 = vmatpush1.msra.mxu0 0.0
    %4192 = vmatprep.subr.mxu0 0.0
    %4193 = vmatpush1.msra.mxu0 0.0
    %4194 = vmatprep.subr.mxu0 0.0
    %4195 = vmatpush1.msra.mxu0 0.0
    %4196 = vmatprep.subr.mxu0 0.0
    %4197 = vmatpush1.msra.mxu0 0.0
    %4198 = vmatprep.subr.mxu0 0.0
    %4199 = vmatpush1.msra.mxu0 0.0
    %4200 = vmatprep.subr.mxu0 0.0
    %4201 = vmatpush1.msra.mxu0 0.0
    %4202 = vmatprep.subr.mxu0 0.0
    %4203 = vmatpush1.msra.mxu0 0.0
    %4204 = vmatprep.subr.mxu0 0.0
    %4205 = vmatpush1.msra.mxu0 0.0
    %4206 = vmatprep.subr.mxu0 0.0
    %4207 = vmatpush1.msra.mxu0 0.0
    %4208 = vmatprep.subr.mxu0 0.0
    %4209 = vmatpush1.msra.mxu0 0.0
    %4210 = vmatprep.subr.mxu0 0.0
    %4211 = vmatpush1.msra.mxu0 0.0
    %4212 = vmatprep.subr.mxu0 0.0
    %4213 = vmatpush1.msra.mxu0 0.0
    %4214 = vmatprep.mubr.f32.mxu0 0.0
    %4215 = vmatmul.mubr.f32.gmra.mrb[0].mxu0 %v2845
    %v4216 = vpop.f32.mrb[0].mxu0
    %v4217 = vadd.f32 0.0, %v4216
    %v4218 = vpop.f32.mrb[0].mxu0
    %4219 = vdwg.mxu0
    %v4220 = vadd.f32 %v4149, %v4217
    %v4221 = vxor.u32 %v4220, 2147483648
    %v4222 = vmul.f32 %v4221, 1.442695
    %v4223 = vpow.pop %v4222
    %v4224 = vadd.f32 %v4223, 1.0
    %v4225 = vrcp.pop %v4224
    %v4226 = vmul.f32 1.0, %v4225
    %v4227 = vadd.f32 %v4217, %v1391
    %4229 = vrot.lane.b32.xlu0 %v4227, 64
    %v4230 = vpop.permute.xlu0 %4229
    %v4232 = vmul.f32 %v4226, %v4230
    %4234 = vrot.lane.b32.xlu0 %v4232, 64
    %v4235 = vpop.permute.xlu0 %4234
    %v4237 = vadd.f32 %v4149, %v4235
    %v4238 = vtanh.pop %v4237
    %v4239 = vsub.f32 1.0, %v4226
    %4241 = vrot.lane.b32.xlu0 %v4238, 96
    %v4242 = vpop.permute.xlu0 %4241
    %v4244 = vmul.f32 %v4239, %v4242
    %v4245 = vmul.f32 %v4226, %v2841
    %v4246 = vadd.f32 %v4244, %v4245
    %4248 = vrot.lane.b32.xlu0 %v4246, 96
    %v4249 = vpop.permute.xlu0 %4248
    %v4250 = vsel %vm127, %v4249, 0
    %4252 = vmatprep.subr.mxu0 0.0
    %4253 = vmatpush1.msra.mxu0 %v114
    %4254 = vmatprep.subr.mxu0 0.0
    %4255 = vmatpush1.msra.mxu0 %v115
    %4256 = vmatprep.subr.mxu0 0.0
    %4257 = vmatpush1.msra.mxu0 %v116
    %4258 = vmatprep.subr.mxu0 0.0
    %4259 = vmatpush1.msra.mxu0 %v117
    %4260 = vmatprep.subr.mxu0 0.0
    %4261 = vmatpush1.msra.mxu0 0.0
    %4262 = vmatprep.subr.mxu0 0.0
    %4263 = vmatpush1.msra.mxu0 0.0
    %4264 = vmatprep.subr.mxu0 0.0
    %4265 = vmatpush1.msra.mxu0 0.0
    %4266 = vmatprep.subr.mxu0 0.0
    %4267 = vmatpush1.msra.mxu0 0.0
    %4268 = vmatprep.subr.mxu0 0.0
    %4269 = vmatpush1.msra.mxu0 0.0
    %4270 = vmatprep.subr.mxu0 0.0
    %4271 = vmatpush1.msra.mxu0 0.0
    %4272 = vmatprep.subr.mxu0 0.0
    %4273 = vmatpush1.msra.mxu0 0.0
    %4274 = vmatprep.subr.mxu0 0.0
    %4275 = vmatpush1.msra.mxu0 0.0
    %4276 = vmatprep.subr.mxu0 0.0
    %4277 = vmatpush1.msra.mxu0 0.0
    %4278 = vmatprep.subr.mxu0 0.0
    %4279 = vmatpush1.msra.mxu0 0.0
    %4280 = vmatprep.subr.mxu0 0.0
    %4281 = vmatpush1.msra.mxu0 0.0
    %4282 = vmatprep.subr.mxu0 0.0
    %4283 = vmatpush1.msra.mxu0 0.0
    %4284 = vmatprep.subr.mxu0 0.0
    %4285 = vmatpush1.msra.mxu0 0.0
    %4286 = vmatprep.subr.mxu0 0.0
    %4287 = vmatpush1.msra.mxu0 0.0
    %4288 = vmatprep.subr.mxu0 0.0
    %4289 = vmatpush1.msra.mxu0 0.0
    %4290 = vmatprep.subr.mxu0 0.0
    %4291 = vmatpush1.msra.mxu0 0.0
    %4292 = vmatprep.subr.mxu0 0.0
    %4293 = vmatpush1.msra.mxu0 0.0
    %4294 = vmatprep.subr.mxu0 0.0
    %4295 = vmatpush1.msra.mxu0 0.0
    %4296 = vmatprep.subr.mxu0 0.0
    %4297 = vmatpush1.msra.mxu0 0.0
    %4298 = vmatprep.subr.mxu0 0.0
    %4299 = vmatpush1.msra.mxu0 0.0
    %4300 = vmatprep.subr.mxu0 0.0
    %4301 = vmatpush1.msra.mxu0 0.0
    %4302 = vmatprep.subr.mxu0 0.0
    %4303 = vmatpush1.msra.mxu0 0.0
    %4304 = vmatprep.subr.mxu0 0.0
    %4305 = vmatpush1.msra.mxu0 0.0
    %4306 = vmatprep.subr.mxu0 0.0
    %4307 = vmatpush1.msra.mxu0 0.0
    %4308 = vmatprep.subr.mxu0 0.0
    %4309 = vmatpush1.msra.mxu0 0.0
    %4310 = vmatprep.subr.mxu0 0.0
    %4311 = vmatpush1.msra.mxu0 0.0
    %4312 = vmatprep.subr.mxu0 0.0
    %4313 = vmatpush1.msra.mxu0 0.0
    %4314 = vmatprep.subr.mxu0 0.0
    %4315 = vmatpush1.msra.mxu0 0.0
    %4316 = vmatprep.mubr.f32.mxu0 0.0
    %4317 = vmatmul.mubr.f32.gmra.mrb[0].mxu0 %v4250
    %v4318 = vpop.f32.mrb[0].mxu0
    %v4319 = vadd.f32 %v1420, %v4318
    %v4320 = vpop.f32.mrb[0].mxu0
    %4321 = vdwg.mxu0
    %4322 = vrot.lane.b32.xlu0 %v3173, 96
    %v4323 = vpop.permute.xlu0 %4322
    %v4325 = vadd.f32 %v4319, %v4323
    %v4326 = vxor.u32 %v4325, 2147483648
    %v4327 = vmul.f32 %v4326, 1.442695
    %v4328 = vpow.pop %v4327
    %v4329 = vadd.f32 %v4328, 1.0
    %v4330 = vrcp.pop %v4329
    %v4331 = vmul.f32 1.0, %v4330
    %v4332 = vadd.f32 %v3173, %v1513
    %4334 = vrot.lane.b32.xlu0 %v4332, 32
    %v4335 = vpop.permute.xlu0 %4334
    %v4337 = vmul.f32 %v4331, %v4335
    %4339 = vrot.lane.b32.xlu0 %v4337, 64
    %v4340 = vpop.permute.xlu0 %4339
    %v4342 = vadd.f32 %v4319, %v4340
    %v4343 = vtanh.pop %v4342
    %v4344 = vsub.f32 1.0, %v4331
    %4346 = vrot.lane.b32.xlu0 %v4343, 96
    %v4347 = vpop.permute.xlu0 %4346
    %v4349 = vmul.f32 %v4344, %v4347
    %v4350 = vmul.f32 %v4331, %v2946
    %v4351 = vadd.f32 %v4349, %v4350
    %4353 = vrot.lane.b32.xlu0 %v4351, 96
    %v4354 = vpop.permute.xlu0 %4353
    %v4355 = vsel %vm127, %v4354, 0
    %4357 = vmatprep.subr.mxu0 0.0
    %4358 = vmatpush1.msra.mxu0 %v120
    %4359 = vmatprep.subr.mxu0 0.0
    %4360 = vmatpush1.msra.mxu0 %v121
    %4361 = vmatprep.subr.mxu0 0.0
    %4362 = vmatpush1.msra.mxu0 %v122
    %4363 = vmatprep.subr.mxu0 0.0
    %4364 = vmatpush1.msra.mxu0 %v123
    %4365 = vmatprep.subr.mxu0 0.0
    %4366 = vmatpush1.msra.mxu0 0.0
    %4367 = vmatprep.subr.mxu0 0.0
    %4368 = vmatpush1.msra.mxu0 0.0
    %4369 = vmatprep.subr.mxu0 0.0
    %4370 = vmatpush1.msra.mxu0 0.0
    %4371 = vmatprep.subr.mxu0 0.0
    %4372 = vmatpush1.msra.mxu0 0.0
    %4373 = vmatprep.subr.mxu0 0.0
    %4374 = vmatpush1.msra.mxu0 0.0
    %4375 = vmatprep.subr.mxu0 0.0
    %4376 = vmatpush1.msra.mxu0 0.0
    %4377 = vmatprep.subr.mxu0 0.0
    %4378 = vmatpush1.msra.mxu0 0.0
    %4379 = vmatprep.subr.mxu0 0.0
    %4380 = vmatpush1.msra.mxu0 0.0
    %4381 = vmatprep.subr.mxu0 0.0
    %4382 = vmatpush1.msra.mxu0 0.0
    %4383 = vmatprep.subr.mxu0 0.0
    %4384 = vmatpush1.msra.mxu0 0.0
    %4385 = vmatprep.subr.mxu0 0.0
    %4386 = vmatpush1.msra.mxu0 0.0
    %4387 = vmatprep.subr.mxu0 0.0
    %4388 = vmatpush1.msra.mxu0 0.0
    %4389 = vmatprep.subr.mxu0 0.0
    %4390 = vmatpush1.msra.mxu0 0.0
    %4391 = vmatprep.subr.mxu0 0.0
    %4392 = vmatpush1.msra.mxu0 0.0
    %4393 = vmatprep.subr.mxu0 0.0
    %4394 = vmatpush1.msra.mxu0 0.0
    %4395 = vmatprep.subr.mxu0 0.0
    %4396 = vmatpush1.msra.mxu0 0.0
    %4397 = vmatprep.subr.mxu0 0.0
    %4398 = vmatpush1.msra.mxu0 0.0
    %4399 = vmatprep.subr.mxu0 0.0
    %4400 = vmatpush1.msra.mxu0 0.0
    %4401 = vmatprep.subr.mxu0 0.0
    %4402 = vmatpush1.msra.mxu0 0.0
    %4403 = vmatprep.subr.mxu0 0.0
    %4404 = vmatpush1.msra.mxu0 0.0
    %4405 = vmatprep.subr.mxu0 0.0
    %4406 = vmatpush1.msra.mxu0 0.0
    %4407 = vmatprep.subr.mxu0 0.0
    %4408 = vmatpush1.msra.mxu0 0.0
    %4409 = vmatprep.subr.mxu0 0.0
    %4410 = vmatpush1.msra.mxu0 0.0
    %4411 = vmatprep.subr.mxu0 0.0
    %4412 = vmatpush1.msra.mxu0 0.0
    %4413 = vmatprep.subr.mxu0 0.0
    %4414 = vmatpush1.msra.mxu0 0.0
    %4415 = vmatprep.subr.mxu0 0.0
    %4416 = vmatpush1.msra.mxu0 0.0
    %4417 = vmatprep.subr.mxu0 0.0
    %4418 = vmatpush1.msra.mxu0 0.0
    %4419 = vmatprep.subr.mxu0 0.0
    %4420 = vmatpush1.msra.mxu0 0.0
    %4421 = vmatprep.mubr.f32.mxu0 0.0
    %4422 = vmatmul.mubr.f32.gmra.mrb[0].mxu0 %v4355
    %v4423 = vpop.f32.mrb[0].mxu0
    %v4424 = vadd.f32 %v1542, %v4423
    %v4425 = vpop.f32.mrb[0].mxu0
    %4426 = vdwg.mxu0
    %s4427 = scalar_lea.vmem [#allocation2], 16
    %4428 = vst.msk [vmem:[%s4427] sm:$0xff] %vm127, %v4424
    %v4429 = vlaneseq
    %v4430 = vshrl.u32 %v4429, 7
    %v4431 = vsub.s32 %v580, %v4430
    %v4432 = vrot.slane %v3822, %v4431
    %v4433 = vlaneseq
    %v4434 = vshrl.u32 %v4433, 7
    %v4435 = vsub.s32 %v585, %v4434
    %v4436 = vrot.slane %v3827, %v4435
    %v4437 = vsel %vm590, %v4436, %v4432
    %v4438 = vlaneseq
    %v4439 = vshrl.u32 %v4438, 7
    %v4440 = vsub.s32 %v580, %v4439
    %v4441 = vrot.slane %v3832, %v4440
    %v4442 = vlaneseq
    %v4443 = vshrl.u32 %v4442, 7
    %v4444 = vsub.s32 %v585, %v4443
    %v4445 = vrot.slane %v3837, %v4444
    %v4446 = vsel %vm590, %v4445, %v4441
    %v4447 = vlaneseq
    %v4448 = vshrl.u32 %v4447, 7
    %v4449 = vsub.s32 %v580, %v4448
    %v4450 = vrot.slane %v3842, %v4449
    %v4451 = vlaneseq
    %v4452 = vshrl.u32 %v4451, 7
    %v4453 = vsub.s32 %v585, %v4452
    %v4454 = vrot.slane %v3847, %v4453
    %v4455 = vsel %vm590, %v4454, %v4450
    %v4456 = vlaneseq
    %v4457 = vshrl.u32 %v4456, 7
    %v4458 = vsub.s32 %v580, %v4457
    %v4459 = vrot.slane %v3852, %v4458
    %v4460 = vlaneseq
    %v4461 = vshrl.u32 %v4460, 7
    %v4462 = vsub.s32 %v585, %v4461
    %v4463 = vrot.slane %v3857, %v4462
    %v4464 = vsel %vm590, %v4463, %v4459
    %v4465 = vlaneseq
    %v4466 = vshrl.u32 %v4465, 7
    %v4467 = vsub.s32 %v580, %v4466
    %v4468 = vrot.slane %v3862, %v4467
    %v4469 = vlaneseq
    %v4470 = vshrl.u32 %v4469, 7
    %v4471 = vsub.s32 %v585, %v4470
    %v4472 = vrot.slane %v3867, %v4471
    %v4473 = vsel %vm590, %v4472, %v4468
    %v4474 = vlaneseq
    %v4475 = vshrl.u32 %v4474, 7
    %v4476 = vsub.s32 %v580, %v4475
    %v4477 = vrot.slane %v3872, %v4476
    %v4478 = vlaneseq
    %v4479 = vshrl.u32 %v4478, 7
    %v4480 = vsub.s32 %v585, %v4479
    %v4481 = vrot.slane %v3877, %v4480
    %v4482 = vsel %vm590, %v4481, %v4477
    %v4483 = vlaneseq
    %v4484 = vshrl.u32 %v4483, 7
    %v4485 = vsub.s32 %v580, %v4484
    %v4486 = vrot.slane %v3882, %v4485
    %v4487 = vlaneseq
    %v4488 = vshrl.u32 %v4487, 7
    %v4489 = vsub.s32 %v585, %v4488
    %v4490 = vrot.slane %v3887, %v4489
    %v4491 = vsel %vm590, %v4490, %v4486
    %v4492 = vlaneseq
    %v4493 = vshrl.u32 %v4492, 7
    %v4494 = vsub.s32 %v580, %v4493
    %v4495 = vrot.slane %v3892, %v4494
    %v4496 = vlaneseq
    %v4497 = vshrl.u32 %v4496, 7
    %v4498 = vsub.s32 %v585, %v4497
    %v4499 = vrot.slane %v3897, %v4498
    %v4500 = vsel %vm590, %v4499, %v4495
    %v4501 = vsel %vm655, %v4446, %v4437
    %v4502 = vsel %vm657, %v4455, %v4501
    %v4503 = vsel %vm659, %v4464, %v4502
    %v4504 = vsel %vm661, %v4473, %v4503
    %v4505 = vsel %vm663, %v4482, %v4504
    %v4506 = vsel %vm665, %v4491, %v4505
    %v4507 = vsel %vm667, %v4500, %v4506
    %s4509 = scalar_lea.vmem [#allocation4], 16
    %4510 = vst.msk [vmem:[%s4509] sm:$0xff] %vm670, %v4507
    %4511 = vmatprep.subr.mxu0 0.0
    %4512 = vmatpush1.msra.mxu0 %v98
    %4513 = vmatprep.subr.mxu0 0.0
    %4514 = vmatpush1.msra.mxu0 %v99
    %4515 = vmatprep.subr.mxu0 0.0
    %4516 = vmatpush1.msra.mxu0 %v100
    %4517 = vmatprep.subr.mxu0 0.0
    %4518 = vmatpush1.msra.mxu0 %v101
    %4519 = vmatprep.subr.mxu0 0.0
    %4520 = vmatpush1.msra.mxu0 0.0
    %4521 = vmatprep.subr.mxu0 0.0
    %4522 = vmatpush1.msra.mxu0 0.0
    %4523 = vmatprep.subr.mxu0 0.0
    %4524 = vmatpush1.msra.mxu0 0.0
    %4525 = vmatprep.subr.mxu0 0.0
    %4526 = vmatpush1.msra.mxu0 0.0
    %4527 = vmatprep.subr.mxu0 0.0
    %4528 = vmatpush1.msra.mxu0 0.0
    %4529 = vmatprep.subr.mxu0 0.0
    %4530 = vmatpush1.msra.mxu0 0.0
    %4531 = vmatprep.subr.mxu0 0.0
    %4532 = vmatpush1.msra.mxu0 0.0
    %4533 = vmatprep.subr.mxu0 0.0
    %4534 = vmatpush1.msra.mxu0 0.0
    %4535 = vmatprep.subr.mxu0 0.0
    %4536 = vmatpush1.msra.mxu0 0.0
    %4537 = vmatprep.subr.mxu0 0.0
    %4538 = vmatpush1.msra.mxu0 0.0
    %4539 = vmatprep.subr.mxu0 0.0
    %4540 = vmatpush1.msra.mxu0 0.0
    %4541 = vmatprep.subr.mxu0 0.0
    %4542 = vmatpush1.msra.mxu0 0.0
    %4543 = vmatprep.subr.mxu0 0.0
    %4544 = vmatpush1.msra.mxu0 0.0
    %4545 = vmatprep.subr.mxu0 0.0
    %4546 = vmatpush1.msra.mxu0 0.0
    %4547 = vmatprep.subr.mxu0 0.0
    %4548 = vmatpush1.msra.mxu0 0.0
    %4549 = vmatprep.subr.mxu0 0.0
    %4550 = vmatpush1.msra.mxu0 0.0
    %4551 = vmatprep.subr.mxu0 0.0
    %4552 = vmatpush1.msra.mxu0 0.0
    %4553 = vmatprep.subr.mxu0 0.0
    %4554 = vmatpush1.msra.mxu0 0.0
    %4555 = vmatprep.subr.mxu0 0.0
    %4556 = vmatpush1.msra.mxu0 0.0
    %4557 = vmatprep.subr.mxu0 0.0
    %4558 = vmatpush1.msra.mxu0 0.0
    %4559 = vmatprep.subr.mxu0 0.0
    %4560 = vmatpush1.msra.mxu0 0.0
    %4561 = vmatprep.subr.mxu0 0.0
    %4562 = vmatpush1.msra.mxu0 0.0
    %4563 = vmatprep.subr.mxu0 0.0
    %4564 = vmatpush1.msra.mxu0 0.0
    %4565 = vmatprep.subr.mxu0 0.0
    %4566 = vmatpush1.msra.mxu0 0.0
    %4567 = vmatprep.subr.mxu0 0.0
    %4568 = vmatpush1.msra.mxu0 0.0
    %4569 = vmatprep.subr.mxu0 0.0
    %4570 = vmatpush1.msra.mxu0 0.0
    %4571 = vmatprep.subr.mxu0 0.0
    %4572 = vmatpush1.msra.mxu0 0.0
    %4573 = vmatprep.subr.mxu0 0.0
    %4574 = vmatpush1.msra.mxu0 0.0
    %4575 = vmatprep.mubr.f32.mxu0 0.0
    %4576 = vmatmul.mubr.f32.gmra.mrb[0].mxu0 %v4355
    %v4577 = vpop.f32.mrb[0].mxu0
    %v4578 = vadd.f32 0.0, %v4577
    %v4579 = vpop.f32.mrb[0].mxu0
    %4580 = vdwg.mxu0
    %v4582 = vcombine.high %v4578, %v4578
    %v4584 = vunpack.c.l.s4 1966171168
    %v4585 = vunpack.c.0.s8 %v4584
    %v4586 = vlaneseq
    %v4587 = vshrl.u32 %v4586, 7
    %v4588 = vsub.s32 %v4585, %v4587
    %v4589 = vrot.slane %v4578, %v4588
    %v4591 = vunpack.c.l.s4 1966171168
    %v4592 = vunpack.c.0.s8 %v4591
    %v4593 = vlaneseq
    %v4594 = vshrl.u32 %v4593, 7
    %v4595 = vsub.s32 %v4592, %v4594
    %v4596 = vrot.slane %v4582, %v4595
    %v4597 = vcombine.high %v4589, %v4589
    %v4598 = vcombine.high %v4596, %v4596
    %v4600 = vunpack.c.l.s4 1966171168
    %v4601 = vunpack.c.0.s8 %v4600
    %v4602 = vlaneseq
    %v4603 = vshrl.u32 %v4602, 7
    %v4604 = vsub.s32 %v4601, %v4603
    %v4605 = vrot.slane %v4589, %v4604
    %v4607 = vunpack.c.l.s4 1966171168
    %v4608 = vunpack.c.0.s8 %v4607
    %v4609 = vlaneseq
    %v4610 = vshrl.u32 %v4609, 7
    %v4611 = vsub.s32 %v4608, %v4610
    %v4612 = vrot.slane %v4596, %v4611
    %v4614 = vunpack.c.l.s4 1966171168
    %v4615 = vunpack.c.0.s8 %v4614
    %v4616 = vlaneseq
    %v4617 = vshrl.u32 %v4616, 7
    %v4618 = vsub.s32 %v4615, %v4617
    %v4619 = vrot.slane %v4597, %v4618
    %v4621 = vunpack.c.l.s4 1966171168
    %v4622 = vunpack.c.0.s8 %v4621
    %v4623 = vlaneseq
    %v4624 = vshrl.u32 %v4623, 7
    %v4625 = vsub.s32 %v4622, %v4624
    %v4626 = vrot.slane %v4598, %v4625
    %v4627 = vcombine.high %v4605, %v4605
    %v4628 = vcombine.high %v4612, %v4612
    %v4629 = vcombine.high %v4619, %v4619
    %v4630 = vcombine.high %v4626, %v4626
    %v4631 = vlaneseq
    %v4632 = vshrl.u32 %v4631, 7
    %v4633 = vsub.s32 0, %v4632
    %v4634 = vrot.slane %v4605, %v4633
    %v4635 = vlaneseq
    %v4636 = vshrl.u32 %v4635, 7
    %v4637 = vsub.s32 0, %v4636
    %v4638 = vrot.slane %v4619, %v4637
    %v4639 = vlaneseq
    %v4640 = vshrl.u32 %v4639, 7
    %v4641 = vsub.s32 0, %v4640
    %v4642 = vrot.slane %v4627, %v4641
    %v4643 = vlaneseq
    %v4644 = vshrl.u32 %v4643, 7
    %v4645 = vsub.s32 0, %v4644
    %v4646 = vrot.slane %v4629, %v4645
    %v4647 = vlaneseq
    %v4648 = vshrl.u32 %v4647, 7
    %v4649 = vsub.s32 0, %v4648
    %v4650 = vrot.slane %v4612, %v4649
    %v4651 = vlaneseq
    %v4652 = vshrl.u32 %v4651, 7
    %v4653 = vsub.s32 0, %v4652
    %v4654 = vrot.slane %v4626, %v4653
    %v4655 = vlaneseq
    %v4656 = vshrl.u32 %v4655, 7
    %v4657 = vsub.s32 0, %v4656
    %v4658 = vrot.slane %v4628, %v4657
    %v4659 = vlaneseq
    %v4660 = vshrl.u32 %v4659, 7
    %v4661 = vsub.s32 0, %v4660
    %v4662 = vrot.slane %v4630, %v4661
    %v4671 = vadd.f32 %v4634, %v80
    %v4672 = vadd.f32 %v4634, %v81
    %v4673 = vadd.f32 %v4638, %v82
    %v4674 = vadd.f32 %v4638, %v83
    %v4675 = vadd.f32 %v4642, %v84
    %v4676 = vadd.f32 %v4642, %v85
    %v4677 = vadd.f32 %v4646, %v86
    %v4678 = vadd.f32 %v4646, %v87
    %v4679 = vadd.f32 %v4650, %v88
    %v4680 = vadd.f32 %v4650, %v89
    %v4681 = vadd.f32 %v4654, %v90
    %v4682 = vadd.f32 %v4654, %v91
    %v4683 = vadd.f32 %v4658, %v92
    %v4684 = vadd.f32 %v4658, %v93
    %v4685 = vadd.f32 %v4662, %v94
    %v4686 = vadd.f32 %v4662, %v95
    %v4687 = vtanh.pop %v4671
    %v4688 = vtanh.pop %v4672
    %v4689 = vtanh.pop %v4673
    %v4690 = vtanh.pop %v4674
    %v4691 = vtanh.pop %v4675
    %v4692 = vtanh.pop %v4676
    %v4693 = vtanh.pop %v4677
    %v4694 = vtanh.pop %v4678
    %v4695 = vtanh.pop %v4679
    %v4696 = vtanh.pop %v4680
    %v4697 = vtanh.pop %v4681
    %v4698 = vtanh.pop %v4682
    %v4699 = vtanh.pop %v4683
    %v4700 = vtanh.pop %v4684
    %v4701 = vtanh.pop %v4685
    %v4702 = vtanh.pop %v4686
    %v4703 = vmul.f32 %v4687, %v327
    %v4704 = vmul.f32 %v4688, %v327
    %v4705 = vmul.f32 %v4689, %v327
    %v4706 = vmul.f32 %v4690, %v327
    %v4707 = vmul.f32 %v4691, %v327
    %v4708 = vmul.f32 %v4692, %v327
    %v4709 = vmul.f32 %v4693, %v327
    %v4710 = vmul.f32 %v4694, %v327
    %v4711 = vmul.f32 %v4695, %v327
    %v4712 = vmul.f32 %v4696, %v327
    %v4713 = vmul.f32 %v4697, %v327
    %v4714 = vmul.f32 %v4698, %v327
    %v4715 = vmul.f32 %v4699, %v327
    %v4716 = vmul.f32 %v4700, %v327
    %v4717 = vmul.f32 %v4701, %v327
    %v4718 = vmul.f32 %v4702, %v327
    %v4719 = vsel %vm127, %v4703, 0.0
    %4720 = vadd.xlane.f32.xlu0 %v4719
    %v4721 = vpop.xlane.xlu0 %4720
    %v4722 = vsel %vm348, %v4704, 0.0
    %4723 = vadd.xlane.f32.xlu0 %v4722
    %v4724 = vpop.xlane.xlu0 %4723
    %v4725 = vsel %vm127, %v4705, 0.0
    %4726 = vadd.xlane.f32.xlu0 %v4725
    %v4727 = vpop.xlane.xlu0 %4726
    %v4728 = vsel %vm348, %v4706, 0.0
    %4729 = vadd.xlane.f32.xlu0 %v4728
    %v4730 = vpop.xlane.xlu0 %4729
    %v4731 = vsel %vm127, %v4707, 0.0
    %4732 = vadd.xlane.f32.xlu0 %v4731
    %v4733 = vpop.xlane.xlu0 %4732
    %v4734 = vsel %vm348, %v4708, 0.0
    %4735 = vadd.xlane.f32.xlu0 %v4734
    %v4736 = vpop.xlane.xlu0 %4735
    %v4737 = vsel %vm127, %v4709, 0.0
    %4738 = vadd.xlane.f32.xlu0 %v4737
    %v4739 = vpop.xlane.xlu0 %4738
    %v4740 = vsel %vm348, %v4710, 0.0
    %4741 = vadd.xlane.f32.xlu0 %v4740
    %v4742 = vpop.xlane.xlu0 %4741
    %v4743 = vsel %vm127, %v4711, 0.0
    %4744 = vadd.xlane.f32.xlu0 %v4743
    %v4745 = vpop.xlane.xlu0 %4744
    %v4746 = vsel %vm348, %v4712, 0.0
    %4747 = vadd.xlane.f32.xlu0 %v4746
    %v4748 = vpop.xlane.xlu0 %4747
    %v4749 = vsel %vm127, %v4713, 0.0
    %4750 = vadd.xlane.f32.xlu0 %v4749
    %v4751 = vpop.xlane.xlu0 %4750
    %v4752 = vsel %vm348, %v4714, 0.0
    %4753 = vadd.xlane.f32.xlu0 %v4752
    %v4754 = vpop.xlane.xlu0 %4753
    %v4755 = vsel %vm127, %v4715, 0.0
    %4756 = vadd.xlane.f32.xlu0 %v4755
    %v4757 = vpop.xlane.xlu0 %4756
    %v4758 = vsel %vm348, %v4716, 0.0
    %4759 = vadd.xlane.f32.xlu0 %v4758
    %v4760 = vpop.xlane.xlu0 %4759
    %v4761 = vsel %vm127, %v4717, 0.0
    %4762 = vadd.xlane.f32.xlu0 %v4761
    %v4763 = vpop.xlane.xlu0 %4762
    %v4764 = vsel %vm348, %v4718, 0.0
    %4765 = vadd.xlane.f32.xlu0 %v4764
    %v4766 = vpop.xlane.xlu0 %4765
    %v4767 = vadd.f32 %v4721, %v401
    %v4768 = vadd.f32 %v4724, %v405
    %v4769 = vadd.f32 %v4727, %v412
    %v4770 = vadd.f32 %v4730, %v416
    %v4771 = vadd.f32 %v4733, %v423
    %v4772 = vadd.f32 %v4736, %v427
    %v4773 = vadd.f32 %v4739, %v434
    %v4774 = vadd.f32 %v4742, %v438
    %v4775 = vadd.f32 %v4745, %v445
    %v4776 = vadd.f32 %v4748, %v449
    %v4777 = vadd.f32 %v4751, %v456
    %v4778 = vadd.f32 %v4754, %v460
    %v4779 = vadd.f32 %v4757, %v467
    %v4780 = vadd.f32 %v4760, %v471
    %v4781 = vadd.f32 %v4763, %v478
    %v4782 = vadd.f32 %v4766, %v482
    %4799 = vset.pattern.permute.xlu0 0
    %4800 = vperm.xlu0 %4799, %v4767
    %v4801 = vpop.permute.xlu0 %4800
    %4802 = vset.pattern.permute.xlu0 0
    %4803 = vperm.xlu0 %4802, %v4768
    %v4804 = vpop.permute.xlu0 %4803
    %4805 = vset.pattern.permute.xlu0 0
    %4806 = vperm.xlu0 %4805, %v4769
    %v4807 = vpop.permute.xlu0 %4806
    %4808 = vset.pattern.permute.xlu0 0
    %4809 = vperm.xlu0 %4808, %v4770
    %v4810 = vpop.permute.xlu0 %4809
    %4811 = vset.pattern.permute.xlu0 0
    %4812 = vperm.xlu0 %4811, %v4771
    %v4813 = vpop.permute.xlu0 %4812
    %4814 = vset.pattern.permute.xlu0 0
    %4815 = vperm.xlu0 %4814, %v4772
    %v4816 = vpop.permute.xlu0 %4815
    %4817 = vset.pattern.permute.xlu0 0
    %4818 = vperm.xlu0 %4817, %v4773
    %v4819 = vpop.permute.xlu0 %4818
    %4820 = vset.pattern.permute.xlu0 0
    %4821 = vperm.xlu0 %4820, %v4774
    %v4822 = vpop.permute.xlu0 %4821
    %4823 = vset.pattern.permute.xlu0 0
    %4824 = vperm.xlu0 %4823, %v4775
    %v4825 = vpop.permute.xlu0 %4824
    %4826 = vset.pattern.permute.xlu0 0
    %4827 = vperm.xlu0 %4826, %v4776
    %v4828 = vpop.permute.xlu0 %4827
    %4829 = vset.pattern.permute.xlu0 0
    %4830 = vperm.xlu0 %4829, %v4777
    %v4831 = vpop.permute.xlu0 %4830
    %4832 = vset.pattern.permute.xlu0 0
    %4833 = vperm.xlu0 %4832, %v4778
    %v4834 = vpop.permute.xlu0 %4833
    %4835 = vset.pattern.permute.xlu0 0
    %4836 = vperm.xlu0 %4835, %v4779
    %v4837 = vpop.permute.xlu0 %4836
    %4838 = vset.pattern.permute.xlu0 0
    %4839 = vperm.xlu0 %4838, %v4780
    %v4840 = vpop.permute.xlu0 %4839
    %4841 = vset.pattern.permute.xlu0 0
    %4842 = vperm.xlu0 %4841, %v4781
    %v4843 = vpop.permute.xlu0 %4842
    %4844 = vset.pattern.permute.xlu0 0
    %4845 = vperm.xlu0 %4844, %v4782
    %v4846 = vpop.permute.xlu0 %4845
    %v4847 = vlaneseq
    %v4848 = vshrl.u32 %v4847, 7
    %v4849 = vsub.s32 %v580, %v4848
    %v4850 = vrot.slane %v4801, %v4849
    %v4851 = vlaneseq
    %v4852 = vshrl.u32 %v4851, 7
    %v4853 = vsub.s32 %v585, %v4852
    %v4854 = vrot.slane %v4804, %v4853
    %v4855 = vsel %vm590, %v4854, %v4850
    %v4856 = vlaneseq
    %v4857 = vshrl.u32 %v4856, 7
    %v4858 = vsub.s32 %v580, %v4857
    %v4859 = vrot.slane %v4807, %v4858
    %v4860 = vlaneseq
    %v4861 = vshrl.u32 %v4860, 7
    %v4862 = vsub.s32 %v585, %v4861
    %v4863 = vrot.slane %v4810, %v4862
    %v4864 = vsel %vm590, %v4863, %v4859
    %v4865 = vlaneseq
    %v4866 = vshrl.u32 %v4865, 7
    %v4867 = vsub.s32 %v580, %v4866
    %v4868 = vrot.slane %v4813, %v4867
    %v4869 = vlaneseq
    %v4870 = vshrl.u32 %v4869, 7
    %v4871 = vsub.s32 %v585, %v4870
    %v4872 = vrot.slane %v4816, %v4871
    %v4873 = vsel %vm590, %v4872, %v4868
    %v4874 = vlaneseq
    %v4875 = vshrl.u32 %v4874, 7
    %v4876 = vsub.s32 %v580, %v4875
    %v4877 = vrot.slane %v4819, %v4876
    %v4878 = vlaneseq
    %v4879 = vshrl.u32 %v4878, 7
    %v4880 = vsub.s32 %v585, %v4879
    %v4881 = vrot.slane %v4822, %v4880
    %v4882 = vsel %vm590, %v4881, %v4877
    %v4883 = vlaneseq
    %v4884 = vshrl.u32 %v4883, 7
    %v4885 = vsub.s32 %v580, %v4884
    %v4886 = vrot.slane %v4825, %v4885
    %v4887 = vlaneseq
    %v4888 = vshrl.u32 %v4887, 7
    %v4889 = vsub.s32 %v585, %v4888
    %v4890 = vrot.slane %v4828, %v4889
    %v4891 = vsel %vm590, %v4890, %v4886
    %v4892 = vlaneseq
    %v4893 = vshrl.u32 %v4892, 7
    %v4894 = vsub.s32 %v580, %v4893
    %v4895 = vrot.slane %v4831, %v4894
    %v4896 = vlaneseq
    %v4897 = vshrl.u32 %v4896, 7
    %v4898 = vsub.s32 %v585, %v4897
    %v4899 = vrot.slane %v4834, %v4898
    %v4900 = vsel %vm590, %v4899, %v4895
    %v4901 = vlaneseq
    %v4902 = vshrl.u32 %v4901, 7
    %v4903 = vsub.s32 %v580, %v4902
    %v4904 = vrot.slane %v4837, %v4903
    %v4905 = vlaneseq
    %v4906 = vshrl.u32 %v4905, 7
    %v4907 = vsub.s32 %v585, %v4906
    %v4908 = vrot.slane %v4840, %v4907
    %v4909 = vsel %vm590, %v4908, %v4904
    %v4910 = vlaneseq
    %v4911 = vshrl.u32 %v4910, 7
    %v4912 = vsub.s32 %v580, %v4911
    %v4913 = vrot.slane %v4843, %v4912
    %v4914 = vlaneseq
    %v4915 = vshrl.u32 %v4914, 7
    %v4916 = vsub.s32 %v585, %v4915
    %v4917 = vrot.slane %v4846, %v4916
    %v4918 = vsel %vm590, %v4917, %v4913
    %v4919 = vsel %vm655, %v4864, %v4855
    %v4920 = vsel %vm657, %v4873, %v4919
    %v4921 = vsel %vm659, %v4882, %v4920
    %v4922 = vsel %vm661, %v4891, %v4921
    %v4923 = vsel %vm663, %v4900, %v4922
    %v4924 = vsel %vm665, %v4909, %v4923
    %v4925 = vsel %vm667, %v4918, %v4924
    %v4927 = vsel %vm670, %v4925, -inf
    %4928 = vmax.xlane.f32.xlu0 %v4927
    %v4929 = vpop.xlane.xlu0 %4928
    %v4931 = vlaneseq
    %v4932 = vshrl.u32 %v4931, 7
    %v4933 = vsub.s32 0, %v4932
    %v4934 = vrot.slane %v4929, %v4933
    %v4935 = vlaneseq
    %v4936 = vshrl.u32 %v4935, 7
    %v4937 = vsub.s32 1, %v4936
    %v4938 = vrot.slane %v4929, %v4937
    %v4939 = vlaneseq
    %v4940 = vshrl.u32 %v4939, 7
    %v4941 = vsub.s32 2, %v4940
    %v4942 = vrot.slane %v4929, %v4941
    %v4943 = vlaneseq
    %v4944 = vshrl.u32 %v4943, 7
    %v4945 = vsub.s32 3, %v4944
    %v4946 = vrot.slane %v4929, %v4945
    %v4947 = vlaneseq
    %v4948 = vshrl.u32 %v4947, 7
    %v4949 = vsub.s32 4, %v4948
    %v4950 = vrot.slane %v4929, %v4949
    %v4951 = vlaneseq
    %v4952 = vshrl.u32 %v4951, 7
    %v4953 = vsub.s32 5, %v4952
    %v4954 = vrot.slane %v4929, %v4953
    %v4955 = vlaneseq
    %v4956 = vshrl.u32 %v4955, 7
    %v4957 = vsub.s32 6, %v4956
    %v4958 = vrot.slane %v4929, %v4957
    %v4959 = vlaneseq
    %v4960 = vshrl.u32 %v4959, 7
    %v4961 = vsub.s32 7, %v4960
    %v4962 = vrot.slane %v4929, %v4961
    %v4971 = vsub.f32 %v4767, %v4934
    %v4972 = vsub.f32 %v4768, %v4934
    %v4973 = vsub.f32 %v4769, %v4938
    %v4974 = vsub.f32 %v4770, %v4938
    %v4975 = vsub.f32 %v4771, %v4942
    %v4976 = vsub.f32 %v4772, %v4942
    %v4977 = vsub.f32 %v4773, %v4946
    %v4978 = vsub.f32 %v4774, %v4946
    %v4979 = vsub.f32 %v4775, %v4950
    %v4980 = vsub.f32 %v4776, %v4950
    %v4981 = vsub.f32 %v4777, %v4954
    %v4982 = vsub.f32 %v4778, %v4954
    %v4983 = vsub.f32 %v4779, %v4958
    %v4984 = vsub.f32 %v4780, %v4958
    %v4985 = vsub.f32 %v4781, %v4962
    %v4986 = vsub.f32 %v4782, %v4962
    %v4987 = vmul.f32 %v4971, 1.442695
    %v4988 = vpow.pop %v4987
    %v4989 = vmul.f32 %v4972, 1.442695
    %v4990 = vpow.pop %v4989
    %v4991 = vmul.f32 %v4973, 1.442695
    %v4992 = vpow.pop %v4991
    %v4993 = vmul.f32 %v4974, 1.442695
    %v4994 = vpow.pop %v4993
    %v4995 = vmul.f32 %v4975, 1.442695
    %v4996 = vpow.pop %v4995
    %v4997 = vmul.f32 %v4976, 1.442695
    %v4998 = vpow.pop %v4997
    %v4999 = vmul.f32 %v4977, 1.442695
    %v5000 = vpow.pop %v4999
    %v5001 = vmul.f32 %v4978, 1.442695
    %v5002 = vpow.pop %v5001
    %v5003 = vmul.f32 %v4979, 1.442695
    %v5004 = vpow.pop %v5003
    %v5005 = vmul.f32 %v4980, 1.442695
    %v5006 = vpow.pop %v5005
    %v5007 = vmul.f32 %v4981, 1.442695
    %v5008 = vpow.pop %v5007
    %v5009 = vmul.f32 %v4982, 1.442695
    %v5010 = vpow.pop %v5009
    %v5011 = vmul.f32 %v4983, 1.442695
    %v5012 = vpow.pop %v5011
    %v5013 = vmul.f32 %v4984, 1.442695
    %v5014 = vpow.pop %v5013
    %v5015 = vmul.f32 %v4985, 1.442695
    %v5016 = vpow.pop %v5015
    %v5017 = vmul.f32 %v4986, 1.442695
    %v5018 = vpow.pop %v5017
    %5035 = vset.pattern.permute.xlu0 0
    %5036 = vperm.xlu0 %5035, %v4988
    %v5037 = vpop.permute.xlu0 %5036
    %5038 = vset.pattern.permute.xlu0 0
    %5039 = vperm.xlu0 %5038, %v4990
    %v5040 = vpop.permute.xlu0 %5039
    %5041 = vset.pattern.permute.xlu0 0
    %5042 = vperm.xlu0 %5041, %v4992
    %v5043 = vpop.permute.xlu0 %5042
    %5044 = vset.pattern.permute.xlu0 0
    %5045 = vperm.xlu0 %5044, %v4994
    %v5046 = vpop.permute.xlu0 %5045
    %5047 = vset.pattern.permute.xlu0 0
    %5048 = vperm.xlu0 %5047, %v4996
    %v5049 = vpop.permute.xlu0 %5048
    %5050 = vset.pattern.permute.xlu0 0
    %5051 = vperm.xlu0 %5050, %v4998
    %v5052 = vpop.permute.xlu0 %5051
    %5053 = vset.pattern.permute.xlu0 0
    %5054 = vperm.xlu0 %5053, %v5000
    %v5055 = vpop.permute.xlu0 %5054
    %5056 = vset.pattern.permute.xlu0 0
    %5057 = vperm.xlu0 %5056, %v5002
    %v5058 = vpop.permute.xlu0 %5057
    %5059 = vset.pattern.permute.xlu0 0
    %5060 = vperm.xlu0 %5059, %v5004
    %v5061 = vpop.permute.xlu0 %5060
    %5062 = vset.pattern.permute.xlu0 0
    %5063 = vperm.xlu0 %5062, %v5006
    %v5064 = vpop.permute.xlu0 %5063
    %5065 = vset.pattern.permute.xlu0 0
    %5066 = vperm.xlu0 %5065, %v5008
    %v5067 = vpop.permute.xlu0 %5066
    %5068 = vset.pattern.permute.xlu0 0
    %5069 = vperm.xlu0 %5068, %v5010
    %v5070 = vpop.permute.xlu0 %5069
    %5071 = vset.pattern.permute.xlu0 0
    %5072 = vperm.xlu0 %5071, %v5012
    %v5073 = vpop.permute.xlu0 %5072
    %5074 = vset.pattern.permute.xlu0 0
    %5075 = vperm.xlu0 %5074, %v5014
    %v5076 = vpop.permute.xlu0 %5075
    %5077 = vset.pattern.permute.xlu0 0
    %5078 = vperm.xlu0 %5077, %v5016
    %v5079 = vpop.permute.xlu0 %5078
    %5080 = vset.pattern.permute.xlu0 0
    %5081 = vperm.xlu0 %5080, %v5018
    %v5082 = vpop.permute.xlu0 %5081
    %v5083 = vlaneseq
    %v5084 = vshrl.u32 %v5083, 7
    %v5085 = vsub.s32 %v580, %v5084
    %v5086 = vrot.slane %v5037, %v5085
    %v5087 = vlaneseq
    %v5088 = vshrl.u32 %v5087, 7
    %v5089 = vsub.s32 %v585, %v5088
    %v5090 = vrot.slane %v5040, %v5089
    %v5091 = vsel %vm590, %v5090, %v5086
    %v5092 = vlaneseq
    %v5093 = vshrl.u32 %v5092, 7
    %v5094 = vsub.s32 %v580, %v5093
    %v5095 = vrot.slane %v5043, %v5094
    %v5096 = vlaneseq
    %v5097 = vshrl.u32 %v5096, 7
    %v5098 = vsub.s32 %v585, %v5097
    %v5099 = vrot.slane %v5046, %v5098
    %v5100 = vsel %vm590, %v5099, %v5095
    %v5101 = vlaneseq
    %v5102 = vshrl.u32 %v5101, 7
    %v5103 = vsub.s32 %v580, %v5102
    %v5104 = vrot.slane %v5049, %v5103
    %v5105 = vlaneseq
    %v5106 = vshrl.u32 %v5105, 7
    %v5107 = vsub.s32 %v585, %v5106
    %v5108 = vrot.slane %v5052, %v5107
    %v5109 = vsel %vm590, %v5108, %v5104
    %v5110 = vlaneseq
    %v5111 = vshrl.u32 %v5110, 7
    %v5112 = vsub.s32 %v580, %v5111
    %v5113 = vrot.slane %v5055, %v5112
    %v5114 = vlaneseq
    %v5115 = vshrl.u32 %v5114, 7
    %v5116 = vsub.s32 %v585, %v5115
    %v5117 = vrot.slane %v5058, %v5116
    %v5118 = vsel %vm590, %v5117, %v5113
    %v5119 = vlaneseq
    %v5120 = vshrl.u32 %v5119, 7
    %v5121 = vsub.s32 %v580, %v5120
    %v5122 = vrot.slane %v5061, %v5121
    %v5123 = vlaneseq
    %v5124 = vshrl.u32 %v5123, 7
    %v5125 = vsub.s32 %v585, %v5124
    %v5126 = vrot.slane %v5064, %v5125
    %v5127 = vsel %vm590, %v5126, %v5122
    %v5128 = vlaneseq
    %v5129 = vshrl.u32 %v5128, 7
    %v5130 = vsub.s32 %v580, %v5129
    %v5131 = vrot.slane %v5067, %v5130
    %v5132 = vlaneseq
    %v5133 = vshrl.u32 %v5132, 7
    %v5134 = vsub.s32 %v585, %v5133
    %v5135 = vrot.slane %v5070, %v5134
    %v5136 = vsel %vm590, %v5135, %v5131
    %v5137 = vlaneseq
    %v5138 = vshrl.u32 %v5137, 7
    %v5139 = vsub.s32 %v580, %v5138
    %v5140 = vrot.slane %v5073, %v5139
    %v5141 = vlaneseq
    %v5142 = vshrl.u32 %v5141, 7
    %v5143 = vsub.s32 %v585, %v5142
    %v5144 = vrot.slane %v5076, %v5143
    %v5145 = vsel %vm590, %v5144, %v5140
    %v5146 = vlaneseq
    %v5147 = vshrl.u32 %v5146, 7
    %v5148 = vsub.s32 %v580, %v5147
    %v5149 = vrot.slane %v5079, %v5148
    %v5150 = vlaneseq
    %v5151 = vshrl.u32 %v5150, 7
    %v5152 = vsub.s32 %v585, %v5151
    %v5153 = vrot.slane %v5082, %v5152
    %v5154 = vsel %vm590, %v5153, %v5149
    %v5155 = vsel %vm655, %v5100, %v5091
    %v5156 = vsel %vm657, %v5109, %v5155
    %v5157 = vsel %vm659, %v5118, %v5156
    %v5158 = vsel %vm661, %v5127, %v5157
    %v5159 = vsel %vm663, %v5136, %v5158
    %v5160 = vsel %vm665, %v5145, %v5159
    %v5161 = vsel %vm667, %v5154, %v5160
    %v5163 = vsel %vm670, %v5161, 0.0
    %5164 = vadd.xlane.f32.xlu0 %v5163
    %v5165 = vpop.xlane.xlu0 %5164
    %v5166 = vrcp.pop %v5165
    %v5168 = vlaneseq
    %v5169 = vshrl.u32 %v5168, 7
    %v5170 = vsub.s32 0, %v5169
    %v5171 = vrot.slane %v5166, %v5170
    %v5172 = vlaneseq
    %v5173 = vshrl.u32 %v5172, 7
    %v5174 = vsub.s32 1, %v5173
    %v5175 = vrot.slane %v5166, %v5174
    %v5176 = vlaneseq
    %v5177 = vshrl.u32 %v5176, 7
    %v5178 = vsub.s32 2, %v5177
    %v5179 = vrot.slane %v5166, %v5178
    %v5180 = vlaneseq
    %v5181 = vshrl.u32 %v5180, 7
    %v5182 = vsub.s32 3, %v5181
    %v5183 = vrot.slane %v5166, %v5182
    %v5184 = vlaneseq
    %v5185 = vshrl.u32 %v5184, 7
    %v5186 = vsub.s32 4, %v5185
    %v5187 = vrot.slane %v5166, %v5186
    %v5188 = vlaneseq
    %v5189 = vshrl.u32 %v5188, 7
    %v5190 = vsub.s32 5, %v5189
    %v5191 = vrot.slane %v5166, %v5190
    %v5192 = vlaneseq
    %v5193 = vshrl.u32 %v5192, 7
    %v5194 = vsub.s32 6, %v5193
    %v5195 = vrot.slane %v5166, %v5194
    %v5196 = vlaneseq
    %v5197 = vshrl.u32 %v5196, 7
    %v5198 = vsub.s32 7, %v5197
    %v5199 = vrot.slane %v5166, %v5198
    %v5208 = vmul.f32 %v4988, %v5171
    %v5209 = vmul.f32 %v4990, %v5171
    %v5210 = vmul.f32 %v4992, %v5175
    %v5211 = vmul.f32 %v4994, %v5175
    %v5212 = vmul.f32 %v4996, %v5179
    %v5213 = vmul.f32 %v4998, %v5179
    %v5214 = vmul.f32 %v5000, %v5183
    %v5215 = vmul.f32 %v5002, %v5183
    %v5216 = vmul.f32 %v5004, %v5187
    %v5217 = vmul.f32 %v5006, %v5187
    %v5218 = vmul.f32 %v5008, %v5191
    %v5219 = vmul.f32 %v5010, %v5191
    %v5220 = vmul.f32 %v5012, %v5195
    %v5221 = vmul.f32 %v5014, %v5195
    %v5222 = vmul.f32 %v5016, %v5199
    %v5223 = vmul.f32 %v5018, %v5199
    %5225 = vset.pattern.permute.xlu0 0
    %5226 = vperm.xlu0 %5225, %v5208
    %v5227 = vpop.permute.xlu0 %5226
    %5230 = vset.pattern.permute.xlu0 0
    %5231 = vperm.xlu0 %5230, %v5209
    %v5232 = vpop.permute.xlu0 %5231
    %5235 = vset.pattern.permute.xlu0 0
    %5236 = vperm.xlu0 %5235, %v5210
    %v5237 = vpop.permute.xlu0 %5236
    %5240 = vset.pattern.permute.xlu0 0
    %5241 = vperm.xlu0 %5240, %v5211
    %v5242 = vpop.permute.xlu0 %5241
    %5245 = vset.pattern.permute.xlu0 0
    %5246 = vperm.xlu0 %5245, %v5212
    %v5247 = vpop.permute.xlu0 %5246
    %5250 = vset.pattern.permute.xlu0 0
    %5251 = vperm.xlu0 %5250, %v5213
    %v5252 = vpop.permute.xlu0 %5251
    %5255 = vset.pattern.permute.xlu0 0
    %5256 = vperm.xlu0 %5255, %v5214
    %v5257 = vpop.permute.xlu0 %5256
    %5260 = vset.pattern.permute.xlu0 0
    %5261 = vperm.xlu0 %5260, %v5215
    %v5262 = vpop.permute.xlu0 %5261
    %5265 = vset.pattern.permute.xlu0 0
    %5266 = vperm.xlu0 %5265, %v5216
    %v5267 = vpop.permute.xlu0 %5266
    %5270 = vset.pattern.permute.xlu0 0
    %5271 = vperm.xlu0 %5270, %v5217
    %v5272 = vpop.permute.xlu0 %5271
    %5275 = vset.pattern.permute.xlu0 0
    %5276 = vperm.xlu0 %5275, %v5218
    %v5277 = vpop.permute.xlu0 %5276
    %5280 = vset.pattern.permute.xlu0 0
    %5281 = vperm.xlu0 %5280, %v5219
    %v5282 = vpop.permute.xlu0 %5281
    %5285 = vset.pattern.permute.xlu0 0
    %5286 = vperm.xlu0 %5285, %v5220
    %v5287 = vpop.permute.xlu0 %5286
    %5290 = vset.pattern.permute.xlu0 0
    %5291 = vperm.xlu0 %5290, %v5221
    %v5292 = vpop.permute.xlu0 %5291
    %5295 = vset.pattern.permute.xlu0 0
    %5296 = vperm.xlu0 %5295, %v5222
    %v5297 = vpop.permute.xlu0 %5296
    %5300 = vset.pattern.permute.xlu0 0
    %5301 = vperm.xlu0 %5300, %v5223
    %v5302 = vpop.permute.xlu0 %5301
    %v5304 = vmul.f32 %v5227, %v64
    %v5305 = vmul.f32 %v5232, %v65
    %v5306 = vmul.f32 %v5237, %v66
    %v5307 = vmul.f32 %v5242, %v67
    %v5308 = vmul.f32 %v5247, %v68
    %v5309 = vmul.f32 %v5252, %v69
    %v5310 = vmul.f32 %v5257, %v70
    %v5311 = vmul.f32 %v5262, %v71
    %v5312 = vmul.f32 %v5267, %v72
    %v5313 = vmul.f32 %v5272, %v73
    %v5314 = vmul.f32 %v5277, %v74
    %v5315 = vmul.f32 %v5282, %v75
    %v5316 = vmul.f32 %v5287, %v76
    %v5317 = vmul.f32 %v5292, %v77
    %v5318 = vmul.f32 %v5297, %v78
    %v5319 = vmul.f32 %v5302, %v79
    %v5320 = vsel %vm127, %v5304, 0.0
    %v5321 = vsel %vm348, %v5305, 0.0
    %v5322 = vadd.f32 %v5320, %v5321
    %v5323 = vrot.slane %v5322, 4
    %v5324 = vadd.f32 %v5322, %v5323
    %v5325 = vrot.slane %v5324, 2
    %v5326 = vadd.f32 %v5324, %v5325
    %v5327 = vrot.slane %v5326, 1
    %v5328 = vadd.f32 %v5326, %v5327
    %v5329 = vsel %vm127, %v5306, 0.0
    %v5330 = vsel %vm348, %v5307, 0.0
    %v5331 = vadd.f32 %v5329, %v5330
    %v5332 = vrot.slane %v5331, 4
    %v5333 = vadd.f32 %v5331, %v5332
    %v5334 = vrot.slane %v5333, 2
    %v5335 = vadd.f32 %v5333, %v5334
    %v5336 = vrot.slane %v5335, 1
    %v5337 = vadd.f32 %v5335, %v5336
    %v5338 = vsel %vm127, %v5308, 0.0
    %v5339 = vsel %vm348, %v5309, 0.0
    %v5340 = vadd.f32 %v5338, %v5339
    %v5341 = vrot.slane %v5340, 4
    %v5342 = vadd.f32 %v5340, %v5341
    %v5343 = vrot.slane %v5342, 2
    %v5344 = vadd.f32 %v5342, %v5343
    %v5345 = vrot.slane %v5344, 1
    %v5346 = vadd.f32 %v5344, %v5345
    %v5347 = vsel %vm127, %v5310, 0.0
    %v5348 = vsel %vm348, %v5311, 0.0
    %v5349 = vadd.f32 %v5347, %v5348
    %v5350 = vrot.slane %v5349, 4
    %v5351 = vadd.f32 %v5349, %v5350
    %v5352 = vrot.slane %v5351, 2
    %v5353 = vadd.f32 %v5351, %v5352
    %v5354 = vrot.slane %v5353, 1
    %v5355 = vadd.f32 %v5353, %v5354
    %v5356 = vsel %vm127, %v5312, 0.0
    %v5357 = vsel %vm348, %v5313, 0.0
    %v5358 = vadd.f32 %v5356, %v5357
    %v5359 = vrot.slane %v5358, 4
    %v5360 = vadd.f32 %v5358, %v5359
    %v5361 = vrot.slane %v5360, 2
    %v5362 = vadd.f32 %v5360, %v5361
    %v5363 = vrot.slane %v5362, 1
    %v5364 = vadd.f32 %v5362, %v5363
    %v5365 = vsel %vm127, %v5314, 0.0
    %v5366 = vsel %vm348, %v5315, 0.0
    %v5367 = vadd.f32 %v5365, %v5366
    %v5368 = vrot.slane %v5367, 4
    %v5369 = vadd.f32 %v5367, %v5368
    %v5370 = vrot.slane %v5369, 2
    %v5371 = vadd.f32 %v5369, %v5370
    %v5372 = vrot.slane %v5371, 1
    %v5373 = vadd.f32 %v5371, %v5372
    %v5374 = vsel %vm127, %v5316, 0.0
    %v5375 = vsel %vm348, %v5317, 0.0
    %v5376 = vadd.f32 %v5374, %v5375
    %v5377 = vrot.slane %v5376, 4
    %v5378 = vadd.f32 %v5376, %v5377
    %v5379 = vrot.slane %v5378, 2
    %v5380 = vadd.f32 %v5378, %v5379
    %v5381 = vrot.slane %v5380, 1
    %v5382 = vadd.f32 %v5380, %v5381
    %v5383 = vsel %vm127, %v5318, 0.0
    %v5384 = vsel %vm348, %v5319, 0.0
    %v5385 = vadd.f32 %v5383, %v5384
    %v5386 = vrot.slane %v5385, 4
    %v5387 = vadd.f32 %v5385, %v5386
    %v5388 = vrot.slane %v5387, 2
    %v5389 = vadd.f32 %v5387, %v5388
    %v5390 = vrot.slane %v5389, 1
    %v5391 = vadd.f32 %v5389, %v5390
    %s5392 = scalar_lea.vmem %s0, 24
    %v5393 = vld [vmem:[%s5392] sm:$0xff]
    %v5395 = vsel %vm1137, %v5393, 0
    %5397 = vmatprep.subr.mxu0 0.0
    %5398 = vmatpush1.msra.mxu0 %v106
    %5399 = vmatprep.subr.mxu0 0.0
    %5400 = vmatpush1.msra.mxu0 %v107
    %5401 = vmatprep.subr.mxu0 0.0
    %5402 = vmatpush1.msra.mxu0 0.0
    %5403 = vmatprep.subr.mxu0 0.0
    %5404 = vmatpush1.msra.mxu0 0.0
    %5405 = vmatprep.subr.mxu0 0.0
    %5406 = vmatpush1.msra.mxu0 0.0
    %5407 = vmatprep.subr.mxu0 0.0
    %5408 = vmatpush1.msra.mxu0 0.0
    %5409 = vmatprep.subr.mxu0 0.0
    %5410 = vmatpush1.msra.mxu0 0.0
    %5411 = vmatprep.subr.mxu0 0.0
    %5412 = vmatpush1.msra.mxu0 0.0
    %5413 = vmatprep.subr.mxu0 0.0
    %5414 = vmatpush1.msra.mxu0 0.0
    %5415 = vmatprep.subr.mxu0 0.0
    %5416 = vmatpush1.msra.mxu0 0.0
    %5417 = vmatprep.subr.mxu0 0.0
    %5418 = vmatpush1.msra.mxu0 0.0
    %5419 = vmatprep.subr.mxu0 0.0
    %5420 = vmatpush1.msra.mxu0 0.0
    %5421 = vmatprep.subr.mxu0 0.0
    %5422 = vmatpush1.msra.mxu0 0.0
    %5423 = vmatprep.subr.mxu0 0.0
    %5424 = vmatpush1.msra.mxu0 0.0
    %5425 = vmatprep.subr.mxu0 0.0
    %5426 = vmatpush1.msra.mxu0 0.0
    %5427 = vmatprep.subr.mxu0 0.0
    %5428 = vmatpush1.msra.mxu0 0.0
    %5429 = vmatprep.subr.mxu0 0.0
    %5430 = vmatpush1.msra.mxu0 0.0
    %5431 = vmatprep.subr.mxu0 0.0
    %5432 = vmatpush1.msra.mxu0 0.0
    %5433 = vmatprep.subr.mxu0 0.0
    %5434 = vmatpush1.msra.mxu0 0.0
    %5435 = vmatprep.subr.mxu0 0.0
    %5436 = vmatpush1.msra.mxu0 0.0
    %5437 = vmatprep.subr.mxu0 0.0
    %5438 = vmatpush1.msra.mxu0 0.0
    %5439 = vmatprep.subr.mxu0 0.0
    %5440 = vmatpush1.msra.mxu0 0.0
    %5441 = vmatprep.subr.mxu0 0.0
    %5442 = vmatpush1.msra.mxu0 0.0
    %5443 = vmatprep.subr.mxu0 0.0
    %5444 = vmatpush1.msra.mxu0 0.0
    %5445 = vmatprep.subr.mxu0 0.0
    %5446 = vmatpush1.msra.mxu0 0.0
    %5447 = vmatprep.subr.mxu0 0.0
    %5448 = vmatpush1.msra.mxu0 0.0
    %5449 = vmatprep.subr.mxu0 0.0
    %5450 = vmatpush1.msra.mxu0 0.0
    %5451 = vmatprep.subr.mxu0 0.0
    %5452 = vmatpush1.msra.mxu0 0.0
    %5453 = vmatprep.subr.mxu0 0.0
    %5454 = vmatpush1.msra.mxu0 0.0
    %5455 = vmatprep.subr.mxu0 0.0
    %5456 = vmatpush1.msra.mxu0 0.0
    %5457 = vmatprep.subr.mxu0 0.0
    %5458 = vmatpush1.msra.mxu0 0.0
    %5459 = vmatprep.subr.mxu0 0.0
    %5460 = vmatpush1.msra.mxu0 0.0
    %5461 = vmatprep.mubr.f32.mxu0 0.0
    %5462 = vmatmul.mubr.f32.gmra.mrb[0].mxu0 %v5395
    %v5463 = vpop.f32.mrb[0].mxu0
    %v5464 = vadd.f32 0.0, %v5463
    %v5465 = vpop.f32.mrb[0].mxu0
    %5466 = vdwg.mxu0
    %v5475 = vsel %vm655, %v5337, %v5328
    %v5476 = vsel %vm657, %v5346, %v5475
    %v5477 = vsel %vm659, %v5355, %v5476
    %v5478 = vsel %vm661, %v5364, %v5477
    %v5479 = vsel %vm663, %v5373, %v5478
    %v5480 = vsel %vm665, %v5382, %v5479
    %v5481 = vsel %vm667, %v5391, %v5480
    %v5482 = vsel %vm127, %v5481, 0
    %5484 = vmatprep.subr.mxu0 0.0
    %5485 = vmatpush1.msra.mxu0 %v102
    %5486 = vmatprep.subr.mxu0 0.0
    %5487 = vmatpush1.msra.mxu0 %v103
    %5488 = vmatprep.subr.mxu0 0.0
    %5489 = vmatpush1.msra.mxu0 %v104
    %5490 = vmatprep.subr.mxu0 0.0
    %5491 = vmatpush1.msra.mxu0 %v105
    %5492 = vmatprep.subr.mxu0 0.0
    %5493 = vmatpush1.msra.mxu0 0.0
    %5494 = vmatprep.subr.mxu0 0.0
    %5495 = vmatpush1.msra.mxu0 0.0
    %5496 = vmatprep.subr.mxu0 0.0
    %5497 = vmatpush1.msra.mxu0 0.0
    %5498 = vmatprep.subr.mxu0 0.0
    %5499 = vmatpush1.msra.mxu0 0.0
    %5500 = vmatprep.subr.mxu0 0.0
    %5501 = vmatpush1.msra.mxu0 0.0
    %5502 = vmatprep.subr.mxu0 0.0
    %5503 = vmatpush1.msra.mxu0 0.0
    %5504 = vmatprep.subr.mxu0 0.0
    %5505 = vmatpush1.msra.mxu0 0.0
    %5506 = vmatprep.subr.mxu0 0.0
    %5507 = vmatpush1.msra.mxu0 0.0
    %5508 = vmatprep.subr.mxu0 0.0
    %5509 = vmatpush1.msra.mxu0 0.0
    %5510 = vmatprep.subr.mxu0 0.0
    %5511 = vmatpush1.msra.mxu0 0.0
    %5512 = vmatprep.subr.mxu0 0.0
    %5513 = vmatpush1.msra.mxu0 0.0
    %5514 = vmatprep.subr.mxu0 0.0
    %5515 = vmatpush1.msra.mxu0 0.0
    %5516 = vmatprep.subr.mxu0 0.0
    %5517 = vmatpush1.msra.mxu0 0.0
    %5518 = vmatprep.subr.mxu0 0.0
    %5519 = vmatpush1.msra.mxu0 0.0
    %5520 = vmatprep.subr.mxu0 0.0
    %5521 = vmatpush1.msra.mxu0 0.0
    %5522 = vmatprep.subr.mxu0 0.0
    %5523 = vmatpush1.msra.mxu0 0.0
    %5524 = vmatprep.subr.mxu0 0.0
    %5525 = vmatpush1.msra.mxu0 0.0
    %5526 = vmatprep.subr.mxu0 0.0
    %5527 = vmatpush1.msra.mxu0 0.0
    %5528 = vmatprep.subr.mxu0 0.0
    %5529 = vmatpush1.msra.mxu0 0.0
    %5530 = vmatprep.subr.mxu0 0.0
    %5531 = vmatpush1.msra.mxu0 0.0
    %5532 = vmatprep.subr.mxu0 0.0
    %5533 = vmatpush1.msra.mxu0 0.0
    %5534 = vmatprep.subr.mxu0 0.0
    %5535 = vmatpush1.msra.mxu0 0.0
    %5536 = vmatprep.subr.mxu0 0.0
    %5537 = vmatpush1.msra.mxu0 0.0
    %5538 = vmatprep.subr.mxu0 0.0
    %5539 = vmatpush1.msra.mxu0 0.0
    %5540 = vmatprep.subr.mxu0 0.0
    %5541 = vmatpush1.msra.mxu0 0.0
    %5542 = vmatprep.subr.mxu0 0.0
    %5543 = vmatpush1.msra.mxu0 0.0
    %5544 = vmatprep.subr.mxu0 0.0
    %5545 = vmatpush1.msra.mxu0 0.0
    %5546 = vmatprep.subr.mxu0 0.0
    %5547 = vmatpush1.msra.mxu0 0.0
    %5548 = vmatprep.mubr.f32.mxu0 0.0
    %5549 = vmatmul.mubr.f32.gmra.mrb[0].mxu0 %v5482
    %v5550 = vpop.f32.mrb[0].mxu0
    %v5551 = vadd.f32 %v5464, %v5550
    %v5552 = vpop.f32.mrb[0].mxu0
    %5553 = vdwg.mxu0
    %v5554 = vadd.f32 %v5551, %v1302
    %5555 = vmatprep.subr.mxu0 0.0
    %5556 = vmatpush1.msra.mxu0 %v108
    %5557 = vmatprep.subr.mxu0 0.0
    %5558 = vmatpush1.msra.mxu0 %v109
    %5559 = vmatprep.subr.mxu0 0.0
    %5560 = vmatpush1.msra.mxu0 %v110
    %5561 = vmatprep.subr.mxu0 0.0
    %5562 = vmatpush1.msra.mxu0 %v111
    %5563 = vmatprep.subr.mxu0 0.0
    %5564 = vmatpush1.msra.mxu0 0.0
    %5565 = vmatprep.subr.mxu0 0.0
    %5566 = vmatpush1.msra.mxu0 0.0
    %5567 = vmatprep.subr.mxu0 0.0
    %5568 = vmatpush1.msra.mxu0 0.0
    %5569 = vmatprep.subr.mxu0 0.0
    %5570 = vmatpush1.msra.mxu0 0.0
    %5571 = vmatprep.subr.mxu0 0.0
    %5572 = vmatpush1.msra.mxu0 0.0
    %5573 = vmatprep.subr.mxu0 0.0
    %5574 = vmatpush1.msra.mxu0 0.0
    %5575 = vmatprep.subr.mxu0 0.0
    %5576 = vmatpush1.msra.mxu0 0.0
    %5577 = vmatprep.subr.mxu0 0.0
    %5578 = vmatpush1.msra.mxu0 0.0
    %5579 = vmatprep.subr.mxu0 0.0
    %5580 = vmatpush1.msra.mxu0 0.0
    %5581 = vmatprep.subr.mxu0 0.0
    %5582 = vmatpush1.msra.mxu0 0.0
    %5583 = vmatprep.subr.mxu0 0.0
    %5584 = vmatpush1.msra.mxu0 0.0
    %5585 = vmatprep.subr.mxu0 0.0
    %5586 = vmatpush1.msra.mxu0 0.0
    %5587 = vmatprep.subr.mxu0 0.0
    %5588 = vmatpush1.msra.mxu0 0.0
    %5589 = vmatprep.subr.mxu0 0.0
    %5590 = vmatpush1.msra.mxu0 0.0
    %5591 = vmatprep.subr.mxu0 0.0
    %5592 = vmatpush1.msra.mxu0 0.0
    %5593 = vmatprep.subr.mxu0 0.0
    %5594 = vmatpush1.msra.mxu0 0.0
    %5595 = vmatprep.subr.mxu0 0.0
    %5596 = vmatpush1.msra.mxu0 0.0
    %5597 = vmatprep.subr.mxu0 0.0
    %5598 = vmatpush1.msra.mxu0 0.0
    %5599 = vmatprep.subr.mxu0 0.0
    %5600 = vmatpush1.msra.mxu0 0.0
    %5601 = vmatprep.subr.mxu0 0.0
    %5602 = vmatpush1.msra.mxu0 0.0
    %5603 = vmatprep.subr.mxu0 0.0
    %5604 = vmatpush1.msra.mxu0 0.0
    %5605 = vmatprep.subr.mxu0 0.0
    %5606 = vmatpush1.msra.mxu0 0.0
    %5607 = vmatprep.subr.mxu0 0.0
    %5608 = vmatpush1.msra.mxu0 0.0
    %5609 = vmatprep.subr.mxu0 0.0
    %5610 = vmatpush1.msra.mxu0 0.0
    %5611 = vmatprep.subr.mxu0 0.0
    %5612 = vmatpush1.msra.mxu0 0.0
    %5613 = vmatprep.subr.mxu0 0.0
    %5614 = vmatpush1.msra.mxu0 0.0
    %5615 = vmatprep.subr.mxu0 0.0
    %5616 = vmatpush1.msra.mxu0 0.0
    %5617 = vmatprep.subr.mxu0 0.0
    %5618 = vmatpush1.msra.mxu0 0.0
    %5619 = vmatprep.mubr.f32.mxu0 0.0
    %5620 = vmatmul.mubr.f32.gmra.mrb[0].mxu0 %v4250
    %v5621 = vpop.f32.mrb[0].mxu0
    %v5622 = vadd.f32 0.0, %v5621
    %v5623 = vpop.f32.mrb[0].mxu0
    %5624 = vdwg.mxu0
    %v5625 = vadd.f32 %v5554, %v5622
    %v5626 = vxor.u32 %v5625, 2147483648
    %v5627 = vmul.f32 %v5626, 1.442695
    %v5628 = vpow.pop %v5627
    %v5629 = vadd.f32 %v5628, 1.0
    %v5630 = vrcp.pop %v5629
    %v5631 = vmul.f32 1.0, %v5630
    %v5632 = vadd.f32 %v5622, %v1391
    %5634 = vrot.lane.b32.xlu0 %v5632, 64
    %v5635 = vpop.permute.xlu0 %5634
    %v5637 = vmul.f32 %v5631, %v5635
    %5639 = vrot.lane.b32.xlu0 %v5637, 64
    %v5640 = vpop.permute.xlu0 %5639
    %v5642 = vadd.f32 %v5554, %v5640
    %v5643 = vtanh.pop %v5642
    %v5644 = vsub.f32 1.0, %v5631
    %5646 = vrot.lane.b32.xlu0 %v5643, 96
    %v5647 = vpop.permute.xlu0 %5646
    %v5649 = vmul.f32 %v5644, %v5647
    %v5650 = vmul.f32 %v5631, %v4246
    %v5651 = vadd.f32 %v5649, %v5650
    %5653 = vrot.lane.b32.xlu0 %v5651, 96
    %v5654 = vpop.permute.xlu0 %5653
    %v5655 = vsel %vm127, %v5654, 0
    %5657 = vmatprep.subr.mxu0 0.0
    %5658 = vmatpush1.msra.mxu0 %v114
    %5659 = vmatprep.subr.mxu0 0.0
    %5660 = vmatpush1.msra.mxu0 %v115
    %5661 = vmatprep.subr.mxu0 0.0
    %5662 = vmatpush1.msra.mxu0 %v116
    %5663 = vmatprep.subr.mxu0 0.0
    %5664 = vmatpush1.msra.mxu0 %v117
    %5665 = vmatprep.subr.mxu0 0.0
    %5666 = vmatpush1.msra.mxu0 0.0
    %5667 = vmatprep.subr.mxu0 0.0
    %5668 = vmatpush1.msra.mxu0 0.0
    %5669 = vmatprep.subr.mxu0 0.0
    %5670 = vmatpush1.msra.mxu0 0.0
    %5671 = vmatprep.subr.mxu0 0.0
    %5672 = vmatpush1.msra.mxu0 0.0
    %5673 = vmatprep.subr.mxu0 0.0
    %5674 = vmatpush1.msra.mxu0 0.0
    %5675 = vmatprep.subr.mxu0 0.0
    %5676 = vmatpush1.msra.mxu0 0.0
    %5677 = vmatprep.subr.mxu0 0.0
    %5678 = vmatpush1.msra.mxu0 0.0
    %5679 = vmatprep.subr.mxu0 0.0
    %5680 = vmatpush1.msra.mxu0 0.0
    %5681 = vmatprep.subr.mxu0 0.0
    %5682 = vmatpush1.msra.mxu0 0.0
    %5683 = vmatprep.subr.mxu0 0.0
    %5684 = vmatpush1.msra.mxu0 0.0
    %5685 = vmatprep.subr.mxu0 0.0
    %5686 = vmatpush1.msra.mxu0 0.0
    %5687 = vmatprep.subr.mxu0 0.0
    %5688 = vmatpush1.msra.mxu0 0.0
    %5689 = vmatprep.subr.mxu0 0.0
    %5690 = vmatpush1.msra.mxu0 0.0
    %5691 = vmatprep.subr.mxu0 0.0
    %5692 = vmatpush1.msra.mxu0 0.0
    %5693 = vmatprep.subr.mxu0 0.0
    %5694 = vmatpush1.msra.mxu0 0.0
    %5695 = vmatprep.subr.mxu0 0.0
    %5696 = vmatpush1.msra.mxu0 0.0
    %5697 = vmatprep.subr.mxu0 0.0
    %5698 = vmatpush1.msra.mxu0 0.0
    %5699 = vmatprep.subr.mxu0 0.0
    %5700 = vmatpush1.msra.mxu0 0.0
    %5701 = vmatprep.subr.mxu0 0.0
    %5702 = vmatpush1.msra.mxu0 0.0
    %5703 = vmatprep.subr.mxu0 0.0
    %5704 = vmatpush1.msra.mxu0 0.0
    %5705 = vmatprep.subr.mxu0 0.0
    %5706 = vmatpush1.msra.mxu0 0.0
    %5707 = vmatprep.subr.mxu0 0.0
    %5708 = vmatpush1.msra.mxu0 0.0
    %5709 = vmatprep.subr.mxu0 0.0
    %5710 = vmatpush1.msra.mxu0 0.0
    %5711 = vmatprep.subr.mxu0 0.0
    %5712 = vmatpush1.msra.mxu0 0.0
    %5713 = vmatprep.subr.mxu0 0.0
    %5714 = vmatpush1.msra.mxu0 0.0
    %5715 = vmatprep.subr.mxu0 0.0
    %5716 = vmatpush1.msra.mxu0 0.0
    %5717 = vmatprep.subr.mxu0 0.0
    %5718 = vmatpush1.msra.mxu0 0.0
    %5719 = vmatprep.subr.mxu0 0.0
    %5720 = vmatpush1.msra.mxu0 0.0
    %5721 = vmatprep.mubr.f32.mxu0 0.0
    %5722 = vmatmul.mubr.f32.gmra.mrb[0].mxu0 %v5655
    %v5723 = vpop.f32.mrb[0].mxu0
    %v5724 = vadd.f32 %v1420, %v5723
    %v5725 = vpop.f32.mrb[0].mxu0
    %5726 = vdwg.mxu0
    %5727 = vrot.lane.b32.xlu0 %v4578, 96
    %v5728 = vpop.permute.xlu0 %5727
    %v5730 = vadd.f32 %v5724, %v5728
    %v5731 = vxor.u32 %v5730, 2147483648
    %v5732 = vmul.f32 %v5731, 1.442695
    %v5733 = vpow.pop %v5732
    %v5734 = vadd.f32 %v5733, 1.0
    %v5735 = vrcp.pop %v5734
    %v5736 = vmul.f32 1.0, %v5735
    %v5737 = vadd.f32 %v4578, %v1513
    %5739 = vrot.lane.b32.xlu0 %v5737, 32
    %v5740 = vpop.permute.xlu0 %5739
    %v5742 = vmul.f32 %v5736, %v5740
    %5744 = vrot.lane.b32.xlu0 %v5742, 64
    %v5745 = vpop.permute.xlu0 %5744
    %v5747 = vadd.f32 %v5724, %v5745
    %v5748 = vtanh.pop %v5747
    %v5749 = vsub.f32 1.0, %v5736
    %5751 = vrot.lane.b32.xlu0 %v5748, 96
    %v5752 = vpop.permute.xlu0 %5751
    %v5754 = vmul.f32 %v5749, %v5752
    %v5755 = vmul.f32 %v5736, %v4351
    %v5756 = vadd.f32 %v5754, %v5755
    %5758 = vrot.lane.b32.xlu0 %v5756, 96
    %v5759 = vpop.permute.xlu0 %5758
    %v5760 = vsel %vm127, %v5759, 0
    %5762 = vmatprep.subr.mxu0 0.0
    %5763 = vmatpush1.msra.mxu0 %v120
    %5764 = vmatprep.subr.mxu0 0.0
    %5765 = vmatpush1.msra.mxu0 %v121
    %5766 = vmatprep.subr.mxu0 0.0
    %5767 = vmatpush1.msra.mxu0 %v122
    %5768 = vmatprep.subr.mxu0 0.0
    %5769 = vmatpush1.msra.mxu0 %v123
    %5770 = vmatprep.subr.mxu0 0.0
    %5771 = vmatpush1.msra.mxu0 0.0
    %5772 = vmatprep.subr.mxu0 0.0
    %5773 = vmatpush1.msra.mxu0 0.0
    %5774 = vmatprep.subr.mxu0 0.0
    %5775 = vmatpush1.msra.mxu0 0.0
    %5776 = vmatprep.subr.mxu0 0.0
    %5777 = vmatpush1.msra.mxu0 0.0
    %5778 = vmatprep.subr.mxu0 0.0
    %5779 = vmatpush1.msra.mxu0 0.0
    %5780 = vmatprep.subr.mxu0 0.0
    %5781 = vmatpush1.msra.mxu0 0.0
    %5782 = vmatprep.subr.mxu0 0.0
    %5783 = vmatpush1.msra.mxu0 0.0
    %5784 = vmatprep.subr.mxu0 0.0
    %5785 = vmatpush1.msra.mxu0 0.0
    %5786 = vmatprep.subr.mxu0 0.0
    %5787 = vmatpush1.msra.mxu0 0.0
    %5788 = vmatprep.subr.mxu0 0.0
    %5789 = vmatpush1.msra.mxu0 0.0
    %5790 = vmatprep.subr.mxu0 0.0
    %5791 = vmatpush1.msra.mxu0 0.0
    %5792 = vmatprep.subr.mxu0 0.0
    %5793 = vmatpush1.msra.mxu0 0.0
    %5794 = vmatprep.subr.mxu0 0.0
    %5795 = vmatpush1.msra.mxu0 0.0
    %5796 = vmatprep.subr.mxu0 0.0
    %5797 = vmatpush1.msra.mxu0 0.0
    %5798 = vmatprep.subr.mxu0 0.0
    %5799 = vmatpush1.msra.mxu0 0.0
    %5800 = vmatprep.subr.mxu0 0.0
    %5801 = vmatpush1.msra.mxu0 0.0
    %5802 = vmatprep.subr.mxu0 0.0
    %5803 = vmatpush1.msra.mxu0 0.0
    %5804 = vmatprep.subr.mxu0 0.0
    %5805 = vmatpush1.msra.mxu0 0.0
    %5806 = vmatprep.subr.mxu0 0.0
    %5807 = vmatpush1.msra.mxu0 0.0
    %5808 = vmatprep.subr.mxu0 0.0
    %5809 = vmatpush1.msra.mxu0 0.0
    %5810 = vmatprep.subr.mxu0 0.0
    %5811 = vmatpush1.msra.mxu0 0.0
    %5812 = vmatprep.subr.mxu0 0.0
    %5813 = vmatpush1.msra.mxu0 0.0
    %5814 = vmatprep.subr.mxu0 0.0
    %5815 = vmatpush1.msra.mxu0 0.0
    %5816 = vmatprep.subr.mxu0 0.0
    %5817 = vmatpush1.msra.mxu0 0.0
    %5818 = vmatprep.subr.mxu0 0.0
    %5819 = vmatpush1.msra.mxu0 0.0
    %5820 = vmatprep.subr.mxu0 0.0
    %5821 = vmatpush1.msra.mxu0 0.0
    %5822 = vmatprep.subr.mxu0 0.0
    %5823 = vmatpush1.msra.mxu0 0.0
    %5824 = vmatprep.subr.mxu0 0.0
    %5825 = vmatpush1.msra.mxu0 0.0
    %5826 = vmatprep.mubr.f32.mxu0 0.0
    %5827 = vmatmul.mubr.f32.gmra.mrb[0].mxu0 %v5760
    %v5828 = vpop.f32.mrb[0].mxu0
    %v5829 = vadd.f32 %v1542, %v5828
    %v5830 = vpop.f32.mrb[0].mxu0
    %5831 = vdwg.mxu0
    %s5832 = scalar_lea.vmem [#allocation2], 24
    %5833 = vst.msk [vmem:[%s5832] sm:$0xff] %vm127, %v5829
    %v5834 = vlaneseq
    %v5835 = vshrl.u32 %v5834, 7
    %v5836 = vsub.s32 %v580, %v5835
    %v5837 = vrot.slane %v5227, %v5836
    %v5838 = vlaneseq
    %v5839 = vshrl.u32 %v5838, 7
    %v5840 = vsub.s32 %v585, %v5839
    %v5841 = vrot.slane %v5232, %v5840
    %v5842 = vsel %vm590, %v5841, %v5837
    %v5843 = vlaneseq
    %v5844 = vshrl.u32 %v5843, 7
    %v5845 = vsub.s32 %v580, %v5844
    %v5846 = vrot.slane %v5237, %v5845
    %v5847 = vlaneseq
    %v5848 = vshrl.u32 %v5847, 7
    %v5849 = vsub.s32 %v585, %v5848
    %v5850 = vrot.slane %v5242, %v5849
    %v5851 = vsel %vm590, %v5850, %v5846
    %v5852 = vlaneseq
    %v5853 = vshrl.u32 %v5852, 7
    %v5854 = vsub.s32 %v580, %v5853
    %v5855 = vrot.slane %v5247, %v5854
    %v5856 = vlaneseq
    %v5857 = vshrl.u32 %v5856, 7
    %v5858 = vsub.s32 %v585, %v5857
    %v5859 = vrot.slane %v5252, %v5858
    %v5860 = vsel %vm590, %v5859, %v5855
    %v5861 = vlaneseq
    %v5862 = vshrl.u32 %v5861, 7
    %v5863 = vsub.s32 %v580, %v5862
    %v5864 = vrot.slane %v5257, %v5863
    %v5865 = vlaneseq
    %v5866 = vshrl.u32 %v5865, 7
    %v5867 = vsub.s32 %v585, %v5866
    %v5868 = vrot.slane %v5262, %v5867
    %v5869 = vsel %vm590, %v5868, %v5864
    %v5870 = vlaneseq
    %v5871 = vshrl.u32 %v5870, 7
    %v5872 = vsub.s32 %v580, %v5871
    %v5873 = vrot.slane %v5267, %v5872
    %v5874 = vlaneseq
    %v5875 = vshrl.u32 %v5874, 7
    %v5876 = vsub.s32 %v585, %v5875
    %v5877 = vrot.slane %v5272, %v5876
    %v5878 = vsel %vm590, %v5877, %v5873
    %v5879 = vlaneseq
    %v5880 = vshrl.u32 %v5879, 7
    %v5881 = vsub.s32 %v580, %v5880
    %v5882 = vrot.slane %v5277, %v5881
    %v5883 = vlaneseq
    %v5884 = vshrl.u32 %v5883, 7
    %v5885 = vsub.s32 %v585, %v5884
    %v5886 = vrot.slane %v5282, %v5885
    %v5887 = vsel %vm590, %v5886, %v5882
    %v5888 = vlaneseq
    %v5889 = vshrl.u32 %v5888, 7
    %v5890 = vsub.s32 %v580, %v5889
    %v5891 = vrot.slane %v5287, %v5890
    %v5892 = vlaneseq
    %v5893 = vshrl.u32 %v5892, 7
    %v5894 = vsub.s32 %v585, %v5893
    %v5895 = vrot.slane %v5292, %v5894
    %v5896 = vsel %vm590, %v5895, %v5891
    %v5897 = vlaneseq
    %v5898 = vshrl.u32 %v5897, 7
    %v5899 = vsub.s32 %v580, %v5898
    %v5900 = vrot.slane %v5297, %v5899
    %v5901 = vlaneseq
    %v5902 = vshrl.u32 %v5901, 7
    %v5903 = vsub.s32 %v585, %v5902
    %v5904 = vrot.slane %v5302, %v5903
    %v5905 = vsel %vm590, %v5904, %v5900
    %v5906 = vsel %vm655, %v5851, %v5842
    %v5907 = vsel %vm657, %v5860, %v5906
    %v5908 = vsel %vm659, %v5869, %v5907
    %v5909 = vsel %vm661, %v5878, %v5908
    %v5910 = vsel %vm663, %v5887, %v5909
    %v5911 = vsel %vm665, %v5896, %v5910
    %v5912 = vsel %vm667, %v5905, %v5911
    %s5914 = scalar_lea.vmem [#allocation4], 24
    %5915 = vst.msk [vmem:[%s5914] sm:$0xff] %vm670, %v5912
    %5916 = vmatprep.subr.mxu0 0.0
    %5917 = vmatpush1.msra.mxu0 %v98
    %5918 = vmatprep.subr.mxu0 0.0
    %5919 = vmatpush1.msra.mxu0 %v99
    %5920 = vmatprep.subr.mxu0 0.0
    %5921 = vmatpush1.msra.mxu0 %v100
    %5922 = vmatprep.subr.mxu0 0.0
    %5923 = vmatpush1.msra.mxu0 %v101
    %5924 = vmatprep.subr.mxu0 0.0
    %5925 = vmatpush1.msra.mxu0 0.0
    %5926 = vmatprep.subr.mxu0 0.0
    %5927 = vmatpush1.msra.mxu0 0.0
    %5928 = vmatprep.subr.mxu0 0.0
    %5929 = vmatpush1.msra.mxu0 0.0
    %5930 = vmatprep.subr.mxu0 0.0
    %5931 = vmatpush1.msra.mxu0 0.0
    %5932 = vmatprep.subr.mxu0 0.0
    %5933 = vmatpush1.msra.mxu0 0.0
    %5934 = vmatprep.subr.mxu0 0.0
    %5935 = vmatpush1.msra.mxu0 0.0
    %5936 = vmatprep.subr.mxu0 0.0
    %5937 = vmatpush1.msra.mxu0 0.0
    %5938 = vmatprep.subr.mxu0 0.0
    %5939 = vmatpush1.msra.mxu0 0.0
    %5940 = vmatprep.subr.mxu0 0.0
    %5941 = vmatpush1.msra.mxu0 0.0
    %5942 = vmatprep.subr.mxu0 0.0
    %5943 = vmatpush1.msra.mxu0 0.0
    %5944 = vmatprep.subr.mxu0 0.0
    %5945 = vmatpush1.msra.mxu0 0.0
    %5946 = vmatprep.subr.mxu0 0.0
    %5947 = vmatpush1.msra.mxu0 0.0
    %5948 = vmatprep.subr.mxu0 0.0
    %5949 = vmatpush1.msra.mxu0 0.0
    %5950 = vmatprep.subr.mxu0 0.0
    %5951 = vmatpush1.msra.mxu0 0.0
    %5952 = vmatprep.subr.mxu0 0.0
    %5953 = vmatpush1.msra.mxu0 0.0
    %5954 = vmatprep.subr.mxu0 0.0
    %5955 = vmatpush1.msra.mxu0 0.0
    %5956 = vmatprep.subr.mxu0 0.0
    %5957 = vmatpush1.msra.mxu0 0.0
    %5958 = vmatprep.subr.mxu0 0.0
    %5959 = vmatpush1.msra.mxu0 0.0
    %5960 = vmatprep.subr.mxu0 0.0
    %5961 = vmatpush1.msra.mxu0 0.0
    %5962 = vmatprep.subr.mxu0 0.0
    %5963 = vmatpush1.msra.mxu0 0.0
    %5964 = vmatprep.subr.mxu0 0.0
    %5965 = vmatpush1.msra.mxu0 0.0
    %5966 = vmatprep.subr.mxu0 0.0
    %5967 = vmatpush1.msra.mxu0 0.0
    %5968 = vmatprep.subr.mxu0 0.0
    %5969 = vmatpush1.msra.mxu0 0.0
    %5970 = vmatprep.subr.mxu0 0.0
    %5971 = vmatpush1.msra.mxu0 0.0
    %5972 = vmatprep.subr.mxu0 0.0
    %5973 = vmatpush1.msra.mxu0 0.0
    %5974 = vmatprep.subr.mxu0 0.0
    %5975 = vmatpush1.msra.mxu0 0.0
    %5976 = vmatprep.subr.mxu0 0.0
    %5977 = vmatpush1.msra.mxu0 0.0
    %5978 = vmatprep.subr.mxu0 0.0
    %5979 = vmatpush1.msra.mxu0 0.0
    %5980 = vmatprep.mubr.f32.mxu0 0.0
    %5981 = vmatmul.mubr.f32.gmra.mrb[0].mxu0 %v5760
    %v5982 = vpop.f32.mrb[0].mxu0
    %v5983 = vadd.f32 0.0, %v5982
    %v5984 = vpop.f32.mrb[0].mxu0
    %5985 = vdwg.mxu0
    %v5987 = vcombine.high %v5983, %v5983
    %v5989 = vunpack.c.l.s4 1966171168
    %v5990 = vunpack.c.0.s8 %v5989
    %v5991 = vlaneseq
    %v5992 = vshrl.u32 %v5991, 7
    %v5993 = vsub.s32 %v5990, %v5992
    %v5994 = vrot.slane %v5983, %v5993
    %v5996 = vunpack.c.l.s4 1966171168
    %v5997 = vunpack.c.0.s8 %v5996
    %v5998 = vlaneseq
    %v5999 = vshrl.u32 %v5998, 7
    %v6000 = vsub.s32 %v5997, %v5999
    %v6001 = vrot.slane %v5987, %v6000
    %v6002 = vcombine.high %v5994, %v5994
    %v6003 = vcombine.high %v6001, %v6001
    %v6005 = vunpack.c.l.s4 1966171168
    %v6006 = vunpack.c.0.s8 %v6005
    %v6007 = vlaneseq
    %v6008 = vshrl.u32 %v6007, 7
    %v6009 = vsub.s32 %v6006, %v6008
    %v6010 = vrot.slane %v5994, %v6009
    %v6012 = vunpack.c.l.s4 1966171168
    %v6013 = vunpack.c.0.s8 %v6012
    %v6014 = vlaneseq
    %v6015 = vshrl.u32 %v6014, 7
    %v6016 = vsub.s32 %v6013, %v6015
    %v6017 = vrot.slane %v6001, %v6016
    %v6019 = vunpack.c.l.s4 1966171168
    %v6020 = vunpack.c.0.s8 %v6019
    %v6021 = vlaneseq
    %v6022 = vshrl.u32 %v6021, 7
    %v6023 = vsub.s32 %v6020, %v6022
    %v6024 = vrot.slane %v6002, %v6023
    %v6026 = vunpack.c.l.s4 1966171168
    %v6027 = vunpack.c.0.s8 %v6026
    %v6028 = vlaneseq
    %v6029 = vshrl.u32 %v6028, 7
    %v6030 = vsub.s32 %v6027, %v6029
    %v6031 = vrot.slane %v6003, %v6030
    %v6032 = vcombine.high %v6010, %v6010
    %v6033 = vcombine.high %v6017, %v6017
    %v6034 = vcombine.high %v6024, %v6024
    %v6035 = vcombine.high %v6031, %v6031
    %v6036 = vlaneseq
    %v6037 = vshrl.u32 %v6036, 7
    %v6038 = vsub.s32 0, %v6037
    %v6039 = vrot.slane %v6010, %v6038
    %v6040 = vlaneseq
    %v6041 = vshrl.u32 %v6040, 7
    %v6042 = vsub.s32 0, %v6041
    %v6043 = vrot.slane %v6024, %v6042
    %v6044 = vlaneseq
    %v6045 = vshrl.u32 %v6044, 7
    %v6046 = vsub.s32 0, %v6045
    %v6047 = vrot.slane %v6032, %v6046
    %v6048 = vlaneseq
    %v6049 = vshrl.u32 %v6048, 7
    %v6050 = vsub.s32 0, %v6049
    %v6051 = vrot.slane %v6034, %v6050
    %v6052 = vlaneseq
    %v6053 = vshrl.u32 %v6052, 7
    %v6054 = vsub.s32 0, %v6053
    %v6055 = vrot.slane %v6017, %v6054
    %v6056 = vlaneseq
    %v6057 = vshrl.u32 %v6056, 7
    %v6058 = vsub.s32 0, %v6057
    %v6059 = vrot.slane %v6031, %v6058
    %v6060 = vlaneseq
    %v6061 = vshrl.u32 %v6060, 7
    %v6062 = vsub.s32 0, %v6061
    %v6063 = vrot.slane %v6033, %v6062
    %v6064 = vlaneseq
    %v6065 = vshrl.u32 %v6064, 7
    %v6066 = vsub.s32 0, %v6065
    %v6067 = vrot.slane %v6035, %v6066
    %v6076 = vadd.f32 %v6039, %v80
    %v6077 = vadd.f32 %v6039, %v81
    %v6078 = vadd.f32 %v6043, %v82
    %v6079 = vadd.f32 %v6043, %v83
    %v6080 = vadd.f32 %v6047, %v84
    %v6081 = vadd.f32 %v6047, %v85
    %v6082 = vadd.f32 %v6051, %v86
    %v6083 = vadd.f32 %v6051, %v87
    %v6084 = vadd.f32 %v6055, %v88
    %v6085 = vadd.f32 %v6055, %v89
    %v6086 = vadd.f32 %v6059, %v90
    %v6087 = vadd.f32 %v6059, %v91
    %v6088 = vadd.f32 %v6063, %v92
    %v6089 = vadd.f32 %v6063, %v93
    %v6090 = vadd.f32 %v6067, %v94
    %v6091 = vadd.f32 %v6067, %v95
    %v6092 = vtanh.pop %v6076
    %v6093 = vtanh.pop %v6077
    %v6094 = vtanh.pop %v6078
    %v6095 = vtanh.pop %v6079
    %v6096 = vtanh.pop %v6080
    %v6097 = vtanh.pop %v6081
    %v6098 = vtanh.pop %v6082
    %v6099 = vtanh.pop %v6083
    %v6100 = vtanh.pop %v6084
    %v6101 = vtanh.pop %v6085
    %v6102 = vtanh.pop %v6086
    %v6103 = vtanh.pop %v6087
    %v6104 = vtanh.pop %v6088
    %v6105 = vtanh.pop %v6089
    %v6106 = vtanh.pop %v6090
    %v6107 = vtanh.pop %v6091
    %v6108 = vmul.f32 %v6092, %v327
    %v6109 = vmul.f32 %v6093, %v327
    %v6110 = vmul.f32 %v6094, %v327
    %v6111 = vmul.f32 %v6095, %v327
    %v6112 = vmul.f32 %v6096, %v327
    %v6113 = vmul.f32 %v6097, %v327
    %v6114 = vmul.f32 %v6098, %v327
    %v6115 = vmul.f32 %v6099, %v327
    %v6116 = vmul.f32 %v6100, %v327
    %v6117 = vmul.f32 %v6101, %v327
    %v6118 = vmul.f32 %v6102, %v327
    %v6119 = vmul.f32 %v6103, %v327
    %v6120 = vmul.f32 %v6104, %v327
    %v6121 = vmul.f32 %v6105, %v327
    %v6122 = vmul.f32 %v6106, %v327
    %v6123 = vmul.f32 %v6107, %v327
    %v6124 = vsel %vm127, %v6108, 0.0
    %6125 = vadd.xlane.f32.xlu0 %v6124
    %v6126 = vpop.xlane.xlu0 %6125
    %v6127 = vsel %vm348, %v6109, 0.0
    %6128 = vadd.xlane.f32.xlu0 %v6127
    %v6129 = vpop.xlane.xlu0 %6128
    %v6130 = vsel %vm127, %v6110, 0.0
    %6131 = vadd.xlane.f32.xlu0 %v6130
    %v6132 = vpop.xlane.xlu0 %6131
    %v6133 = vsel %vm348, %v6111, 0.0
    %6134 = vadd.xlane.f32.xlu0 %v6133
    %v6135 = vpop.xlane.xlu0 %6134
    %v6136 = vsel %vm127, %v6112, 0.0
    %6137 = vadd.xlane.f32.xlu0 %v6136
    %v6138 = vpop.xlane.xlu0 %6137
    %v6139 = vsel %vm348, %v6113, 0.0
    %6140 = vadd.xlane.f32.xlu0 %v6139
    %v6141 = vpop.xlane.xlu0 %6140
    %v6142 = vsel %vm127, %v6114, 0.0
    %6143 = vadd.xlane.f32.xlu0 %v6142
    %v6144 = vpop.xlane.xlu0 %6143
    %v6145 = vsel %vm348, %v6115, 0.0
    %6146 = vadd.xlane.f32.xlu0 %v6145
    %v6147 = vpop.xlane.xlu0 %6146
    %v6148 = vsel %vm127, %v6116, 0.0
    %6149 = vadd.xlane.f32.xlu0 %v6148
    %v6150 = vpop.xlane.xlu0 %6149
    %v6151 = vsel %vm348, %v6117, 0.0
    %6152 = vadd.xlane.f32.xlu0 %v6151
    %v6153 = vpop.xlane.xlu0 %6152
    %v6154 = vsel %vm127, %v6118, 0.0
    %6155 = vadd.xlane.f32.xlu0 %v6154
    %v6156 = vpop.xlane.xlu0 %6155
    %v6157 = vsel %vm348, %v6119, 0.0
    %6158 = vadd.xlane.f32.xlu0 %v6157
    %v6159 = vpop.xlane.xlu0 %6158
    %v6160 = vsel %vm127, %v6120, 0.0
    %6161 = vadd.xlane.f32.xlu0 %v6160
    %v6162 = vpop.xlane.xlu0 %6161
    %v6163 = vsel %vm348, %v6121, 0.0
    %6164 = vadd.xlane.f32.xlu0 %v6163
    %v6165 = vpop.xlane.xlu0 %6164
    %v6166 = vsel %vm127, %v6122, 0.0
    %6167 = vadd.xlane.f32.xlu0 %v6166
    %v6168 = vpop.xlane.xlu0 %6167
    %v6169 = vsel %vm348, %v6123, 0.0
    %6170 = vadd.xlane.f32.xlu0 %v6169
    %v6171 = vpop.xlane.xlu0 %6170
    %v6172 = vadd.f32 %v6126, %v401
    %v6173 = vadd.f32 %v6129, %v405
    %v6174 = vadd.f32 %v6132, %v412
    %v6175 = vadd.f32 %v6135, %v416
    %v6176 = vadd.f32 %v6138, %v423
    %v6177 = vadd.f32 %v6141, %v427
    %v6178 = vadd.f32 %v6144, %v434
    %v6179 = vadd.f32 %v6147, %v438
    %v6180 = vadd.f32 %v6150, %v445
    %v6181 = vadd.f32 %v6153, %v449
    %v6182 = vadd.f32 %v6156, %v456
    %v6183 = vadd.f32 %v6159, %v460
    %v6184 = vadd.f32 %v6162, %v467
    %v6185 = vadd.f32 %v6165, %v471
    %v6186 = vadd.f32 %v6168, %v478
    %v6187 = vadd.f32 %v6171, %v482
    %6204 = vset.pattern.permute.xlu0 0
    %6205 = vperm.xlu0 %6204, %v6172
    %v6206 = vpop.permute.xlu0 %6205
    %6207 = vset.pattern.permute.xlu0 0
    %6208 = vperm.xlu0 %6207, %v6173
    %v6209 = vpop.permute.xlu0 %6208
    %6210 = vset.pattern.permute.xlu0 0
    %6211 = vperm.xlu0 %6210, %v6174
    %v6212 = vpop.permute.xlu0 %6211
    %6213 = vset.pattern.permute.xlu0 0
    %6214 = vperm.xlu0 %6213, %v6175
    %v6215 = vpop.permute.xlu0 %6214
    %6216 = vset.pattern.permute.xlu0 0
    %6217 = vperm.xlu0 %6216, %v6176
    %v6218 = vpop.permute.xlu0 %6217
    %6219 = vset.pattern.permute.xlu0 0
    %6220 = vperm.xlu0 %6219, %v6177
    %v6221 = vpop.permute.xlu0 %6220
    %6222 = vset.pattern.permute.xlu0 0
    %6223 = vperm.xlu0 %6222, %v6178
    %v6224 = vpop.permute.xlu0 %6223
    %6225 = vset.pattern.permute.xlu0 0
    %6226 = vperm.xlu0 %6225, %v6179
    %v6227 = vpop.permute.xlu0 %6226
    %6228 = vset.pattern.permute.xlu0 0
    %6229 = vperm.xlu0 %6228, %v6180
    %v6230 = vpop.permute.xlu0 %6229
    %6231 = vset.pattern.permute.xlu0 0
    %6232 = vperm.xlu0 %6231, %v6181
    %v6233 = vpop.permute.xlu0 %6232
    %6234 = vset.pattern.permute.xlu0 0
    %6235 = vperm.xlu0 %6234, %v6182
    %v6236 = vpop.permute.xlu0 %6235
    %6237 = vset.pattern.permute.xlu0 0
    %6238 = vperm.xlu0 %6237, %v6183
    %v6239 = vpop.permute.xlu0 %6238
    %6240 = vset.pattern.permute.xlu0 0
    %6241 = vperm.xlu0 %6240, %v6184
    %v6242 = vpop.permute.xlu0 %6241
    %6243 = vset.pattern.permute.xlu0 0
    %6244 = vperm.xlu0 %6243, %v6185
    %v6245 = vpop.permute.xlu0 %6244
    %6246 = vset.pattern.permute.xlu0 0
    %6247 = vperm.xlu0 %6246, %v6186
    %v6248 = vpop.permute.xlu0 %6247
    %6249 = vset.pattern.permute.xlu0 0
    %6250 = vperm.xlu0 %6249, %v6187
    %v6251 = vpop.permute.xlu0 %6250
    %v6252 = vlaneseq
    %v6253 = vshrl.u32 %v6252, 7
    %v6254 = vsub.s32 %v580, %v6253
    %v6255 = vrot.slane %v6206, %v6254
    %v6256 = vlaneseq
    %v6257 = vshrl.u32 %v6256, 7
    %v6258 = vsub.s32 %v585, %v6257
    %v6259 = vrot.slane %v6209, %v6258
    %v6260 = vsel %vm590, %v6259, %v6255
    %v6261 = vlaneseq
    %v6262 = vshrl.u32 %v6261, 7
    %v6263 = vsub.s32 %v580, %v6262
    %v6264 = vrot.slane %v6212, %v6263
    %v6265 = vlaneseq
    %v6266 = vshrl.u32 %v6265, 7
    %v6267 = vsub.s32 %v585, %v6266
    %v6268 = vrot.slane %v6215, %v6267
    %v6269 = vsel %vm590, %v6268, %v6264
    %v6270 = vlaneseq
    %v6271 = vshrl.u32 %v6270, 7
    %v6272 = vsub.s32 %v580, %v6271
    %v6273 = vrot.slane %v6218, %v6272
    %v6274 = vlaneseq
    %v6275 = vshrl.u32 %v6274, 7
    %v6276 = vsub.s32 %v585, %v6275
    %v6277 = vrot.slane %v6221, %v6276
    %v6278 = vsel %vm590, %v6277, %v6273
    %v6279 = vlaneseq
    %v6280 = vshrl.u32 %v6279, 7
    %v6281 = vsub.s32 %v580, %v6280
    %v6282 = vrot.slane %v6224, %v6281
    %v6283 = vlaneseq
    %v6284 = vshrl.u32 %v6283, 7
    %v6285 = vsub.s32 %v585, %v6284
    %v6286 = vrot.slane %v6227, %v6285
    %v6287 = vsel %vm590, %v6286, %v6282
    %v6288 = vlaneseq
    %v6289 = vshrl.u32 %v6288, 7
    %v6290 = vsub.s32 %v580, %v6289
    %v6291 = vrot.slane %v6230, %v6290
    %v6292 = vlaneseq
    %v6293 = vshrl.u32 %v6292, 7
    %v6294 = vsub.s32 %v585, %v6293
    %v6295 = vrot.slane %v6233, %v6294
    %v6296 = vsel %vm590, %v6295, %v6291
    %v6297 = vlaneseq
    %v6298 = vshrl.u32 %v6297, 7
    %v6299 = vsub.s32 %v580, %v6298
    %v6300 = vrot.slane %v6236, %v6299
    %v6301 = vlaneseq
    %v6302 = vshrl.u32 %v6301, 7
    %v6303 = vsub.s32 %v585, %v6302
    %v6304 = vrot.slane %v6239, %v6303
    %v6305 = vsel %vm590, %v6304, %v6300
    %v6306 = vlaneseq
    %v6307 = vshrl.u32 %v6306, 7
    %v6308 = vsub.s32 %v580, %v6307
    %v6309 = vrot.slane %v6242, %v6308
    %v6310 = vlaneseq
    %v6311 = vshrl.u32 %v6310, 7
    %v6312 = vsub.s32 %v585, %v6311
    %v6313 = vrot.slane %v6245, %v6312
    %v6314 = vsel %vm590, %v6313, %v6309
    %v6315 = vlaneseq
    %v6316 = vshrl.u32 %v6315, 7
    %v6317 = vsub.s32 %v580, %v6316
    %v6318 = vrot.slane %v6248, %v6317
    %v6319 = vlaneseq
    %v6320 = vshrl.u32 %v6319, 7
    %v6321 = vsub.s32 %v585, %v6320
    %v6322 = vrot.slane %v6251, %v6321
    %v6323 = vsel %vm590, %v6322, %v6318
    %v6324 = vsel %vm655, %v6269, %v6260
    %v6325 = vsel %vm657, %v6278, %v6324
    %v6326 = vsel %vm659, %v6287, %v6325
    %v6327 = vsel %vm661, %v6296, %v6326
    %v6328 = vsel %vm663, %v6305, %v6327
    %v6329 = vsel %vm665, %v6314, %v6328
    %v6330 = vsel %vm667, %v6323, %v6329
    %v6332 = vsel %vm670, %v6330, -inf
    %6333 = vmax.xlane.f32.xlu0 %v6332
    %v6334 = vpop.xlane.xlu0 %6333
    %v6336 = vlaneseq
    %v6337 = vshrl.u32 %v6336, 7
    %v6338 = vsub.s32 0, %v6337
    %v6339 = vrot.slane %v6334, %v6338
    %v6340 = vlaneseq
    %v6341 = vshrl.u32 %v6340, 7
    %v6342 = vsub.s32 1, %v6341
    %v6343 = vrot.slane %v6334, %v6342
    %v6344 = vlaneseq
    %v6345 = vshrl.u32 %v6344, 7
    %v6346 = vsub.s32 2, %v6345
    %v6347 = vrot.slane %v6334, %v6346
    %v6348 = vlaneseq
    %v6349 = vshrl.u32 %v6348, 7
    %v6350 = vsub.s32 3, %v6349
    %v6351 = vrot.slane %v6334, %v6350
    %v6352 = vlaneseq
    %v6353 = vshrl.u32 %v6352, 7
    %v6354 = vsub.s32 4, %v6353
    %v6355 = vrot.slane %v6334, %v6354
    %v6356 = vlaneseq
    %v6357 = vshrl.u32 %v6356, 7
    %v6358 = vsub.s32 5, %v6357
    %v6359 = vrot.slane %v6334, %v6358
    %v6360 = vlaneseq
    %v6361 = vshrl.u32 %v6360, 7
    %v6362 = vsub.s32 6, %v6361
    %v6363 = vrot.slane %v6334, %v6362
    %v6364 = vlaneseq
    %v6365 = vshrl.u32 %v6364, 7
    %v6366 = vsub.s32 7, %v6365
    %v6367 = vrot.slane %v6334, %v6366
    %v6376 = vsub.f32 %v6172, %v6339
    %v6377 = vsub.f32 %v6173, %v6339
    %v6378 = vsub.f32 %v6174, %v6343
    %v6379 = vsub.f32 %v6175, %v6343
    %v6380 = vsub.f32 %v6176, %v6347
    %v6381 = vsub.f32 %v6177, %v6347
    %v6382 = vsub.f32 %v6178, %v6351
    %v6383 = vsub.f32 %v6179, %v6351
    %v6384 = vsub.f32 %v6180, %v6355
    %v6385 = vsub.f32 %v6181, %v6355
    %v6386 = vsub.f32 %v6182, %v6359
    %v6387 = vsub.f32 %v6183, %v6359
    %v6388 = vsub.f32 %v6184, %v6363
    %v6389 = vsub.f32 %v6185, %v6363
    %v6390 = vsub.f32 %v6186, %v6367
    %v6391 = vsub.f32 %v6187, %v6367
    %v6392 = vmul.f32 %v6376, 1.442695
    %v6393 = vpow.pop %v6392
    %v6394 = vmul.f32 %v6377, 1.442695
    %v6395 = vpow.pop %v6394
    %v6396 = vmul.f32 %v6378, 1.442695
    %v6397 = vpow.pop %v6396
    %v6398 = vmul.f32 %v6379, 1.442695
    %v6399 = vpow.pop %v6398
    %v6400 = vmul.f32 %v6380, 1.442695
    %v6401 = vpow.pop %v6400
    %v6402 = vmul.f32 %v6381, 1.442695
    %v6403 = vpow.pop %v6402
    %v6404 = vmul.f32 %v6382, 1.442695
    %v6405 = vpow.pop %v6404
    %v6406 = vmul.f32 %v6383, 1.442695
    %v6407 = vpow.pop %v6406
    %v6408 = vmul.f32 %v6384, 1.442695
    %v6409 = vpow.pop %v6408
    %v6410 = vmul.f32 %v6385, 1.442695
    %v6411 = vpow.pop %v6410
    %v6412 = vmul.f32 %v6386, 1.442695
    %v6413 = vpow.pop %v6412
    %v6414 = vmul.f32 %v6387, 1.442695
    %v6415 = vpow.pop %v6414
    %v6416 = vmul.f32 %v6388, 1.442695
    %v6417 = vpow.pop %v6416
    %v6418 = vmul.f32 %v6389, 1.442695
    %v6419 = vpow.pop %v6418
    %v6420 = vmul.f32 %v6390, 1.442695
    %v6421 = vpow.pop %v6420
    %v6422 = vmul.f32 %v6391, 1.442695
    %v6423 = vpow.pop %v6422
    %6440 = vset.pattern.permute.xlu0 0
    %6441 = vperm.xlu0 %6440, %v6393
    %v6442 = vpop.permute.xlu0 %6441
    %6443 = vset.pattern.permute.xlu0 0
    %6444 = vperm.xlu0 %6443, %v6395
    %v6445 = vpop.permute.xlu0 %6444
    %6446 = vset.pattern.permute.xlu0 0
    %6447 = vperm.xlu0 %6446, %v6397
    %v6448 = vpop.permute.xlu0 %6447
    %6449 = vset.pattern.permute.xlu0 0
    %6450 = vperm.xlu0 %6449, %v6399
    %v6451 = vpop.permute.xlu0 %6450
    %6452 = vset.pattern.permute.xlu0 0
    %6453 = vperm.xlu0 %6452, %v6401
    %v6454 = vpop.permute.xlu0 %6453
    %6455 = vset.pattern.permute.xlu0 0
    %6456 = vperm.xlu0 %6455, %v6403
    %v6457 = vpop.permute.xlu0 %6456
    %6458 = vset.pattern.permute.xlu0 0
    %6459 = vperm.xlu0 %6458, %v6405
    %v6460 = vpop.permute.xlu0 %6459
    %6461 = vset.pattern.permute.xlu0 0
    %6462 = vperm.xlu0 %6461, %v6407
    %v6463 = vpop.permute.xlu0 %6462
    %6464 = vset.pattern.permute.xlu0 0
    %6465 = vperm.xlu0 %6464, %v6409
    %v6466 = vpop.permute.xlu0 %6465
    %6467 = vset.pattern.permute.xlu0 0
    %6468 = vperm.xlu0 %6467, %v6411
    %v6469 = vpop.permute.xlu0 %6468
    %6470 = vset.pattern.permute.xlu0 0
    %6471 = vperm.xlu0 %6470, %v6413
    %v6472 = vpop.permute.xlu0 %6471
    %6473 = vset.pattern.permute.xlu0 0
    %6474 = vperm.xlu0 %6473, %v6415
    %v6475 = vpop.permute.xlu0 %6474
    %6476 = vset.pattern.permute.xlu0 0
    %6477 = vperm.xlu0 %6476, %v6417
    %v6478 = vpop.permute.xlu0 %6477
    %6479 = vset.pattern.permute.xlu0 0
    %6480 = vperm.xlu0 %6479, %v6419
    %v6481 = vpop.permute.xlu0 %6480
    %6482 = vset.pattern.permute.xlu0 0
    %6483 = vperm.xlu0 %6482, %v6421
    %v6484 = vpop.permute.xlu0 %6483
    %6485 = vset.pattern.permute.xlu0 0
    %6486 = vperm.xlu0 %6485, %v6423
    %v6487 = vpop.permute.xlu0 %6486
    %v6488 = vlaneseq
    %v6489 = vshrl.u32 %v6488, 7
    %v6490 = vsub.s32 %v580, %v6489
    %v6491 = vrot.slane %v6442, %v6490
    %v6492 = vlaneseq
    %v6493 = vshrl.u32 %v6492, 7
    %v6494 = vsub.s32 %v585, %v6493
    %v6495 = vrot.slane %v6445, %v6494
    %v6496 = vsel %vm590, %v6495, %v6491
    %v6497 = vlaneseq
    %v6498 = vshrl.u32 %v6497, 7
    %v6499 = vsub.s32 %v580, %v6498
    %v6500 = vrot.slane %v6448, %v6499
    %v6501 = vlaneseq
    %v6502 = vshrl.u32 %v6501, 7
    %v6503 = vsub.s32 %v585, %v6502
    %v6504 = vrot.slane %v6451, %v6503
    %v6505 = vsel %vm590, %v6504, %v6500
    %v6506 = vlaneseq
    %v6507 = vshrl.u32 %v6506, 7
    %v6508 = vsub.s32 %v580, %v6507
    %v6509 = vrot.slane %v6454, %v6508
    %v6510 = vlaneseq
    %v6511 = vshrl.u32 %v6510, 7
    %v6512 = vsub.s32 %v585, %v6511
    %v6513 = vrot.slane %v6457, %v6512
    %v6514 = vsel %vm590, %v6513, %v6509
    %v6515 = vlaneseq
    %v6516 = vshrl.u32 %v6515, 7
    %v6517 = vsub.s32 %v580, %v6516
    %v6518 = vrot.slane %v6460, %v6517
    %v6519 = vlaneseq
    %v6520 = vshrl.u32 %v6519, 7
    %v6521 = vsub.s32 %v585, %v6520
    %v6522 = vrot.slane %v6463, %v6521
    %v6523 = vsel %vm590, %v6522, %v6518
    %v6524 = vlaneseq
    %v6525 = vshrl.u32 %v6524, 7
    %v6526 = vsub.s32 %v580, %v6525
    %v6527 = vrot.slane %v6466, %v6526
    %v6528 = vlaneseq
    %v6529 = vshrl.u32 %v6528, 7
    %v6530 = vsub.s32 %v585, %v6529
    %v6531 = vrot.slane %v6469, %v6530
    %v6532 = vsel %vm590, %v6531, %v6527
    %v6533 = vlaneseq
    %v6534 = vshrl.u32 %v6533, 7
    %v6535 = vsub.s32 %v580, %v6534
    %v6536 = vrot.slane %v6472, %v6535
    %v6537 = vlaneseq
    %v6538 = vshrl.u32 %v6537, 7
    %v6539 = vsub.s32 %v585, %v6538
    %v6540 = vrot.slane %v6475, %v6539
    %v6541 = vsel %vm590, %v6540, %v6536
    %v6542 = vlaneseq
    %v6543 = vshrl.u32 %v6542, 7
    %v6544 = vsub.s32 %v580, %v6543
    %v6545 = vrot.slane %v6478, %v6544
    %v6546 = vlaneseq
    %v6547 = vshrl.u32 %v6546, 7
    %v6548 = vsub.s32 %v585, %v6547
    %v6549 = vrot.slane %v6481, %v6548
    %v6550 = vsel %vm590, %v6549, %v6545
    %v6551 = vlaneseq
    %v6552 = vshrl.u32 %v6551, 7
    %v6553 = vsub.s32 %v580, %v6552
    %v6554 = vrot.slane %v6484, %v6553
    %v6555 = vlaneseq
    %v6556 = vshrl.u32 %v6555, 7
    %v6557 = vsub.s32 %v585, %v6556
    %v6558 = vrot.slane %v6487, %v6557
    %v6559 = vsel %vm590, %v6558, %v6554
    %v6560 = vsel %vm655, %v6505, %v6496
    %v6561 = vsel %vm657, %v6514, %v6560
    %v6562 = vsel %vm659, %v6523, %v6561
    %v6563 = vsel %vm661, %v6532, %v6562
    %v6564 = vsel %vm663, %v6541, %v6563
    %v6565 = vsel %vm665, %v6550, %v6564
    %v6566 = vsel %vm667, %v6559, %v6565
    %v6568 = vsel %vm670, %v6566, 0.0
    %6569 = vadd.xlane.f32.xlu0 %v6568
    %v6570 = vpop.xlane.xlu0 %6569
    %v6571 = vrcp.pop %v6570
    %v6573 = vlaneseq
    %v6574 = vshrl.u32 %v6573, 7
    %v6575 = vsub.s32 0, %v6574
    %v6576 = vrot.slane %v6571, %v6575
    %v6577 = vlaneseq
    %v6578 = vshrl.u32 %v6577, 7
    %v6579 = vsub.s32 1, %v6578
    %v6580 = vrot.slane %v6571, %v6579
    %v6581 = vlaneseq
    %v6582 = vshrl.u32 %v6581, 7
    %v6583 = vsub.s32 2, %v6582
    %v6584 = vrot.slane %v6571, %v6583
    %v6585 = vlaneseq
    %v6586 = vshrl.u32 %v6585, 7
    %v6587 = vsub.s32 3, %v6586
    %v6588 = vrot.slane %v6571, %v6587
    %v6589 = vlaneseq
    %v6590 = vshrl.u32 %v6589, 7
    %v6591 = vsub.s32 4, %v6590
    %v6592 = vrot.slane %v6571, %v6591
    %v6593 = vlaneseq
    %v6594 = vshrl.u32 %v6593, 7
    %v6595 = vsub.s32 5, %v6594
    %v6596 = vrot.slane %v6571, %v6595
    %v6597 = vlaneseq
    %v6598 = vshrl.u32 %v6597, 7
    %v6599 = vsub.s32 6, %v6598
    %v6600 = vrot.slane %v6571, %v6599
    %v6601 = vlaneseq
    %v6602 = vshrl.u32 %v6601, 7
    %v6603 = vsub.s32 7, %v6602
    %v6604 = vrot.slane %v6571, %v6603
    %v6613 = vmul.f32 %v6393, %v6576
    %v6614 = vmul.f32 %v6395, %v6576
    %v6615 = vmul.f32 %v6397, %v6580
    %v6616 = vmul.f32 %v6399, %v6580
    %v6617 = vmul.f32 %v6401, %v6584
    %v6618 = vmul.f32 %v6403, %v6584
    %v6619 = vmul.f32 %v6405, %v6588
    %v6620 = vmul.f32 %v6407, %v6588
    %v6621 = vmul.f32 %v6409, %v6592
    %v6622 = vmul.f32 %v6411, %v6592
    %v6623 = vmul.f32 %v6413, %v6596
    %v6624 = vmul.f32 %v6415, %v6596
    %v6625 = vmul.f32 %v6417, %v6600
    %v6626 = vmul.f32 %v6419, %v6600
    %v6627 = vmul.f32 %v6421, %v6604
    %v6628 = vmul.f32 %v6423, %v6604
    %6630 = vset.pattern.permute.xlu0 0
    %6631 = vperm.xlu0 %6630, %v6613
    %v6632 = vpop.permute.xlu0 %6631
    %6635 = vset.pattern.permute.xlu0 0
    %6636 = vperm.xlu0 %6635, %v6614
    %v6637 = vpop.permute.xlu0 %6636
    %6640 = vset.pattern.permute.xlu0 0
    %6641 = vperm.xlu0 %6640, %v6615
    %v6642 = vpop.permute.xlu0 %6641
    %6645 = vset.pattern.permute.xlu0 0
    %6646 = vperm.xlu0 %6645, %v6616
    %v6647 = vpop.permute.xlu0 %6646
    %6650 = vset.pattern.permute.xlu0 0
    %6651 = vperm.xlu0 %6650, %v6617
    %v6652 = vpop.permute.xlu0 %6651
    %6655 = vset.pattern.permute.xlu0 0
    %6656 = vperm.xlu0 %6655, %v6618
    %v6657 = vpop.permute.xlu0 %6656
    %6660 = vset.pattern.permute.xlu0 0
    %6661 = vperm.xlu0 %6660, %v6619
    %v6662 = vpop.permute.xlu0 %6661
    %6665 = vset.pattern.permute.xlu0 0
    %6666 = vperm.xlu0 %6665, %v6620
    %v6667 = vpop.permute.xlu0 %6666
    %6670 = vset.pattern.permute.xlu0 0
    %6671 = vperm.xlu0 %6670, %v6621
    %v6672 = vpop.permute.xlu0 %6671
    %6675 = vset.pattern.permute.xlu0 0
    %6676 = vperm.xlu0 %6675, %v6622
    %v6677 = vpop.permute.xlu0 %6676
    %6680 = vset.pattern.permute.xlu0 0
    %6681 = vperm.xlu0 %6680, %v6623
    %v6682 = vpop.permute.xlu0 %6681
    %6685 = vset.pattern.permute.xlu0 0
    %6686 = vperm.xlu0 %6685, %v6624
    %v6687 = vpop.permute.xlu0 %6686
    %6690 = vset.pattern.permute.xlu0 0
    %6691 = vperm.xlu0 %6690, %v6625
    %v6692 = vpop.permute.xlu0 %6691
    %6695 = vset.pattern.permute.xlu0 0
    %6696 = vperm.xlu0 %6695, %v6626
    %v6697 = vpop.permute.xlu0 %6696
    %6700 = vset.pattern.permute.xlu0 0
    %6701 = vperm.xlu0 %6700, %v6627
    %v6702 = vpop.permute.xlu0 %6701
    %6705 = vset.pattern.permute.xlu0 0
    %6706 = vperm.xlu0 %6705, %v6628
    %v6707 = vpop.permute.xlu0 %6706
    %v6709 = vmul.f32 %v6632, %v64
    %v6710 = vmul.f32 %v6637, %v65
    %v6711 = vmul.f32 %v6642, %v66
    %v6712 = vmul.f32 %v6647, %v67
    %v6713 = vmul.f32 %v6652, %v68
    %v6714 = vmul.f32 %v6657, %v69
    %v6715 = vmul.f32 %v6662, %v70
    %v6716 = vmul.f32 %v6667, %v71
    %v6717 = vmul.f32 %v6672, %v72
    %v6718 = vmul.f32 %v6677, %v73
    %v6719 = vmul.f32 %v6682, %v74
    %v6720 = vmul.f32 %v6687, %v75
    %v6721 = vmul.f32 %v6692, %v76
    %v6722 = vmul.f32 %v6697, %v77
    %v6723 = vmul.f32 %v6702, %v78
    %v6724 = vmul.f32 %v6707, %v79
    %v6725 = vsel %vm127, %v6709, 0.0
    %v6726 = vsel %vm348, %v6710, 0.0
    %v6727 = vadd.f32 %v6725, %v6726
    %v6728 = vrot.slane %v6727, 4
    %v6729 = vadd.f32 %v6727, %v6728
    %v6730 = vrot.slane %v6729, 2
    %v6731 = vadd.f32 %v6729, %v6730
    %v6732 = vrot.slane %v6731, 1
    %v6733 = vadd.f32 %v6731, %v6732
    %v6734 = vsel %vm127, %v6711, 0.0
    %v6735 = vsel %vm348, %v6712, 0.0
    %v6736 = vadd.f32 %v6734, %v6735
    %v6737 = vrot.slane %v6736, 4
    %v6738 = vadd.f32 %v6736, %v6737
    %v6739 = vrot.slane %v6738, 2
    %v6740 = vadd.f32 %v6738, %v6739
    %v6741 = vrot.slane %v6740, 1
    %v6742 = vadd.f32 %v6740, %v6741
    %v6743 = vsel %vm127, %v6713, 0.0
    %v6744 = vsel %vm348, %v6714, 0.0
    %v6745 = vadd.f32 %v6743, %v6744
    %v6746 = vrot.slane %v6745, 4
    %v6747 = vadd.f32 %v6745, %v6746
    %v6748 = vrot.slane %v6747, 2
    %v6749 = vadd.f32 %v6747, %v6748
    %v6750 = vrot.slane %v6749, 1
    %v6751 = vadd.f32 %v6749, %v6750
    %v6752 = vsel %vm127, %v6715, 0.0
    %v6753 = vsel %vm348, %v6716, 0.0
    %v6754 = vadd.f32 %v6752, %v6753
    %v6755 = vrot.slane %v6754, 4
    %v6756 = vadd.f32 %v6754, %v6755
    %v6757 = vrot.slane %v6756, 2
    %v6758 = vadd.f32 %v6756, %v6757
    %v6759 = vrot.slane %v6758, 1
    %v6760 = vadd.f32 %v6758, %v6759
    %v6761 = vsel %vm127, %v6717, 0.0
    %v6762 = vsel %vm348, %v6718, 0.0
    %v6763 = vadd.f32 %v6761, %v6762
    %v6764 = vrot.slane %v6763, 4
    %v6765 = vadd.f32 %v6763, %v6764
    %v6766 = vrot.slane %v6765, 2
    %v6767 = vadd.f32 %v6765, %v6766
    %v6768 = vrot.slane %v6767, 1
    %v6769 = vadd.f32 %v6767, %v6768
    %v6770 = vsel %vm127, %v6719, 0.0
    %v6771 = vsel %vm348, %v6720, 0.0
    %v6772 = vadd.f32 %v6770, %v6771
    %v6773 = vrot.slane %v6772, 4
    %v6774 = vadd.f32 %v6772, %v6773
    %v6775 = vrot.slane %v6774, 2
    %v6776 = vadd.f32 %v6774, %v6775
    %v6777 = vrot.slane %v6776, 1
    %v6778 = vadd.f32 %v6776, %v6777
    %v6779 = vsel %vm127, %v6721, 0.0
    %v6780 = vsel %vm348, %v6722, 0.0
    %v6781 = vadd.f32 %v6779, %v6780
    %v6782 = vrot.slane %v6781, 4
    %v6783 = vadd.f32 %v6781, %v6782
    %v6784 = vrot.slane %v6783, 2
    %v6785 = vadd.f32 %v6783, %v6784
    %v6786 = vrot.slane %v6785, 1
    %v6787 = vadd.f32 %v6785, %v6786
    %v6788 = vsel %vm127, %v6723, 0.0
    %v6789 = vsel %vm348, %v6724, 0.0
    %v6790 = vadd.f32 %v6788, %v6789
    %v6791 = vrot.slane %v6790, 4
    %v6792 = vadd.f32 %v6790, %v6791
    %v6793 = vrot.slane %v6792, 2
    %v6794 = vadd.f32 %v6792, %v6793
    %v6795 = vrot.slane %v6794, 1
    %v6796 = vadd.f32 %v6794, %v6795
    %s6797 = scalar_lea.vmem %s0, 32
    %v6798 = vld [vmem:[%s6797] sm:$0xff]
    %v6800 = vsel %vm1137, %v6798, 0
    %6802 = vmatprep.subr.mxu0 0.0
    %6803 = vmatpush1.msra.mxu0 %v106
    %6804 = vmatprep.subr.mxu0 0.0
    %6805 = vmatpush1.msra.mxu0 %v107
    %6806 = vmatprep.subr.mxu0 0.0
    %6807 = vmatpush1.msra.mxu0 0.0
    %6808 = vmatprep.subr.mxu0 0.0
    %6809 = vmatpush1.msra.mxu0 0.0
    %6810 = vmatprep.subr.mxu0 0.0
    %6811 = vmatpush1.msra.mxu0 0.0
    %6812 = vmatprep.subr.mxu0 0.0
    %6813 = vmatpush1.msra.mxu0 0.0
    %6814 = vmatprep.subr.mxu0 0.0
    %6815 = vmatpush1.msra.mxu0 0.0
    %6816 = vmatprep.subr.mxu0 0.0
    %6817 = vmatpush1.msra.mxu0 0.0
    %6818 = vmatprep.subr.mxu0 0.0
    %6819 = vmatpush1.msra.mxu0 0.0
    %6820 = vmatprep.subr.mxu0 0.0
    %6821 = vmatpush1.msra.mxu0 0.0
    %6822 = vmatprep.subr.mxu0 0.0
    %6823 = vmatpush1.msra.mxu0 0.0
    %6824 = vmatprep.subr.mxu0 0.0
    %6825 = vmatpush1.msra.mxu0 0.0
    %6826 = vmatprep.subr.mxu0 0.0
    %6827 = vmatpush1.msra.mxu0 0.0
    %6828 = vmatprep.subr.mxu0 0.0
    %6829 = vmatpush1.msra.mxu0 0.0
    %6830 = vmatprep.subr.mxu0 0.0
    %6831 = vmatpush1.msra.mxu0 0.0
    %6832 = vmatprep.subr.mxu0 0.0
    %6833 = vmatpush1.msra.mxu0 0.0
    %6834 = vmatprep.subr.mxu0 0.0
    %6835 = vmatpush1.msra.mxu0 0.0
    %6836 = vmatprep.subr.mxu0 0.0
    %6837 = vmatpush1.msra.mxu0 0.0
    %6838 = vmatprep.subr.mxu0 0.0
    %6839 = vmatpush1.msra.mxu0 0.0
    %6840 = vmatprep.subr.mxu0 0.0
    %6841 = vmatpush1.msra.mxu0 0.0
    %6842 = vmatprep.subr.mxu0 0.0
    %6843 = vmatpush1.msra.mxu0 0.0
    %6844 = vmatprep.subr.mxu0 0.0
    %6845 = vmatpush1.msra.mxu0 0.0
    %6846 = vmatprep.subr.mxu0 0.0
    %6847 = vmatpush1.msra.mxu0 0.0
    %6848 = vmatprep.subr.mxu0 0.0
    %6849 = vmatpush1.msra.mxu0 0.0
    %6850 = vmatprep.subr.mxu0 0.0
    %6851 = vmatpush1.msra.mxu0 0.0
    %6852 = vmatprep.subr.mxu0 0.0
    %6853 = vmatpush1.msra.mxu0 0.0
    %6854 = vmatprep.subr.mxu0 0.0
    %6855 = vmatpush1.msra.mxu0 0.0
    %6856 = vmatprep.subr.mxu0 0.0
    %6857 = vmatpush1.msra.mxu0 0.0
    %6858 = vmatprep.subr.mxu0 0.0
    %6859 = vmatpush1.msra.mxu0 0.0
    %6860 = vmatprep.subr.mxu0 0.0
    %6861 = vmatpush1.msra.mxu0 0.0
    %6862 = vmatprep.subr.mxu0 0.0
    %6863 = vmatpush1.msra.mxu0 0.0
    %6864 = vmatprep.subr.mxu0 0.0
    %6865 = vmatpush1.msra.mxu0 0.0
    %6866 = vmatprep.mubr.f32.mxu0 0.0
    %6867 = vmatmul.mubr.f32.gmra.mrb[0].mxu0 %v6800
    %v6868 = vpop.f32.mrb[0].mxu0
    %v6869 = vadd.f32 0.0, %v6868
    %v6870 = vpop.f32.mrb[0].mxu0
    %6871 = vdwg.mxu0
    %v6880 = vsel %vm655, %v6742, %v6733
    %v6881 = vsel %vm657, %v6751, %v6880
    %v6882 = vsel %vm659, %v6760, %v6881
    %v6883 = vsel %vm661, %v6769, %v6882
    %v6884 = vsel %vm663, %v6778, %v6883
    %v6885 = vsel %vm665, %v6787, %v6884
    %v6886 = vsel %vm667, %v6796, %v6885
    %v6887 = vsel %vm127, %v6886, 0
    %6889 = vmatprep.subr.mxu0 0.0
    %6890 = vmatpush1.msra.mxu0 %v102
    %6891 = vmatprep.subr.mxu0 0.0
    %6892 = vmatpush1.msra.mxu0 %v103
    %6893 = vmatprep.subr.mxu0 0.0
    %6894 = vmatpush1.msra.mxu0 %v104
    %6895 = vmatprep.subr.mxu0 0.0
    %6896 = vmatpush1.msra.mxu0 %v105
    %6897 = vmatprep.subr.mxu0 0.0
    %6898 = vmatpush1.msra.mxu0 0.0
    %6899 = vmatprep.subr.mxu0 0.0
    %6900 = vmatpush1.msra.mxu0 0.0
    %6901 = vmatprep.subr.mxu0 0.0
    %6902 = vmatpush1.msra.mxu0 0.0
    %6903 = vmatprep.subr.mxu0 0.0
    %6904 = vmatpush1.msra.mxu0 0.0
    %6905 = vmatprep.subr.mxu0 0.0
    %6906 = vmatpush1.msra.mxu0 0.0
    %6907 = vmatprep.subr.mxu0 0.0
    %6908 = vmatpush1.msra.mxu0 0.0
    %6909 = vmatprep.subr.mxu0 0.0
    %6910 = vmatpush1.msra.mxu0 0.0
    %6911 = vmatprep.subr.mxu0 0.0
    %6912 = vmatpush1.msra.mxu0 0.0
    %6913 = vmatprep.subr.mxu0 0.0
    %6914 = vmatpush1.msra.mxu0 0.0
    %6915 = vmatprep.subr.mxu0 0.0
    %6916 = vmatpush1.msra.mxu0 0.0
    %6917 = vmatprep.subr.mxu0 0.0
    %6918 = vmatpush1.msra.mxu0 0.0
    %6919 = vmatprep.subr.mxu0 0.0
    %6920 = vmatpush1.msra.mxu0 0.0
    %6921 = vmatprep.subr.mxu0 0.0
    %6922 = vmatpush1.msra.mxu0 0.0
    %6923 = vmatprep.subr.mxu0 0.0
    %6924 = vmatpush1.msra.mxu0 0.0
    %6925 = vmatprep.subr.mxu0 0.0
    %6926 = vmatpush1.msra.mxu0 0.0
    %6927 = vmatprep.subr.mxu0 0.0
    %6928 = vmatpush1.msra.mxu0 0.0
    %6929 = vmatprep.subr.mxu0 0.0
    %6930 = vmatpush1.msra.mxu0 0.0
    %6931 = vmatprep.subr.mxu0 0.0
    %6932 = vmatpush1.msra.mxu0 0.0
    %6933 = vmatprep.subr.mxu0 0.0
    %6934 = vmatpush1.msra.mxu0 0.0
    %6935 = vmatprep.subr.mxu0 0.0
    %6936 = vmatpush1.msra.mxu0 0.0
    %6937 = vmatprep.subr.mxu0 0.0
    %6938 = vmatpush1.msra.mxu0 0.0
    %6939 = vmatprep.subr.mxu0 0.0
    %6940 = vmatpush1.msra.mxu0 0.0
    %6941 = vmatprep.subr.mxu0 0.0
    %6942 = vmatpush1.msra.mxu0 0.0
    %6943 = vmatprep.subr.mxu0 0.0
    %6944 = vmatpush1.msra.mxu0 0.0
    %6945 = vmatprep.subr.mxu0 0.0
    %6946 = vmatpush1.msra.mxu0 0.0
    %6947 = vmatprep.subr.mxu0 0.0
    %6948 = vmatpush1.msra.mxu0 0.0
    %6949 = vmatprep.subr.mxu0 0.0
    %6950 = vmatpush1.msra.mxu0 0.0
    %6951 = vmatprep.subr.mxu0 0.0
    %6952 = vmatpush1.msra.mxu0 0.0
    %6953 = vmatprep.mubr.f32.mxu0 0.0
    %6954 = vmatmul.mubr.f32.gmra.mrb[0].mxu0 %v6887
    %v6955 = vpop.f32.mrb[0].mxu0
    %v6956 = vadd.f32 %v6869, %v6955
    %v6957 = vpop.f32.mrb[0].mxu0
    %6958 = vdwg.mxu0
    %v6959 = vadd.f32 %v6956, %v1302
    %6960 = vmatprep.subr.mxu0 0.0
    %6961 = vmatpush1.msra.mxu0 %v108
    %6962 = vmatprep.subr.mxu0 0.0
    %6963 = vmatpush1.msra.mxu0 %v109
    %6964 = vmatprep.subr.mxu0 0.0
    %6965 = vmatpush1.msra.mxu0 %v110
    %6966 = vmatprep.subr.mxu0 0.0
    %6967 = vmatpush1.msra.mxu0 %v111
    %6968 = vmatprep.subr.mxu0 0.0
    %6969 = vmatpush1.msra.mxu0 0.0
    %6970 = vmatprep.subr.mxu0 0.0
    %6971 = vmatpush1.msra.mxu0 0.0
    %6972 = vmatprep.subr.mxu0 0.0
    %6973 = vmatpush1.msra.mxu0 0.0
    %6974 = vmatprep.subr.mxu0 0.0
    %6975 = vmatpush1.msra.mxu0 0.0
    %6976 = vmatprep.subr.mxu0 0.0
    %6977 = vmatpush1.msra.mxu0 0.0
    %6978 = vmatprep.subr.mxu0 0.0
    %6979 = vmatpush1.msra.mxu0 0.0
    %6980 = vmatprep.subr.mxu0 0.0
    %6981 = vmatpush1.msra.mxu0 0.0
    %6982 = vmatprep.subr.mxu0 0.0
    %6983 = vmatpush1.msra.mxu0 0.0
    %6984 = vmatprep.subr.mxu0 0.0
    %6985 = vmatpush1.msra.mxu0 0.0
    %6986 = vmatprep.subr.mxu0 0.0
    %6987 = vmatpush1.msra.mxu0 0.0
    %6988 = vmatprep.subr.mxu0 0.0
    %6989 = vmatpush1.msra.mxu0 0.0
    %6990 = vmatprep.subr.mxu0 0.0
    %6991 = vmatpush1.msra.mxu0 0.0
    %6992 = vmatprep.subr.mxu0 0.0
    %6993 = vmatpush1.msra.mxu0 0.0
    %6994 = vmatprep.subr.mxu0 0.0
    %6995 = vmatpush1.msra.mxu0 0.0
    %6996 = vmatprep.subr.mxu0 0.0
    %6997 = vmatpush1.msra.mxu0 0.0
    %6998 = vmatprep.subr.mxu0 0.0
    %6999 = vmatpush1.msra.mxu0 0.0
    %7000 = vmatprep.subr.mxu0 0.0
    %7001 = vmatpush1.msra.mxu0 0.0
    %7002 = vmatprep.subr.mxu0 0.0
    %7003 = vmatpush1.msra.mxu0 0.0
    %7004 = vmatprep.subr.mxu0 0.0
    %7005 = vmatpush1.msra.mxu0 0.0
    %7006 = vmatprep.subr.mxu0 0.0
    %7007 = vmatpush1.msra.mxu0 0.0
    %7008 = vmatprep.subr.mxu0 0.0
    %7009 = vmatpush1.msra.mxu0 0.0
    %7010 = vmatprep.subr.mxu0 0.0
    %7011 = vmatpush1.msra.mxu0 0.0
    %7012 = vmatprep.subr.mxu0 0.0
    %7013 = vmatpush1.msra.mxu0 0.0
    %7014 = vmatprep.subr.mxu0 0.0
    %7015 = vmatpush1.msra.mxu0 0.0
    %7016 = vmatprep.subr.mxu0 0.0
    %7017 = vmatpush1.msra.mxu0 0.0
    %7018 = vmatprep.subr.mxu0 0.0
    %7019 = vmatpush1.msra.mxu0 0.0
    %7020 = vmatprep.subr.mxu0 0.0
    %7021 = vmatpush1.msra.mxu0 0.0
    %7022 = vmatprep.subr.mxu0 0.0
    %7023 = vmatpush1.msra.mxu0 0.0
    %7024 = vmatprep.mubr.f32.mxu0 0.0
    %7025 = vmatmul.mubr.f32.gmra.mrb[0].mxu0 %v5655
    %v7026 = vpop.f32.mrb[0].mxu0
    %v7027 = vadd.f32 0.0, %v7026
    %v7028 = vpop.f32.mrb[0].mxu0
    %7029 = vdwg.mxu0
    %v7030 = vadd.f32 %v6959, %v7027
    %v7031 = vxor.u32 %v7030, 2147483648
    %v7032 = vmul.f32 %v7031, 1.442695
    %v7033 = vpow.pop %v7032
    %v7034 = vadd.f32 %v7033, 1.0
    %v7035 = vrcp.pop %v7034
    %v7036 = vmul.f32 1.0, %v7035
    %v7037 = vadd.f32 %v7027, %v1391
    %7039 = vrot.lane.b32.xlu0 %v7037, 64
    %v7040 = vpop.permute.xlu0 %7039
    %v7042 = vmul.f32 %v7036, %v7040
    %7044 = vrot.lane.b32.xlu0 %v7042, 64
    %v7045 = vpop.permute.xlu0 %7044
    %v7047 = vadd.f32 %v6959, %v7045
    %v7048 = vtanh.pop %v7047
    %v7049 = vsub.f32 1.0, %v7036
    %7051 = vrot.lane.b32.xlu0 %v7048, 96
    %v7052 = vpop.permute.xlu0 %7051
    %v7054 = vmul.f32 %v7049, %v7052
    %v7055 = vmul.f32 %v7036, %v5651
    %v7056 = vadd.f32 %v7054, %v7055
    %7058 = vrot.lane.b32.xlu0 %v7056, 96
    %v7059 = vpop.permute.xlu0 %7058
    %v7060 = vsel %vm127, %v7059, 0
    %7062 = vmatprep.subr.mxu0 0.0
    %7063 = vmatpush1.msra.mxu0 %v114
    %7064 = vmatprep.subr.mxu0 0.0
    %7065 = vmatpush1.msra.mxu0 %v115
    %7066 = vmatprep.subr.mxu0 0.0
    %7067 = vmatpush1.msra.mxu0 %v116
    %7068 = vmatprep.subr.mxu0 0.0
    %7069 = vmatpush1.msra.mxu0 %v117
    %7070 = vmatprep.subr.mxu0 0.0
    %7071 = vmatpush1.msra.mxu0 0.0
    %7072 = vmatprep.subr.mxu0 0.0
    %7073 = vmatpush1.msra.mxu0 0.0
    %7074 = vmatprep.subr.mxu0 0.0
    %7075 = vmatpush1.msra.mxu0 0.0
    %7076 = vmatprep.subr.mxu0 0.0
    %7077 = vmatpush1.msra.mxu0 0.0
    %7078 = vmatprep.subr.mxu0 0.0
    %7079 = vmatpush1.msra.mxu0 0.0
    %7080 = vmatprep.subr.mxu0 0.0
    %7081 = vmatpush1.msra.mxu0 0.0
    %7082 = vmatprep.subr.mxu0 0.0
    %7083 = vmatpush1.msra.mxu0 0.0
    %7084 = vmatprep.subr.mxu0 0.0
    %7085 = vmatpush1.msra.mxu0 0.0
    %7086 = vmatprep.subr.mxu0 0.0
    %7087 = vmatpush1.msra.mxu0 0.0
    %7088 = vmatprep.subr.mxu0 0.0
    %7089 = vmatpush1.msra.mxu0 0.0
    %7090 = vmatprep.subr.mxu0 0.0
    %7091 = vmatpush1.msra.mxu0 0.0
    %7092 = vmatprep.subr.mxu0 0.0
    %7093 = vmatpush1.msra.mxu0 0.0
    %7094 = vmatprep.subr.mxu0 0.0
    %7095 = vmatpush1.msra.mxu0 0.0
    %7096 = vmatprep.subr.mxu0 0.0
    %7097 = vmatpush1.msra.mxu0 0.0
    %7098 = vmatprep.subr.mxu0 0.0
    %7099 = vmatpush1.msra.mxu0 0.0
    %7100 = vmatprep.subr.mxu0 0.0
    %7101 = vmatpush1.msra.mxu0 0.0
    %7102 = vmatprep.subr.mxu0 0.0
    %7103 = vmatpush1.msra.mxu0 0.0
    %7104 = vmatprep.subr.mxu0 0.0
    %7105 = vmatpush1.msra.mxu0 0.0
    %7106 = vmatprep.subr.mxu0 0.0
    %7107 = vmatpush1.msra.mxu0 0.0
    %7108 = vmatprep.subr.mxu0 0.0
    %7109 = vmatpush1.msra.mxu0 0.0
    %7110 = vmatprep.subr.mxu0 0.0
    %7111 = vmatpush1.msra.mxu0 0.0
    %7112 = vmatprep.subr.mxu0 0.0
    %7113 = vmatpush1.msra.mxu0 0.0
    %7114 = vmatprep.subr.mxu0 0.0
    %7115 = vmatpush1.msra.mxu0 0.0
    %7116 = vmatprep.subr.mxu0 0.0
    %7117 = vmatpush1.msra.mxu0 0.0
    %7118 = vmatprep.subr.mxu0 0.0
    %7119 = vmatpush1.msra.mxu0 0.0
    %7120 = vmatprep.subr.mxu0 0.0
    %7121 = vmatpush1.msra.mxu0 0.0
    %7122 = vmatprep.subr.mxu0 0.0
    %7123 = vmatpush1.msra.mxu0 0.0
    %7124 = vmatprep.subr.mxu0 0.0
    %7125 = vmatpush1.msra.mxu0 0.0
    %7126 = vmatprep.mubr.f32.mxu0 0.0
    %7127 = vmatmul.mubr.f32.gmra.mrb[0].mxu0 %v7060
    %v7128 = vpop.f32.mrb[0].mxu0
    %v7129 = vadd.f32 %v1420, %v7128
    %v7130 = vpop.f32.mrb[0].mxu0
    %7131 = vdwg.mxu0
    %7132 = vrot.lane.b32.xlu0 %v5983, 96
    %v7133 = vpop.permute.xlu0 %7132
    %v7135 = vadd.f32 %v7129, %v7133
    %v7136 = vxor.u32 %v7135, 2147483648
    %v7137 = vmul.f32 %v7136, 1.442695
    %v7138 = vpow.pop %v7137
    %v7139 = vadd.f32 %v7138, 1.0
    %v7140 = vrcp.pop %v7139
    %v7141 = vmul.f32 1.0, %v7140
    %v7142 = vadd.f32 %v5983, %v1513
    %7144 = vrot.lane.b32.xlu0 %v7142, 32
    %v7145 = vpop.permute.xlu0 %7144
    %v7147 = vmul.f32 %v7141, %v7145
    %7149 = vrot.lane.b32.xlu0 %v7147, 64
    %v7150 = vpop.permute.xlu0 %7149
    %v7152 = vadd.f32 %v7129, %v7150
    %v7153 = vtanh.pop %v7152
    %v7154 = vsub.f32 1.0, %v7141
    %7156 = vrot.lane.b32.xlu0 %v7153, 96
    %v7157 = vpop.permute.xlu0 %7156
    %v7159 = vmul.f32 %v7154, %v7157
    %v7160 = vmul.f32 %v7141, %v5756
    %v7161 = vadd.f32 %v7159, %v7160
    %7163 = vrot.lane.b32.xlu0 %v7161, 96
    %v7164 = vpop.permute.xlu0 %7163
    %v7165 = vsel %vm127, %v7164, 0
    %7167 = vmatprep.subr.mxu0 0.0
    %7168 = vmatpush1.msra.mxu0 %v120
    %7169 = vmatprep.subr.mxu0 0.0
    %7170 = vmatpush1.msra.mxu0 %v121
    %7171 = vmatprep.subr.mxu0 0.0
    %7172 = vmatpush1.msra.mxu0 %v122
    %7173 = vmatprep.subr.mxu0 0.0
    %7174 = vmatpush1.msra.mxu0 %v123
    %7175 = vmatprep.subr.mxu0 0.0
    %7176 = vmatpush1.msra.mxu0 0.0
    %7177 = vmatprep.subr.mxu0 0.0
    %7178 = vmatpush1.msra.mxu0 0.0
    %7179 = vmatprep.subr.mxu0 0.0
    %7180 = vmatpush1.msra.mxu0 0.0
    %7181 = vmatprep.subr.mxu0 0.0
    %7182 = vmatpush1.msra.mxu0 0.0
    %7183 = vmatprep.subr.mxu0 0.0
    %7184 = vmatpush1.msra.mxu0 0.0
    %7185 = vmatprep.subr.mxu0 0.0
    %7186 = vmatpush1.msra.mxu0 0.0
    %7187 = vmatprep.subr.mxu0 0.0
    %7188 = vmatpush1.msra.mxu0 0.0
    %7189 = vmatprep.subr.mxu0 0.0
    %7190 = vmatpush1.msra.mxu0 0.0
    %7191 = vmatprep.subr.mxu0 0.0
    %7192 = vmatpush1.msra.mxu0 0.0
    %7193 = vmatprep.subr.mxu0 0.0
    %7194 = vmatpush1.msra.mxu0 0.0
    %7195 = vmatprep.subr.mxu0 0.0
    %7196 = vmatpush1.msra.mxu0 0.0
    %7197 = vmatprep.subr.mxu0 0.0
    %7198 = vmatpush1.msra.mxu0 0.0
    %7199 = vmatprep.subr.mxu0 0.0
    %7200 = vmatpush1.msra.mxu0 0.0
    %7201 = vmatprep.subr.mxu0 0.0
    %7202 = vmatpush1.msra.mxu0 0.0
    %7203 = vmatprep.subr.mxu0 0.0
    %7204 = vmatpush1.msra.mxu0 0.0
    %7205 = vmatprep.subr.mxu0 0.0
    %7206 = vmatpush1.msra.mxu0 0.0
    %7207 = vmatprep.subr.mxu0 0.0
    %7208 = vmatpush1.msra.mxu0 0.0
    %7209 = vmatprep.subr.mxu0 0.0
    %7210 = vmatpush1.msra.mxu0 0.0
    %7211 = vmatprep.subr.mxu0 0.0
    %7212 = vmatpush1.msra.mxu0 0.0
    %7213 = vmatprep.subr.mxu0 0.0
    %7214 = vmatpush1.msra.mxu0 0.0
    %7215 = vmatprep.subr.mxu0 0.0
    %7216 = vmatpush1.msra.mxu0 0.0
    %7217 = vmatprep.subr.mxu0 0.0
    %7218 = vmatpush1.msra.mxu0 0.0
    %7219 = vmatprep.subr.mxu0 0.0
    %7220 = vmatpush1.msra.mxu0 0.0
    %7221 = vmatprep.subr.mxu0 0.0
    %7222 = vmatpush1.msra.mxu0 0.0
    %7223 = vmatprep.subr.mxu0 0.0
    %7224 = vmatpush1.msra.mxu0 0.0
    %7225 = vmatprep.subr.mxu0 0.0
    %7226 = vmatpush1.msra.mxu0 0.0
    %7227 = vmatprep.subr.mxu0 0.0
    %7228 = vmatpush1.msra.mxu0 0.0
    %7229 = vmatprep.subr.mxu0 0.0
    %7230 = vmatpush1.msra.mxu0 0.0
    %7231 = vmatprep.mubr.f32.mxu0 0.0
    %7232 = vmatmul.mubr.f32.gmra.mrb[0].mxu0 %v7165
    %v7233 = vpop.f32.mrb[0].mxu0
    %v7234 = vadd.f32 %v1542, %v7233
    %v7235 = vpop.f32.mrb[0].mxu0
    %7236 = vdwg.mxu0
    %s7237 = scalar_lea.vmem [#allocation2], 32
    %7238 = vst.msk [vmem:[%s7237] sm:$0xff] %vm127, %v7234
    %v7239 = vlaneseq
    %v7240 = vshrl.u32 %v7239, 7
    %v7241 = vsub.s32 %v580, %v7240
    %v7242 = vrot.slane %v6632, %v7241
    %v7243 = vlaneseq
    %v7244 = vshrl.u32 %v7243, 7
    %v7245 = vsub.s32 %v585, %v7244
    %v7246 = vrot.slane %v6637, %v7245
    %v7247 = vsel %vm590, %v7246, %v7242
    %v7248 = vlaneseq
    %v7249 = vshrl.u32 %v7248, 7
    %v7250 = vsub.s32 %v580, %v7249
    %v7251 = vrot.slane %v6642, %v7250
    %v7252 = vlaneseq
    %v7253 = vshrl.u32 %v7252, 7
    %v7254 = vsub.s32 %v585, %v7253
    %v7255 = vrot.slane %v6647, %v7254
    %v7256 = vsel %vm590, %v7255, %v7251
    %v7257 = vlaneseq
    %v7258 = vshrl.u32 %v7257, 7
    %v7259 = vsub.s32 %v580, %v7258
    %v7260 = vrot.slane %v6652, %v7259
    %v7261 = vlaneseq
    %v7262 = vshrl.u32 %v7261, 7
    %v7263 = vsub.s32 %v585, %v7262
    %v7264 = vrot.slane %v6657, %v7263
    %v7265 = vsel %vm590, %v7264, %v7260
    %v7266 = vlaneseq
    %v7267 = vshrl.u32 %v7266, 7
    %v7268 = vsub.s32 %v580, %v7267
    %v7269 = vrot.slane %v6662, %v7268
    %v7270 = vlaneseq
    %v7271 = vshrl.u32 %v7270, 7
    %v7272 = vsub.s32 %v585, %v7271
    %v7273 = vrot.slane %v6667, %v7272
    %v7274 = vsel %vm590, %v7273, %v7269
    %v7275 = vlaneseq
    %v7276 = vshrl.u32 %v7275, 7
    %v7277 = vsub.s32 %v580, %v7276
    %v7278 = vrot.slane %v6672, %v7277
    %v7279 = vlaneseq
    %v7280 = vshrl.u32 %v7279, 7
    %v7281 = vsub.s32 %v585, %v7280
    %v7282 = vrot.slane %v6677, %v7281
    %v7283 = vsel %vm590, %v7282, %v7278
    %v7284 = vlaneseq
    %v7285 = vshrl.u32 %v7284, 7
    %v7286 = vsub.s32 %v580, %v7285
    %v7287 = vrot.slane %v6682, %v7286
    %v7288 = vlaneseq
    %v7289 = vshrl.u32 %v7288, 7
    %v7290 = vsub.s32 %v585, %v7289
    %v7291 = vrot.slane %v6687, %v7290
    %v7292 = vsel %vm590, %v7291, %v7287
    %v7293 = vlaneseq
    %v7294 = vshrl.u32 %v7293, 7
    %v7295 = vsub.s32 %v580, %v7294
    %v7296 = vrot.slane %v6692, %v7295
    %v7297 = vlaneseq
    %v7298 = vshrl.u32 %v7297, 7
    %v7299 = vsub.s32 %v585, %v7298
    %v7300 = vrot.slane %v6697, %v7299
    %v7301 = vsel %vm590, %v7300, %v7296
    %v7302 = vlaneseq
    %v7303 = vshrl.u32 %v7302, 7
    %v7304 = vsub.s32 %v580, %v7303
    %v7305 = vrot.slane %v6702, %v7304
    %v7306 = vlaneseq
    %v7307 = vshrl.u32 %v7306, 7
    %v7308 = vsub.s32 %v585, %v7307
    %v7309 = vrot.slane %v6707, %v7308
    %v7310 = vsel %vm590, %v7309, %v7305
    %v7311 = vsel %vm655, %v7256, %v7247
    %v7312 = vsel %vm657, %v7265, %v7311
    %v7313 = vsel %vm659, %v7274, %v7312
    %v7314 = vsel %vm661, %v7283, %v7313
    %v7315 = vsel %vm663, %v7292, %v7314
    %v7316 = vsel %vm665, %v7301, %v7315
    %v7317 = vsel %vm667, %v7310, %v7316
    %s7319 = scalar_lea.vmem [#allocation4], 32
    %7320 = vst.msk [vmem:[%s7319] sm:$0xff] %vm670, %v7317
    %7321 = vmatprep.subr.mxu0 0.0
    %7322 = vmatpush1.msra.mxu0 %v98
    %7323 = vmatprep.subr.mxu0 0.0
    %7324 = vmatpush1.msra.mxu0 %v99
    %7325 = vmatprep.subr.mxu0 0.0
    %7326 = vmatpush1.msra.mxu0 %v100
    %7327 = vmatprep.subr.mxu0 0.0
    %7328 = vmatpush1.msra.mxu0 %v101
    %7329 = vmatprep.subr.mxu0 0.0
    %7330 = vmatpush1.msra.mxu0 0.0
    %7331 = vmatprep.subr.mxu0 0.0
    %7332 = vmatpush1.msra.mxu0 0.0
    %7333 = vmatprep.subr.mxu0 0.0
    %7334 = vmatpush1.msra.mxu0 0.0
    %7335 = vmatprep.subr.mxu0 0.0
    %7336 = vmatpush1.msra.mxu0 0.0
    %7337 = vmatprep.subr.mxu0 0.0
    %7338 = vmatpush1.msra.mxu0 0.0
    %7339 = vmatprep.subr.mxu0 0.0
    %7340 = vmatpush1.msra.mxu0 0.0
    %7341 = vmatprep.subr.mxu0 0.0
    %7342 = vmatpush1.msra.mxu0 0.0
    %7343 = vmatprep.subr.mxu0 0.0
    %7344 = vmatpush1.msra.mxu0 0.0
    %7345 = vmatprep.subr.mxu0 0.0
    %7346 = vmatpush1.msra.mxu0 0.0
    %7347 = vmatprep.subr.mxu0 0.0
    %7348 = vmatpush1.msra.mxu0 0.0
    %7349 = vmatprep.subr.mxu0 0.0
    %7350 = vmatpush1.msra.mxu0 0.0
    %7351 = vmatprep.subr.mxu0 0.0
    %7352 = vmatpush1.msra.mxu0 0.0
    %7353 = vmatprep.subr.mxu0 0.0
    %7354 = vmatpush1.msra.mxu0 0.0
    %7355 = vmatprep.subr.mxu0 0.0
    %7356 = vmatpush1.msra.mxu0 0.0
    %7357 = vmatprep.subr.mxu0 0.0
    %7358 = vmatpush1.msra.mxu0 0.0
    %7359 = vmatprep.subr.mxu0 0.0
    %7360 = vmatpush1.msra.mxu0 0.0
    %7361 = vmatprep.subr.mxu0 0.0
    %7362 = vmatpush1.msra.mxu0 0.0
    %7363 = vmatprep.subr.mxu0 0.0
    %7364 = vmatpush1.msra.mxu0 0.0
    %7365 = vmatprep.subr.mxu0 0.0
    %7366 = vmatpush1.msra.mxu0 0.0
    %7367 = vmatprep.subr.mxu0 0.0
    %7368 = vmatpush1.msra.mxu0 0.0
    %7369 = vmatprep.subr.mxu0 0.0
    %7370 = vmatpush1.msra.mxu0 0.0
    %7371 = vmatprep.subr.mxu0 0.0
    %7372 = vmatpush1.msra.mxu0 0.0
    %7373 = vmatprep.subr.mxu0 0.0
    %7374 = vmatpush1.msra.mxu0 0.0
    %7375 = vmatprep.subr.mxu0 0.0
    %7376 = vmatpush1.msra.mxu0 0.0
    %7377 = vmatprep.subr.mxu0 0.0
    %7378 = vmatpush1.msra.mxu0 0.0
    %7379 = vmatprep.subr.mxu0 0.0
    %7380 = vmatpush1.msra.mxu0 0.0
    %7381 = vmatprep.subr.mxu0 0.0
    %7382 = vmatpush1.msra.mxu0 0.0
    %7383 = vmatprep.subr.mxu0 0.0
    %7384 = vmatpush1.msra.mxu0 0.0
    %7385 = vmatprep.mubr.f32.mxu0 0.0
    %7386 = vmatmul.mubr.f32.gmra.mrb[0].mxu0 %v7165
    %v7387 = vpop.f32.mrb[0].mxu0
    %v7388 = vadd.f32 0.0, %v7387
    %v7389 = vpop.f32.mrb[0].mxu0
    %7390 = vdwg.mxu0
    %v7392 = vcombine.high %v7388, %v7388
    %v7394 = vunpack.c.l.s4 1966171168
    %v7395 = vunpack.c.0.s8 %v7394
    %v7396 = vlaneseq
    %v7397 = vshrl.u32 %v7396, 7
    %v7398 = vsub.s32 %v7395, %v7397
    %v7399 = vrot.slane %v7388, %v7398
    %v7401 = vunpack.c.l.s4 1966171168
    %v7402 = vunpack.c.0.s8 %v7401
    %v7403 = vlaneseq
    %v7404 = vshrl.u32 %v7403, 7
    %v7405 = vsub.s32 %v7402, %v7404
    %v7406 = vrot.slane %v7392, %v7405
    %v7407 = vcombine.high %v7399, %v7399
    %v7408 = vcombine.high %v7406, %v7406
    %v7410 = vunpack.c.l.s4 1966171168
    %v7411 = vunpack.c.0.s8 %v7410
    %v7412 = vlaneseq
    %v7413 = vshrl.u32 %v7412, 7
    %v7414 = vsub.s32 %v7411, %v7413
    %v7415 = vrot.slane %v7399, %v7414
    %v7417 = vunpack.c.l.s4 1966171168
    %v7418 = vunpack.c.0.s8 %v7417
    %v7419 = vlaneseq
    %v7420 = vshrl.u32 %v7419, 7
    %v7421 = vsub.s32 %v7418, %v7420
    %v7422 = vrot.slane %v7406, %v7421
    %v7424 = vunpack.c.l.s4 1966171168
    %v7425 = vunpack.c.0.s8 %v7424
    %v7426 = vlaneseq
    %v7427 = vshrl.u32 %v7426, 7
    %v7428 = vsub.s32 %v7425, %v7427
    %v7429 = vrot.slane %v7407, %v7428
    %v7431 = vunpack.c.l.s4 1966171168
    %v7432 = vunpack.c.0.s8 %v7431
    %v7433 = vlaneseq
    %v7434 = vshrl.u32 %v7433, 7
    %v7435 = vsub.s32 %v7432, %v7434
    %v7436 = vrot.slane %v7408, %v7435
    %v7437 = vcombine.high %v7415, %v7415
    %v7438 = vcombine.high %v7422, %v7422
    %v7439 = vcombine.high %v7429, %v7429
    %v7440 = vcombine.high %v7436, %v7436
    %v7441 = vlaneseq
    %v7442 = vshrl.u32 %v7441, 7
    %v7443 = vsub.s32 0, %v7442
    %v7444 = vrot.slane %v7415, %v7443
    %v7445 = vlaneseq
    %v7446 = vshrl.u32 %v7445, 7
    %v7447 = vsub.s32 0, %v7446
    %v7448 = vrot.slane %v7429, %v7447
    %v7449 = vlaneseq
    %v7450 = vshrl.u32 %v7449, 7
    %v7451 = vsub.s32 0, %v7450
    %v7452 = vrot.slane %v7437, %v7451
    %v7453 = vlaneseq
    %v7454 = vshrl.u32 %v7453, 7
    %v7455 = vsub.s32 0, %v7454
    %v7456 = vrot.slane %v7439, %v7455
    %v7457 = vlaneseq
    %v7458 = vshrl.u32 %v7457, 7
    %v7459 = vsub.s32 0, %v7458
    %v7460 = vrot.slane %v7422, %v7459
    %v7461 = vlaneseq
    %v7462 = vshrl.u32 %v7461, 7
    %v7463 = vsub.s32 0, %v7462
    %v7464 = vrot.slane %v7436, %v7463
    %v7465 = vlaneseq
    %v7466 = vshrl.u32 %v7465, 7
    %v7467 = vsub.s32 0, %v7466
    %v7468 = vrot.slane %v7438, %v7467
    %v7469 = vlaneseq
    %v7470 = vshrl.u32 %v7469, 7
    %v7471 = vsub.s32 0, %v7470
    %v7472 = vrot.slane %v7440, %v7471
    %v7481 = vadd.f32 %v7444, %v80
    %v7482 = vadd.f32 %v7444, %v81
    %v7483 = vadd.f32 %v7448, %v82
    %v7484 = vadd.f32 %v7448, %v83
    %v7485 = vadd.f32 %v7452, %v84
    %v7486 = vadd.f32 %v7452, %v85
    %v7487 = vadd.f32 %v7456, %v86
    %v7488 = vadd.f32 %v7456, %v87
    %v7489 = vadd.f32 %v7460, %v88
    %v7490 = vadd.f32 %v7460, %v89
    %v7491 = vadd.f32 %v7464, %v90
    %v7492 = vadd.f32 %v7464, %v91
    %v7493 = vadd.f32 %v7468, %v92
    %v7494 = vadd.f32 %v7468, %v93
    %v7495 = vadd.f32 %v7472, %v94
    %v7496 = vadd.f32 %v7472, %v95
    %v7497 = vtanh.pop %v7481
    %v7498 = vtanh.pop %v7482
    %v7499 = vtanh.pop %v7483
    %v7500 = vtanh.pop %v7484
    %v7501 = vtanh.pop %v7485
    %v7502 = vtanh.pop %v7486
    %v7503 = vtanh.pop %v7487
    %v7504 = vtanh.pop %v7488
    %v7505 = vtanh.pop %v7489
    %v7506 = vtanh.pop %v7490
    %v7507 = vtanh.pop %v7491
    %v7508 = vtanh.pop %v7492
    %v7509 = vtanh.pop %v7493
    %v7510 = vtanh.pop %v7494
    %v7511 = vtanh.pop %v7495
    %v7512 = vtanh.pop %v7496
    %v7513 = vmul.f32 %v7497, %v327
    %v7514 = vmul.f32 %v7498, %v327
    %v7515 = vmul.f32 %v7499, %v327
    %v7516 = vmul.f32 %v7500, %v327
    %v7517 = vmul.f32 %v7501, %v327
    %v7518 = vmul.f32 %v7502, %v327
    %v7519 = vmul.f32 %v7503, %v327
    %v7520 = vmul.f32 %v7504, %v327
    %v7521 = vmul.f32 %v7505, %v327
    %v7522 = vmul.f32 %v7506, %v327
    %v7523 = vmul.f32 %v7507, %v327
    %v7524 = vmul.f32 %v7508, %v327
    %v7525 = vmul.f32 %v7509, %v327
    %v7526 = vmul.f32 %v7510, %v327
    %v7527 = vmul.f32 %v7511, %v327
    %v7528 = vmul.f32 %v7512, %v327
    %v7529 = vsel %vm127, %v7513, 0.0
    %7530 = vadd.xlane.f32.xlu0 %v7529
    %v7531 = vpop.xlane.xlu0 %7530
    %v7532 = vsel %vm348, %v7514, 0.0
    %7533 = vadd.xlane.f32.xlu0 %v7532
    %v7534 = vpop.xlane.xlu0 %7533
    %v7535 = vsel %vm127, %v7515, 0.0
    %7536 = vadd.xlane.f32.xlu0 %v7535
    %v7537 = vpop.xlane.xlu0 %7536
    %v7538 = vsel %vm348, %v7516, 0.0
    %7539 = vadd.xlane.f32.xlu0 %v7538
    %v7540 = vpop.xlane.xlu0 %7539
    %v7541 = vsel %vm127, %v7517, 0.0
    %7542 = vadd.xlane.f32.xlu0 %v7541
    %v7543 = vpop.xlane.xlu0 %7542
    %v7544 = vsel %vm348, %v7518, 0.0
    %7545 = vadd.xlane.f32.xlu0 %v7544
    %v7546 = vpop.xlane.xlu0 %7545
    %v7547 = vsel %vm127, %v7519, 0.0
    %7548 = vadd.xlane.f32.xlu0 %v7547
    %v7549 = vpop.xlane.xlu0 %7548
    %v7550 = vsel %vm348, %v7520, 0.0
    %7551 = vadd.xlane.f32.xlu0 %v7550
    %v7552 = vpop.xlane.xlu0 %7551
    %v7553 = vsel %vm127, %v7521, 0.0
    %7554 = vadd.xlane.f32.xlu0 %v7553
    %v7555 = vpop.xlane.xlu0 %7554
    %v7556 = vsel %vm348, %v7522, 0.0
    %7557 = vadd.xlane.f32.xlu0 %v7556
    %v7558 = vpop.xlane.xlu0 %7557
    %v7559 = vsel %vm127, %v7523, 0.0
    %7560 = vadd.xlane.f32.xlu0 %v7559
    %v7561 = vpop.xlane.xlu0 %7560
    %v7562 = vsel %vm348, %v7524, 0.0
    %7563 = vadd.xlane.f32.xlu0 %v7562
    %v7564 = vpop.xlane.xlu0 %7563
    %v7565 = vsel %vm127, %v7525, 0.0
    %7566 = vadd.xlane.f32.xlu0 %v7565
    %v7567 = vpop.xlane.xlu0 %7566
    %v7568 = vsel %vm348, %v7526, 0.0
    %7569 = vadd.xlane.f32.xlu0 %v7568
    %v7570 = vpop.xlane.xlu0 %7569
    %v7571 = vsel %vm127, %v7527, 0.0
    %7572 = vadd.xlane.f32.xlu0 %v7571
    %v7573 = vpop.xlane.xlu0 %7572
    %v7574 = vsel %vm348, %v7528, 0.0
    %7575 = vadd.xlane.f32.xlu0 %v7574
    %v7576 = vpop.xlane.xlu0 %7575
    %v7577 = vadd.f32 %v7531, %v401
    %v7578 = vadd.f32 %v7534, %v405
    %v7579 = vadd.f32 %v7537, %v412
    %v7580 = vadd.f32 %v7540, %v416
    %v7581 = vadd.f32 %v7543, %v423
    %v7582 = vadd.f32 %v7546, %v427
    %v7583 = vadd.f32 %v7549, %v434
    %v7584 = vadd.f32 %v7552, %v438
    %v7585 = vadd.f32 %v7555, %v445
    %v7586 = vadd.f32 %v7558, %v449
    %v7587 = vadd.f32 %v7561, %v456
    %v7588 = vadd.f32 %v7564, %v460
    %v7589 = vadd.f32 %v7567, %v467
    %v7590 = vadd.f32 %v7570, %v471
    %v7591 = vadd.f32 %v7573, %v478
    %v7592 = vadd.f32 %v7576, %v482
    %7609 = vset.pattern.permute.xlu0 0
    %7610 = vperm.xlu0 %7609, %v7577
    %v7611 = vpop.permute.xlu0 %7610
    %7612 = vset.pattern.permute.xlu0 0
    %7613 = vperm.xlu0 %7612, %v7578
    %v7614 = vpop.permute.xlu0 %7613
    %7615 = vset.pattern.permute.xlu0 0
    %7616 = vperm.xlu0 %7615, %v7579
    %v7617 = vpop.permute.xlu0 %7616
    %7618 = vset.pattern.permute.xlu0 0
    %7619 = vperm.xlu0 %7618, %v7580
    %v7620 = vpop.permute.xlu0 %7619
    %7621 = vset.pattern.permute.xlu0 0
    %7622 = vperm.xlu0 %7621, %v7581
    %v7623 = vpop.permute.xlu0 %7622
    %7624 = vset.pattern.permute.xlu0 0
    %7625 = vperm.xlu0 %7624, %v7582
    %v7626 = vpop.permute.xlu0 %7625
    %7627 = vset.pattern.permute.xlu0 0
    %7628 = vperm.xlu0 %7627, %v7583
    %v7629 = vpop.permute.xlu0 %7628
    %7630 = vset.pattern.permute.xlu0 0
    %7631 = vperm.xlu0 %7630, %v7584
    %v7632 = vpop.permute.xlu0 %7631
    %7633 = vset.pattern.permute.xlu0 0
    %7634 = vperm.xlu0 %7633, %v7585
    %v7635 = vpop.permute.xlu0 %7634
    %7636 = vset.pattern.permute.xlu0 0
    %7637 = vperm.xlu0 %7636, %v7586
    %v7638 = vpop.permute.xlu0 %7637
    %7639 = vset.pattern.permute.xlu0 0
    %7640 = vperm.xlu0 %7639, %v7587
    %v7641 = vpop.permute.xlu0 %7640
    %7642 = vset.pattern.permute.xlu0 0
    %7643 = vperm.xlu0 %7642, %v7588
    %v7644 = vpop.permute.xlu0 %7643
    %7645 = vset.pattern.permute.xlu0 0
    %7646 = vperm.xlu0 %7645, %v7589
    %v7647 = vpop.permute.xlu0 %7646
    %7648 = vset.pattern.permute.xlu0 0
    %7649 = vperm.xlu0 %7648, %v7590
    %v7650 = vpop.permute.xlu0 %7649
    %7651 = vset.pattern.permute.xlu0 0
    %7652 = vperm.xlu0 %7651, %v7591
    %v7653 = vpop.permute.xlu0 %7652
    %7654 = vset.pattern.permute.xlu0 0
    %7655 = vperm.xlu0 %7654, %v7592
    %v7656 = vpop.permute.xlu0 %7655
    %v7657 = vlaneseq
    %v7658 = vshrl.u32 %v7657, 7
    %v7659 = vsub.s32 %v580, %v7658
    %v7660 = vrot.slane %v7611, %v7659
    %v7661 = vlaneseq
    %v7662 = vshrl.u32 %v7661, 7
    %v7663 = vsub.s32 %v585, %v7662
    %v7664 = vrot.slane %v7614, %v7663
    %v7665 = vsel %vm590, %v7664, %v7660
    %v7666 = vlaneseq
    %v7667 = vshrl.u32 %v7666, 7
    %v7668 = vsub.s32 %v580, %v7667
    %v7669 = vrot.slane %v7617, %v7668
    %v7670 = vlaneseq
    %v7671 = vshrl.u32 %v7670, 7
    %v7672 = vsub.s32 %v585, %v7671
    %v7673 = vrot.slane %v7620, %v7672
    %v7674 = vsel %vm590, %v7673, %v7669
    %v7675 = vlaneseq
    %v7676 = vshrl.u32 %v7675, 7
    %v7677 = vsub.s32 %v580, %v7676
    %v7678 = vrot.slane %v7623, %v7677
    %v7679 = vlaneseq
    %v7680 = vshrl.u32 %v7679, 7
    %v7681 = vsub.s32 %v585, %v7680
    %v7682 = vrot.slane %v7626, %v7681
    %v7683 = vsel %vm590, %v7682, %v7678
    %v7684 = vlaneseq
    %v7685 = vshrl.u32 %v7684, 7
    %v7686 = vsub.s32 %v580, %v7685
    %v7687 = vrot.slane %v7629, %v7686
    %v7688 = vlaneseq
    %v7689 = vshrl.u32 %v7688, 7
    %v7690 = vsub.s32 %v585, %v7689
    %v7691 = vrot.slane %v7632, %v7690
    %v7692 = vsel %vm590, %v7691, %v7687
    %v7693 = vlaneseq
    %v7694 = vshrl.u32 %v7693, 7
    %v7695 = vsub.s32 %v580, %v7694
    %v7696 = vrot.slane %v7635, %v7695
    %v7697 = vlaneseq
    %v7698 = vshrl.u32 %v7697, 7
    %v7699 = vsub.s32 %v585, %v7698
    %v7700 = vrot.slane %v7638, %v7699
    %v7701 = vsel %vm590, %v7700, %v7696
    %v7702 = vlaneseq
    %v7703 = vshrl.u32 %v7702, 7
    %v7704 = vsub.s32 %v580, %v7703
    %v7705 = vrot.slane %v7641, %v7704
    %v7706 = vlaneseq
    %v7707 = vshrl.u32 %v7706, 7
    %v7708 = vsub.s32 %v585, %v7707
    %v7709 = vrot.slane %v7644, %v7708
    %v7710 = vsel %vm590, %v7709, %v7705
    %v7711 = vlaneseq
    %v7712 = vshrl.u32 %v7711, 7
    %v7713 = vsub.s32 %v580, %v7712
    %v7714 = vrot.slane %v7647, %v7713
    %v7715 = vlaneseq
    %v7716 = vshrl.u32 %v7715, 7
    %v7717 = vsub.s32 %v585, %v7716
    %v7718 = vrot.slane %v7650, %v7717
    %v7719 = vsel %vm590, %v7718, %v7714
    %v7720 = vlaneseq
    %v7721 = vshrl.u32 %v7720, 7
    %v7722 = vsub.s32 %v580, %v7721
    %v7723 = vrot.slane %v7653, %v7722
    %v7724 = vlaneseq
    %v7725 = vshrl.u32 %v7724, 7
    %v7726 = vsub.s32 %v585, %v7725
    %v7727 = vrot.slane %v7656, %v7726
    %v7728 = vsel %vm590, %v7727, %v7723
    %v7729 = vsel %vm655, %v7674, %v7665
    %v7730 = vsel %vm657, %v7683, %v7729
    %v7731 = vsel %vm659, %v7692, %v7730
    %v7732 = vsel %vm661, %v7701, %v7731
    %v7733 = vsel %vm663, %v7710, %v7732
    %v7734 = vsel %vm665, %v7719, %v7733
    %v7735 = vsel %vm667, %v7728, %v7734
    %v7737 = vsel %vm670, %v7735, -inf
    %7738 = vmax.xlane.f32.xlu0 %v7737
    %v7739 = vpop.xlane.xlu0 %7738
    %v7741 = vlaneseq
    %v7742 = vshrl.u32 %v7741, 7
    %v7743 = vsub.s32 0, %v7742
    %v7744 = vrot.slane %v7739, %v7743
    %v7745 = vlaneseq
    %v7746 = vshrl.u32 %v7745, 7
    %v7747 = vsub.s32 1, %v7746
    %v7748 = vrot.slane %v7739, %v7747
    %v7749 = vlaneseq
    %v7750 = vshrl.u32 %v7749, 7
    %v7751 = vsub.s32 2, %v7750
    %v7752 = vrot.slane %v7739, %v7751
    %v7753 = vlaneseq
    %v7754 = vshrl.u32 %v7753, 7
    %v7755 = vsub.s32 3, %v7754
    %v7756 = vrot.slane %v7739, %v7755
    %v7757 = vlaneseq
    %v7758 = vshrl.u32 %v7757, 7
    %v7759 = vsub.s32 4, %v7758
    %v7760 = vrot.slane %v7739, %v7759
    %v7761 = vlaneseq
    %v7762 = vshrl.u32 %v7761, 7
    %v7763 = vsub.s32 5, %v7762
    %v7764 = vrot.slane %v7739, %v7763
    %v7765 = vlaneseq
    %v7766 = vshrl.u32 %v7765, 7
    %v7767 = vsub.s32 6, %v7766
    %v7768 = vrot.slane %v7739, %v7767
    %v7769 = vlaneseq
    %v7770 = vshrl.u32 %v7769, 7
    %v7771 = vsub.s32 7, %v7770
    %v7772 = vrot.slane %v7739, %v7771
    %v7781 = vsub.f32 %v7577, %v7744
    %v7782 = vsub.f32 %v7578, %v7744
    %v7783 = vsub.f32 %v7579, %v7748
    %v7784 = vsub.f32 %v7580, %v7748
    %v7785 = vsub.f32 %v7581, %v7752
    %v7786 = vsub.f32 %v7582, %v7752
    %v7787 = vsub.f32 %v7583, %v7756
    %v7788 = vsub.f32 %v7584, %v7756
    %v7789 = vsub.f32 %v7585, %v7760
    %v7790 = vsub.f32 %v7586, %v7760
    %v7791 = vsub.f32 %v7587, %v7764
    %v7792 = vsub.f32 %v7588, %v7764
    %v7793 = vsub.f32 %v7589, %v7768
    %v7794 = vsub.f32 %v7590, %v7768
    %v7795 = vsub.f32 %v7591, %v7772
    %v7796 = vsub.f32 %v7592, %v7772
    %v7797 = vmul.f32 %v7781, 1.442695
    %v7798 = vpow.pop %v7797
    %v7799 = vmul.f32 %v7782, 1.442695
    %v7800 = vpow.pop %v7799
    %v7801 = vmul.f32 %v7783, 1.442695
    %v7802 = vpow.pop %v7801
    %v7803 = vmul.f32 %v7784, 1.442695
    %v7804 = vpow.pop %v7803
    %v7805 = vmul.f32 %v7785, 1.442695
    %v7806 = vpow.pop %v7805
    %v7807 = vmul.f32 %v7786, 1.442695
    %v7808 = vpow.pop %v7807
    %v7809 = vmul.f32 %v7787, 1.442695
    %v7810 = vpow.pop %v7809
    %v7811 = vmul.f32 %v7788, 1.442695
    %v7812 = vpow.pop %v7811
    %v7813 = vmul.f32 %v7789, 1.442695
    %v7814 = vpow.pop %v7813
    %v7815 = vmul.f32 %v7790, 1.442695
    %v7816 = vpow.pop %v7815
    %v7817 = vmul.f32 %v7791, 1.442695
    %v7818 = vpow.pop %v7817
    %v7819 = vmul.f32 %v7792, 1.442695
    %v7820 = vpow.pop %v7819
    %v7821 = vmul.f32 %v7793, 1.442695
    %v7822 = vpow.pop %v7821
    %v7823 = vmul.f32 %v7794, 1.442695
    %v7824 = vpow.pop %v7823
    %v7825 = vmul.f32 %v7795, 1.442695
    %v7826 = vpow.pop %v7825
    %v7827 = vmul.f32 %v7796, 1.442695
    %v7828 = vpow.pop %v7827
    %7845 = vset.pattern.permute.xlu0 0
    %7846 = vperm.xlu0 %7845, %v7798
    %v7847 = vpop.permute.xlu0 %7846
    %7848 = vset.pattern.permute.xlu0 0
    %7849 = vperm.xlu0 %7848, %v7800
    %v7850 = vpop.permute.xlu0 %7849
    %7851 = vset.pattern.permute.xlu0 0
    %7852 = vperm.xlu0 %7851, %v7802
    %v7853 = vpop.permute.xlu0 %7852
    %7854 = vset.pattern.permute.xlu0 0
    %7855 = vperm.xlu0 %7854, %v7804
    %v7856 = vpop.permute.xlu0 %7855
    %7857 = vset.pattern.permute.xlu0 0
    %7858 = vperm.xlu0 %7857, %v7806
    %v7859 = vpop.permute.xlu0 %7858
    %7860 = vset.pattern.permute.xlu0 0
    %7861 = vperm.xlu0 %7860, %v7808
    %v7862 = vpop.permute.xlu0 %7861
    %7863 = vset.pattern.permute.xlu0 0
    %7864 = vperm.xlu0 %7863, %v7810
    %v7865 = vpop.permute.xlu0 %7864
    %7866 = vset.pattern.permute.xlu0 0
    %7867 = vperm.xlu0 %7866, %v7812
    %v7868 = vpop.permute.xlu0 %7867
    %7869 = vset.pattern.permute.xlu0 0
    %7870 = vperm.xlu0 %7869, %v7814
    %v7871 = vpop.permute.xlu0 %7870
    %7872 = vset.pattern.permute.xlu0 0
    %7873 = vperm.xlu0 %7872, %v7816
    %v7874 = vpop.permute.xlu0 %7873
    %7875 = vset.pattern.permute.xlu0 0
    %7876 = vperm.xlu0 %7875, %v7818
    %v7877 = vpop.permute.xlu0 %7876
    %7878 = vset.pattern.permute.xlu0 0
    %7879 = vperm.xlu0 %7878, %v7820
    %v7880 = vpop.permute.xlu0 %7879
    %7881 = vset.pattern.permute.xlu0 0
    %7882 = vperm.xlu0 %7881, %v7822
    %v7883 = vpop.permute.xlu0 %7882
    %7884 = vset.pattern.permute.xlu0 0
    %7885 = vperm.xlu0 %7884, %v7824
    %v7886 = vpop.permute.xlu0 %7885
    %7887 = vset.pattern.permute.xlu0 0
    %7888 = vperm.xlu0 %7887, %v7826
    %v7889 = vpop.permute.xlu0 %7888
    %7890 = vset.pattern.permute.xlu0 0
    %7891 = vperm.xlu0 %7890, %v7828
    %v7892 = vpop.permute.xlu0 %7891
    %v7893 = vlaneseq
    %v7894 = vshrl.u32 %v7893, 7
    %v7895 = vsub.s32 %v580, %v7894
    %v7896 = vrot.slane %v7847, %v7895
    %v7897 = vlaneseq
    %v7898 = vshrl.u32 %v7897, 7
    %v7899 = vsub.s32 %v585, %v7898
    %v7900 = vrot.slane %v7850, %v7899
    %v7901 = vsel %vm590, %v7900, %v7896
    %v7902 = vlaneseq
    %v7903 = vshrl.u32 %v7902, 7
    %v7904 = vsub.s32 %v580, %v7903
    %v7905 = vrot.slane %v7853, %v7904
    %v7906 = vlaneseq
    %v7907 = vshrl.u32 %v7906, 7
    %v7908 = vsub.s32 %v585, %v7907
    %v7909 = vrot.slane %v7856, %v7908
    %v7910 = vsel %vm590, %v7909, %v7905
    %v7911 = vlaneseq
    %v7912 = vshrl.u32 %v7911, 7
    %v7913 = vsub.s32 %v580, %v7912
    %v7914 = vrot.slane %v7859, %v7913
    %v7915 = vlaneseq
    %v7916 = vshrl.u32 %v7915, 7
    %v7917 = vsub.s32 %v585, %v7916
    %v7918 = vrot.slane %v7862, %v7917
    %v7919 = vsel %vm590, %v7918, %v7914
    %v7920 = vlaneseq
    %v7921 = vshrl.u32 %v7920, 7
    %v7922 = vsub.s32 %v580, %v7921
    %v7923 = vrot.slane %v7865, %v7922
    %v7924 = vlaneseq
    %v7925 = vshrl.u32 %v7924, 7
    %v7926 = vsub.s32 %v585, %v7925
    %v7927 = vrot.slane %v7868, %v7926
    %v7928 = vsel %vm590, %v7927, %v7923
    %v7929 = vlaneseq
    %v7930 = vshrl.u32 %v7929, 7
    %v7931 = vsub.s32 %v580, %v7930
    %v7932 = vrot.slane %v7871, %v7931
    %v7933 = vlaneseq
    %v7934 = vshrl.u32 %v7933, 7
    %v7935 = vsub.s32 %v585, %v7934
    %v7936 = vrot.slane %v7874, %v7935
    %v7937 = vsel %vm590, %v7936, %v7932
    %v7938 = vlaneseq
    %v7939 = vshrl.u32 %v7938, 7
    %v7940 = vsub.s32 %v580, %v7939
    %v7941 = vrot.slane %v7877, %v7940
    %v7942 = vlaneseq
    %v7943 = vshrl.u32 %v7942, 7
    %v7944 = vsub.s32 %v585, %v7943
    %v7945 = vrot.slane %v7880, %v7944
    %v7946 = vsel %vm590, %v7945, %v7941
    %v7947 = vlaneseq
    %v7948 = vshrl.u32 %v7947, 7
    %v7949 = vsub.s32 %v580, %v7948
    %v7950 = vrot.slane %v7883, %v7949
    %v7951 = vlaneseq
    %v7952 = vshrl.u32 %v7951, 7
    %v7953 = vsub.s32 %v585, %v7952
    %v7954 = vrot.slane %v7886, %v7953
    %v7955 = vsel %vm590, %v7954, %v7950
    %v7956 = vlaneseq
    %v7957 = vshrl.u32 %v7956, 7
    %v7958 = vsub.s32 %v580, %v7957
    %v7959 = vrot.slane %v7889, %v7958
    %v7960 = vlaneseq
    %v7961 = vshrl.u32 %v7960, 7
    %v7962 = vsub.s32 %v585, %v7961
    %v7963 = vrot.slane %v7892, %v7962
    %v7964 = vsel %vm590, %v7963, %v7959
    %v7965 = vsel %vm655, %v7910, %v7901
    %v7966 = vsel %vm657, %v7919, %v7965
    %v7967 = vsel %vm659, %v7928, %v7966
    %v7968 = vsel %vm661, %v7937, %v7967
    %v7969 = vsel %vm663, %v7946, %v7968
    %v7970 = vsel %vm665, %v7955, %v7969
    %v7971 = vsel %vm667, %v7964, %v7970
    %v7973 = vsel %vm670, %v7971, 0.0
    %7974 = vadd.xlane.f32.xlu0 %v7973
    %v7975 = vpop.xlane.xlu0 %7974
    %v7976 = vrcp.pop %v7975
    %v7978 = vlaneseq
    %v7979 = vshrl.u32 %v7978, 7
    %v7980 = vsub.s32 0, %v7979
    %v7981 = vrot.slane %v7976, %v7980
    %v7982 = vlaneseq
    %v7983 = vshrl.u32 %v7982, 7
    %v7984 = vsub.s32 1, %v7983
    %v7985 = vrot.slane %v7976, %v7984
    %v7986 = vlaneseq
    %v7987 = vshrl.u32 %v7986, 7
    %v7988 = vsub.s32 2, %v7987
    %v7989 = vrot.slane %v7976, %v7988
    %v7990 = vlaneseq
    %v7991 = vshrl.u32 %v7990, 7
    %v7992 = vsub.s32 3, %v7991
    %v7993 = vrot.slane %v7976, %v7992
    %v7994 = vlaneseq
    %v7995 = vshrl.u32 %v7994, 7
    %v7996 = vsub.s32 4, %v7995
    %v7997 = vrot.slane %v7976, %v7996
    %v7998 = vlaneseq
    %v7999 = vshrl.u32 %v7998, 7
    %v8000 = vsub.s32 5, %v7999
    %v8001 = vrot.slane %v7976, %v8000
    %v8002 = vlaneseq
    %v8003 = vshrl.u32 %v8002, 7
    %v8004 = vsub.s32 6, %v8003
    %v8005 = vrot.slane %v7976, %v8004
    %v8006 = vlaneseq
    %v8007 = vshrl.u32 %v8006, 7
    %v8008 = vsub.s32 7, %v8007
    %v8009 = vrot.slane %v7976, %v8008
    %v8018 = vmul.f32 %v7798, %v7981
    %v8019 = vmul.f32 %v7800, %v7981
    %v8020 = vmul.f32 %v7802, %v7985
    %v8021 = vmul.f32 %v7804, %v7985
    %v8022 = vmul.f32 %v7806, %v7989
    %v8023 = vmul.f32 %v7808, %v7989
    %v8024 = vmul.f32 %v7810, %v7993
    %v8025 = vmul.f32 %v7812, %v7993
    %v8026 = vmul.f32 %v7814, %v7997
    %v8027 = vmul.f32 %v7816, %v7997
    %v8028 = vmul.f32 %v7818, %v8001
    %v8029 = vmul.f32 %v7820, %v8001
    %v8030 = vmul.f32 %v7822, %v8005
    %v8031 = vmul.f32 %v7824, %v8005
    %v8032 = vmul.f32 %v7826, %v8009
    %v8033 = vmul.f32 %v7828, %v8009
    %8035 = vset.pattern.permute.xlu0 0
    %8036 = vperm.xlu0 %8035, %v8018
    %v8037 = vpop.permute.xlu0 %8036
    %8040 = vset.pattern.permute.xlu0 0
    %8041 = vperm.xlu0 %8040, %v8019
    %v8042 = vpop.permute.xlu0 %8041
    %8045 = vset.pattern.permute.xlu0 0
    %8046 = vperm.xlu0 %8045, %v8020
    %v8047 = vpop.permute.xlu0 %8046
    %8050 = vset.pattern.permute.xlu0 0
    %8051 = vperm.xlu0 %8050, %v8021
    %v8052 = vpop.permute.xlu0 %8051
    %8055 = vset.pattern.permute.xlu0 0
    %8056 = vperm.xlu0 %8055, %v8022
    %v8057 = vpop.permute.xlu0 %8056
    %8060 = vset.pattern.permute.xlu0 0
    %8061 = vperm.xlu0 %8060, %v8023
    %v8062 = vpop.permute.xlu0 %8061
    %8065 = vset.pattern.permute.xlu0 0
    %8066 = vperm.xlu0 %8065, %v8024
    %v8067 = vpop.permute.xlu0 %8066
    %8070 = vset.pattern.permute.xlu0 0
    %8071 = vperm.xlu0 %8070, %v8025
    %v8072 = vpop.permute.xlu0 %8071
    %8075 = vset.pattern.permute.xlu0 0
    %8076 = vperm.xlu0 %8075, %v8026
    %v8077 = vpop.permute.xlu0 %8076
    %8080 = vset.pattern.permute.xlu0 0
    %8081 = vperm.xlu0 %8080, %v8027
    %v8082 = vpop.permute.xlu0 %8081
    %8085 = vset.pattern.permute.xlu0 0
    %8086 = vperm.xlu0 %8085, %v8028
    %v8087 = vpop.permute.xlu0 %8086
    %8090 = vset.pattern.permute.xlu0 0
    %8091 = vperm.xlu0 %8090, %v8029
    %v8092 = vpop.permute.xlu0 %8091
    %8095 = vset.pattern.permute.xlu0 0
    %8096 = vperm.xlu0 %8095, %v8030
    %v8097 = vpop.permute.xlu0 %8096
    %8100 = vset.pattern.permute.xlu0 0
    %8101 = vperm.xlu0 %8100, %v8031
    %v8102 = vpop.permute.xlu0 %8101
    %8105 = vset.pattern.permute.xlu0 0
    %8106 = vperm.xlu0 %8105, %v8032
    %v8107 = vpop.permute.xlu0 %8106
    %8110 = vset.pattern.permute.xlu0 0
    %8111 = vperm.xlu0 %8110, %v8033
    %v8112 = vpop.permute.xlu0 %8111
    %v8114 = vmul.f32 %v8037, %v64
    %v8115 = vmul.f32 %v8042, %v65
    %v8116 = vmul.f32 %v8047, %v66
    %v8117 = vmul.f32 %v8052, %v67
    %v8118 = vmul.f32 %v8057, %v68
    %v8119 = vmul.f32 %v8062, %v69
    %v8120 = vmul.f32 %v8067, %v70
    %v8121 = vmul.f32 %v8072, %v71
    %v8122 = vmul.f32 %v8077, %v72
    %v8123 = vmul.f32 %v8082, %v73
    %v8124 = vmul.f32 %v8087, %v74
    %v8125 = vmul.f32 %v8092, %v75
    %v8126 = vmul.f32 %v8097, %v76
    %v8127 = vmul.f32 %v8102, %v77
    %v8128 = vmul.f32 %v8107, %v78
    %v8129 = vmul.f32 %v8112, %v79
    %v8130 = vsel %vm127, %v8114, 0.0
    %v8131 = vsel %vm348, %v8115, 0.0
    %v8132 = vadd.f32 %v8130, %v8131
    %v8133 = vrot.slane %v8132, 4
    %v8134 = vadd.f32 %v8132, %v8133
    %v8135 = vrot.slane %v8134, 2
    %v8136 = vadd.f32 %v8134, %v8135
    %v8137 = vrot.slane %v8136, 1
    %v8138 = vadd.f32 %v8136, %v8137
    %v8139 = vsel %vm127, %v8116, 0.0
    %v8140 = vsel %vm348, %v8117, 0.0
    %v8141 = vadd.f32 %v8139, %v8140
    %v8142 = vrot.slane %v8141, 4
    %v8143 = vadd.f32 %v8141, %v8142
    %v8144 = vrot.slane %v8143, 2
    %v8145 = vadd.f32 %v8143, %v8144
    %v8146 = vrot.slane %v8145, 1
    %v8147 = vadd.f32 %v8145, %v8146
    %v8148 = vsel %vm127, %v8118, 0.0
    %v8149 = vsel %vm348, %v8119, 0.0
    %v8150 = vadd.f32 %v8148, %v8149
    %v8151 = vrot.slane %v8150, 4
    %v8152 = vadd.f32 %v8150, %v8151
    %v8153 = vrot.slane %v8152, 2
    %v8154 = vadd.f32 %v8152, %v8153
    %v8155 = vrot.slane %v8154, 1
    %v8156 = vadd.f32 %v8154, %v8155
    %v8157 = vsel %vm127, %v8120, 0.0
    %v8158 = vsel %vm348, %v8121, 0.0
    %v8159 = vadd.f32 %v8157, %v8158
    %v8160 = vrot.slane %v8159, 4
    %v8161 = vadd.f32 %v8159, %v8160
    %v8162 = vrot.slane %v8161, 2
    %v8163 = vadd.f32 %v8161, %v8162
    %v8164 = vrot.slane %v8163, 1
    %v8165 = vadd.f32 %v8163, %v8164
    %v8166 = vsel %vm127, %v8122, 0.0
    %v8167 = vsel %vm348, %v8123, 0.0
    %v8168 = vadd.f32 %v8166, %v8167
    %v8169 = vrot.slane %v8168, 4
    %v8170 = vadd.f32 %v8168, %v8169
    %v8171 = vrot.slane %v8170, 2
    %v8172 = vadd.f32 %v8170, %v8171
    %v8173 = vrot.slane %v8172, 1
    %v8174 = vadd.f32 %v8172, %v8173
    %v8175 = vsel %vm127, %v8124, 0.0
    %v8176 = vsel %vm348, %v8125, 0.0
    %v8177 = vadd.f32 %v8175, %v8176
    %v8178 = vrot.slane %v8177, 4
    %v8179 = vadd.f32 %v8177, %v8178
    %v8180 = vrot.slane %v8179, 2
    %v8181 = vadd.f32 %v8179, %v8180
    %v8182 = vrot.slane %v8181, 1
    %v8183 = vadd.f32 %v8181, %v8182
    %v8184 = vsel %vm127, %v8126, 0.0
    %v8185 = vsel %vm348, %v8127, 0.0
    %v8186 = vadd.f32 %v8184, %v8185
    %v8187 = vrot.slane %v8186, 4
    %v8188 = vadd.f32 %v8186, %v8187
    %v8189 = vrot.slane %v8188, 2
    %v8190 = vadd.f32 %v8188, %v8189
    %v8191 = vrot.slane %v8190, 1
    %v8192 = vadd.f32 %v8190, %v8191
    %v8193 = vsel %vm127, %v8128, 0.0
    %v8194 = vsel %vm348, %v8129, 0.0
    %v8195 = vadd.f32 %v8193, %v8194
    %v8196 = vrot.slane %v8195, 4
    %v8197 = vadd.f32 %v8195, %v8196
    %v8198 = vrot.slane %v8197, 2
    %v8199 = vadd.f32 %v8197, %v8198
    %v8200 = vrot.slane %v8199, 1
    %v8201 = vadd.f32 %v8199, %v8200
    %s8202 = scalar_lea.vmem %s0, 40
    %v8203 = vld [vmem:[%s8202] sm:$0xff]
    %v8205 = vsel %vm1137, %v8203, 0
    %8207 = vmatprep.subr.mxu0 0.0
    %8208 = vmatpush1.msra.mxu0 %v106
    %8209 = vmatprep.subr.mxu0 0.0
    %8210 = vmatpush1.msra.mxu0 %v107
    %8211 = vmatprep.subr.mxu0 0.0
    %8212 = vmatpush1.msra.mxu0 0.0
    %8213 = vmatprep.subr.mxu0 0.0
    %8214 = vmatpush1.msra.mxu0 0.0
    %8215 = vmatprep.subr.mxu0 0.0
    %8216 = vmatpush1.msra.mxu0 0.0
    %8217 = vmatprep.subr.mxu0 0.0
    %8218 = vmatpush1.msra.mxu0 0.0
    %8219 = vmatprep.subr.mxu0 0.0
    %8220 = vmatpush1.msra.mxu0 0.0
    %8221 = vmatprep.subr.mxu0 0.0
    %8222 = vmatpush1.msra.mxu0 0.0
    %8223 = vmatprep.subr.mxu0 0.0
    %8224 = vmatpush1.msra.mxu0 0.0
    %8225 = vmatprep.subr.mxu0 0.0
    %8226 = vmatpush1.msra.mxu0 0.0
    %8227 = vmatprep.subr.mxu0 0.0
    %8228 = vmatpush1.msra.mxu0 0.0
    %8229 = vmatprep.subr.mxu0 0.0
    %8230 = vmatpush1.msra.mxu0 0.0
    %8231 = vmatprep.subr.mxu0 0.0
    %8232 = vmatpush1.msra.mxu0 0.0
    %8233 = vmatprep.subr.mxu0 0.0
    %8234 = vmatpush1.msra.mxu0 0.0
    %8235 = vmatprep.subr.mxu0 0.0
    %8236 = vmatpush1.msra.mxu0 0.0
    %8237 = vmatprep.subr.mxu0 0.0
    %8238 = vmatpush1.msra.mxu0 0.0
    %8239 = vmatprep.subr.mxu0 0.0
    %8240 = vmatpush1.msra.mxu0 0.0
    %8241 = vmatprep.subr.mxu0 0.0
    %8242 = vmatpush1.msra.mxu0 0.0
    %8243 = vmatprep.subr.mxu0 0.0
    %8244 = vmatpush1.msra.mxu0 0.0
    %8245 = vmatprep.subr.mxu0 0.0
    %8246 = vmatpush1.msra.mxu0 0.0
    %8247 = vmatprep.subr.mxu0 0.0
    %8248 = vmatpush1.msra.mxu0 0.0
    %8249 = vmatprep.subr.mxu0 0.0
    %8250 = vmatpush1.msra.mxu0 0.0
    %8251 = vmatprep.subr.mxu0 0.0
    %8252 = vmatpush1.msra.mxu0 0.0
    %8253 = vmatprep.subr.mxu0 0.0
    %8254 = vmatpush1.msra.mxu0 0.0
    %8255 = vmatprep.subr.mxu0 0.0
    %8256 = vmatpush1.msra.mxu0 0.0
    %8257 = vmatprep.subr.mxu0 0.0
    %8258 = vmatpush1.msra.mxu0 0.0
    %8259 = vmatprep.subr.mxu0 0.0
    %8260 = vmatpush1.msra.mxu0 0.0
    %8261 = vmatprep.subr.mxu0 0.0
    %8262 = vmatpush1.msra.mxu0 0.0
    %8263 = vmatprep.subr.mxu0 0.0
    %8264 = vmatpush1.msra.mxu0 0.0
    %8265 = vmatprep.subr.mxu0 0.0
    %8266 = vmatpush1.msra.mxu0 0.0
    %8267 = vmatprep.subr.mxu0 0.0
    %8268 = vmatpush1.msra.mxu0 0.0
    %8269 = vmatprep.subr.mxu0 0.0
    %8270 = vmatpush1.msra.mxu0 0.0
    %8271 = vmatprep.mubr.f32.mxu0 0.0
    %8272 = vmatmul.mubr.f32.gmra.mrb[0].mxu0 %v8205
    %v8273 = vpop.f32.mrb[0].mxu0
    %v8274 = vadd.f32 0.0, %v8273
    %v8275 = vpop.f32.mrb[0].mxu0
    %8276 = vdwg.mxu0
    %v8285 = vsel %vm655, %v8147, %v8138
    %v8286 = vsel %vm657, %v8156, %v8285
    %v8287 = vsel %vm659, %v8165, %v8286
    %v8288 = vsel %vm661, %v8174, %v8287
    %v8289 = vsel %vm663, %v8183, %v8288
    %v8290 = vsel %vm665, %v8192, %v8289
    %v8291 = vsel %vm667, %v8201, %v8290
    %v8292 = vsel %vm127, %v8291, 0
    %8294 = vmatprep.subr.mxu0 0.0
    %8295 = vmatpush1.msra.mxu0 %v102
    %8296 = vmatprep.subr.mxu0 0.0
    %8297 = vmatpush1.msra.mxu0 %v103
    %8298 = vmatprep.subr.mxu0 0.0
    %8299 = vmatpush1.msra.mxu0 %v104
    %8300 = vmatprep.subr.mxu0 0.0
    %8301 = vmatpush1.msra.mxu0 %v105
    %8302 = vmatprep.subr.mxu0 0.0
    %8303 = vmatpush1.msra.mxu0 0.0
    %8304 = vmatprep.subr.mxu0 0.0
    %8305 = vmatpush1.msra.mxu0 0.0
    %8306 = vmatprep.subr.mxu0 0.0
    %8307 = vmatpush1.msra.mxu0 0.0
    %8308 = vmatprep.subr.mxu0 0.0
    %8309 = vmatpush1.msra.mxu0 0.0
    %8310 = vmatprep.subr.mxu0 0.0
    %8311 = vmatpush1.msra.mxu0 0.0
    %8312 = vmatprep.subr.mxu0 0.0
    %8313 = vmatpush1.msra.mxu0 0.0
    %8314 = vmatprep.subr.mxu0 0.0
    %8315 = vmatpush1.msra.mxu0 0.0
    %8316 = vmatprep.subr.mxu0 0.0
    %8317 = vmatpush1.msra.mxu0 0.0
    %8318 = vmatprep.subr.mxu0 0.0
    %8319 = vmatpush1.msra.mxu0 0.0
    %8320 = vmatprep.subr.mxu0 0.0
    %8321 = vmatpush1.msra.mxu0 0.0
    %8322 = vmatprep.subr.mxu0 0.0
    %8323 = vmatpush1.msra.mxu0 0.0
    %8324 = vmatprep.subr.mxu0 0.0
    %8325 = vmatpush1.msra.mxu0 0.0
    %8326 = vmatprep.subr.mxu0 0.0
    %8327 = vmatpush1.msra.mxu0 0.0
    %8328 = vmatprep.subr.mxu0 0.0
    %8329 = vmatpush1.msra.mxu0 0.0
    %8330 = vmatprep.subr.mxu0 0.0
    %8331 = vmatpush1.msra.mxu0 0.0
    %8332 = vmatprep.subr.mxu0 0.0
    %8333 = vmatpush1.msra.mxu0 0.0
    %8334 = vmatprep.subr.mxu0 0.0
    %8335 = vmatpush1.msra.mxu0 0.0
    %8336 = vmatprep.subr.mxu0 0.0
    %8337 = vmatpush1.msra.mxu0 0.0
    %8338 = vmatprep.subr.mxu0 0.0
    %8339 = vmatpush1.msra.mxu0 0.0
    %8340 = vmatprep.subr.mxu0 0.0
    %8341 = vmatpush1.msra.mxu0 0.0
    %8342 = vmatprep.subr.mxu0 0.0
    %8343 = vmatpush1.msra.mxu0 0.0
    %8344 = vmatprep.subr.mxu0 0.0
    %8345 = vmatpush1.msra.mxu0 0.0
    %8346 = vmatprep.subr.mxu0 0.0
    %8347 = vmatpush1.msra.mxu0 0.0
    %8348 = vmatprep.subr.mxu0 0.0
    %8349 = vmatpush1.msra.mxu0 0.0
    %8350 = vmatprep.subr.mxu0 0.0
    %8351 = vmatpush1.msra.mxu0 0.0
    %8352 = vmatprep.subr.mxu0 0.0
    %8353 = vmatpush1.msra.mxu0 0.0
    %8354 = vmatprep.subr.mxu0 0.0
    %8355 = vmatpush1.msra.mxu0 0.0
    %8356 = vmatprep.subr.mxu0 0.0
    %8357 = vmatpush1.msra.mxu0 0.0
    %8358 = vmatprep.mubr.f32.mxu0 0.0
    %8359 = vmatmul.mubr.f32.gmra.mrb[0].mxu0 %v8292
    %v8360 = vpop.f32.mrb[0].mxu0
    %v8361 = vadd.f32 %v8274, %v8360
    %v8362 = vpop.f32.mrb[0].mxu0
    %8363 = vdwg.mxu0
    %v8364 = vadd.f32 %v8361, %v1302
    %8365 = vmatprep.subr.mxu0 0.0
    %8366 = vmatpush1.msra.mxu0 %v108
    %8367 = vmatprep.subr.mxu0 0.0
    %8368 = vmatpush1.msra.mxu0 %v109
    %8369 = vmatprep.subr.mxu0 0.0
    %8370 = vmatpush1.msra.mxu0 %v110
    %8371 = vmatprep.subr.mxu0 0.0
    %8372 = vmatpush1.msra.mxu0 %v111
    %8373 = vmatprep.subr.mxu0 0.0
    %8374 = vmatpush1.msra.mxu0 0.0
    %8375 = vmatprep.subr.mxu0 0.0
    %8376 = vmatpush1.msra.mxu0 0.0
    %8377 = vmatprep.subr.mxu0 0.0
    %8378 = vmatpush1.msra.mxu0 0.0
    %8379 = vmatprep.subr.mxu0 0.0
    %8380 = vmatpush1.msra.mxu0 0.0
    %8381 = vmatprep.subr.mxu0 0.0
    %8382 = vmatpush1.msra.mxu0 0.0
    %8383 = vmatprep.subr.mxu0 0.0
    %8384 = vmatpush1.msra.mxu0 0.0
    %8385 = vmatprep.subr.mxu0 0.0
    %8386 = vmatpush1.msra.mxu0 0.0
    %8387 = vmatprep.subr.mxu0 0.0
    %8388 = vmatpush1.msra.mxu0 0.0
    %8389 = vmatprep.subr.mxu0 0.0
    %8390 = vmatpush1.msra.mxu0 0.0
    %8391 = vmatprep.subr.mxu0 0.0
    %8392 = vmatpush1.msra.mxu0 0.0
    %8393 = vmatprep.subr.mxu0 0.0
    %8394 = vmatpush1.msra.mxu0 0.0
    %8395 = vmatprep.subr.mxu0 0.0
    %8396 = vmatpush1.msra.mxu0 0.0
    %8397 = vmatprep.subr.mxu0 0.0
    %8398 = vmatpush1.msra.mxu0 0.0
    %8399 = vmatprep.subr.mxu0 0.0
    %8400 = vmatpush1.msra.mxu0 0.0
    %8401 = vmatprep.subr.mxu0 0.0
    %8402 = vmatpush1.msra.mxu0 0.0
    %8403 = vmatprep.subr.mxu0 0.0
    %8404 = vmatpush1.msra.mxu0 0.0
    %8405 = vmatprep.subr.mxu0 0.0
    %8406 = vmatpush1.msra.mxu0 0.0
    %8407 = vmatprep.subr.mxu0 0.0
    %8408 = vmatpush1.msra.mxu0 0.0
    %8409 = vmatprep.subr.mxu0 0.0
    %8410 = vmatpush1.msra.mxu0 0.0
    %8411 = vmatprep.subr.mxu0 0.0
    %8412 = vmatpush1.msra.mxu0 0.0
    %8413 = vmatprep.subr.mxu0 0.0
    %8414 = vmatpush1.msra.mxu0 0.0
    %8415 = vmatprep.subr.mxu0 0.0
    %8416 = vmatpush1.msra.mxu0 0.0
    %8417 = vmatprep.subr.mxu0 0.0
    %8418 = vmatpush1.msra.mxu0 0.0
    %8419 = vmatprep.subr.mxu0 0.0
    %8420 = vmatpush1.msra.mxu0 0.0
    %8421 = vmatprep.subr.mxu0 0.0
    %8422 = vmatpush1.msra.mxu0 0.0
    %8423 = vmatprep.subr.mxu0 0.0
    %8424 = vmatpush1.msra.mxu0 0.0
    %8425 = vmatprep.subr.mxu0 0.0
    %8426 = vmatpush1.msra.mxu0 0.0
    %8427 = vmatprep.subr.mxu0 0.0
    %8428 = vmatpush1.msra.mxu0 0.0
    %8429 = vmatprep.mubr.f32.mxu0 0.0
    %8430 = vmatmul.mubr.f32.gmra.mrb[0].mxu0 %v7060
    %v8431 = vpop.f32.mrb[0].mxu0
    %v8432 = vadd.f32 0.0, %v8431
    %v8433 = vpop.f32.mrb[0].mxu0
    %8434 = vdwg.mxu0
    %v8435 = vadd.f32 %v8364, %v8432
    %v8436 = vxor.u32 %v8435, 2147483648
    %v8437 = vmul.f32 %v8436, 1.442695
    %v8438 = vpow.pop %v8437
    %v8439 = vadd.f32 %v8438, 1.0
    %v8440 = vrcp.pop %v8439
    %v8441 = vmul.f32 1.0, %v8440
    %v8442 = vadd.f32 %v8432, %v1391
    %8444 = vrot.lane.b32.xlu0 %v8442, 64
    %v8445 = vpop.permute.xlu0 %8444
    %v8447 = vmul.f32 %v8441, %v8445
    %8449 = vrot.lane.b32.xlu0 %v8447, 64
    %v8450 = vpop.permute.xlu0 %8449
    %v8452 = vadd.f32 %v8364, %v8450
    %v8453 = vtanh.pop %v8452
    %v8454 = vsub.f32 1.0, %v8441
    %8456 = vrot.lane.b32.xlu0 %v8453, 96
    %v8457 = vpop.permute.xlu0 %8456
    %v8459 = vmul.f32 %v8454, %v8457
    %v8460 = vmul.f32 %v8441, %v7056
    %v8461 = vadd.f32 %v8459, %v8460
    %8463 = vrot.lane.b32.xlu0 %v8461, 96
    %v8464 = vpop.permute.xlu0 %8463
    %v8465 = vsel %vm127, %v8464, 0
    %8467 = vmatprep.subr.mxu0 0.0
    %8468 = vmatpush1.msra.mxu0 %v114
    %8469 = vmatprep.subr.mxu0 0.0
    %8470 = vmatpush1.msra.mxu0 %v115
    %8471 = vmatprep.subr.mxu0 0.0
    %8472 = vmatpush1.msra.mxu0 %v116
    %8473 = vmatprep.subr.mxu0 0.0
    %8474 = vmatpush1.msra.mxu0 %v117
    %8475 = vmatprep.subr.mxu0 0.0
    %8476 = vmatpush1.msra.mxu0 0.0
    %8477 = vmatprep.subr.mxu0 0.0
    %8478 = vmatpush1.msra.mxu0 0.0
    %8479 = vmatprep.subr.mxu0 0.0
    %8480 = vmatpush1.msra.mxu0 0.0
    %8481 = vmatprep.subr.mxu0 0.0
    %8482 = vmatpush1.msra.mxu0 0.0
    %8483 = vmatprep.subr.mxu0 0.0
    %8484 = vmatpush1.msra.mxu0 0.0
    %8485 = vmatprep.subr.mxu0 0.0
    %8486 = vmatpush1.msra.mxu0 0.0
    %8487 = vmatprep.subr.mxu0 0.0
    %8488 = vmatpush1.msra.mxu0 0.0
    %8489 = vmatprep.subr.mxu0 0.0
    %8490 = vmatpush1.msra.mxu0 0.0
    %8491 = vmatprep.subr.mxu0 0.0
    %8492 = vmatpush1.msra.mxu0 0.0
    %8493 = vmatprep.subr.mxu0 0.0
    %8494 = vmatpush1.msra.mxu0 0.0
    %8495 = vmatprep.subr.mxu0 0.0
    %8496 = vmatpush1.msra.mxu0 0.0
    %8497 = vmatprep.subr.mxu0 0.0
    %8498 = vmatpush1.msra.mxu0 0.0
    %8499 = vmatprep.subr.mxu0 0.0
    %8500 = vmatpush1.msra.mxu0 0.0
    %8501 = vmatprep.subr.mxu0 0.0
    %8502 = vmatpush1.msra.mxu0 0.0
    %8503 = vmatprep.subr.mxu0 0.0
    %8504 = vmatpush1.msra.mxu0 0.0
    %8505 = vmatprep.subr.mxu0 0.0
    %8506 = vmatpush1.msra.mxu0 0.0
    %8507 = vmatprep.subr.mxu0 0.0
    %8508 = vmatpush1.msra.mxu0 0.0
    %8509 = vmatprep.subr.mxu0 0.0
    %8510 = vmatpush1.msra.mxu0 0.0
    %8511 = vmatprep.subr.mxu0 0.0
    %8512 = vmatpush1.msra.mxu0 0.0
    %8513 = vmatprep.subr.mxu0 0.0
    %8514 = vmatpush1.msra.mxu0 0.0
    %8515 = vmatprep.subr.mxu0 0.0
    %8516 = vmatpush1.msra.mxu0 0.0
    %8517 = vmatprep.subr.mxu0 0.0
    %8518 = vmatpush1.msra.mxu0 0.0
    %8519 = vmatprep.subr.mxu0 0.0
    %8520 = vmatpush1.msra.mxu0 0.0
    %8521 = vmatprep.subr.mxu0 0.0
    %8522 = vmatpush1.msra.mxu0 0.0
    %8523 = vmatprep.subr.mxu0 0.0
    %8524 = vmatpush1.msra.mxu0 0.0
    %8525 = vmatprep.subr.mxu0 0.0
    %8526 = vmatpush1.msra.mxu0 0.0
    %8527 = vmatprep.subr.mxu0 0.0
    %8528 = vmatpush1.msra.mxu0 0.0
    %8529 = vmatprep.subr.mxu0 0.0
    %8530 = vmatpush1.msra.mxu0 0.0
    %8531 = vmatprep.mubr.f32.mxu0 0.0
    %8532 = vmatmul.mubr.f32.gmra.mrb[0].mxu0 %v8465
    %v8533 = vpop.f32.mrb[0].mxu0
    %v8534 = vadd.f32 %v1420, %v8533
    %v8535 = vpop.f32.mrb[0].mxu0
    %8536 = vdwg.mxu0
    %8537 = vrot.lane.b32.xlu0 %v7388, 96
    %v8538 = vpop.permute.xlu0 %8537
    %v8540 = vadd.f32 %v8534, %v8538
    %v8541 = vxor.u32 %v8540, 2147483648
    %v8542 = vmul.f32 %v8541, 1.442695
    %v8543 = vpow.pop %v8542
    %v8544 = vadd.f32 %v8543, 1.0
    %v8545 = vrcp.pop %v8544
    %v8546 = vmul.f32 1.0, %v8545
    %v8547 = vadd.f32 %v7388, %v1513
    %8549 = vrot.lane.b32.xlu0 %v8547, 32
    %v8550 = vpop.permute.xlu0 %8549
    %v8552 = vmul.f32 %v8546, %v8550
    %8554 = vrot.lane.b32.xlu0 %v8552, 64
    %v8555 = vpop.permute.xlu0 %8554
    %v8557 = vadd.f32 %v8534, %v8555
    %v8558 = vtanh.pop %v8557
    %v8559 = vsub.f32 1.0, %v8546
    %8561 = vrot.lane.b32.xlu0 %v8558, 96
    %v8562 = vpop.permute.xlu0 %8561
    %v8564 = vmul.f32 %v8559, %v8562
    %v8565 = vmul.f32 %v8546, %v7161
    %v8566 = vadd.f32 %v8564, %v8565
    %8568 = vrot.lane.b32.xlu0 %v8566, 96
    %v8569 = vpop.permute.xlu0 %8568
    %v8570 = vsel %vm127, %v8569, 0
    %8572 = vmatprep.subr.mxu0 0.0
    %8573 = vmatpush1.msra.mxu0 %v120
    %8574 = vmatprep.subr.mxu0 0.0
    %8575 = vmatpush1.msra.mxu0 %v121
    %8576 = vmatprep.subr.mxu0 0.0
    %8577 = vmatpush1.msra.mxu0 %v122
    %8578 = vmatprep.subr.mxu0 0.0
    %8579 = vmatpush1.msra.mxu0 %v123
    %8580 = vmatprep.subr.mxu0 0.0
    %8581 = vmatpush1.msra.mxu0 0.0
    %8582 = vmatprep.subr.mxu0 0.0
    %8583 = vmatpush1.msra.mxu0 0.0
    %8584 = vmatprep.subr.mxu0 0.0
    %8585 = vmatpush1.msra.mxu0 0.0
    %8586 = vmatprep.subr.mxu0 0.0
    %8587 = vmatpush1.msra.mxu0 0.0
    %8588 = vmatprep.subr.mxu0 0.0
    %8589 = vmatpush1.msra.mxu0 0.0
    %8590 = vmatprep.subr.mxu0 0.0
    %8591 = vmatpush1.msra.mxu0 0.0
    %8592 = vmatprep.subr.mxu0 0.0
    %8593 = vmatpush1.msra.mxu0 0.0
    %8594 = vmatprep.subr.mxu0 0.0
    %8595 = vmatpush1.msra.mxu0 0.0
    %8596 = vmatprep.subr.mxu0 0.0
    %8597 = vmatpush1.msra.mxu0 0.0
    %8598 = vmatprep.subr.mxu0 0.0
    %8599 = vmatpush1.msra.mxu0 0.0
    %8600 = vmatprep.subr.mxu0 0.0
    %8601 = vmatpush1.msra.mxu0 0.0
    %8602 = vmatprep.subr.mxu0 0.0
    %8603 = vmatpush1.msra.mxu0 0.0
    %8604 = vmatprep.subr.mxu0 0.0
    %8605 = vmatpush1.msra.mxu0 0.0
    %8606 = vmatprep.subr.mxu0 0.0
    %8607 = vmatpush1.msra.mxu0 0.0
    %8608 = vmatprep.subr.mxu0 0.0
    %8609 = vmatpush1.msra.mxu0 0.0
    %8610 = vmatprep.subr.mxu0 0.0
    %8611 = vmatpush1.msra.mxu0 0.0
    %8612 = vmatprep.subr.mxu0 0.0
    %8613 = vmatpush1.msra.mxu0 0.0
    %8614 = vmatprep.subr.mxu0 0.0
    %8615 = vmatpush1.msra.mxu0 0.0
    %8616 = vmatprep.subr.mxu0 0.0
    %8617 = vmatpush1.msra.mxu0 0.0
    %8618 = vmatprep.subr.mxu0 0.0
    %8619 = vmatpush1.msra.mxu0 0.0
    %8620 = vmatprep.subr.mxu0 0.0
    %8621 = vmatpush1.msra.mxu0 0.0
    %8622 = vmatprep.subr.mxu0 0.0
    %8623 = vmatpush1.msra.mxu0 0.0
    %8624 = vmatprep.subr.mxu0 0.0
    %8625 = vmatpush1.msra.mxu0 0.0
    %8626 = vmatprep.subr.mxu0 0.0
    %8627 = vmatpush1.msra.mxu0 0.0
    %8628 = vmatprep.subr.mxu0 0.0
    %8629 = vmatpush1.msra.mxu0 0.0
    %8630 = vmatprep.subr.mxu0 0.0
    %8631 = vmatpush1.msra.mxu0 0.0
    %8632 = vmatprep.subr.mxu0 0.0
    %8633 = vmatpush1.msra.mxu0 0.0
    %8634 = vmatprep.subr.mxu0 0.0
    %8635 = vmatpush1.msra.mxu0 0.0
    %8636 = vmatprep.mubr.f32.mxu0 0.0
    %8637 = vmatmul.mubr.f32.gmra.mrb[0].mxu0 %v8570
    %v8638 = vpop.f32.mrb[0].mxu0
    %v8639 = vadd.f32 %v1542, %v8638
    %v8640 = vpop.f32.mrb[0].mxu0
    %8641 = vdwg.mxu0
    %s8642 = scalar_lea.vmem [#allocation2], 40
    %8643 = vst.msk [vmem:[%s8642] sm:$0xff] %vm127, %v8639
    %v8644 = vlaneseq
    %v8645 = vshrl.u32 %v8644, 7
    %v8646 = vsub.s32 %v580, %v8645
    %v8647 = vrot.slane %v8037, %v8646
    %v8648 = vlaneseq
    %v8649 = vshrl.u32 %v8648, 7
    %v8650 = vsub.s32 %v585, %v8649
    %v8651 = vrot.slane %v8042, %v8650
    %v8652 = vsel %vm590, %v8651, %v8647
    %v8653 = vlaneseq
    %v8654 = vshrl.u32 %v8653, 7
    %v8655 = vsub.s32 %v580, %v8654
    %v8656 = vrot.slane %v8047, %v8655
    %v8657 = vlaneseq
    %v8658 = vshrl.u32 %v8657, 7
    %v8659 = vsub.s32 %v585, %v8658
    %v8660 = vrot.slane %v8052, %v8659
    %v8661 = vsel %vm590, %v8660, %v8656
    %v8662 = vlaneseq
    %v8663 = vshrl.u32 %v8662, 7
    %v8664 = vsub.s32 %v580, %v8663
    %v8665 = vrot.slane %v8057, %v8664
    %v8666 = vlaneseq
    %v8667 = vshrl.u32 %v8666, 7
    %v8668 = vsub.s32 %v585, %v8667
    %v8669 = vrot.slane %v8062, %v8668
    %v8670 = vsel %vm590, %v8669, %v8665
    %v8671 = vlaneseq
    %v8672 = vshrl.u32 %v8671, 7
    %v8673 = vsub.s32 %v580, %v8672
    %v8674 = vrot.slane %v8067, %v8673
    %v8675 = vlaneseq
    %v8676 = vshrl.u32 %v8675, 7
    %v8677 = vsub.s32 %v585, %v8676
    %v8678 = vrot.slane %v8072, %v8677
    %v8679 = vsel %vm590, %v8678, %v8674
    %v8680 = vlaneseq
    %v8681 = vshrl.u32 %v8680, 7
    %v8682 = vsub.s32 %v580, %v8681
    %v8683 = vrot.slane %v8077, %v8682
    %v8684 = vlaneseq
    %v8685 = vshrl.u32 %v8684, 7
    %v8686 = vsub.s32 %v585, %v8685
    %v8687 = vrot.slane %v8082, %v8686
    %v8688 = vsel %vm590, %v8687, %v8683
    %v8689 = vlaneseq
    %v8690 = vshrl.u32 %v8689, 7
    %v8691 = vsub.s32 %v580, %v8690
    %v8692 = vrot.slane %v8087, %v8691
    %v8693 = vlaneseq
    %v8694 = vshrl.u32 %v8693, 7
    %v8695 = vsub.s32 %v585, %v8694
    %v8696 = vrot.slane %v8092, %v8695
    %v8697 = vsel %vm590, %v8696, %v8692
    %v8698 = vlaneseq
    %v8699 = vshrl.u32 %v8698, 7
    %v8700 = vsub.s32 %v580, %v8699
    %v8701 = vrot.slane %v8097, %v8700
    %v8702 = vlaneseq
    %v8703 = vshrl.u32 %v8702, 7
    %v8704 = vsub.s32 %v585, %v8703
    %v8705 = vrot.slane %v8102, %v8704
    %v8706 = vsel %vm590, %v8705, %v8701
    %v8707 = vlaneseq
    %v8708 = vshrl.u32 %v8707, 7
    %v8709 = vsub.s32 %v580, %v8708
    %v8710 = vrot.slane %v8107, %v8709
    %v8711 = vlaneseq
    %v8712 = vshrl.u32 %v8711, 7
    %v8713 = vsub.s32 %v585, %v8712
    %v8714 = vrot.slane %v8112, %v8713
    %v8715 = vsel %vm590, %v8714, %v8710
    %v8716 = vsel %vm655, %v8661, %v8652
    %v8717 = vsel %vm657, %v8670, %v8716
    %v8718 = vsel %vm659, %v8679, %v8717
    %v8719 = vsel %vm661, %v8688, %v8718
    %v8720 = vsel %vm663, %v8697, %v8719
    %v8721 = vsel %vm665, %v8706, %v8720
    %v8722 = vsel %vm667, %v8715, %v8721
    %s8724 = scalar_lea.vmem [#allocation4], 40
    %8725 = vst.msk [vmem:[%s8724] sm:$0xff] %vm670, %v8722
    %8727 = vst.msk [vmem:[#allocation6] sm:$0xff] %vm127, %v8464
    %s8729 = scalar_lea.vmem [#allocation6], 8
    %8730 = vst.msk [vmem:[%s8729] sm:$0xff] %vm127, %v8569
    // Predicated region
    $region74: #{tpu_custom_call.1} parent=1 // pred_check
      _
    $region75: #{tpu_custom_call.1} parent=1 // pred_check_branch
      %8732 = sbr.rel (0) target = $region77
    $region76: #{tpu_custom_call.1} parent=1 // pred_region
      %s8734 = ssub.s32 768, 768
      %8735 = vsyncadd [#allocation3], %s8734
      %s8736 = sshll.u32 [#allocation2], 4
      %s8737 = int_to_ptr.vmem [resolvable:$true] %s8736
      %8742 = dma.vmem_to_hbm [thread:$0]  %s8737, 768, %s18, [#allocation3], 128, 128, 8
    $region77: #{tpu_custom_call.1} parent=1 // pred_fallthru
      _
    // Predicated region
    $region78: #{tpu_custom_call.1} parent=1 // pred_check
      _
    $region79: #{tpu_custom_call.1} parent=1 // pred_check_branch
      %8744 = sbr.rel (0) target = $region81
    $region80: #{tpu_custom_call.1} parent=1 // pred_region
      %s8746 = ssub.s32 768, 768
      %8747 = vsyncadd [#allocation5], %s8746
      %s8748 = sshll.u32 [#allocation4], 4
      %s8749 = int_to_ptr.vmem [resolvable:$true] %s8748
      %8754 = dma.vmem_to_hbm [thread:$0]  %s8749, 768, %s19, [#allocation5], 128, 128, 8
    $region81: #{tpu_custom_call.1} parent=1 // pred_fallthru
      _
    // Predicated region
    $region82: #{tpu_custom_call.1} parent=1 // pred_check
      _
    $region83: #{tpu_custom_call.1} parent=1 // pred_check_branch
      %8756 = sbr.rel (0) target = $region85
    $region84: #{tpu_custom_call.1} parent=1 // pred_region
      %s8758 = ssub.s32 256, 256
      %8759 = vsyncadd [#allocation5], %s8758
      %s8760 = sshll.u32 [#allocation6], 4
      %s8761 = int_to_ptr.vmem [resolvable:$true] %s8760
      %8766 = dma.vmem_to_hbm [thread:$0]  %s8761, 256, %s20, [#allocation5], 128, 128, 8
    $region85: #{tpu_custom_call.1} parent=1 // pred_fallthru
      _
    // Predicated region
    $region86: #{tpu_custom_call.1} parent=1 // pred_check
      _
    $region87: #{tpu_custom_call.1} parent=1 // pred_check_branch
      %8768 = sbr.rel (0) target = $region89
    $region88: #{tpu_custom_call.1} parent=1 // pred_region
      %8769 = dma.done [#allocation3], 768
    $region89: #{tpu_custom_call.1} parent=1 // pred_fallthru
      _
    // Predicated region
    $region90: #{tpu_custom_call.1} parent=1 // pred_check
      _
    $region91: #{tpu_custom_call.1} parent=1 // pred_check_branch
      %8771 = sbr.rel (0) target = $region93
    $region92: #{tpu_custom_call.1} parent=1 // pred_region
      %8772 = dma.done [#allocation5], 768
    $region93: #{tpu_custom_call.1} parent=1 // pred_fallthru
      _
    // Predicated region
    $region94: #{tpu_custom_call.1} parent=1 // pred_check
      _
    $region95: #{tpu_custom_call.1} parent=1 // pred_check_branch
      %8774 = sbr.rel (0) target = $region97
    $region96: #{tpu_custom_call.1} parent=1 // pred_region
      %8775 = dma.done [#allocation5], 256
    $region97: #{tpu_custom_call.1} parent=1 // pred_fallthru
      _
    %8776 = vsyncpa [#allocation3], 1
    %8777 = vsyncpa [#allocation5], 1

</llo_original>
